<compile_context>
chip_gen: v6e
topology: v6e:2x2x1
jax: 0.10.0
libtpu: 0.0.40
codegen_flags: <defaults>
</compile_context>

<pallas_src>
import jax
import jax.numpy as jnp
from jax.experimental import pallas as pl
from jax.experimental.pallas import tpu as pltpu

NEG_SLOPE = 0.1
BN_EPS = 1e-3
LANE = 128          # channel dims padded to a multiple of the 128-lane vreg
ROW_TILE = 256      # rows (of N*H*W) per grid step; raise toward 512-1024 on
                    # v6e for large M, keep smaller on v7x (64 MiB VMEM)
DOT_DTYPE = jnp.float32   # set to jnp.bfloat16 on v6e/v7x for ~2x MXU rate and
                          # half HBM traffic; BN stats / epilogue stay f32

_CPARAMS = pltpu.CompilerParams(
    dimension_semantics=("parallel",),        # megacore-shard the row/batch axis
    vmem_limit_bytes=48 * 1024 * 1024,        # > default scoped limit, < v7x phys
)


# ----------------------------- small helpers ------------------------------- #

def _ceil_to(x, m):
    return ((x + m - 1) // m) * m


def _pick_tm(m):
    """Largest row tile <= ROW_TILE that divides m (keeps stats exact)."""
    for tm in (ROW_TILE, 256, 128, 64, 32, 16, 8):
        if tm <= m and m % tm == 0:
            return tm
    # TODO(synk): masked partial row tiles for row counts not a multiple of 8.
    return m


def _pad2(w, rows, cols):
    return jnp.pad(w, ((0, rows - w.shape[0]), (0, cols - w.shape[1])))


def _lrelu(y):
    return jnp.where(y > 0, y, NEG_SLOPE * y)


# ------------------------------- kernels ----------------------------------- #

def _mm_stats_kernel(x_ref, w_ref, y_ref, s_ref, q_ref):
    # 1x1 conv as matmul (conv bias dropped: cancels under training-mode BN).
    y = jnp.dot(x_ref[...], w_ref[...], preferred_element_type=jnp.float32)
    y_ref[...] = y
    # single pass: per-channel sum and sum-of-squares for this row tile
    s_ref[...] = jnp.broadcast_to(jnp.sum(y, axis=0, keepdims=True), s_ref.shape)
    q_ref[...] = jnp.broadcast_to(jnp.sum(y * y, axis=0, keepdims=True), q_ref.shape)


def _norm_lrelu_kernel(y_ref, scale_ref, shift_ref, o_ref):
    # folded BN epilogue: one FMA + LeakyReLU
    h = y_ref[...] * scale_ref[...] + shift_ref[...]
    o_ref[...] = _lrelu(h)


def _norm_res_lrelu_kernel(y_ref, scale_ref, shift_ref, res_ref, o_ref):
    h = y_ref[...] * scale_ref[...] + shift_ref[...] + res_ref[...]
    o_ref[...] = _lrelu(h)


def _norm_lrelu_mm_stats_kernel(y_ref, scale_ref, shift_ref, w_ref,
                                o_ref, s_ref, q_ref):
    # bn2-normalize + LeakyReLU fused with the conv3 (1x1) matmul + bn3 stats.
    h = _lrelu(y_ref[...] * scale_ref[...] + shift_ref[...])
    y = jnp.dot(h.astype(DOT_DTYPE), w_ref[...],
                preferred_element_type=jnp.float32)
    o_ref[...] = y
    s_ref[...] = jnp.broadcast_to(jnp.sum(y, axis=0, keepdims=True), s_ref.shape)
    q_ref[...] = jnp.broadcast_to(jnp.sum(y * y, axis=0, keepdims=True), q_ref.shape)


def _conv3x3_stats_kernel(xp_ref, w_ref, y_ref, s_ref, q_ref):
    # 3x3 "same" conv on one zero-padded image as 9 accumulated MXU matmuls
    # over statically shifted windows (no im2col slab through HBM).
    Hp, Wp, C = xp_ref.shape[1], xp_ref.shape[2], xp_ref.shape[3]
    H, W = Hp - 2, Wp - 2
    cout = w_ref.shape[2]
    acc = jnp.zeros((H * W, cout), jnp.float32)
    for kh in range(3):
        for kw in range(3):
            patch = xp_ref[0, kh:kh + H, kw:kw + W, :].reshape(H * W, C)
            acc = acc + jnp.dot(patch, w_ref[kh * 3 + kw],
                                preferred_element_type=jnp.float32)
    y_ref[...] = acc[None]
    s_ref[...] = jnp.broadcast_to(jnp.sum(acc, axis=0, keepdims=True), s_ref.shape)
    q_ref[...] = jnp.broadcast_to(jnp.sum(acc * acc, axis=0, keepdims=True), q_ref.shape)
    # TODO(synk): for very large images, tile rows with a +/-1-row halo instead
    # of one whole padded image per grid step.


# ------------------------------ wrappers ------------------------------------ #

def matmul_stats(x2d, w):
    M, K = x2d.shape
    C = w.shape[1]
    tm = _pick_tm(M)
    nt = M // tm
    return pl.pallas_call(
        _mm_stats_kernel,
        grid=(nt,),
        in_specs=[pl.BlockSpec((tm, K), lambda i: (i, 0)),
                  pl.BlockSpec((K, C), lambda i: (0, 0))],
        out_specs=(pl.BlockSpec((tm, C), lambda i: (i, 0)),
                   pl.BlockSpec((1, 8, C), lambda i: (i, 0, 0)),
                   pl.BlockSpec((1, 8, C), lambda i: (i, 0, 0))),
        out_shape=(jax.ShapeDtypeStruct((M, C), jnp.float32),
                   jax.ShapeDtypeStruct((nt, 8, C), jnp.float32),
                   jax.ShapeDtypeStruct((nt, 8, C), jnp.float32)),
        compiler_params=_CPARAMS,
    )(x2d.astype(DOT_DTYPE), w.astype(DOT_DTYPE))


def norm_lrelu(y, scale, shift):
    M, C = y.shape
    tm = _pick_tm(M)
    nt = M // tm
    return pl.pallas_call(
        _norm_lrelu_kernel,
        grid=(nt,),
        in_specs=[pl.BlockSpec((tm, C), lambda i: (i, 0)),
                  pl.BlockSpec((1, C), lambda i: (0, 0)),
                  pl.BlockSpec((1, C), lambda i: (0, 0))],
        out_specs=pl.BlockSpec((tm, C), lambda i: (i, 0)),
        out_shape=jax.ShapeDtypeStruct((M, C), jnp.float32),
        compiler_params=_CPARAMS,
    )(y, scale, shift)


def norm_res_lrelu(y, scale, shift, res):
    M, C = y.shape
    tm = _pick_tm(M)
    nt = M // tm
    return pl.pallas_call(
        _norm_res_lrelu_kernel,
        grid=(nt,),
        in_specs=[pl.BlockSpec((tm, C), lambda i: (i, 0)),
                  pl.BlockSpec((1, C), lambda i: (0, 0)),
                  pl.BlockSpec((1, C), lambda i: (0, 0)),
                  pl.BlockSpec((tm, C), lambda i: (i, 0))],
        out_specs=pl.BlockSpec((tm, C), lambda i: (i, 0)),
        out_shape=jax.ShapeDtypeStruct((M, C), jnp.float32),
        compiler_params=_CPARAMS,
    )(y, scale, shift, res)


def norm_lrelu_matmul_stats(y, scale, shift, w):
    M, K = y.shape
    C = w.shape[1]
    tm = _pick_tm(M)
    nt = M // tm
    return pl.pallas_call(
        _norm_lrelu_mm_stats_kernel,
        grid=(nt,),
        in_specs=[pl.BlockSpec((tm, K), lambda i: (i, 0)),
                  pl.BlockSpec((1, K), lambda i: (0, 0)),
                  pl.BlockSpec((1, K), lambda i: (0, 0)),
                  pl.BlockSpec((K, C), lambda i: (0, 0))],
        out_specs=(pl.BlockSpec((tm, C), lambda i: (i, 0)),
                   pl.BlockSpec((1, 8, C), lambda i: (i, 0, 0)),
                   pl.BlockSpec((1, 8, C), lambda i: (i, 0, 0))),
        out_shape=(jax.ShapeDtypeStruct((M, C), jnp.float32),
                   jax.ShapeDtypeStruct((nt, 8, C), jnp.float32),
                   jax.ShapeDtypeStruct((nt, 8, C), jnp.float32)),
        compiler_params=_CPARAMS,
    )(y, scale, shift, w.astype(DOT_DTYPE))


def conv3x3_stats(hp, w_taps):
    N, Hp, Wp, C = hp.shape
    H, W = Hp - 2, Wp - 2
    cout = w_taps.shape[2]
    y, s, q = pl.pallas_call(
        _conv3x3_stats_kernel,
        grid=(N,),
        in_specs=[pl.BlockSpec((1, Hp, Wp, C), lambda n: (n, 0, 0, 0)),
                  pl.BlockSpec((9, C, cout), lambda n: (0, 0, 0))],
        out_specs=(pl.BlockSpec((1, H * W, cout), lambda n: (n, 0, 0)),
                   pl.BlockSpec((1, 8, cout), lambda n: (n, 0, 0)),
                   pl.BlockSpec((1, 8, cout), lambda n: (n, 0, 0))),
        out_shape=(jax.ShapeDtypeStruct((N, H * W, cout), jnp.float32),
                   jax.ShapeDtypeStruct((N, 8, cout), jnp.float32),
                   jax.ShapeDtypeStruct((N, 8, cout), jnp.float32)),
        compiler_params=_CPARAMS,
    )(hp.astype(DOT_DTYPE), w_taps.astype(DOT_DTYPE))
    return y.reshape(N * H * W, cout), s, q


def _bn_fold(s_part, q_part, count, gamma, beta, cpad):
    """Combine per-tile (sum, sumsq) -> per-channel (scale, shift) FMA params."""
    g = jnp.pad(gamma, (0, cpad - gamma.shape[0]))
    b = jnp.pad(beta, (0, cpad - beta.shape[0]))
    total = s_part[:, 0, :].sum(axis=0)
    total_sq = q_part[:, 0, :].sum(axis=0)
    mean = total / count
    # single-pass variance; fine in f32 at these magnitudes
    # TODO(synk): compensated / two-pass variance if |mean| >> std.
    var = jnp.maximum(total_sq / count - mean * mean, 0.0)
    scale = g * jax.lax.rsqrt(var + BN_EPS)
    shift = b - mean * scale
    return scale.reshape(1, cpad), shift.reshape(1, cpad)


# ------------------------------ forward ------------------------------------- #

def bottleneck_forward(x_nhwc, p):
    """x_nhwc: (N, H, W, inplanes) with inplanes == 4*planes, stride=1."""
    N, H, W, cin = x_nhwc.shape
    planes = p["w1"].shape[1]
    cout = 4 * planes
    M = N * H * W

    cin_p = _ceil_to(cin, LANE)
    pp = _ceil_to(planes, LANE)
    co_p = _ceil_to(cout, LANE)

    # zero-pad weights; padded channels stay exactly zero through every stage
    w1 = _pad2(p["w1"], cin_p, pp)
    w2 = jnp.pad(p["w2"].reshape(9, planes, planes),
                 ((0, 0), (0, pp - planes), (0, pp - planes)))
    w3 = _pad2(p["w3"], pp, co_p)

    x2d = jnp.pad(x_nhwc.reshape(M, cin), ((0, 0), (0, cin_p - cin)))

    # stage 1: conv1(1x1) + bn1 + leaky_relu
    y1, s1, q1 = matmul_stats(x2d, w1)
    sc1, sh1 = _bn_fold(s1, q1, M, p["g1"], p["be1"], pp)
    h1 = norm_lrelu(y1, sc1, sh1)

    # stage 2: SamePad2d(3,1) pad (plain-JAX glue) + conv2(3x3) + bn2 stats
    hp = jnp.pad(h1.reshape(N, H, W, pp), ((0, 0), (1, 1), (1, 1), (0, 0)))
    y2, s2, q2 = conv3x3_stats(hp, w2)
    sc2, sh2 = _bn_fold(s2, q2, M, p["g2"], p["be2"], pp)

    # stage 3: (bn2-normalize + lrelu fused with) conv3(1x1) + bn3 stats
    y3, s3, q3 = norm_lrelu_matmul_stats(y2, sc2, sh2, w3)
    sc3, sh3 = _bn_fold(s3, q3, M, p["g3"], p["be3"], co_p)

    # bn3 affine + residual add + final leaky_relu (residual streamed per tile)
    res = jnp.pad(x_nhwc.reshape(M, cin), ((0, 0), (0, co_p - cin)))
    out = norm_res_lrelu(y3, sc3, sh3, res)
    return out[:, :cout].reshape(N, H, W, cout)


# ----------------------------- reference ------------------------------------ #

def bottleneck_ref(x, p):
    """Pure-JAX reference mirroring the PyTorch training-mode forward."""
    def bn(y, g, b):
        m = jnp.mean(y, axis=(0, 1, 2), keepdims=True)
        v = jnp.mean((y - m) ** 2, axis=(0, 1, 2), keepdims=True)
        return (y - m) / jnp.sqrt(v + BN_EPS) * g + b

    h = jnp.einsum("nhwc,cp->nhwp", x, p["w1"]) + p["b1"]
    h = _lrelu(bn(h, p["g1"], p["be1"]))
    h = jax.lax.conv_general_dilated(
        h, p["w2"], (1, 1), [(1, 1), (1, 1)],
        dimension_numbers=("NHWC", "HWIO", "NHWC")) + p["b2"]
    h = _lrelu(bn(h, p["g2"], p["be2"]))
    h = jnp.einsum("nhwc,cp->nhwp", h, p["w3"]) + p["b3"]
    h = bn(h, p["g3"], p["be3"]) + x
    return _lrelu(h)


def make_params(key, inplanes, planes):
    ks = jax.random.split(key, 12)
    f32 = jnp.float32
    return {
        "w1": 0.1 * jax.random.normal(ks[0], (inplanes, planes), f32),
        "b1": 0.1 * jax.random.normal(ks[1], (planes,), f32),
        "g1": 1.0 + 0.1 * jax.random.normal(ks[2], (planes,), f32),
        "be1": 0.1 * jax.random.normal(ks[3], (planes,), f32),
        # conv2 weight stored HWIO: (3, 3, planes, planes)
        "w2": 0.1 * jax.random.normal(ks[4], (3, 3, planes, planes), f32),
        "b2": 0.1 * jax.random.normal(ks[5], (planes,), f32),
        "g2": 1.0 + 0.1 * jax.random.normal(ks[6], (planes,), f32),
        "be2": 0.1 * jax.random.normal(ks[7], (planes,), f32),
        "w3": 0.1 * jax.random.normal(ks[8], (planes, 4 * planes), f32),
        "b3": 0.1 * jax.random.normal(ks[9], (4 * planes,), f32),
        "g3": 1.0 + 0.1 * jax.random.normal(ks[10], (4 * planes,), f32),
        "be3": 0.1 * jax.random.normal(ks[11], (4 * planes,), f32),
    }


if __name__ == "__main__":
    key = jax.random.PRNGKey(0)
    kx, kp = jax.random.split(key)

    batch, planes, hw = 2, 4, 16
    inplanes = planes * 4            # required so the residual add is shape-valid
    x = jax.random.normal(kx, (batch, hw, hw, inplanes), jnp.float32)  # NHWC
    params = make_params(kp, inplanes, planes)

    out = jax.jit(bottleneck_forward)(x, params)
    out = jax.block_until_ready(out)

    ref = bottleneck_ref(x, params)
    assert out.shape == (batch, hw, hw, 4 * planes)
    err = float(jnp.max(jnp.abs(out - ref)))
    assert jnp.allclose(out, ref, rtol=1e-3, atol=1e-3), err

    print("KERNEL_OK")
</pallas_src>

<mosaic_0001>
module attributes {stable_mosaic.version = 11 : i64} {
  func.func @_mm_stats_kernel(%arg0: i32, %arg1: memref<256x128xf32, #tpu.memory_space<vmem>>, %arg2: memref<128x128xf32, #tpu.memory_space<vmem>>, %arg3: memref<256x128xf32, #tpu.memory_space<vmem>>, %arg4: memref<1x8x128xf32, #tpu.memory_space<vmem>>, %arg5: memref<1x8x128xf32, #tpu.memory_space<vmem>>) attributes {dimension_semantics = [#tpu.dimension_semantics<parallel>], iteration_bounds = array<i64: 2>, scalar_prefetch = 0 : i64, scratch_operands = 0 : i64, tpu.core_type = #tpu.core_type<tc>, window_params = [{transform_indices = @transform_0, window_bounds = array<i64: 256, 128>}, {pipeline_mode = #tpu.pipeline_mode<synchronous>, transform_indices = @transform_1, window_bounds = array<i64: 128, 128>}, {transform_indices = @transform_2, window_bounds = array<i64: 256, 128>}, {transform_indices = @transform_3, window_bounds = array<i64: 1, 8, 128>}, {transform_indices = @transform_4, window_bounds = array<i64: 1, 8, 128>}]} {
    %c0 = arith.constant 0 : index
    %c0_0 = arith.constant 0 : index
    %0 = vector.load %arg1[%c0, %c0_0] : memref<256x128xf32, #tpu.memory_space<vmem>>, vector<256x128xf32>
    %c0_1 = arith.constant 0 : index
    %c0_2 = arith.constant 0 : index
    %1 = vector.load %arg2[%c0_1, %c0_2] : memref<128x128xf32, #tpu.memory_space<vmem>>, vector<128x128xf32>
    %cst = arith.constant dense<0.000000e+00> : vector<256x128xf32>
    %2 = tpu.matmul %0, %1, %cst {dimension_numbers = #tpu.dot_dimension_numbers<[1], [0], [0], [1], [0, 0, 1, 1], [], []>} : vector<256x128xf32>, vector<128x128xf32>, vector<256x128xf32> -> vector<256x128xf32>
    %c0_3 = arith.constant 0 : index
    %c0_4 = arith.constant 0 : index
    %3 = vector.load %arg3[%c0_3, %c0_4] : memref<256x128xf32, #tpu.memory_space<vmem>>, vector<256x128xf32>
    tpu.vector_store %arg3[%c0_3, %c0_4], %2 {strides = array<i32>} : memref<256x128xf32, #tpu.memory_space<vmem>>, vector<256x128xf32>,
    %cst_5 = arith.constant dense<0.000000e+00> : vector<128xf32>
    %4 = vector.multi_reduction <add>, %2, %cst_5 [0] : vector<256x128xf32> to vector<128xf32>
    %5 = vector.shape_cast %4 : vector<128xf32> to vector<1x128xf32>
    %6 = vector.shape_cast %5 : vector<1x128xf32> to vector<1x1x128xf32>
    %7 = vector.broadcast %6 : vector<1x1x128xf32> to vector<1x8x128xf32>
    %c0_6 = arith.constant 0 : index
    %c0_7 = arith.constant 0 : index
    %c0_8 = arith.constant 0 : index
    %8 = vector.load %arg4[%c0_6, %c0_7, %c0_8] : memref<1x8x128xf32, #tpu.memory_space<vmem>>, vector<1x8x128xf32>
    tpu.vector_store %arg4[%c0_6, %c0_7, %c0_8], %7 {strides = array<i32>} : memref<1x8x128xf32, #tpu.memory_space<vmem>>, vector<1x8x128xf32>,
    %9 = arith.mulf %2, %2 : vector<256x128xf32>
    %cst_9 = arith.constant dense<0.000000e+00> : vector<128xf32>
    %10 = vector.multi_reduction <add>, %9, %cst_9 [0] : vector<256x128xf32> to vector<128xf32>
    %11 = vector.shape_cast %10 : vector<128xf32> to vector<1x128xf32>
    %12 = vector.shape_cast %11 : vector<1x128xf32> to vector<1x1x128xf32>
    %13 = vector.broadcast %12 : vector<1x1x128xf32> to vector<1x8x128xf32>
    %c0_10 = arith.constant 0 : index
    %c0_11 = arith.constant 0 : index
    %c0_12 = arith.constant 0 : index
    %14 = vector.load %arg5[%c0_10, %c0_11, %c0_12] : memref<1x8x128xf32, #tpu.memory_space<vmem>>, vector<1x8x128xf32>
    tpu.vector_store %arg5[%c0_10, %c0_11, %c0_12], %13 {strides = array<i32>} : memref<1x8x128xf32, #tpu.memory_space<vmem>>, vector<1x8x128xf32>,
    return
  }
  func.func @transform_0(%arg0: i32) -> (i32, i32) {
    %c0_i32 = arith.constant 0 : i32
    %c0_i32_0 = arith.constant 0 : i32
    return %arg0, %c0_i32 : i32, i32
  }
  func.func @transform_1(%arg0: i32) -> (i32, i32) {
    %c0_i32 = arith.constant 0 : i32
    %c0_i32_0 = arith.constant 0 : i32
    %c0_i32_1 = arith.constant 0 : i32
    return %c0_i32, %c0_i32_0 : i32, i32
  }
  func.func @transform_2(%arg0: i32) -> (i32, i32) {
    %c0_i32 = arith.constant 0 : i32
    %c0_i32_0 = arith.constant 0 : i32
    return %arg0, %c0_i32 : i32, i32
  }
  func.func @transform_3(%arg0: i32) -> (i32, i32, i32) {
    %c0_i32 = arith.constant 0 : i32
    %c0_i32_0 = arith.constant 0 : i32
    %c0_i32_1 = arith.constant 0 : i32
    return %arg0, %c0_i32, %c0_i32_0 : i32, i32, i32
  }
  func.func @transform_4(%arg0: i32) -> (i32, i32, i32) {
    %c0_i32 = arith.constant 0 : i32
    %c0_i32_0 = arith.constant 0 : i32
    %c0_i32_1 = arith.constant 0 : i32
    return %arg0, %c0_i32, %c0_i32_0 : i32, i32, i32
  }
}

module attributes {stable_mosaic.version = 11 : i64} {
  func.func @_norm_lrelu_kernel(%arg0: i32, %arg1: memref<256x128xf32, #tpu.memory_space<vmem>>, %arg2: memref<1x128xf32, #tpu.memory_space<vmem>>, %arg3: memref<1x128xf32, #tpu.memory_space<vmem>>, %arg4: memref<256x128xf32, #tpu.memory_space<vmem>>) attributes {dimension_semantics = [#tpu.dimension_semantics<parallel>], iteration_bounds = array<i64: 2>, scalar_prefetch = 0 : i64, scratch_operands = 0 : i64, tpu.core_type = #tpu.core_type<tc>, window_params = [{transform_indices = @transform_0, window_bounds = array<i64: 256, 128>}, {pipeline_mode = #tpu.pipeline_mode<synchronous>, transform_indices = @transform_1, window_bounds = array<i64: 1, 128>}, {pipeline_mode = #tpu.pipeline_mode<synchronous>, transform_indices = @transform_2, window_bounds = array<i64: 1, 128>}, {transform_indices = @transform_3, window_bounds = array<i64: 256, 128>}]} {
    %c0 = arith.constant 0 : index
    %c0_0 = arith.constant 0 : index
    %0 = vector.load %arg1[%c0, %c0_0] : memref<256x128xf32, #tpu.memory_space<vmem>>, vector<256x128xf32>
    %c0_1 = arith.constant 0 : index
    %c0_2 = arith.constant 0 : index
    %1 = vector.load %arg2[%c0_1, %c0_2] : memref<1x128xf32, #tpu.memory_space<vmem>>, vector<1x128xf32>
    %2 = vector.broadcast %1 : vector<1x128xf32> to vector<256x128xf32>
    %3 = arith.mulf %0, %2 : vector<256x128xf32>
    %c0_3 = arith.constant 0 : index
    %c0_4 = arith.constant 0 : index
    %4 = vector.load %arg3[%c0_3, %c0_4] : memref<1x128xf32, #tpu.memory_space<vmem>>, vector<1x128xf32>
    %5 = vector.broadcast %4 : vector<1x128xf32> to vector<256x128xf32>
    %6 = arith.addf %3, %5 : vector<256x128xf32>
    %cst = arith.constant 0.000000e+00 : f32
    %7 = vector.broadcast %cst : f32 to vector<256x128xf32>
    %8 = arith.cmpf ogt, %6, %7 : vector<256x128xf32>
    %cst_5 = arith.constant 1.000000e-01 : f32
    %9 = vector.broadcast %cst_5 : f32 to vector<256x128xf32>
    %10 = arith.mulf %9, %6 : vector<256x128xf32>
    %11 = arith.select %8, %6, %10 : vector<256x128xi1>, vector<256x128xf32>
    %c0_6 = arith.constant 0 : index
    %c0_7 = arith.constant 0 : index
    %12 = vector.load %arg4[%c0_6, %c0_7] : memref<256x128xf32, #tpu.memory_space<vmem>>, vector<256x128xf32>
    tpu.vector_store %arg4[%c0_6, %c0_7], %11 {strides = array<i32>} : memref<256x128xf32, #tpu.memory_space<vmem>>, vector<256x128xf32>,
    return
  }
  func.func @transform_0(%arg0: i32) -> (i32, i32) {
    %c0_i32 = arith.constant 0 : i32
    %c0_i32_0 = arith.constant 0 : i32
    return %arg0, %c0_i32 : i32, i32
  }
  func.func @transform_1(%arg0: i32) -> (i32, i32) {
    %c0_i32 = arith.constant 0 : i32
    %c0_i32_0 = arith.constant 0 : i32
    %c0_i32_1 = arith.constant 0 : i32
    return %c0_i32, %c0_i32_0 : i32, i32
  }
  func.func @transform_2(%arg0: i32) -> (i32, i32) {
    %c0_i32 = arith.constant 0 : i32
    %c0_i32_0 = arith.constant 0 : i32
    %c0_i32_1 = arith.constant 0 : i32
    return %c0_i32, %c0_i32_0 : i32, i32
  }
  func.func @transform_3(%arg0: i32) -> (i32, i32) {
    %c0_i32 = arith.constant 0 : i32
    %c0_i32_0 = arith.constant 0 : i32
    return %arg0, %c0_i32 : i32, i32
  }
}

module attributes {stable_mosaic.version = 11 : i64} {
  func.func @_norm_lrelu_mm_stats_kernel(%arg0: i32, %arg1: memref<256x128xf32, #tpu.memory_space<vmem>>, %arg2: memref<1x128xf32, #tpu.memory_space<vmem>>, %arg3: memref<1x128xf32, #tpu.memory_space<vmem>>, %arg4: memref<128x128xf32, #tpu.memory_space<vmem>>, %arg5: memref<256x128xf32, #tpu.memory_space<vmem>>, %arg6: memref<1x8x128xf32, #tpu.memory_space<vmem>>, %arg7: memref<1x8x128xf32, #tpu.memory_space<vmem>>) attributes {dimension_semantics = [#tpu.dimension_semantics<parallel>], iteration_bounds = array<i64: 2>, scalar_prefetch = 0 : i64, scratch_operands = 0 : i64, tpu.core_type = #tpu.core_type<tc>, window_params = [{transform_indices = @transform_0, window_bounds = array<i64: 256, 128>}, {pipeline_mode = #tpu.pipeline_mode<synchronous>, transform_indices = @transform_1, window_bounds = array<i64: 1, 128>}, {pipeline_mode = #tpu.pipeline_mode<synchronous>, transform_indices = @transform_2, window_bounds = array<i64: 1, 128>}, {pipeline_mode = #tpu.pipeline_mode<synchronous>, transform_indices = @transform_3, window_bounds = array<i64: 128, 128>}, {transform_indices = @transform_4, window_bounds = array<i64: 256, 128>}, {transform_indices = @transform_5, window_bounds = array<i64: 1, 8, 128>}, {transform_indices = @transform_6, window_bounds = array<i64: 1, 8, 128>}]} {
    %c0 = arith.constant 0 : index
    %c0_0 = arith.constant 0 : index
    %0 = vector.load %arg1[%c0, %c0_0] : memref<256x128xf32, #tpu.memory_space<vmem>>, vector<256x128xf32>
    %c0_1 = arith.constant 0 : index
    %c0_2 = arith.constant 0 : index
    %1 = vector.load %arg2[%c0_1, %c0_2] : memref<1x128xf32, #tpu.memory_space<vmem>>, vector<1x128xf32>
    %2 = vector.broadcast %1 : vector<1x128xf32> to vector<256x128xf32>
    %3 = arith.mulf %0, %2 : vector<256x128xf32>
    %c0_3 = arith.constant 0 : index
    %c0_4 = arith.constant 0 : index
    %4 = vector.load %arg3[%c0_3, %c0_4] : memref<1x128xf32, #tpu.memory_space<vmem>>, vector<1x128xf32>
    %5 = vector.broadcast %4 : vector<1x128xf32> to vector<256x128xf32>
    %6 = arith.addf %3, %5 : vector<256x128xf32>
    %cst = arith.constant 0.000000e+00 : f32
    %7 = vector.broadcast %cst : f32 to vector<256x128xf32>
    %8 = arith.cmpf ogt, %6, %7 : vector<256x128xf32>
    %cst_5 = arith.constant 1.000000e-01 : f32
    %9 = vector.broadcast %cst_5 : f32 to vector<256x128xf32>
    %10 = arith.mulf %9, %6 : vector<256x128xf32>
    %11 = arith.select %8, %6, %10 : vector<256x128xi1>, vector<256x128xf32>
    %c0_6 = arith.constant 0 : index
    %c0_7 = arith.constant 0 : index
    %12 = vector.load %arg4[%c0_6, %c0_7] : memref<128x128xf32, #tpu.memory_space<vmem>>, vector<128x128xf32>
    %cst_8 = arith.constant dense<0.000000e+00> : vector<256x128xf32>
    %13 = tpu.matmul %11, %12, %cst_8 {dimension_numbers = #tpu.dot_dimension_numbers<[1], [0], [0], [1], [0, 0, 1, 1], [], []>} : vector<256x128xf32>, vector<128x128xf32>, vector<256x128xf32> -> vector<256x128xf32>
    %c0_9 = arith.constant 0 : index
    %c0_10 = arith.constant 0 : index
    %14 = vector.load %arg5[%c0_9, %c0_10] : memref<256x128xf32, #tpu.memory_space<vmem>>, vector<256x128xf32>
    tpu.vector_store %arg5[%c0_9, %c0_10], %13 {strides = array<i32>} : memref<256x128xf32, #tpu.memory_space<vmem>>, vector<256x128xf32>,
    %cst_11 = arith.constant dense<0.000000e+00> : vector<128xf32>
    %15 = vector.multi_reduction <add>, %13, %cst_11 [0] : vector<256x128xf32> to vector<128xf32>
    %16 = vector.shape_cast %15 : vector<128xf32> to vector<1x128xf32>
    %17 = vector.shape_cast %16 : vector<1x128xf32> to vector<1x1x128xf32>
    %18 = vector.broadcast %17 : vector<1x1x128xf32> to vector<1x8x128xf32>
    %c0_12 = arith.constant 0 : index
    %c0_13 = arith.constant 0 : index
    %c0_14 = arith.constant 0 : index
    %19 = vector.load %arg6[%c0_12, %c0_13, %c0_14] : memref<1x8x128xf32, #tpu.memory_space<vmem>>, vector<1x8x128xf32>
    tpu.vector_store %arg6[%c0_12, %c0_13, %c0_14], %18 {strides = array<i32>} : memref<1x8x128xf32, #tpu.memory_space<vmem>>, vector<1x8x128xf32>,
    %20 = arith.mulf %13, %13 : vector<256x128xf32>
    %cst_15 = arith.constant dense<0.000000e+00> : vector<128xf32>
    %21 = vector.multi_reduction <add>, %20, %cst_15 [0] : vector<256x128xf32> to vector<128xf32>
    %22 = vector.shape_cast %21 : vector<128xf32> to vector<1x128xf32>
    %23 = vector.shape_cast %22 : vector<1x128xf32> to vector<1x1x128xf32>
    %24 = vector.broadcast %23 : vector<1x1x128xf32> to vector<1x8x128xf32>
    %c0_16 = arith.constant 0 : index
    %c0_17 = arith.constant 0 : index
    %c0_18 = arith.constant 0 : index
    %25 = vector.load %arg7[%c0_16, %c0_17, %c0_18] : memref<1x8x128xf32, #tpu.memory_space<vmem>>, vector<1x8x128xf32>
    tpu.vector_store %arg7[%c0_16, %c0_17, %c0_18], %24 {strides = array<i32>} : memref<1x8x128xf32, #tpu.memory_space<vmem>>, vector<1x8x128xf32>,
    return
  }
  func.func @transform_0(%arg0: i32) -> (i32, i32) {
    %c0_i32 = arith.constant 0 : i32
    %c0_i32_0 = arith.constant 0 : i32
    return %arg0, %c0_i32 : i32, i32
  }
  func.func @transform_1(%arg0: i32) -> (i32, i32) {
    %c0_i32 = arith.constant 0 : i32
    %c0_i32_0 = arith.constant 0 : i32
    %c0_i32_1 = arith.constant 0 : i32
    return %c0_i32, %c0_i32_0 : i32, i32
  }
  func.func @transform_2(%arg0: i32) -> (i32, i32) {
    %c0_i32 = arith.constant 0 : i32
    %c0_i32_0 = arith.constant 0 : i32
    %c0_i32_1 = arith.constant 0 : i32
    return %c0_i32, %c0_i32_0 : i32, i32
  }
  func.func @transform_3(%arg0: i32) -> (i32, i32) {
    %c0_i32 = arith.constant 0 : i32
    %c0_i32_0 = arith.constant 0 : i32
    %c0_i32_1 = arith.constant 0 : i32
    return %c0_i32, %c0_i32_0 : i32, i32
  }
  func.func @transform_4(%arg0: i32) -> (i32, i32) {
    %c0_i32 = arith.constant 0 : i32
    %c0_i32_0 = arith.constant 0 : i32
    return %arg0, %c0_i32 : i32, i32
  }
  func.func @transform_5(%arg0: i32) -> (i32, i32, i32) {
    %c0_i32 = arith.constant 0 : i32
    %c0_i32_0 = arith.constant 0 : i32
    %c0_i32_1 = arith.constant 0 : i32
    return %arg0, %c0_i32, %c0_i32_0 : i32, i32, i32
  }
  func.func @transform_6(%arg0: i32) -> (i32, i32, i32) {
    %c0_i32 = arith.constant 0 : i32
    %c0_i32_0 = arith.constant 0 : i32
    %c0_i32_1 = arith.constant 0 : i32
    return %arg0, %c0_i32, %c0_i32_0 : i32, i32, i32
  }
}

module attributes {stable_mosaic.version = 11 : i64} {
  func.func @_conv3x3_stats_kernel(%arg0: i32, %arg1: memref<1x18x18x128xf32, #tpu.memory_space<vmem>>, %arg2: memref<9x128x128xf32, #tpu.memory_space<vmem>>, %arg3: memref<1x256x128xf32, #tpu.memory_space<vmem>>, %arg4: memref<1x8x128xf32, #tpu.memory_space<vmem>>, %arg5: memref<1x8x128xf32, #tpu.memory_space<vmem>>) attributes {dimension_semantics = [#tpu.dimension_semantics<parallel>], iteration_bounds = array<i64: 2>, scalar_prefetch = 0 : i64, scratch_operands = 0 : i64, tpu.core_type = #tpu.core_type<tc>, window_params = [{transform_indices = @transform_0, window_bounds = array<i64: 1, 18, 18, 128>}, {pipeline_mode = #tpu.pipeline_mode<synchronous>, transform_indices = @transform_1, window_bounds = array<i64: 9, 128, 128>}, {transform_indices = @transform_2, window_bounds = array<i64: 1, 256, 128>}, {transform_indices = @transform_3, window_bounds = array<i64: 1, 8, 128>}, {transform_indices = @transform_4, window_bounds = array<i64: 1, 8, 128>}]} {
    %cst = arith.constant 0.000000e+00 : f32
    %0 = vector.broadcast %cst : f32 to vector<256x128xf32>
    %c0 = arith.constant 0 : index
    %c0_0 = arith.constant 0 : index
    %c0_1 = arith.constant 0 : index
    %c0_2 = arith.constant 0 : index
    %1 = vector.load %arg1[%c0, %c0_0, %c0_1, %c0_2] : memref<1x18x18x128xf32, #tpu.memory_space<vmem>>, vector<1x16x16x128xf32>
    %2 = vector.shape_cast %1 : vector<1x16x16x128xf32> to vector<16x16x128xf32>
    %3 = vector.shape_cast %2 : vector<16x16x128xf32> to vector<256x128xf32>
    %c0_3 = arith.constant 0 : index
    %c0_4 = arith.constant 0 : index
    %c0_5 = arith.constant 0 : index
    %4 = vector.load %arg2[%c0_3, %c0_4, %c0_5] : memref<9x128x128xf32, #tpu.memory_space<vmem>>, vector<1x128x128xf32>
    %5 = vector.shape_cast %4 : vector<1x128x128xf32> to vector<128x128xf32>
    %cst_6 = arith.constant dense<0.000000e+00> : vector<256x128xf32>
    %6 = tpu.matmul %3, %5, %cst_6 {dimension_numbers = #tpu.dot_dimension_numbers<[1], [0], [0], [1], [0, 0, 1, 1], [], []>} : vector<256x128xf32>, vector<128x128xf32>, vector<256x128xf32> -> vector<256x128xf32>
    %7 = arith.addf %0, %6 : vector<256x128xf32>
    %c0_7 = arith.constant 0 : index
    %c0_8 = arith.constant 0 : index
    %c1 = arith.constant 1 : index
    %c0_9 = arith.constant 0 : index
    %8 = vector.load %arg1[%c0_7, %c0_8, %c1, %c0_9] : memref<1x18x18x128xf32, #tpu.memory_space<vmem>>, vector<1x16x16x128xf32>
    %9 = vector.shape_cast %8 : vector<1x16x16x128xf32> to vector<16x16x128xf32>
    %10 = vector.shape_cast %9 : vector<16x16x128xf32> to vector<256x128xf32>
    %c1_10 = arith.constant 1 : index
    %c0_11 = arith.constant 0 : index
    %c0_12 = arith.constant 0 : index
    %11 = vector.load %arg2[%c1_10, %c0_11, %c0_12] : memref<9x128x128xf32, #tpu.memory_space<vmem>>, vector<1x128x128xf32>
    %12 = vector.shape_cast %11 : vector<1x128x128xf32> to vector<128x128xf32>
    %cst_13 = arith.constant dense<0.000000e+00> : vector<256x128xf32>
    %13 = tpu.matmul %10, %12, %cst_13 {dimension_numbers = #tpu.dot_dimension_numbers<[1], [0], [0], [1], [0, 0, 1, 1], [], []>} : vector<256x128xf32>, vector<128x128xf32>, vector<256x128xf32> -> vector<256x128xf32>
    %14 = arith.addf %7, %13 : vector<256x128xf32>
    %c0_14 = arith.constant 0 : index
    %c0_15 = arith.constant 0 : index
    %c2 = arith.constant 2 : index
    %c0_16 = arith.constant 0 : index
    %15 = vector.load %arg1[%c0_14, %c0_15, %c2, %c0_16] : memref<1x18x18x128xf32, #tpu.memory_space<vmem>>, vector<1x16x16x128xf32>
    %16 = vector.shape_cast %15 : vector<1x16x16x128xf32> to vector<16x16x128xf32>
    %17 = vector.shape_cast %16 : vector<16x16x128xf32> to vector<256x128xf32>
    %c2_17 = arith.constant 2 : index
    %c0_18 = arith.constant 0 : index
    %c0_19 = arith.constant 0 : index
    %18 = vector.load %arg2[%c2_17, %c0_18, %c0_19] : memref<9x128x128xf32, #tpu.memory_space<vmem>>, vector<1x128x128xf32>
    %19 = vector.shape_cast %18 : vector<1x128x128xf32> to vector<128x128xf32>
    %cst_20 = arith.constant dense<0.000000e+00> : vector<256x128xf32>
    %20 = tpu.matmul %17, %19, %cst_20 {dimension_numbers = #tpu.dot_dimension_numbers<[1], [0], [0], [1], [0, 0, 1, 1], [], []>} : vector<256x128xf32>, vector<128x128xf32>, vector<256x128xf32> -> vector<256x128xf32>
    %21 = arith.addf %14, %20 : vector<256x128xf32>
    %c0_21 = arith.constant 0 : index
    %c1_22 = arith.constant 1 : index
    %c0_23 = arith.constant 0 : index
    %c0_24 = arith.constant 0 : index
    %22 = vector.load %arg1[%c0_21, %c1_22, %c0_23, %c0_24] : memref<1x18x18x128xf32, #tpu.memory_space<vmem>>, vector<1x16x16x128xf32>
    %23 = vector.shape_cast %22 : vector<1x16x16x128xf32> to vector<16x16x128xf32>
    %24 = vector.shape_cast %23 : vector<16x16x128xf32> to vector<256x128xf32>
    %c3 = arith.constant 3 : index
    %c0_25 = arith.constant 0 : index
    %c0_26 = arith.constant 0 : index
    %25 = vector.load %arg2[%c3, %c0_25, %c0_26] : memref<9x128x128xf32, #tpu.memory_space<vmem>>, vector<1x128x128xf32>
    %26 = vector.shape_cast %25 : vector<1x128x128xf32> to vector<128x128xf32>
    %cst_27 = arith.constant dense<0.000000e+00> : vector<256x128xf32>
    %27 = tpu.matmul %24, %26, %cst_27 {dimension_numbers = #tpu.dot_dimension_numbers<[1], [0], [0], [1], [0, 0, 1, 1], [], []>} : vector<256x128xf32>, vector<128x128xf32>, vector<256x128xf32> -> vector<256x128xf32>
    %28 = arith.addf %21, %27 : vector<256x128xf32>
    %c0_28 = arith.constant 0 : index
    %c1_29 = arith.constant 1 : index
    %c1_30 = arith.constant 1 : index
    %c0_31 = arith.constant 0 : index
    %29 = vector.load %arg1[%c0_28, %c1_29, %c1_30, %c0_31] : memref<1x18x18x128xf32, #tpu.memory_space<vmem>>, vector<1x16x16x128xf32>
    %30 = vector.shape_cast %29 : vector<1x16x16x128xf32> to vector<16x16x128xf32>
    %31 = vector.shape_cast %30 : vector<16x16x128xf32> to vector<256x128xf32>
    %c4 = arith.constant 4 : index
    %c0_32 = arith.constant 0 : index
    %c0_33 = arith.constant 0 : index
    %32 = vector.load %arg2[%c4, %c0_32, %c0_33] : memref<9x128x128xf32, #tpu.memory_space<vmem>>, vector<1x128x128xf32>
    %33 = vector.shape_cast %32 : vector<1x128x128xf32> to vector<128x128xf32>
    %cst_34 = arith.constant dense<0.000000e+00> : vector<256x128xf32>
    %34 = tpu.matmul %31, %33, %cst_34 {dimension_numbers = #tpu.dot_dimension_numbers<[1], [0], [0], [1], [0, 0, 1, 1], [], []>} : vector<256x128xf32>, vector<128x128xf32>, vector<256x128xf32> -> vector<256x128xf32>
    %35 = arith.addf %28, %34 : vector<256x128xf32>
    %c0_35 = arith.constant 0 : index
    %c1_36 = arith.constant 1 : index
    %c2_37 = arith.constant 2 : index
    %c0_38 = arith.constant 0 : index
    %36 = vector.load %arg1[%c0_35, %c1_36, %c2_37, %c0_38] : memref<1x18x18x128xf32, #tpu.memory_space<vmem>>, vector<1x16x16x128xf32>
    %37 = vector.shape_cast %36 : vector<1x16x16x128xf32> to vector<16x16x128xf32>
    %38 = vector.shape_cast %37 : vector<16x16x128xf32> to vector<256x128xf32>
    %c5 = arith.constant 5 : index
    %c0_39 = arith.constant 0 : index
    %c0_40 = arith.constant 0 : index
    %39 = vector.load %arg2[%c5, %c0_39, %c0_40] : memref<9x128x128xf32, #tpu.memory_space<vmem>>, vector<1x128x128xf32>
    %40 = vector.shape_cast %39 : vector<1x128x128xf32> to vector<128x128xf32>
    %cst_41 = arith.constant dense<0.000000e+00> : vector<256x128xf32>
    %41 = tpu.matmul %38, %40, %cst_41 {dimension_numbers = #tpu.dot_dimension_numbers<[1], [0], [0], [1], [0, 0, 1, 1], [], []>} : vector<256x128xf32>, vector<128x128xf32>, vector<256x128xf32> -> vector<256x128xf32>
    %42 = arith.addf %35, %41 : vector<256x128xf32>
    %c0_42 = arith.constant 0 : index
    %c2_43 = arith.constant 2 : index
    %c0_44 = arith.constant 0 : index
    %c0_45 = arith.constant 0 : index
    %43 = vector.load %arg1[%c0_42, %c2_43, %c0_44, %c0_45] : memref<1x18x18x128xf32, #tpu.memory_space<vmem>>, vector<1x16x16x128xf32>
    %44 = vector.shape_cast %43 : vector<1x16x16x128xf32> to vector<16x16x128xf32>
    %45 = vector.shape_cast %44 : vector<16x16x128xf32> to vector<256x128xf32>
    %c6 = arith.constant 6 : index
    %c0_46 = arith.constant 0 : index
    %c0_47 = arith.constant 0 : index
    %46 = vector.load %arg2[%c6, %c0_46, %c0_47] : memref<9x128x128xf32, #tpu.memory_space<vmem>>, vector<1x128x128xf32>
    %47 = vector.shape_cast %46 : vector<1x128x128xf32> to vector<128x128xf32>
    %cst_48 = arith.constant dense<0.000000e+00> : vector<256x128xf32>
    %48 = tpu.matmul %45, %47, %cst_48 {dimension_numbers = #tpu.dot_dimension_numbers<[1], [0], [0], [1], [0, 0, 1, 1], [], []>} : vector<256x128xf32>, vector<128x128xf32>, vector<256x128xf32> -> vector<256x128xf32>
    %49 = arith.addf %42, %48 : vector<256x128xf32>
    %c0_49 = arith.constant 0 : index
    %c2_50 = arith.constant 2 : index
    %c1_51 = arith.constant 1 : index
    %c0_52 = arith.constant 0 : index
    %50 = vector.load %arg1[%c0_49, %c2_50, %c1_51, %c0_52] : memref<1x18x18x128xf32, #tpu.memory_space<vmem>>, vector<1x16x16x128xf32>
    %51 = vector.shape_cast %50 : vector<1x16x16x128xf32> to vector<16x16x128xf32>
    %52 = vector.shape_cast %51 : vector<16x16x128xf32> to vector<256x128xf32>
    %c7 = arith.constant 7 : index
    %c0_53 = arith.constant 0 : index
    %c0_54 = arith.constant 0 : index
    %53 = vector.load %arg2[%c7, %c0_53, %c0_54] : memref<9x128x128xf32, #tpu.memory_space<vmem>>, vector<1x128x128xf32>
    %54 = vector.shape_cast %53 : vector<1x128x128xf32> to vector<128x128xf32>
    %cst_55 = arith.constant dense<0.000000e+00> : vector<256x128xf32>
    %55 = tpu.matmul %52, %54, %cst_55 {dimension_numbers = #tpu.dot_dimension_numbers<[1], [0], [0], [1], [0, 0, 1, 1], [], []>} : vector<256x128xf32>, vector<128x128xf32>, vector<256x128xf32> -> vector<256x128xf32>
    %56 = arith.addf %49, %55 : vector<256x128xf32>
    %c0_56 = arith.constant 0 : index
    %c2_57 = arith.constant 2 : index
    %c2_58 = arith.constant 2 : index
    %c0_59 = arith.constant 0 : index
    %57 = vector.load %arg1[%c0_56, %c2_57, %c2_58, %c0_59] : memref<1x18x18x128xf32, #tpu.memory_space<vmem>>, vector<1x16x16x128xf32>
    %58 = vector.shape_cast %57 : vector<1x16x16x128xf32> to vector<16x16x128xf32>
    %59 = vector.shape_cast %58 : vector<16x16x128xf32> to vector<256x128xf32>
    %c8 = arith.constant 8 : index
    %c0_60 = arith.constant 0 : index
    %c0_61 = arith.constant 0 : index
    %60 = vector.load %arg2[%c8, %c0_60, %c0_61] : memref<9x128x128xf32, #tpu.memory_space<vmem>>, vector<1x128x128xf32>
    %61 = vector.shape_cast %60 : vector<1x128x128xf32> to vector<128x128xf32>
    %cst_62 = arith.constant dense<0.000000e+00> : vector<256x128xf32>
    %62 = tpu.matmul %59, %61, %cst_62 {dimension_numbers = #tpu.dot_dimension_numbers<[1], [0], [0], [1], [0, 0, 1, 1], [], []>} : vector<256x128xf32>, vector<128x128xf32>, vector<256x128xf32> -> vector<256x128xf32>
    %63 = arith.addf %56, %62 : vector<256x128xf32>
    %64 = vector.shape_cast %63 : vector<256x128xf32> to vector<1x256x128xf32>
    %c0_63 = arith.constant 0 : index
    %c0_64 = arith.constant 0 : index
    %c0_65 = arith.constant 0 : index
    %65 = vector.load %arg3[%c0_63, %c0_64, %c0_65] : memref<1x256x128xf32, #tpu.memory_space<vmem>>, vector<1x256x128xf32>
    tpu.vector_store %arg3[%c0_63, %c0_64, %c0_65], %64 {strides = array<i32>} : memref<1x256x128xf32, #tpu.memory_space<vmem>>, vector<1x256x128xf32>,
    %cst_66 = arith.constant dense<0.000000e+00> : vector<128xf32>
    %66 = vector.multi_reduction <add>, %63, %cst_66 [0] : vector<256x128xf32> to vector<128xf32>
    %67 = vector.shape_cast %66 : vector<128xf32> to vector<1x128xf32>
    %68 = vector.shape_cast %67 : vector<1x128xf32> to vector<1x1x128xf32>
    %69 = vector.broadcast %68 : vector<1x1x128xf32> to vector<1x8x128xf32>
    %c0_67 = arith.constant 0 : index
    %c0_68 = arith.constant 0 : index
    %c0_69 = arith.constant 0 : index
    %70 = vector.load %arg4[%c0_67, %c0_68, %c0_69] : memref<1x8x128xf32, #tpu.memory_space<vmem>>, vector<1x8x128xf32>
    tpu.vector_store %arg4[%c0_67, %c0_68, %c0_69], %69 {strides = array<i32>} : memref<1x8x128xf32, #tpu.memory_space<vmem>>, vector<1x8x128xf32>,
    %71 = arith.mulf %63, %63 : vector<256x128xf32>
    %cst_70 = arith.constant dense<0.000000e+00> : vector<128xf32>
    %72 = vector.multi_reduction <add>, %71, %cst_70 [0] : vector<256x128xf32> to vector<128xf32>
    %73 = vector.shape_cast %72 : vector<128xf32> to vector<1x128xf32>
    %74 = vector.shape_cast %73 : vector<1x128xf32> to vector<1x1x128xf32>
    %75 = vector.broadcast %74 : vector<1x1x128xf32> to vector<1x8x128xf32>
    %c0_71 = arith.constant 0 : index
    %c0_72 = arith.constant 0 : index
    %c0_73 = arith.constant 0 : index
    %76 = vector.load %arg5[%c0_71, %c0_72, %c0_73] : memref<1x8x128xf32, #tpu.memory_space<vmem>>, vector<1x8x128xf32>
    tpu.vector_store %arg5[%c0_71, %c0_72, %c0_73], %75 {strides = array<i32>} : memref<1x8x128xf32, #tpu.memory_space<vmem>>, vector<1x8x128xf32>,
    return
  }
  func.func @transform_0(%arg0: i32) -> (i32, i32, i32, i32) {
    %c0_i32 = arith.constant 0 : i32
    %c0_i32_0 = arith.constant 0 : i32
    %c0_i32_1 = arith.constant 0 : i32
    %c0_i32_2 = arith.constant 0 : i32
    return %arg0, %c0_i32, %c0_i32_0, %c0_i32_1 : i32, i32, i32, i32
  }
  func.func @transform_1(%arg0: i32) -> (i32, i32, i32) {
    %c0_i32 = arith.constant 0 : i32
    %c0_i32_0 = arith.constant 0 : i32
    %c0_i32_1 = arith.constant 0 : i32
    %c0_i32_2 = arith.constant 0 : i32
    return %c0_i32, %c0_i32_0, %c0_i32_1 : i32, i32, i32
  }
  func.func @transform_2(%arg0: i32) -> (i32, i32, i32) {
    %c0_i32 = arith.constant 0 : i32
    %c0_i32_0 = arith.constant 0 : i32
    %c0_i32_1 = arith.constant 0 : i32
    return %arg0, %c0_i32, %c0_i32_0 : i32, i32, i32
  }
  func.func @transform_3(%arg0: i32) -> (i32, i32, i32) {
    %c0_i32 = arith.constant 0 : i32
    %c0_i32_0 = arith.constant 0 : i32
    %c0_i32_1 = arith.constant 0 : i32
    return %arg0, %c0_i32, %c0_i32_0 : i32, i32, i32
  }
  func.func @transform_4(%arg0: i32) -> (i32, i32, i32) {
    %c0_i32 = arith.constant 0 : i32
    %c0_i32_0 = arith.constant 0 : i32
    %c0_i32_1 = arith.constant 0 : i32
    return %arg0, %c0_i32, %c0_i32_0 : i32, i32, i32
  }
}

module attributes {stable_mosaic.version = 11 : i64} {
  func.func @_norm_res_lrelu_kernel(%arg0: i32, %arg1: memref<256x128xf32, #tpu.memory_space<vmem>>, %arg2: memref<1x128xf32, #tpu.memory_space<vmem>>, %arg3: memref<1x128xf32, #tpu.memory_space<vmem>>, %arg4: memref<256x128xf32, #tpu.memory_space<vmem>>, %arg5: memref<256x128xf32, #tpu.memory_space<vmem>>) attributes {dimension_semantics = [#tpu.dimension_semantics<parallel>], iteration_bounds = array<i64: 2>, scalar_prefetch = 0 : i64, scratch_operands = 0 : i64, tpu.core_type = #tpu.core_type<tc>, window_params = [{transform_indices = @transform_0, window_bounds = array<i64: 256, 128>}, {pipeline_mode = #tpu.pipeline_mode<synchronous>, transform_indices = @transform_1, window_bounds = array<i64: 1, 128>}, {pipeline_mode = #tpu.pipeline_mode<synchronous>, transform_indices = @transform_2, window_bounds = array<i64: 1, 128>}, {transform_indices = @transform_3, window_bounds = array<i64: 256, 128>}, {transform_indices = @transform_4, window_bounds = array<i64: 256, 128>}]} {
    %c0 = arith.constant 0 : index
    %c0_0 = arith.constant 0 : index
    %0 = vector.load %arg1[%c0, %c0_0] : memref<256x128xf32, #tpu.memory_space<vmem>>, vector<256x128xf32>
    %c0_1 = arith.constant 0 : index
    %c0_2 = arith.constant 0 : index
    %1 = vector.load %arg2[%c0_1, %c0_2] : memref<1x128xf32, #tpu.memory_space<vmem>>, vector<1x128xf32>
    %2 = vector.broadcast %1 : vector<1x128xf32> to vector<256x128xf32>
    %3 = arith.mulf %0, %2 : vector<256x128xf32>
    %c0_3 = arith.constant 0 : index
    %c0_4 = arith.constant 0 : index
    %4 = vector.load %arg3[%c0_3, %c0_4] : memref<1x128xf32, #tpu.memory_space<vmem>>, vector<1x128xf32>
    %5 = vector.broadcast %4 : vector<1x128xf32> to vector<256x128xf32>
    %6 = arith.addf %3, %5 : vector<256x128xf32>
    %c0_5 = arith.constant 0 : index
    %c0_6 = arith.constant 0 : index
    %7 = vector.load %arg4[%c0_5, %c0_6] : memref<256x128xf32, #tpu.memory_space<vmem>>, vector<256x128xf32>
    %8 = arith.addf %6, %7 : vector<256x128xf32>
    %cst = arith.constant 0.000000e+00 : f32
    %9 = vector.broadcast %cst : f32 to vector<256x128xf32>
    %10 = arith.cmpf ogt, %8, %9 : vector<256x128xf32>
    %cst_7 = arith.constant 1.000000e-01 : f32
    %11 = vector.broadcast %cst_7 : f32 to vector<256x128xf32>
    %12 = arith.mulf %11, %8 : vector<256x128xf32>
    %13 = arith.select %10, %8, %12 : vector<256x128xi1>, vector<256x128xf32>
    %c0_8 = arith.constant 0 : index
    %c0_9 = arith.constant 0 : index
    %14 = vector.load %arg5[%c0_8, %c0_9] : memref<256x128xf32, #tpu.memory_space<vmem>>, vector<256x128xf32>
    tpu.vector_store %arg5[%c0_8, %c0_9], %13 {strides = array<i32>} : memref<256x128xf32, #tpu.memory_space<vmem>>, vector<256x128xf32>,
    return
  }
  func.func @transform_0(%arg0: i32) -> (i32, i32) {
    %c0_i32 = arith.constant 0 : i32
    %c0_i32_0 = arith.constant 0 : i32
    return %arg0, %c0_i32 : i32, i32
  }
  func.func @transform_1(%arg0: i32) -> (i32, i32) {
    %c0_i32 = arith.constant 0 : i32
    %c0_i32_0 = arith.constant 0 : i32
    %c0_i32_1 = arith.constant 0 : i32
    return %c0_i32, %c0_i32_0 : i32, i32
  }
  func.func @transform_2(%arg0: i32) -> (i32, i32) {
    %c0_i32 = arith.constant 0 : i32
    %c0_i32_0 = arith.constant 0 : i32
    %c0_i32_1 = arith.constant 0 : i32
    return %c0_i32, %c0_i32_0 : i32, i32
  }
  func.func @transform_3(%arg0: i32) -> (i32, i32) {
    %c0_i32 = arith.constant 0 : i32
    %c0_i32_0 = arith.constant 0 : i32
    return %arg0, %c0_i32 : i32, i32
  }
  func.func @transform_4(%arg0: i32) -> (i32, i32) {
    %c0_i32 = arith.constant 0 : i32
    %c0_i32_0 = arith.constant 0 : i32
    return %arg0, %c0_i32 : i32, i32
  }
}

</mosaic_0001>

<llo_original>
// kernel: bottleneck_forward.5
$region0: #{bottleneck_forward.5}
  #allocation0 [shape = 'u32[]', space=smem, size = 0x4, offset = 0x4, fixed_abs, tag = 'smem constant byte address 0x4 - core index']
  #allocation1 [shape = 'u32[144,128]{1,0:T(1,128)}', space=vmem, size = 0x12000, scoped, tag = 'internal scratch']
  %s0 = inlined_call_operand.vmem [shape: f32[512,128], index: 0, kind: input, shape index: {}]
  %s1 = inlined_call_operand.vmem [shape: f32[128,128], index: 1, kind: input, shape index: {}]
  %s2 = inlined_call_operand.vmem [shape: f32[512,128], index: 2, kind: output, shape index: {0}]
  %s3 = inlined_call_operand.vmem [shape: f32[2,8,128], index: 3, kind: output, shape index: {1}]
  %s4 = inlined_call_operand.vmem [shape: f32[2,8,128], index: 4, kind: output, shape index: {2}]
  %5 = xla_tuple %s2, %s3, %s4
  %s6 = sld [smem:[#allocation0]]
  $region57: #{bottleneck_forward.5} parent=0
    _
  %s8 = ssub.s32 1, %s6
  %s9 = scalar_select 0, %s8, %s6
  loop: start=0, step=1, limit=4
  $region2: #{bottleneck_forward.5} parent=0 // loop_pre_header
    _
  $region3: #{bottleneck_forward.5} parent=0 // loop_header
    %s11 = sphi 0, %s15
    %p12 = scmp.ge.s32.totalorder %s11, 4
    %s21 = sphi 0, %s23
    %s24 = sphi 0, %s21
    %s25 = sphi 0, %s24
    %s41 = sphi 0, %s25
    %s45 = sphi 0, %s45
    %s47 = sphi 0, %s45
    %s48 = sphi 0, %s47
    %s62 = sphi 0, %s48
    %s68 = sphi 0, %s70
    %s71 = sphi 0, %s68
    %s72 = sphi 0, %s71
    %s88 = sphi 0, %s72
    %s94 = sphi 0, %s96
    %s97 = sphi 0, %s94
    %s98 = sphi 0, %s97
    %s114 = sphi 0, %s98
    %s120 = sphi 0, %s122
    %s123 = sphi 0, %s120
    %s124 = sphi 0, %s123
    %s140 = sphi 0, %s124
  $region4: #{bottleneck_forward.5} parent=0 // loop_header_branch
    %14 = sbr.rel (%p12) target = $region8
  $region5: #{bottleneck_forward.5} parent=0 // loop_body
    %s16 = ssub.s32 %s11, 1
    %s17 = ssub.s32 %s11, 2
    %s18 = sadd.s32 %s11, 1
    %s19 = ssub.s32 %s11, %s18
    %p20 = scmp.eq.s32.totalorder %s19, 0
    %s22 = sadd.s32 %s21, 1
    %s23 = scalar_select %p20, %s21, %s22
    %p26 = pneg %p20
    %p27 = scmp.eq.s32.totalorder %s11, 1
    %p28 = por %p26, %p27
    %p29 = scmp.ne.s32.totalorder %s21, %s24
    %p30 = scmp.eq.s32.totalorder %s11, 0
    %p31 = por %p29, %p30
    %p32 = scmp.ne.s32.totalorder %s21, %s24
    %p33 = scmp.eq.s32.totalorder %s16, 1
    %p34 = por %p32, %p33
    %p35 = scmp.ne.s32.totalorder %s24, %s25
    %p36 = scmp.eq.s32.totalorder %s16, 0
    %p37 = por %p35, %p36
    %p38 = scmp.ne.s32.totalorder %s24, %s25
    %p39 = scmp.eq.s32.totalorder %s17, 1
    %p40 = por %p38, %p39
    %p42 = scmp.ne.s32.totalorder %s25, %s41
    %p43 = scmp.eq.s32.totalorder %s17, 0
    %p44 = por %p42, %p43
    %s46 = sadd.s32 %s45, 1
    %p49 = scmp.eq.s32.totalorder %s11, 1
    %p50 = scmp.ne.s32.totalorder %s45, %s47
    %p51 = scmp.eq.s32.totalorder %s11, 0
    %p52 = por %p50, %p51
    %p53 = scmp.ne.s32.totalorder %s45, %s47
    %p54 = scmp.eq.s32.totalorder %s16, 1
    %p55 = por %p53, %p54
    %p56 = scmp.ne.s32.totalorder %s47, %s48
    %p57 = scmp.eq.s32.totalorder %s16, 0
    %p58 = por %p56, %p57
    %p59 = scmp.ne.s32.totalorder %s47, %s48
    %p60 = scmp.eq.s32.totalorder %s17, 1
    %p61 = por %p59, %p60
    %p63 = scmp.ne.s32.totalorder %s48, %s62
    %p64 = scmp.eq.s32.totalorder %s17, 0
    %p65 = por %p63, %p64
    %s66 = ssub.s32 %s11, %s18
    %p67 = scmp.eq.s32.totalorder %s66, 0
    %s69 = sadd.s32 %s68, 1
    %s70 = scalar_select %p67, %s68, %s69
    %p73 = pneg %p67
    %p74 = scmp.eq.s32.totalorder %s11, 1
    %p75 = por %p73, %p74
    %p76 = scmp.ne.s32.totalorder %s68, %s71
    %p77 = scmp.eq.s32.totalorder %s11, 0
    %p78 = por %p76, %p77
    %p79 = scmp.ne.s32.totalorder %s68, %s71
    %p80 = scmp.eq.s32.totalorder %s16, 1
    %p81 = por %p79, %p80
    %p82 = scmp.ne.s32.totalorder %s71, %s72
    %p83 = scmp.eq.s32.totalorder %s16, 0
    %p84 = por %p82, %p83
    %p85 = scmp.ne.s32.totalorder %s71, %s72
    %p86 = scmp.eq.s32.totalorder %s17, 1
    %p87 = por %p85, %p86
    %p89 = scmp.ne.s32.totalorder %s72, %s88
    %p90 = scmp.eq.s32.totalorder %s17, 0
    %p91 = por %p89, %p90
    %s92 = ssub.s32 %s11, %s18
    %p93 = scmp.eq.s32.totalorder %s92, 0
    %s95 = sadd.s32 %s94, 1
    %s96 = scalar_select %p93, %s94, %s95
    %p99 = pneg %p93
    %p100 = scmp.eq.s32.totalorder %s11, 1
    %p101 = por %p99, %p100
    %p102 = scmp.ne.s32.totalorder %s94, %s97
    %p103 = scmp.eq.s32.totalorder %s11, 0
    %p104 = por %p102, %p103
    %p105 = scmp.ne.s32.totalorder %s94, %s97
    %p106 = scmp.eq.s32.totalorder %s16, 1
    %p107 = por %p105, %p106
    %p108 = scmp.ne.s32.totalorder %s97, %s98
    %p109 = scmp.eq.s32.totalorder %s16, 0
    %p110 = por %p108, %p109
    %p111 = scmp.ne.s32.totalorder %s97, %s98
    %p112 = scmp.eq.s32.totalorder %s17, 1
    %p113 = por %p111, %p112
    %p115 = scmp.ne.s32.totalorder %s98, %s114
    %p116 = scmp.eq.s32.totalorder %s17, 0
    %p117 = por %p115, %p116
    %s118 = ssub.s32 %s11, %s18
    %p119 = scmp.eq.s32.totalorder %s118, 0
    %s121 = sadd.s32 %s120, 1
    %s122 = scalar_select %p119, %s120, %s121
    %p125 = pneg %p119
    %p126 = scmp.eq.s32.totalorder %s11, 1
    %p127 = por %p125, %p126
    %p128 = scmp.ne.s32.totalorder %s120, %s123
    %p129 = scmp.eq.s32.totalorder %s11, 0
    %p130 = por %p128, %p129
    %p131 = scmp.ne.s32.totalorder %s120, %s123
    %p132 = scmp.eq.s32.totalorder %s16, 1
    %p133 = por %p131, %p132
    %p134 = scmp.ne.s32.totalorder %s123, %s124
    %p135 = scmp.eq.s32.totalorder %s16, 0
    %p136 = por %p134, %p135
    %p137 = scmp.ne.s32.totalorder %s123, %s124
    %p138 = scmp.eq.s32.totalorder %s17, 1
    %p139 = por %p137, %p138
    %p141 = scmp.ne.s32.totalorder %s124, %s140
    %p142 = scmp.eq.s32.totalorder %s17, 0
    %p143 = por %p141, %p142
    %p144 = scmp.le.s32.totalorder 1, %s11
    %p145 = scmp.lt.s32.totalorder %s11, 3
    %p146 = pnand %p144, %p145
    %p147 = pneg %p146
    // Predicated region
    $region9: #{bottleneck_forward.5} parent=5 // pred_check
      _
    $region10: #{bottleneck_forward.5} parent=5 // pred_check_branch
      %149 = sbr.rel (%p146) target = $region12
    $region11: #{bottleneck_forward.5} parent=5 // pred_region
      %s150 = ssub.s32 %s11, 1
      // Predicated region
      $region13: #{bottleneck_forward.5} parent=11 // pred_check
        %p151 = pneg %p58
      $region14: #{bottleneck_forward.5} parent=11 // pred_check_branch
        %153 = sbr.rel (%p151) target = $region16
      $region15: #{bottleneck_forward.5} parent=11 // pred_region
        _
      $region16: #{bottleneck_forward.5} parent=11 // pred_fallthru
        _
    $region12: #{bottleneck_forward.5} parent=5 // pred_fallthru
      _
    %p154 = scmp.lt.s32.totalorder %s11, 2
    // Predicated region
    $region17: #{bottleneck_forward.5} parent=5 // pred_check
      %p155 = pneg %p154
    $region18: #{bottleneck_forward.5} parent=5 // pred_check_branch
      %157 = sbr.rel (%p155) target = $region20
    $region19: #{bottleneck_forward.5} parent=5 // pred_region
      // Predicated region
      $region21: #{bottleneck_forward.5} parent=19 // pred_check
        %p158 = pneg %p31
      $region22: #{bottleneck_forward.5} parent=19 // pred_check_branch
        %160 = sbr.rel (%p158) target = $region24
      $region23: #{bottleneck_forward.5} parent=19 // pred_region
        %s161 = smul.u32 32, %s11
        %p162 = scmp.lt.s32.totalorder %s161, 63
        %s163 = scalar_select %p162, %s161, 63
        %s164 = smul.addr %s163, 8
        %s165 = scalar_lea.vmem %s0, %s164
        %s166 = smul.u32 32, %s11
      $region24: #{bottleneck_forward.5} parent=19 // pred_fallthru
        _
    $region20: #{bottleneck_forward.5} parent=5 // pred_fallthru
      _
    %p167 = scmp.le.s32.totalorder 1, %s11
    %p168 = scmp.lt.s32.totalorder %s11, 3
    %p169 = pnand %p167, %p168
    %p170 = pneg %p169
    // Predicated region
    $region25: #{bottleneck_forward.5} parent=5 // pred_check
      _
    $region26: #{bottleneck_forward.5} parent=5 // pred_check_branch
      %172 = sbr.rel (%p169) target = $region28
    $region27: #{bottleneck_forward.5} parent=5 // pred_region
      %s173 = ssub.s32 %s11, 1
      %s174 = smul.u32 32, %s16
      %p175 = scmp.lt.s32.totalorder %s174, 63
      %s176 = scalar_select %p175, %s174, 63
      %s177 = smul.addr %s176, 8
      %s178 = scalar_lea.vmem %s0, %s177
      %p179 = pneg %p37
      %p180 = pneg %p34
      %p181 = pneg %p58
      %p182 = pneg %p55
      %p183 = pneg %p84
      %p184 = pneg %p81
      %s185 = smul.u32 32, %s16
      %p186 = scmp.lt.s32.totalorder %s185, 63
      %s187 = scalar_select %p186, %s185, 63
      %s188 = smul.addr %s187, 8
      %s189 = scalar_lea.vmem %s2, %s188
      %p190 = pneg %p110
      %p191 = pneg %p107
      %p192 = scmp.lt.s32.totalorder %s16, 1
      %s193 = scalar_select %p192, %s16, 1
      %s194 = smul.addr %s193, 8
      %s195 = scalar_lea.vmem %s3, %s194
      %p196 = pneg %p136
      %p197 = pneg %p133
      %p198 = scmp.lt.s32.totalorder %s16, 1
      %s199 = scalar_select %p198, %s16, 1
      %s200 = smul.addr %s199, 8
      %s201 = scalar_lea.vmem %s4, %s200
      %s202 = smul.u32 32, %s16
      %p203 = scmp.lt.s32.totalorder %s202, 63
      %s204 = scalar_select %p203, %s202, 63
      %s205 = smul.addr %s204, 8
      %s206 = scalar_lea.vmem %s0, %s205
      %s207 = smul.u32 32, %s16
      %s208 = smul.u32 32, %s16
      %p209 = scmp.lt.s32.totalorder %s208, 63
      %s210 = scalar_select %p209, %s208, 63
      %s211 = smul.addr %s210, 8
      %s212 = scalar_lea.vmem %s2, %s211
      %s213 = smul.u32 32, %s16
      %p214 = scmp.lt.s32.totalorder %s16, 1
      %s215 = scalar_select %p214, %s16, 1
      %s216 = smul.addr %s215, 8
      %s217 = scalar_lea.vmem %s3, %s216
      %p218 = scmp.lt.s32.totalorder %s16, 1
      %s219 = scalar_select %p218, %s16, 1
      %s220 = smul.addr %s219, 8
      %s221 = scalar_lea.vmem %s4, %s220
      %v222 = vld [vmem:[%s206] sm:$0xff]
      %v223 = vld [vmem:[%s206 + $0x8] sm:$0xff]
      %v224 = vld [vmem:[%s206 + $0x10] sm:$0xff]
      %v225 = vld [vmem:[%s206 + $0x18] sm:$0xff]
      %v226 = vld [vmem:[%s206 + $0x20] sm:$0xff]
      %v227 = vld [vmem:[%s206 + $0x28] sm:$0xff]
      %v228 = vld [vmem:[%s206 + $0x30] sm:$0xff]
      %v229 = vld [vmem:[%s206 + $0x38] sm:$0xff]
      %v230 = vld [vmem:[%s206 + $0x40] sm:$0xff]
      %v231 = vld [vmem:[%s206 + $0x48] sm:$0xff]
      %v232 = vld [vmem:[%s206 + $0x50] sm:$0xff]
      %v233 = vld [vmem:[%s206 + $0x58] sm:$0xff]
      %v234 = vld [vmem:[%s206 + $0x60] sm:$0xff]
      %v235 = vld [vmem:[%s206 + $0x68] sm:$0xff]
      %v236 = vld [vmem:[%s206 + $0x70] sm:$0xff]
      %v237 = vld [vmem:[%s206 + $0x78] sm:$0xff]
      %v238 = vld [vmem:[%s206 + $0x80] sm:$0xff]
      %v239 = vld [vmem:[%s206 + $0x88] sm:$0xff]
      %v240 = vld [vmem:[%s206 + $0x90] sm:$0xff]
      %v241 = vld [vmem:[%s206 + $0x98] sm:$0xff]
      %v242 = vld [vmem:[%s206 + $0xa0] sm:$0xff]
      %v243 = vld [vmem:[%s206 + $0xa8] sm:$0xff]
      %v244 = vld [vmem:[%s206 + $0xb0] sm:$0xff]
      %v245 = vld [vmem:[%s206 + $0xb8] sm:$0xff]
      %v246 = vld [vmem:[%s206 + $0xc0] sm:$0xff]
      %v247 = vld [vmem:[%s206 + $0xc8] sm:$0xff]
      %v248 = vld [vmem:[%s206 + $0xd0] sm:$0xff]
      %v249 = vld [vmem:[%s206 + $0xd8] sm:$0xff]
      %v250 = vld [vmem:[%s206 + $0xe0] sm:$0xff]
      %v251 = vld [vmem:[%s206 + $0xe8] sm:$0xff]
      %v252 = vld [vmem:[%s206 + $0xf0] sm:$0xff]
      %v253 = vld [vmem:[%s206 + $0xf8] sm:$0xff]
      %v254 = vld [vmem:[%s1] sm:$0xff]
      %v255 = vld [vmem:[%s1 + $0x8] sm:$0xff]
      %v256 = vld [vmem:[%s1 + $0x10] sm:$0xff]
      %v257 = vld [vmem:[%s1 + $0x18] sm:$0xff]
      %v258 = vld [vmem:[%s1 + $0x20] sm:$0xff]
      %v259 = vld [vmem:[%s1 + $0x28] sm:$0xff]
      %v260 = vld [vmem:[%s1 + $0x30] sm:$0xff]
      %v261 = vld [vmem:[%s1 + $0x38] sm:$0xff]
      %v262 = vld [vmem:[%s1 + $0x40] sm:$0xff]
      %v263 = vld [vmem:[%s1 + $0x48] sm:$0xff]
      %v264 = vld [vmem:[%s1 + $0x50] sm:$0xff]
      %v265 = vld [vmem:[%s1 + $0x58] sm:$0xff]
      %v266 = vld [vmem:[%s1 + $0x60] sm:$0xff]
      %v267 = vld [vmem:[%s1 + $0x68] sm:$0xff]
      %v268 = vld [vmem:[%s1 + $0x70] sm:$0xff]
      %v269 = vld [vmem:[%s1 + $0x78] sm:$0xff]
      %270 = vmatprep.subr.mxu0 0.0
      %271 = vmatpush1.msra.mxu0 %v269
      %272 = vmatprep.subr.mxu0 0.0
      %273 = vmatpush1.msra.mxu0 %v268
      %274 = vmatprep.subr.mxu0 0.0
      %275 = vmatpush1.msra.mxu0 %v267
      %276 = vmatprep.subr.mxu0 0.0
      %277 = vmatpush1.msra.mxu0 %v266
      %278 = vmatprep.subr.mxu0 0.0
      %279 = vmatpush1.msra.mxu0 %v265
      %280 = vmatprep.subr.mxu0 0.0
      %281 = vmatpush1.msra.mxu0 %v264
      %282 = vmatprep.subr.mxu0 0.0
      %283 = vmatpush1.msra.mxu0 %v263
      %284 = vmatprep.subr.mxu0 0.0
      %285 = vmatpush1.msra.mxu0 %v262
      %286 = vmatprep.subr.mxu0 0.0
      %287 = vmatpush1.msra.mxu0 %v261
      %288 = vmatprep.subr.mxu0 0.0
      %289 = vmatpush1.msra.mxu0 %v260
      %290 = vmatprep.subr.mxu0 0.0
      %291 = vmatpush1.msra.mxu0 %v259
      %292 = vmatprep.subr.mxu0 0.0
      %293 = vmatpush1.msra.mxu0 %v258
      %294 = vmatprep.subr.mxu0 0.0
      %295 = vmatpush1.msra.mxu0 %v257
      %296 = vmatprep.subr.mxu0 0.0
      %297 = vmatpush1.msra.mxu0 %v256
      %298 = vmatprep.subr.mxu0 0.0
      %299 = vmatpush1.msra.mxu0 %v255
      %300 = vmatprep.subr.mxu0 0.0
      %301 = vmatpush1.msra.mxu0 %v254
      %302 = vmatprep.subr.mxu0 0.0
      %303 = vmatpush2.msra.mxu0 0.0
      %304 = vmatprep.subr.mxu0 0.0
      %305 = vmatpush2.msra.mxu0 0.0
      %306 = vmatprep.subr.mxu0 0.0
      %307 = vmatpush2.msra.mxu0 0.0
      %308 = vmatprep.subr.mxu0 0.0
      %309 = vmatpush2.msra.mxu0 0.0
      %310 = vmatprep.subr.mxu0 0.0
      %311 = vmatpush2.msra.mxu0 0.0
      %312 = vmatprep.subr.mxu0 0.0
      %313 = vmatpush2.msra.mxu0 0.0
      %314 = vmatprep.subr.mxu0 0.0
      %315 = vmatpush2.msra.mxu0 0.0
      %316 = vmatprep.subr.mxu0 0.0
      %317 = vmatpush2.msra.mxu0 0.0
      %318 = vmatprep.subr.mxu0 0.0
      %319 = vmatpush2.msra.mxu0 0.0
      %320 = vmatprep.subr.mxu0 0.0
      %321 = vmatpush2.msra.mxu0 0.0
      %322 = vmatprep.subr.mxu0 0.0
      %323 = vmatpush2.msra.mxu0 0.0
      %324 = vmatprep.subr.mxu0 0.0
      %325 = vmatpush2.msra.mxu0 0.0
      %326 = vmatprep.subr.mxu0 0.0
      %327 = vmatpush2.msra.mxu0 0.0
      %328 = vmatprep.subr.mxu0 0.0
      %329 = vmatpush2.msra.mxu0 0.0
      %330 = vmatprep.subr.mxu0 0.0
      %331 = vmatpush2.msra.mxu0 0.0
      %332 = vmatprep.subr.mxu0 0.0
      %333 = vmatpush2.msra.mxu0 0.0
      %334 = vmatprep.mubr.f32.mxu0 0.0
      %335 = vmatmul.mubr.f32.gmra.mxu0 %v222
      %v336 = vpop.f32.mrf.mxu0
      %v337 = vadd.f32 0.0, %v336
      %v338 = vpop.f32.mrf.mxu0
      %339 = vmatprep.mubr.f32.mxu0 0.0
      %340 = vmatmul.mubr.f32.gmra.mxu0 %v223
      %v341 = vpop.f32.mrf.mxu0
      %v342 = vadd.f32 0.0, %v341
      %v343 = vpop.f32.mrf.mxu0
      %344 = vmatprep.mubr.f32.mxu0 0.0
      %345 = vmatmul.mubr.f32.gmra.mxu0 %v224
      %v346 = vpop.f32.mrf.mxu0
      %v347 = vadd.f32 0.0, %v346
      %v348 = vpop.f32.mrf.mxu0
      %349 = vmatprep.mubr.f32.mxu0 0.0
      %350 = vmatmul.mubr.f32.gmra.mxu0 %v225
      %v351 = vpop.f32.mrf.mxu0
      %v352 = vadd.f32 0.0, %v351
      %v353 = vpop.f32.mrf.mxu0
      %354 = vmatprep.mubr.f32.mxu0 0.0
      %355 = vmatmul.mubr.f32.gmra.mxu0 %v226
      %v356 = vpop.f32.mrf.mxu0
      %v357 = vadd.f32 0.0, %v356
      %v358 = vpop.f32.mrf.mxu0
      %359 = vmatprep.mubr.f32.mxu0 0.0
      %360 = vmatmul.mubr.f32.gmra.mxu0 %v227
      %v361 = vpop.f32.mrf.mxu0
      %v362 = vadd.f32 0.0, %v361
      %v363 = vpop.f32.mrf.mxu0
      %364 = vmatprep.mubr.f32.mxu0 0.0
      %365 = vmatmul.mubr.f32.gmra.mxu0 %v228
      %v366 = vpop.f32.mrf.mxu0
      %v367 = vadd.f32 0.0, %v366
      %v368 = vpop.f32.mrf.mxu0
      %369 = vmatprep.mubr.f32.mxu0 0.0
      %370 = vmatmul.mubr.f32.gmra.mxu0 %v229
      %v371 = vpop.f32.mrf.mxu0
      %v372 = vadd.f32 0.0, %v371
      %v373 = vpop.f32.mrf.mxu0
      %374 = vmatprep.mubr.f32.mxu0 0.0
      %375 = vmatmul.mubr.f32.gmra.mxu0 %v230
      %v376 = vpop.f32.mrf.mxu0
      %v377 = vadd.f32 0.0, %v376
      %v378 = vpop.f32.mrf.mxu0
      %379 = vmatprep.mubr.f32.mxu0 0.0
      %380 = vmatmul.mubr.f32.gmra.mxu0 %v231
      %v381 = vpop.f32.mrf.mxu0
      %v382 = vadd.f32 0.0, %v381
      %v383 = vpop.f32.mrf.mxu0
      %384 = vmatprep.mubr.f32.mxu0 0.0
      %385 = vmatmul.mubr.f32.gmra.mxu0 %v232
      %v386 = vpop.f32.mrf.mxu0
      %v387 = vadd.f32 0.0, %v386
      %v388 = vpop.f32.mrf.mxu0
      %389 = vmatprep.mubr.f32.mxu0 0.0
      %390 = vmatmul.mubr.f32.gmra.mxu0 %v233
      %v391 = vpop.f32.mrf.mxu0
      %v392 = vadd.f32 0.0, %v391
      %v393 = vpop.f32.mrf.mxu0
      %394 = vmatprep.mubr.f32.mxu0 0.0
      %395 = vmatmul.mubr.f32.gmra.mxu0 %v234
      %v396 = vpop.f32.mrf.mxu0
      %v397 = vadd.f32 0.0, %v396
      %v398 = vpop.f32.mrf.mxu0
      %399 = vmatprep.mubr.f32.mxu0 0.0
      %400 = vmatmul.mubr.f32.gmra.mxu0 %v235
      %v401 = vpop.f32.mrf.mxu0
      %v402 = vadd.f32 0.0, %v401
      %v403 = vpop.f32.mrf.mxu0
      %404 = vmatprep.mubr.f32.mxu0 0.0
      %405 = vmatmul.mubr.f32.gmra.mxu0 %v236
      %v406 = vpop.f32.mrf.mxu0
      %v407 = vadd.f32 0.0, %v406
      %v408 = vpop.f32.mrf.mxu0
      %409 = vmatprep.mubr.f32.mxu0 0.0
      %410 = vmatmul.mubr.f32.gmra.mxu0 %v237
      %v411 = vpop.f32.mrf.mxu0
      %v412 = vadd.f32 0.0, %v411
      %v413 = vpop.f32.mrf.mxu0
      %414 = vmatprep.mubr.f32.mxu0 0.0
      %415 = vmatmul.mubr.f32.gmra.mxu0 %v238
      %v416 = vpop.f32.mrf.mxu0
      %v417 = vadd.f32 0.0, %v416
      %v418 = vpop.f32.mrf.mxu0
      %419 = vmatprep.mubr.f32.mxu0 0.0
      %420 = vmatmul.mubr.f32.gmra.mxu0 %v239
      %v421 = vpop.f32.mrf.mxu0
      %v422 = vadd.f32 0.0, %v421
      %v423 = vpop.f32.mrf.mxu0
      %424 = vmatprep.mubr.f32.mxu0 0.0
      %425 = vmatmul.mubr.f32.gmra.mxu0 %v240
      %v426 = vpop.f32.mrf.mxu0
      %v427 = vadd.f32 0.0, %v426
      %v428 = vpop.f32.mrf.mxu0
      %429 = vmatprep.mubr.f32.mxu0 0.0
      %430 = vmatmul.mubr.f32.gmra.mxu0 %v241
      %v431 = vpop.f32.mrf.mxu0
      %v432 = vadd.f32 0.0, %v431
      %v433 = vpop.f32.mrf.mxu0
      %434 = vmatprep.mubr.f32.mxu0 0.0
      %435 = vmatmul.mubr.f32.gmra.mxu0 %v242
      %v436 = vpop.f32.mrf.mxu0
      %v437 = vadd.f32 0.0, %v436
      %v438 = vpop.f32.mrf.mxu0
      %439 = vmatprep.mubr.f32.mxu0 0.0
      %440 = vmatmul.mubr.f32.gmra.mxu0 %v243
      %v441 = vpop.f32.mrf.mxu0
      %v442 = vadd.f32 0.0, %v441
      %v443 = vpop.f32.mrf.mxu0
      %444 = vmatprep.mubr.f32.mxu0 0.0
      %445 = vmatmul.mubr.f32.gmra.mxu0 %v244
      %v446 = vpop.f32.mrf.mxu0
      %v447 = vadd.f32 0.0, %v446
      %v448 = vpop.f32.mrf.mxu0
      %449 = vmatprep.mubr.f32.mxu0 0.0
      %450 = vmatmul.mubr.f32.gmra.mxu0 %v245
      %v451 = vpop.f32.mrf.mxu0
      %v452 = vadd.f32 0.0, %v451
      %v453 = vpop.f32.mrf.mxu0
      %454 = vmatprep.mubr.f32.mxu0 0.0
      %455 = vmatmul.mubr.f32.gmra.mxu0 %v246
      %v456 = vpop.f32.mrf.mxu0
      %v457 = vadd.f32 0.0, %v456
      %v458 = vpop.f32.mrf.mxu0
      %459 = vmatprep.mubr.f32.mxu0 0.0
      %460 = vmatmul.mubr.f32.gmra.mxu0 %v247
      %v461 = vpop.f32.mrf.mxu0
      %v462 = vadd.f32 0.0, %v461
      %v463 = vpop.f32.mrf.mxu0
      %464 = vmatprep.mubr.f32.mxu0 0.0
      %465 = vmatmul.mubr.f32.gmra.mxu0 %v248
      %v466 = vpop.f32.mrf.mxu0
      %v467 = vadd.f32 0.0, %v466
      %v468 = vpop.f32.mrf.mxu0
      %469 = vmatprep.mubr.f32.mxu0 0.0
      %470 = vmatmul.mubr.f32.gmra.mxu0 %v249
      %v471 = vpop.f32.mrf.mxu0
      %v472 = vadd.f32 0.0, %v471
      %v473 = vpop.f32.mrf.mxu0
      %474 = vmatprep.mubr.f32.mxu0 0.0
      %475 = vmatmul.mubr.f32.gmra.mxu0 %v250
      %v476 = vpop.f32.mrf.mxu0
      %v477 = vadd.f32 0.0, %v476
      %v478 = vpop.f32.mrf.mxu0
      %479 = vmatprep.mubr.f32.mxu0 0.0
      %480 = vmatmul.mubr.f32.gmra.mxu0 %v251
      %v481 = vpop.f32.mrf.mxu0
      %v482 = vadd.f32 0.0, %v481
      %v483 = vpop.f32.mrf.mxu0
      %484 = vmatprep.mubr.f32.mxu0 0.0
      %485 = vmatmul.mubr.f32.gmra.mxu0 %v252
      %v486 = vpop.f32.mrf.mxu0
      %v487 = vadd.f32 0.0, %v486
      %v488 = vpop.f32.mrf.mxu0
      %489 = vmatprep.mubr.f32.mxu0 0.0
      %490 = vmatmul.mubr.f32.gmra.mxu0 %v253
      %v491 = vpop.f32.mrf.mxu0
      %v492 = vadd.f32 0.0, %v491
      %v493 = vpop.f32.mrf.mxu0
      %494 = vdwg.mxu0
      %495 = vst [vmem:[%s212] sm:$0xff] %v337
      %496 = vst [vmem:[%s212 + $0x8] sm:$0xff] %v342
      %497 = vst [vmem:[%s212 + $0x10] sm:$0xff] %v347
      %498 = vst [vmem:[%s212 + $0x18] sm:$0xff] %v352
      %499 = vst [vmem:[%s212 + $0x20] sm:$0xff] %v357
      %500 = vst [vmem:[%s212 + $0x28] sm:$0xff] %v362
      %501 = vst [vmem:[%s212 + $0x30] sm:$0xff] %v367
      %502 = vst [vmem:[%s212 + $0x38] sm:$0xff] %v372
      %503 = vst [vmem:[%s212 + $0x40] sm:$0xff] %v377
      %504 = vst [vmem:[%s212 + $0x48] sm:$0xff] %v382
      %505 = vst [vmem:[%s212 + $0x50] sm:$0xff] %v387
      %506 = vst [vmem:[%s212 + $0x58] sm:$0xff] %v392
      %507 = vst [vmem:[%s212 + $0x60] sm:$0xff] %v397
      %508 = vst [vmem:[%s212 + $0x68] sm:$0xff] %v402
      %509 = vst [vmem:[%s212 + $0x70] sm:$0xff] %v407
      %510 = vst [vmem:[%s212 + $0x78] sm:$0xff] %v412
      %511 = vst [vmem:[%s212 + $0x80] sm:$0xff] %v417
      %512 = vst [vmem:[%s212 + $0x88] sm:$0xff] %v422
      %513 = vst [vmem:[%s212 + $0x90] sm:$0xff] %v427
      %514 = vst [vmem:[%s212 + $0x98] sm:$0xff] %v432
      %515 = vst [vmem:[%s212 + $0xa0] sm:$0xff] %v437
      %516 = vst [vmem:[%s212 + $0xa8] sm:$0xff] %v442
      %517 = vst [vmem:[%s212 + $0xb0] sm:$0xff] %v447
      %518 = vst [vmem:[%s212 + $0xb8] sm:$0xff] %v452
      %519 = vst [vmem:[%s212 + $0xc0] sm:$0xff] %v457
      %520 = vst [vmem:[%s212 + $0xc8] sm:$0xff] %v462
      %521 = vst [vmem:[%s212 + $0xd0] sm:$0xff] %v467
      %522 = vst [vmem:[%s212 + $0xd8] sm:$0xff] %v472
      %523 = vst [vmem:[%s212 + $0xe0] sm:$0xff] %v477
      %524 = vst [vmem:[%s212 + $0xe8] sm:$0xff] %v482
      %525 = vst [vmem:[%s212 + $0xf0] sm:$0xff] %v487
      %526 = vst [vmem:[%s212 + $0xf8] sm:$0xff] %v492
      %v527 = vadd.f32 %v337, %v342
      %v528 = vadd.f32 %v527, %v347
      %v529 = vadd.f32 %v528, %v352
      %v530 = vadd.f32 %v529, %v357
      %v531 = vadd.f32 %v530, %v362
      %v532 = vadd.f32 %v531, %v367
      %v533 = vadd.f32 %v532, %v372
      %v534 = vadd.f32 %v533, %v377
      %v535 = vadd.f32 %v534, %v382
      %v536 = vadd.f32 %v535, %v387
      %v537 = vadd.f32 %v536, %v392
      %v538 = vadd.f32 %v537, %v397
      %v539 = vadd.f32 %v538, %v402
      %v540 = vadd.f32 %v539, %v407
      %v541 = vadd.f32 %v540, %v412
      %v542 = vadd.f32 %v541, %v417
      %v543 = vadd.f32 %v542, %v422
      %v544 = vadd.f32 %v543, %v427
      %v545 = vadd.f32 %v544, %v432
      %v546 = vadd.f32 %v545, %v437
      %v547 = vadd.f32 %v546, %v442
      %v548 = vadd.f32 %v547, %v447
      %v549 = vadd.f32 %v548, %v452
      %v550 = vadd.f32 %v549, %v457
      %v551 = vadd.f32 %v550, %v462
      %v552 = vadd.f32 %v551, %v467
      %v553 = vadd.f32 %v552, %v472
      %v554 = vadd.f32 %v553, %v477
      %v555 = vadd.f32 %v554, %v482
      %v556 = vadd.f32 %v555, %v487
      %v557 = vadd.f32 %v556, %v492
      %v558 = vrot.slane %v557, 4
      %v559 = vadd.f32 %v557, %v558
      %v560 = vrot.slane %v559, 2
      %v561 = vadd.f32 %v559, %v560
      %v562 = vrot.slane %v561, 1
      %v563 = vadd.f32 %v561, %v562
      %564 = vst [vmem:[%s217] sm:$0xff] %v563
      %v565 = vmul.f32 %v337, %v337
      %v566 = vmul.f32 %v342, %v342
      %v567 = vmul.f32 %v347, %v347
      %v568 = vmul.f32 %v352, %v352
      %v569 = vmul.f32 %v357, %v357
      %v570 = vmul.f32 %v362, %v362
      %v571 = vmul.f32 %v367, %v367
      %v572 = vmul.f32 %v372, %v372
      %v573 = vmul.f32 %v377, %v377
      %v574 = vmul.f32 %v382, %v382
      %v575 = vmul.f32 %v387, %v387
      %v576 = vmul.f32 %v392, %v392
      %v577 = vmul.f32 %v397, %v397
      %v578 = vmul.f32 %v402, %v402
      %v579 = vmul.f32 %v407, %v407
      %v580 = vmul.f32 %v412, %v412
      %v581 = vmul.f32 %v417, %v417
      %v582 = vmul.f32 %v422, %v422
      %v583 = vmul.f32 %v427, %v427
      %v584 = vmul.f32 %v432, %v432
      %v585 = vmul.f32 %v437, %v437
      %v586 = vmul.f32 %v442, %v442
      %v587 = vmul.f32 %v447, %v447
      %v588 = vmul.f32 %v452, %v452
      %v589 = vmul.f32 %v457, %v457
      %v590 = vmul.f32 %v462, %v462
      %v591 = vmul.f32 %v467, %v467
      %v592 = vmul.f32 %v472, %v472
      %v593 = vmul.f32 %v477, %v477
      %v594 = vmul.f32 %v482, %v482
      %v595 = vmul.f32 %v487, %v487
      %v596 = vmul.f32 %v492, %v492
      %v597 = vadd.f32 %v565, %v566
      %v598 = vadd.f32 %v597, %v567
      %v599 = vadd.f32 %v598, %v568
      %v600 = vadd.f32 %v599, %v569
      %v601 = vadd.f32 %v600, %v570
      %v602 = vadd.f32 %v601, %v571
      %v603 = vadd.f32 %v602, %v572
      %v604 = vadd.f32 %v603, %v573
      %v605 = vadd.f32 %v604, %v574
      %v606 = vadd.f32 %v605, %v575
      %v607 = vadd.f32 %v606, %v576
      %v608 = vadd.f32 %v607, %v577
      %v609 = vadd.f32 %v608, %v578
      %v610 = vadd.f32 %v609, %v579
      %v611 = vadd.f32 %v610, %v580
      %v612 = vadd.f32 %v611, %v581
      %v613 = vadd.f32 %v612, %v582
      %v614 = vadd.f32 %v613, %v583
      %v615 = vadd.f32 %v614, %v584
      %v616 = vadd.f32 %v615, %v585
      %v617 = vadd.f32 %v616, %v586
      %v618 = vadd.f32 %v617, %v587
      %v619 = vadd.f32 %v618, %v588
      %v620 = vadd.f32 %v619, %v589
      %v621 = vadd.f32 %v620, %v590
      %v622 = vadd.f32 %v621, %v591
      %v623 = vadd.f32 %v622, %v592
      %v624 = vadd.f32 %v623, %v593
      %v625 = vadd.f32 %v624, %v594
      %v626 = vadd.f32 %v625, %v595
      %v627 = vadd.f32 %v626, %v596
      %v628 = vrot.slane %v627, 4
      %v629 = vadd.f32 %v627, %v628
      %v630 = vrot.slane %v629, 2
      %v631 = vadd.f32 %v629, %v630
      %v632 = vrot.slane %v631, 1
      %v633 = vadd.f32 %v631, %v632
      %634 = vst [vmem:[%s221] sm:$0xff] %v633
      %s635 = smul.u32 32, %s16
      %p636 = scmp.lt.s32.totalorder %s635, 63
      %s637 = scalar_select %p636, %s635, 63
      %s638 = smul.addr %s637, 8
      %s639 = scalar_lea.vmem %s2, %s638
      %p640 = scmp.lt.s32.totalorder %s16, 1
      %s641 = scalar_select %p640, %s16, 1
      %s642 = smul.addr %s641, 8
      %s643 = scalar_lea.vmem %s3, %s642
      %p644 = scmp.lt.s32.totalorder %s16, 1
      %s645 = scalar_select %p644, %s16, 1
      %s646 = smul.addr %s645, 8
      %s647 = scalar_lea.vmem %s4, %s646
      // Predicated region
      $region29: #{bottleneck_forward.5} parent=27 // pred_check
        %p648 = pneg %p81
      $region30: #{bottleneck_forward.5} parent=27 // pred_check_branch
        %650 = sbr.rel (%p648) target = $region32
      $region31: #{bottleneck_forward.5} parent=27 // pred_region
        %s651 = smul.u32 32, %s16
      $region32: #{bottleneck_forward.5} parent=27 // pred_fallthru
        _
      // Predicated region
      $region33: #{bottleneck_forward.5} parent=27 // pred_check
        %p652 = pneg %p107
      $region34: #{bottleneck_forward.5} parent=27 // pred_check_branch
        %654 = sbr.rel (%p652) target = $region36
      $region35: #{bottleneck_forward.5} parent=27 // pred_region
        _
      $region36: #{bottleneck_forward.5} parent=27 // pred_fallthru
        _
      // Predicated region
      $region37: #{bottleneck_forward.5} parent=27 // pred_check
        %p655 = pneg %p133
      $region38: #{bottleneck_forward.5} parent=27 // pred_check_branch
        %657 = sbr.rel (%p655) target = $region40
      $region39: #{bottleneck_forward.5} parent=27 // pred_region
        _
      $region40: #{bottleneck_forward.5} parent=27 // pred_fallthru
        _
    $region28: #{bottleneck_forward.5} parent=5 // pred_fallthru
      _
    %p658 = scmp.le.s32.totalorder 2, %s11
    // Predicated region
    $region41: #{bottleneck_forward.5} parent=5 // pred_check
      %p659 = pneg %p658
    $region42: #{bottleneck_forward.5} parent=5 // pred_check_branch
      %661 = sbr.rel (%p659) target = $region44
    $region43: #{bottleneck_forward.5} parent=5 // pred_region
      %s662 = ssub.s32 %s11, 2
      // Predicated region
      $region45: #{bottleneck_forward.5} parent=43 // pred_check
        %p663 = pneg %p87
      $region46: #{bottleneck_forward.5} parent=43 // pred_check_branch
        %665 = sbr.rel (%p663) target = $region48
      $region47: #{bottleneck_forward.5} parent=43 // pred_region
        %s666 = smul.u32 32, %s17
        %p667 = scmp.lt.s32.totalorder %s666, 63
        %s668 = scalar_select %p667, %s666, 63
        %s669 = smul.addr %s668, 8
        %s670 = scalar_lea.vmem %s2, %s669
      $region48: #{bottleneck_forward.5} parent=43 // pred_fallthru
        _
      // Predicated region
      $region49: #{bottleneck_forward.5} parent=43 // pred_check
        %p671 = pneg %p113
      $region50: #{bottleneck_forward.5} parent=43 // pred_check_branch
        %673 = sbr.rel (%p671) target = $region52
      $region51: #{bottleneck_forward.5} parent=43 // pred_region
        %p674 = scmp.lt.s32.totalorder %s17, 1
        %s675 = scalar_select %p674, %s17, 1
        %s676 = smul.addr %s675, 8
        %s677 = scalar_lea.vmem %s3, %s676
      $region52: #{bottleneck_forward.5} parent=43 // pred_fallthru
        _
      // Predicated region
      $region53: #{bottleneck_forward.5} parent=43 // pred_check
        %p678 = pneg %p139
      $region54: #{bottleneck_forward.5} parent=43 // pred_check_branch
        %680 = sbr.rel (%p678) target = $region56
      $region55: #{bottleneck_forward.5} parent=43 // pred_region
        %p681 = scmp.lt.s32.totalorder %s17, 1
        %s682 = scalar_select %p681, %s17, 1
        %s683 = smul.addr %s682, 8
        %s684 = scalar_lea.vmem %s4, %s683
      $region56: #{bottleneck_forward.5} parent=43 // pred_fallthru
        _
    $region44: #{bottleneck_forward.5} parent=5 // pred_fallthru
      _
  $region6: #{bottleneck_forward.5} parent=0 // loop_footer
    %s15 = sadd.s32 1, %s11
  $region7: #{bottleneck_forward.5} parent=0 // loop_footer_branch
    %10 = sbr.rel target = $region3
  $region8: #{bottleneck_forward.5} parent=0 // loop_exit
    _

// kernel: bottleneck_forward.6
$region0: #{bottleneck_forward.6}
  #allocation0 [shape = 'u32[]', space=smem, size = 0x4, offset = 0x4, fixed_abs, tag = 'smem constant byte address 0x4 - core index']
  #allocation1 [shape = 'u32[144,128]{1,0:T(1,128)}', space=vmem, size = 0x12000, scoped, tag = 'internal scratch']
  %s0 = inlined_call_operand.vmem [shape: f32[512,128], index: 0, kind: input, shape index: {}]
  %s1 = inlined_call_operand.vmem [shape: f32[1,128], index: 1, kind: input, shape index: {}]
  %s2 = inlined_call_operand.vmem [shape: f32[1,128], index: 2, kind: input, shape index: {}]
  %s3 = inlined_call_operand.vmem [shape: f32[512,128], index: 3, kind: output, shape index: {}]
  %s4 = sld [smem:[#allocation0]]
  $region45: #{bottleneck_forward.6} parent=0
    _
  %s6 = ssub.s32 1, %s4
  %s7 = scalar_select 0, %s6, %s4
  loop: start=0, step=1, limit=4
  $region2: #{bottleneck_forward.6} parent=0 // loop_pre_header
    _
  $region3: #{bottleneck_forward.6} parent=0 // loop_header
    %s9 = sphi 0, %s13
    %p10 = scmp.ge.s32.totalorder %s9, 4
    %s19 = sphi 0, %s21
    %s22 = sphi 0, %s19
    %s23 = sphi 0, %s22
    %s39 = sphi 0, %s23
    %s43 = sphi 0, %s43
    %s45 = sphi 0, %s43
    %s46 = sphi 0, %s45
    %s60 = sphi 0, %s46
    %s64 = sphi 0, %s64
    %s66 = sphi 0, %s64
    %s67 = sphi 0, %s66
    %s81 = sphi 0, %s67
    %s87 = sphi 0, %s89
    %s90 = sphi 0, %s87
    %s91 = sphi 0, %s90
    %s107 = sphi 0, %s91
  $region4: #{bottleneck_forward.6} parent=0 // loop_header_branch
    %12 = sbr.rel (%p10) target = $region8
  $region5: #{bottleneck_forward.6} parent=0 // loop_body
    %s14 = ssub.s32 %s9, 1
    %s15 = ssub.s32 %s9, 2
    %s16 = sadd.s32 %s9, 1
    %s17 = ssub.s32 %s9, %s16
    %p18 = scmp.eq.s32.totalorder %s17, 0
    %s20 = sadd.s32 %s19, 1
    %s21 = scalar_select %p18, %s19, %s20
    %p24 = pneg %p18
    %p25 = scmp.eq.s32.totalorder %s9, 1
    %p26 = por %p24, %p25
    %p27 = scmp.ne.s32.totalorder %s19, %s22
    %p28 = scmp.eq.s32.totalorder %s9, 0
    %p29 = por %p27, %p28
    %p30 = scmp.ne.s32.totalorder %s19, %s22
    %p31 = scmp.eq.s32.totalorder %s14, 1
    %p32 = por %p30, %p31
    %p33 = scmp.ne.s32.totalorder %s22, %s23
    %p34 = scmp.eq.s32.totalorder %s14, 0
    %p35 = por %p33, %p34
    %p36 = scmp.ne.s32.totalorder %s22, %s23
    %p37 = scmp.eq.s32.totalorder %s15, 1
    %p38 = por %p36, %p37
    %p40 = scmp.ne.s32.totalorder %s23, %s39
    %p41 = scmp.eq.s32.totalorder %s15, 0
    %p42 = por %p40, %p41
    %s44 = sadd.s32 %s43, 1
    %p47 = scmp.eq.s32.totalorder %s9, 1
    %p48 = scmp.ne.s32.totalorder %s43, %s45
    %p49 = scmp.eq.s32.totalorder %s9, 0
    %p50 = por %p48, %p49
    %p51 = scmp.ne.s32.totalorder %s43, %s45
    %p52 = scmp.eq.s32.totalorder %s14, 1
    %p53 = por %p51, %p52
    %p54 = scmp.ne.s32.totalorder %s45, %s46
    %p55 = scmp.eq.s32.totalorder %s14, 0
    %p56 = por %p54, %p55
    %p57 = scmp.ne.s32.totalorder %s45, %s46
    %p58 = scmp.eq.s32.totalorder %s15, 1
    %p59 = por %p57, %p58
    %p61 = scmp.ne.s32.totalorder %s46, %s60
    %p62 = scmp.eq.s32.totalorder %s15, 0
    %p63 = por %p61, %p62
    %s65 = sadd.s32 %s64, 1
    %p68 = scmp.eq.s32.totalorder %s9, 1
    %p69 = scmp.ne.s32.totalorder %s64, %s66
    %p70 = scmp.eq.s32.totalorder %s9, 0
    %p71 = por %p69, %p70
    %p72 = scmp.ne.s32.totalorder %s64, %s66
    %p73 = scmp.eq.s32.totalorder %s14, 1
    %p74 = por %p72, %p73
    %p75 = scmp.ne.s32.totalorder %s66, %s67
    %p76 = scmp.eq.s32.totalorder %s14, 0
    %p77 = por %p75, %p76
    %p78 = scmp.ne.s32.totalorder %s66, %s67
    %p79 = scmp.eq.s32.totalorder %s15, 1
    %p80 = por %p78, %p79
    %p82 = scmp.ne.s32.totalorder %s67, %s81
    %p83 = scmp.eq.s32.totalorder %s15, 0
    %p84 = por %p82, %p83
    %s85 = ssub.s32 %s9, %s16
    %p86 = scmp.eq.s32.totalorder %s85, 0
    %s88 = sadd.s32 %s87, 1
    %s89 = scalar_select %p86, %s87, %s88
    %p92 = pneg %p86
    %p93 = scmp.eq.s32.totalorder %s9, 1
    %p94 = por %p92, %p93
    %p95 = scmp.ne.s32.totalorder %s87, %s90
    %p96 = scmp.eq.s32.totalorder %s9, 0
    %p97 = por %p95, %p96
    %p98 = scmp.ne.s32.totalorder %s87, %s90
    %p99 = scmp.eq.s32.totalorder %s14, 1
    %p100 = por %p98, %p99
    %p101 = scmp.ne.s32.totalorder %s90, %s91
    %p102 = scmp.eq.s32.totalorder %s14, 0
    %p103 = por %p101, %p102
    %p104 = scmp.ne.s32.totalorder %s90, %s91
    %p105 = scmp.eq.s32.totalorder %s15, 1
    %p106 = por %p104, %p105
    %p108 = scmp.ne.s32.totalorder %s91, %s107
    %p109 = scmp.eq.s32.totalorder %s15, 0
    %p110 = por %p108, %p109
    %p111 = scmp.le.s32.totalorder 1, %s9
    %p112 = scmp.lt.s32.totalorder %s9, 3
    %p113 = pnand %p111, %p112
    %p114 = pneg %p113
    // Predicated region
    $region9: #{bottleneck_forward.6} parent=5 // pred_check
      _
    $region10: #{bottleneck_forward.6} parent=5 // pred_check_branch
      %116 = sbr.rel (%p113) target = $region12
    $region11: #{bottleneck_forward.6} parent=5 // pred_region
      %s117 = ssub.s32 %s9, 1
      // Predicated region
      $region13: #{bottleneck_forward.6} parent=11 // pred_check
        %p118 = pneg %p56
      $region14: #{bottleneck_forward.6} parent=11 // pred_check_branch
        %120 = sbr.rel (%p118) target = $region16
      $region15: #{bottleneck_forward.6} parent=11 // pred_region
        _
      $region16: #{bottleneck_forward.6} parent=11 // pred_fallthru
        _
      // Predicated region
      $region17: #{bottleneck_forward.6} parent=11 // pred_check
        %p121 = pneg %p77
      $region18: #{bottleneck_forward.6} parent=11 // pred_check_branch
        %123 = sbr.rel (%p121) target = $region20
      $region19: #{bottleneck_forward.6} parent=11 // pred_region
        _
      $region20: #{bottleneck_forward.6} parent=11 // pred_fallthru
        _
    $region12: #{bottleneck_forward.6} parent=5 // pred_fallthru
      _
    %p124 = scmp.lt.s32.totalorder %s9, 2
    // Predicated region
    $region21: #{bottleneck_forward.6} parent=5 // pred_check
      %p125 = pneg %p124
    $region22: #{bottleneck_forward.6} parent=5 // pred_check_branch
      %127 = sbr.rel (%p125) target = $region24
    $region23: #{bottleneck_forward.6} parent=5 // pred_region
      // Predicated region
      $region25: #{bottleneck_forward.6} parent=23 // pred_check
        %p128 = pneg %p29
      $region26: #{bottleneck_forward.6} parent=23 // pred_check_branch
        %130 = sbr.rel (%p128) target = $region28
      $region27: #{bottleneck_forward.6} parent=23 // pred_region
        %s131 = smul.u32 32, %s9
        %p132 = scmp.lt.s32.totalorder %s131, 63
        %s133 = scalar_select %p132, %s131, 63
        %s134 = smul.addr %s133, 8
        %s135 = scalar_lea.vmem %s0, %s134
        %s136 = smul.u32 32, %s9
      $region28: #{bottleneck_forward.6} parent=23 // pred_fallthru
        _
    $region24: #{bottleneck_forward.6} parent=5 // pred_fallthru
      _
    %p137 = scmp.le.s32.totalorder 1, %s9
    %p138 = scmp.lt.s32.totalorder %s9, 3
    %p139 = pnand %p137, %p138
    %p140 = pneg %p139
    // Predicated region
    $region29: #{bottleneck_forward.6} parent=5 // pred_check
      _
    $region30: #{bottleneck_forward.6} parent=5 // pred_check_branch
      %142 = sbr.rel (%p139) target = $region32
    $region31: #{bottleneck_forward.6} parent=5 // pred_region
      %s143 = ssub.s32 %s9, 1
      %s144 = smul.u32 32, %s14
      %p145 = scmp.lt.s32.totalorder %s144, 63
      %s146 = scalar_select %p145, %s144, 63
      %s147 = smul.addr %s146, 8
      %s148 = scalar_lea.vmem %s0, %s147
      %p149 = pneg %p35
      %p150 = pneg %p32
      %p151 = pneg %p56
      %p152 = pneg %p53
      %p153 = pneg %p77
      %p154 = pneg %p74
      %p155 = pneg %p103
      %p156 = pneg %p100
      %s157 = smul.u32 32, %s14
      %p158 = scmp.lt.s32.totalorder %s157, 63
      %s159 = scalar_select %p158, %s157, 63
      %s160 = smul.addr %s159, 8
      %s161 = scalar_lea.vmem %s3, %s160
      %s162 = smul.u32 32, %s14
      %p163 = scmp.lt.s32.totalorder %s162, 63
      %s164 = scalar_select %p163, %s162, 63
      %s165 = smul.addr %s164, 8
      %s166 = scalar_lea.vmem %s0, %s165
      %s167 = smul.u32 32, %s14
      %s168 = smul.u32 32, %s14
      %p169 = scmp.lt.s32.totalorder %s168, 63
      %s170 = scalar_select %p169, %s168, 63
      %s171 = smul.addr %s170, 8
      %s172 = scalar_lea.vmem %s3, %s171
      %s173 = smul.u32 32, %s14
      %v174 = vld [vmem:[%s166] sm:$0xff]
      %v175 = vld [vmem:[%s166 + $0x8] sm:$0xff]
      %v176 = vld [vmem:[%s166 + $0x10] sm:$0xff]
      %v177 = vld [vmem:[%s166 + $0x18] sm:$0xff]
      %v178 = vld [vmem:[%s166 + $0x20] sm:$0xff]
      %v179 = vld [vmem:[%s166 + $0x28] sm:$0xff]
      %v180 = vld [vmem:[%s166 + $0x30] sm:$0xff]
      %v181 = vld [vmem:[%s166 + $0x38] sm:$0xff]
      %v182 = vld [vmem:[%s166 + $0x40] sm:$0xff]
      %v183 = vld [vmem:[%s166 + $0x48] sm:$0xff]
      %v184 = vld [vmem:[%s166 + $0x50] sm:$0xff]
      %v185 = vld [vmem:[%s166 + $0x58] sm:$0xff]
      %v186 = vld [vmem:[%s166 + $0x60] sm:$0xff]
      %v187 = vld [vmem:[%s166 + $0x68] sm:$0xff]
      %v188 = vld [vmem:[%s166 + $0x70] sm:$0xff]
      %v189 = vld [vmem:[%s166 + $0x78] sm:$0xff]
      %v190 = vld [vmem:[%s166 + $0x80] sm:$0xff]
      %v191 = vld [vmem:[%s166 + $0x88] sm:$0xff]
      %v192 = vld [vmem:[%s166 + $0x90] sm:$0xff]
      %v193 = vld [vmem:[%s166 + $0x98] sm:$0xff]
      %v194 = vld [vmem:[%s166 + $0xa0] sm:$0xff]
      %v195 = vld [vmem:[%s166 + $0xa8] sm:$0xff]
      %v196 = vld [vmem:[%s166 + $0xb0] sm:$0xff]
      %v197 = vld [vmem:[%s166 + $0xb8] sm:$0xff]
      %v198 = vld [vmem:[%s166 + $0xc0] sm:$0xff]
      %v199 = vld [vmem:[%s166 + $0xc8] sm:$0xff]
      %v200 = vld [vmem:[%s166 + $0xd0] sm:$0xff]
      %v201 = vld [vmem:[%s166 + $0xd8] sm:$0xff]
      %v202 = vld [vmem:[%s166 + $0xe0] sm:$0xff]
      %v203 = vld [vmem:[%s166 + $0xe8] sm:$0xff]
      %v204 = vld [vmem:[%s166 + $0xf0] sm:$0xff]
      %v205 = vld [vmem:[%s166 + $0xf8] sm:$0xff]
      %v206 = vld [vmem:[%s1] sm:$0x1]
      %v208 = vlaneseq
      %v209 = vshrl.u32 %v208, 7
      %v210 = vsub.s32 0, %v209
      %v211 = vrot.slane %v206, %v210
      %v213 = vmul.f32 %v174, %v211
      %v214 = vmul.f32 %v175, %v211
      %v215 = vmul.f32 %v176, %v211
      %v216 = vmul.f32 %v177, %v211
      %v217 = vmul.f32 %v178, %v211
      %v218 = vmul.f32 %v179, %v211
      %v219 = vmul.f32 %v180, %v211
      %v220 = vmul.f32 %v181, %v211
      %v221 = vmul.f32 %v182, %v211
      %v222 = vmul.f32 %v183, %v211
      %v223 = vmul.f32 %v184, %v211
      %v224 = vmul.f32 %v185, %v211
      %v225 = vmul.f32 %v186, %v211
      %v226 = vmul.f32 %v187, %v211
      %v227 = vmul.f32 %v188, %v211
      %v228 = vmul.f32 %v189, %v211
      %v229 = vmul.f32 %v190, %v211
      %v230 = vmul.f32 %v191, %v211
      %v231 = vmul.f32 %v192, %v211
      %v232 = vmul.f32 %v193, %v211
      %v233 = vmul.f32 %v194, %v211
      %v234 = vmul.f32 %v195, %v211
      %v235 = vmul.f32 %v196, %v211
      %v236 = vmul.f32 %v197, %v211
      %v237 = vmul.f32 %v198, %v211
      %v238 = vmul.f32 %v199, %v211
      %v239 = vmul.f32 %v200, %v211
      %v240 = vmul.f32 %v201, %v211
      %v241 = vmul.f32 %v202, %v211
      %v242 = vmul.f32 %v203, %v211
      %v243 = vmul.f32 %v204, %v211
      %v244 = vmul.f32 %v205, %v211
      %v245 = vld [vmem:[%s2] sm:$0x1]
      %v247 = vlaneseq
      %v248 = vshrl.u32 %v247, 7
      %v249 = vsub.s32 0, %v248
      %v250 = vrot.slane %v245, %v249
      %v252 = vadd.f32 %v213, %v250
      %v253 = vadd.f32 %v214, %v250
      %v254 = vadd.f32 %v215, %v250
      %v255 = vadd.f32 %v216, %v250
      %v256 = vadd.f32 %v217, %v250
      %v257 = vadd.f32 %v218, %v250
      %v258 = vadd.f32 %v219, %v250
      %v259 = vadd.f32 %v220, %v250
      %v260 = vadd.f32 %v221, %v250
      %v261 = vadd.f32 %v222, %v250
      %v262 = vadd.f32 %v223, %v250
      %v263 = vadd.f32 %v224, %v250
      %v264 = vadd.f32 %v225, %v250
      %v265 = vadd.f32 %v226, %v250
      %v266 = vadd.f32 %v227, %v250
      %v267 = vadd.f32 %v228, %v250
      %v268 = vadd.f32 %v229, %v250
      %v269 = vadd.f32 %v230, %v250
      %v270 = vadd.f32 %v231, %v250
      %v271 = vadd.f32 %v232, %v250
      %v272 = vadd.f32 %v233, %v250
      %v273 = vadd.f32 %v234, %v250
      %v274 = vadd.f32 %v235, %v250
      %v275 = vadd.f32 %v236, %v250
      %v276 = vadd.f32 %v237, %v250
      %v277 = vadd.f32 %v238, %v250
      %v278 = vadd.f32 %v239, %v250
      %v279 = vadd.f32 %v240, %v250
      %v280 = vadd.f32 %v241, %v250
      %v281 = vadd.f32 %v242, %v250
      %v282 = vadd.f32 %v243, %v250
      %v283 = vadd.f32 %v244, %v250
      %vm284 = vcmp.gt.f32.partialorder %v252, 0.0
      %vm285 = vcmp.gt.f32.partialorder %v253, 0.0
      %vm286 = vcmp.gt.f32.partialorder %v254, 0.0
      %vm287 = vcmp.gt.f32.partialorder %v255, 0.0
      %vm288 = vcmp.gt.f32.partialorder %v256, 0.0
      %vm289 = vcmp.gt.f32.partialorder %v257, 0.0
      %vm290 = vcmp.gt.f32.partialorder %v258, 0.0
      %vm291 = vcmp.gt.f32.partialorder %v259, 0.0
      %vm292 = vcmp.gt.f32.partialorder %v260, 0.0
      %vm293 = vcmp.gt.f32.partialorder %v261, 0.0
      %vm294 = vcmp.gt.f32.partialorder %v262, 0.0
      %vm295 = vcmp.gt.f32.partialorder %v263, 0.0
      %vm296 = vcmp.gt.f32.partialorder %v264, 0.0
      %vm297 = vcmp.gt.f32.partialorder %v265, 0.0
      %vm298 = vcmp.gt.f32.partialorder %v266, 0.0
      %vm299 = vcmp.gt.f32.partialorder %v267, 0.0
      %vm300 = vcmp.gt.f32.partialorder %v268, 0.0
      %vm301 = vcmp.gt.f32.partialorder %v269, 0.0
      %vm302 = vcmp.gt.f32.partialorder %v270, 0.0
      %vm303 = vcmp.gt.f32.partialorder %v271, 0.0
      %vm304 = vcmp.gt.f32.partialorder %v272, 0.0
      %vm305 = vcmp.gt.f32.partialorder %v273, 0.0
      %vm306 = vcmp.gt.f32.partialorder %v274, 0.0
      %vm307 = vcmp.gt.f32.partialorder %v275, 0.0
      %vm308 = vcmp.gt.f32.partialorder %v276, 0.0
      %vm309 = vcmp.gt.f32.partialorder %v277, 0.0
      %vm310 = vcmp.gt.f32.partialorder %v278, 0.0
      %vm311 = vcmp.gt.f32.partialorder %v279, 0.0
      %vm312 = vcmp.gt.f32.partialorder %v280, 0.0
      %vm313 = vcmp.gt.f32.partialorder %v281, 0.0
      %vm314 = vcmp.gt.f32.partialorder %v282, 0.0
      %vm315 = vcmp.gt.f32.partialorder %v283, 0.0
      %v316 = vmul.f32 %v252, 0.1
      %v317 = vmul.f32 %v253, 0.1
      %v318 = vmul.f32 %v254, 0.1
      %v319 = vmul.f32 %v255, 0.1
      %v320 = vmul.f32 %v256, 0.1
      %v321 = vmul.f32 %v257, 0.1
      %v322 = vmul.f32 %v258, 0.1
      %v323 = vmul.f32 %v259, 0.1
      %v324 = vmul.f32 %v260, 0.1
      %v325 = vmul.f32 %v261, 0.1
      %v326 = vmul.f32 %v262, 0.1
      %v327 = vmul.f32 %v263, 0.1
      %v328 = vmul.f32 %v264, 0.1
      %v329 = vmul.f32 %v265, 0.1
      %v330 = vmul.f32 %v266, 0.1
      %v331 = vmul.f32 %v267, 0.1
      %v332 = vmul.f32 %v268, 0.1
      %v333 = vmul.f32 %v269, 0.1
      %v334 = vmul.f32 %v270, 0.1
      %v335 = vmul.f32 %v271, 0.1
      %v336 = vmul.f32 %v272, 0.1
      %v337 = vmul.f32 %v273, 0.1
      %v338 = vmul.f32 %v274, 0.1
      %v339 = vmul.f32 %v275, 0.1
      %v340 = vmul.f32 %v276, 0.1
      %v341 = vmul.f32 %v277, 0.1
      %v342 = vmul.f32 %v278, 0.1
      %v343 = vmul.f32 %v279, 0.1
      %v344 = vmul.f32 %v280, 0.1
      %v345 = vmul.f32 %v281, 0.1
      %v346 = vmul.f32 %v282, 0.1
      %v347 = vmul.f32 %v283, 0.1
      %v348 = vsel %vm284, %v252, %v316
      %v349 = vsel %vm285, %v253, %v317
      %v350 = vsel %vm286, %v254, %v318
      %v351 = vsel %vm287, %v255, %v319
      %v352 = vsel %vm288, %v256, %v320
      %v353 = vsel %vm289, %v257, %v321
      %v354 = vsel %vm290, %v258, %v322
      %v355 = vsel %vm291, %v259, %v323
      %v356 = vsel %vm292, %v260, %v324
      %v357 = vsel %vm293, %v261, %v325
      %v358 = vsel %vm294, %v262, %v326
      %v359 = vsel %vm295, %v263, %v327
      %v360 = vsel %vm296, %v264, %v328
      %v361 = vsel %vm297, %v265, %v329
      %v362 = vsel %vm298, %v266, %v330
      %v363 = vsel %vm299, %v267, %v331
      %v364 = vsel %vm300, %v268, %v332
      %v365 = vsel %vm301, %v269, %v333
      %v366 = vsel %vm302, %v270, %v334
      %v367 = vsel %vm303, %v271, %v335
      %v368 = vsel %vm304, %v272, %v336
      %v369 = vsel %vm305, %v273, %v337
      %v370 = vsel %vm306, %v274, %v338
      %v371 = vsel %vm307, %v275, %v339
      %v372 = vsel %vm308, %v276, %v340
      %v373 = vsel %vm309, %v277, %v341
      %v374 = vsel %vm310, %v278, %v342
      %v375 = vsel %vm311, %v279, %v343
      %v376 = vsel %vm312, %v280, %v344
      %v377 = vsel %vm313, %v281, %v345
      %v378 = vsel %vm314, %v282, %v346
      %v379 = vsel %vm315, %v283, %v347
      %380 = vst [vmem:[%s172] sm:$0xff] %v348
      %381 = vst [vmem:[%s172 + $0x8] sm:$0xff] %v349
      %382 = vst [vmem:[%s172 + $0x10] sm:$0xff] %v350
      %383 = vst [vmem:[%s172 + $0x18] sm:$0xff] %v351
      %384 = vst [vmem:[%s172 + $0x20] sm:$0xff] %v352
      %385 = vst [vmem:[%s172 + $0x28] sm:$0xff] %v353
      %386 = vst [vmem:[%s172 + $0x30] sm:$0xff] %v354
      %387 = vst [vmem:[%s172 + $0x38] sm:$0xff] %v355
      %388 = vst [vmem:[%s172 + $0x40] sm:$0xff] %v356
      %389 = vst [vmem:[%s172 + $0x48] sm:$0xff] %v357
      %390 = vst [vmem:[%s172 + $0x50] sm:$0xff] %v358
      %391 = vst [vmem:[%s172 + $0x58] sm:$0xff] %v359
      %392 = vst [vmem:[%s172 + $0x60] sm:$0xff] %v360
      %393 = vst [vmem:[%s172 + $0x68] sm:$0xff] %v361
      %394 = vst [vmem:[%s172 + $0x70] sm:$0xff] %v362
      %395 = vst [vmem:[%s172 + $0x78] sm:$0xff] %v363
      %396 = vst [vmem:[%s172 + $0x80] sm:$0xff] %v364
      %397 = vst [vmem:[%s172 + $0x88] sm:$0xff] %v365
      %398 = vst [vmem:[%s172 + $0x90] sm:$0xff] %v366
      %399 = vst [vmem:[%s172 + $0x98] sm:$0xff] %v367
      %400 = vst [vmem:[%s172 + $0xa0] sm:$0xff] %v368
      %401 = vst [vmem:[%s172 + $0xa8] sm:$0xff] %v369
      %402 = vst [vmem:[%s172 + $0xb0] sm:$0xff] %v370
      %403 = vst [vmem:[%s172 + $0xb8] sm:$0xff] %v371
      %404 = vst [vmem:[%s172 + $0xc0] sm:$0xff] %v372
      %405 = vst [vmem:[%s172 + $0xc8] sm:$0xff] %v373
      %406 = vst [vmem:[%s172 + $0xd0] sm:$0xff] %v374
      %407 = vst [vmem:[%s172 + $0xd8] sm:$0xff] %v375
      %408 = vst [vmem:[%s172 + $0xe0] sm:$0xff] %v376
      %409 = vst [vmem:[%s172 + $0xe8] sm:$0xff] %v377
      %410 = vst [vmem:[%s172 + $0xf0] sm:$0xff] %v378
      %411 = vst [vmem:[%s172 + $0xf8] sm:$0xff] %v379
      %s412 = smul.u32 32, %s14
      %p413 = scmp.lt.s32.totalorder %s412, 63
      %s414 = scalar_select %p413, %s412, 63
      %s415 = smul.addr %s414, 8
      %s416 = scalar_lea.vmem %s3, %s415
      // Predicated region
      $region33: #{bottleneck_forward.6} parent=31 // pred_check
        %p417 = pneg %p100
      $region34: #{bottleneck_forward.6} parent=31 // pred_check_branch
        %419 = sbr.rel (%p417) target = $region36
      $region35: #{bottleneck_forward.6} parent=31 // pred_region
        %s420 = smul.u32 32, %s14
      $region36: #{bottleneck_forward.6} parent=31 // pred_fallthru
        _
    $region32: #{bottleneck_forward.6} parent=5 // pred_fallthru
      _
    %p421 = scmp.le.s32.totalorder 2, %s9
    // Predicated region
    $region37: #{bottleneck_forward.6} parent=5 // pred_check
      %p422 = pneg %p421
    $region38: #{bottleneck_forward.6} parent=5 // pred_check_branch
      %424 = sbr.rel (%p422) target = $region40
    $region39: #{bottleneck_forward.6} parent=5 // pred_region
      %s425 = ssub.s32 %s9, 2
      // Predicated region
      $region41: #{bottleneck_forward.6} parent=39 // pred_check
        %p426 = pneg %p106
      $region42: #{bottleneck_forward.6} parent=39 // pred_check_branch
        %428 = sbr.rel (%p426) target = $region44
      $region43: #{bottleneck_forward.6} parent=39 // pred_region
        %s429 = smul.u32 32, %s15
        %p430 = scmp.lt.s32.totalorder %s429, 63
        %s431 = scalar_select %p430, %s429, 63
        %s432 = smul.addr %s431, 8
        %s433 = scalar_lea.vmem %s3, %s432
      $region44: #{bottleneck_forward.6} parent=39 // pred_fallthru
        _
    $region40: #{bottleneck_forward.6} parent=5 // pred_fallthru
      _
  $region6: #{bottleneck_forward.6} parent=0 // loop_footer
    %s13 = sadd.s32 1, %s9
  $region7: #{bottleneck_forward.6} parent=0 // loop_footer_branch
    %8 = sbr.rel target = $region3
  $region8: #{bottleneck_forward.6} parent=0 // loop_exit
    _

// kernel: bottleneck_forward.8
$region0: #{bottleneck_forward.8}
  #allocation0 [shape = 'u32[]', space=smem, size = 0x4, offset = 0x4, fixed_abs, tag = 'smem constant byte address 0x4 - core index']
  #allocation1 [shape = 'u32[144,128]{1,0:T(1,128)}', space=vmem, size = 0x12000, scoped, tag = 'internal scratch']
  %s0 = inlined_call_operand.vmem [shape: f32[512,128], index: 0, kind: input, shape index: {}]
  %s1 = inlined_call_operand.vmem [shape: f32[1,128], index: 1, kind: input, shape index: {}]
  %s2 = inlined_call_operand.vmem [shape: f32[1,128], index: 2, kind: input, shape index: {}]
  %s3 = inlined_call_operand.vmem [shape: f32[128,128], index: 3, kind: input, shape index: {}]
  %s4 = inlined_call_operand.vmem [shape: f32[512,128], index: 4, kind: output, shape index: {0}]
  %s5 = inlined_call_operand.vmem [shape: f32[2,8,128], index: 5, kind: output, shape index: {1}]
  %s6 = inlined_call_operand.vmem [shape: f32[2,8,128], index: 6, kind: output, shape index: {2}]
  %7 = xla_tuple %s4, %s5, %s6
  %s8 = sld [smem:[#allocation0]]
  $region65: #{bottleneck_forward.8} parent=0
    _
  %s10 = ssub.s32 1, %s8
  %s11 = scalar_select 0, %s10, %s8
  loop: start=0, step=1, limit=4
  $region2: #{bottleneck_forward.8} parent=0 // loop_pre_header
    _
  $region3: #{bottleneck_forward.8} parent=0 // loop_header
    %s13 = sphi 0, %s17
    %p14 = scmp.ge.s32.totalorder %s13, 4
    %s23 = sphi 0, %s25
    %s26 = sphi 0, %s23
    %s27 = sphi 0, %s26
    %s43 = sphi 0, %s27
    %s47 = sphi 0, %s47
    %s49 = sphi 0, %s47
    %s50 = sphi 0, %s49
    %s64 = sphi 0, %s50
    %s68 = sphi 0, %s68
    %s70 = sphi 0, %s68
    %s71 = sphi 0, %s70
    %s85 = sphi 0, %s71
    %s89 = sphi 0, %s89
    %s91 = sphi 0, %s89
    %s92 = sphi 0, %s91
    %s106 = sphi 0, %s92
    %s112 = sphi 0, %s114
    %s115 = sphi 0, %s112
    %s116 = sphi 0, %s115
    %s132 = sphi 0, %s116
    %s138 = sphi 0, %s140
    %s141 = sphi 0, %s138
    %s142 = sphi 0, %s141
    %s158 = sphi 0, %s142
    %s164 = sphi 0, %s166
    %s167 = sphi 0, %s164
    %s168 = sphi 0, %s167
    %s184 = sphi 0, %s168
  $region4: #{bottleneck_forward.8} parent=0 // loop_header_branch
    %16 = sbr.rel (%p14) target = $region8
  $region5: #{bottleneck_forward.8} parent=0 // loop_body
    %s18 = ssub.s32 %s13, 1
    %s19 = ssub.s32 %s13, 2
    %s20 = sadd.s32 %s13, 1
    %s21 = ssub.s32 %s13, %s20
    %p22 = scmp.eq.s32.totalorder %s21, 0
    %s24 = sadd.s32 %s23, 1
    %s25 = scalar_select %p22, %s23, %s24
    %p28 = pneg %p22
    %p29 = scmp.eq.s32.totalorder %s13, 1
    %p30 = por %p28, %p29
    %p31 = scmp.ne.s32.totalorder %s23, %s26
    %p32 = scmp.eq.s32.totalorder %s13, 0
    %p33 = por %p31, %p32
    %p34 = scmp.ne.s32.totalorder %s23, %s26
    %p35 = scmp.eq.s32.totalorder %s18, 1
    %p36 = por %p34, %p35
    %p37 = scmp.ne.s32.totalorder %s26, %s27
    %p38 = scmp.eq.s32.totalorder %s18, 0
    %p39 = por %p37, %p38
    %p40 = scmp.ne.s32.totalorder %s26, %s27
    %p41 = scmp.eq.s32.totalorder %s19, 1
    %p42 = por %p40, %p41
    %p44 = scmp.ne.s32.totalorder %s27, %s43
    %p45 = scmp.eq.s32.totalorder %s19, 0
    %p46 = por %p44, %p45
    %s48 = sadd.s32 %s47, 1
    %p51 = scmp.eq.s32.totalorder %s13, 1
    %p52 = scmp.ne.s32.totalorder %s47, %s49
    %p53 = scmp.eq.s32.totalorder %s13, 0
    %p54 = por %p52, %p53
    %p55 = scmp.ne.s32.totalorder %s47, %s49
    %p56 = scmp.eq.s32.totalorder %s18, 1
    %p57 = por %p55, %p56
    %p58 = scmp.ne.s32.totalorder %s49, %s50
    %p59 = scmp.eq.s32.totalorder %s18, 0
    %p60 = por %p58, %p59
    %p61 = scmp.ne.s32.totalorder %s49, %s50
    %p62 = scmp.eq.s32.totalorder %s19, 1
    %p63 = por %p61, %p62
    %p65 = scmp.ne.s32.totalorder %s50, %s64
    %p66 = scmp.eq.s32.totalorder %s19, 0
    %p67 = por %p65, %p66
    %s69 = sadd.s32 %s68, 1
    %p72 = scmp.eq.s32.totalorder %s13, 1
    %p73 = scmp.ne.s32.totalorder %s68, %s70
    %p74 = scmp.eq.s32.totalorder %s13, 0
    %p75 = por %p73, %p74
    %p76 = scmp.ne.s32.totalorder %s68, %s70
    %p77 = scmp.eq.s32.totalorder %s18, 1
    %p78 = por %p76, %p77
    %p79 = scmp.ne.s32.totalorder %s70, %s71
    %p80 = scmp.eq.s32.totalorder %s18, 0
    %p81 = por %p79, %p80
    %p82 = scmp.ne.s32.totalorder %s70, %s71
    %p83 = scmp.eq.s32.totalorder %s19, 1
    %p84 = por %p82, %p83
    %p86 = scmp.ne.s32.totalorder %s71, %s85
    %p87 = scmp.eq.s32.totalorder %s19, 0
    %p88 = por %p86, %p87
    %s90 = sadd.s32 %s89, 1
    %p93 = scmp.eq.s32.totalorder %s13, 1
    %p94 = scmp.ne.s32.totalorder %s89, %s91
    %p95 = scmp.eq.s32.totalorder %s13, 0
    %p96 = por %p94, %p95
    %p97 = scmp.ne.s32.totalorder %s89, %s91
    %p98 = scmp.eq.s32.totalorder %s18, 1
    %p99 = por %p97, %p98
    %p100 = scmp.ne.s32.totalorder %s91, %s92
    %p101 = scmp.eq.s32.totalorder %s18, 0
    %p102 = por %p100, %p101
    %p103 = scmp.ne.s32.totalorder %s91, %s92
    %p104 = scmp.eq.s32.totalorder %s19, 1
    %p105 = por %p103, %p104
    %p107 = scmp.ne.s32.totalorder %s92, %s106
    %p108 = scmp.eq.s32.totalorder %s19, 0
    %p109 = por %p107, %p108
    %s110 = ssub.s32 %s13, %s20
    %p111 = scmp.eq.s32.totalorder %s110, 0
    %s113 = sadd.s32 %s112, 1
    %s114 = scalar_select %p111, %s112, %s113
    %p117 = pneg %p111
    %p118 = scmp.eq.s32.totalorder %s13, 1
    %p119 = por %p117, %p118
    %p120 = scmp.ne.s32.totalorder %s112, %s115
    %p121 = scmp.eq.s32.totalorder %s13, 0
    %p122 = por %p120, %p121
    %p123 = scmp.ne.s32.totalorder %s112, %s115
    %p124 = scmp.eq.s32.totalorder %s18, 1
    %p125 = por %p123, %p124
    %p126 = scmp.ne.s32.totalorder %s115, %s116
    %p127 = scmp.eq.s32.totalorder %s18, 0
    %p128 = por %p126, %p127
    %p129 = scmp.ne.s32.totalorder %s115, %s116
    %p130 = scmp.eq.s32.totalorder %s19, 1
    %p131 = por %p129, %p130
    %p133 = scmp.ne.s32.totalorder %s116, %s132
    %p134 = scmp.eq.s32.totalorder %s19, 0
    %p135 = por %p133, %p134
    %s136 = ssub.s32 %s13, %s20
    %p137 = scmp.eq.s32.totalorder %s136, 0
    %s139 = sadd.s32 %s138, 1
    %s140 = scalar_select %p137, %s138, %s139
    %p143 = pneg %p137
    %p144 = scmp.eq.s32.totalorder %s13, 1
    %p145 = por %p143, %p144
    %p146 = scmp.ne.s32.totalorder %s138, %s141
    %p147 = scmp.eq.s32.totalorder %s13, 0
    %p148 = por %p146, %p147
    %p149 = scmp.ne.s32.totalorder %s138, %s141
    %p150 = scmp.eq.s32.totalorder %s18, 1
    %p151 = por %p149, %p150
    %p152 = scmp.ne.s32.totalorder %s141, %s142
    %p153 = scmp.eq.s32.totalorder %s18, 0
    %p154 = por %p152, %p153
    %p155 = scmp.ne.s32.totalorder %s141, %s142
    %p156 = scmp.eq.s32.totalorder %s19, 1
    %p157 = por %p155, %p156
    %p159 = scmp.ne.s32.totalorder %s142, %s158
    %p160 = scmp.eq.s32.totalorder %s19, 0
    %p161 = por %p159, %p160
    %s162 = ssub.s32 %s13, %s20
    %p163 = scmp.eq.s32.totalorder %s162, 0
    %s165 = sadd.s32 %s164, 1
    %s166 = scalar_select %p163, %s164, %s165
    %p169 = pneg %p163
    %p170 = scmp.eq.s32.totalorder %s13, 1
    %p171 = por %p169, %p170
    %p172 = scmp.ne.s32.totalorder %s164, %s167
    %p173 = scmp.eq.s32.totalorder %s13, 0
    %p174 = por %p172, %p173
    %p175 = scmp.ne.s32.totalorder %s164, %s167
    %p176 = scmp.eq.s32.totalorder %s18, 1
    %p177 = por %p175, %p176
    %p178 = scmp.ne.s32.totalorder %s167, %s168
    %p179 = scmp.eq.s32.totalorder %s18, 0
    %p180 = por %p178, %p179
    %p181 = scmp.ne.s32.totalorder %s167, %s168
    %p182 = scmp.eq.s32.totalorder %s19, 1
    %p183 = por %p181, %p182
    %p185 = scmp.ne.s32.totalorder %s168, %s184
    %p186 = scmp.eq.s32.totalorder %s19, 0
    %p187 = por %p185, %p186
    %p188 = scmp.le.s32.totalorder 1, %s13
    %p189 = scmp.lt.s32.totalorder %s13, 3
    %p190 = pnand %p188, %p189
    %p191 = pneg %p190
    // Predicated region
    $region9: #{bottleneck_forward.8} parent=5 // pred_check
      _
    $region10: #{bottleneck_forward.8} parent=5 // pred_check_branch
      %193 = sbr.rel (%p190) target = $region12
    $region11: #{bottleneck_forward.8} parent=5 // pred_region
      %s194 = ssub.s32 %s13, 1
      // Predicated region
      $region13: #{bottleneck_forward.8} parent=11 // pred_check
        %p195 = pneg %p60
      $region14: #{bottleneck_forward.8} parent=11 // pred_check_branch
        %197 = sbr.rel (%p195) target = $region16
      $region15: #{bottleneck_forward.8} parent=11 // pred_region
        _
      $region16: #{bottleneck_forward.8} parent=11 // pred_fallthru
        _
      // Predicated region
      $region17: #{bottleneck_forward.8} parent=11 // pred_check
        %p198 = pneg %p81
      $region18: #{bottleneck_forward.8} parent=11 // pred_check_branch
        %200 = sbr.rel (%p198) target = $region20
      $region19: #{bottleneck_forward.8} parent=11 // pred_region
        _
      $region20: #{bottleneck_forward.8} parent=11 // pred_fallthru
        _
      // Predicated region
      $region21: #{bottleneck_forward.8} parent=11 // pred_check
        %p201 = pneg %p102
      $region22: #{bottleneck_forward.8} parent=11 // pred_check_branch
        %203 = sbr.rel (%p201) target = $region24
      $region23: #{bottleneck_forward.8} parent=11 // pred_region
        _
      $region24: #{bottleneck_forward.8} parent=11 // pred_fallthru
        _
    $region12: #{bottleneck_forward.8} parent=5 // pred_fallthru
      _
    %p204 = scmp.lt.s32.totalorder %s13, 2
    // Predicated region
    $region25: #{bottleneck_forward.8} parent=5 // pred_check
      %p205 = pneg %p204
    $region26: #{bottleneck_forward.8} parent=5 // pred_check_branch
      %207 = sbr.rel (%p205) target = $region28
    $region27: #{bottleneck_forward.8} parent=5 // pred_region
      // Predicated region
      $region29: #{bottleneck_forward.8} parent=27 // pred_check
        %p208 = pneg %p33
      $region30: #{bottleneck_forward.8} parent=27 // pred_check_branch
        %210 = sbr.rel (%p208) target = $region32
      $region31: #{bottleneck_forward.8} parent=27 // pred_region
        %s211 = smul.u32 32, %s13
        %p212 = scmp.lt.s32.totalorder %s211, 63
        %s213 = scalar_select %p212, %s211, 63
        %s214 = smul.addr %s213, 8
        %s215 = scalar_lea.vmem %s0, %s214
        %s216 = smul.u32 32, %s13
      $region32: #{bottleneck_forward.8} parent=27 // pred_fallthru
        _
    $region28: #{bottleneck_forward.8} parent=5 // pred_fallthru
      _
    %p217 = scmp.le.s32.totalorder 1, %s13
    %p218 = scmp.lt.s32.totalorder %s13, 3
    %p219 = pnand %p217, %p218
    %p220 = pneg %p219
    // Predicated region
    $region33: #{bottleneck_forward.8} parent=5 // pred_check
      _
    $region34: #{bottleneck_forward.8} parent=5 // pred_check_branch
      %222 = sbr.rel (%p219) target = $region36
    $region35: #{bottleneck_forward.8} parent=5 // pred_region
      %s223 = ssub.s32 %s13, 1
      %s224 = smul.u32 32, %s18
      %p225 = scmp.lt.s32.totalorder %s224, 63
      %s226 = scalar_select %p225, %s224, 63
      %s227 = smul.addr %s226, 8
      %s228 = scalar_lea.vmem %s0, %s227
      %p229 = pneg %p39
      %p230 = pneg %p36
      %p231 = pneg %p60
      %p232 = pneg %p57
      %p233 = pneg %p81
      %p234 = pneg %p78
      %p235 = pneg %p102
      %p236 = pneg %p99
      %p237 = pneg %p128
      %p238 = pneg %p125
      %s239 = smul.u32 32, %s18
      %p240 = scmp.lt.s32.totalorder %s239, 63
      %s241 = scalar_select %p240, %s239, 63
      %s242 = smul.addr %s241, 8
      %s243 = scalar_lea.vmem %s4, %s242
      %p244 = pneg %p154
      %p245 = pneg %p151
      %p246 = scmp.lt.s32.totalorder %s18, 1
      %s247 = scalar_select %p246, %s18, 1
      %s248 = smul.addr %s247, 8
      %s249 = scalar_lea.vmem %s5, %s248
      %p250 = pneg %p180
      %p251 = pneg %p177
      %p252 = scmp.lt.s32.totalorder %s18, 1
      %s253 = scalar_select %p252, %s18, 1
      %s254 = smul.addr %s253, 8
      %s255 = scalar_lea.vmem %s6, %s254
      %s256 = smul.u32 32, %s18
      %p257 = scmp.lt.s32.totalorder %s256, 63
      %s258 = scalar_select %p257, %s256, 63
      %s259 = smul.addr %s258, 8
      %s260 = scalar_lea.vmem %s0, %s259
      %s261 = smul.u32 32, %s18
      %s262 = smul.u32 32, %s18
      %p263 = scmp.lt.s32.totalorder %s262, 63
      %s264 = scalar_select %p263, %s262, 63
      %s265 = smul.addr %s264, 8
      %s266 = scalar_lea.vmem %s4, %s265
      %s267 = smul.u32 32, %s18
      %p268 = scmp.lt.s32.totalorder %s18, 1
      %s269 = scalar_select %p268, %s18, 1
      %s270 = smul.addr %s269, 8
      %s271 = scalar_lea.vmem %s5, %s270
      %p272 = scmp.lt.s32.totalorder %s18, 1
      %s273 = scalar_select %p272, %s18, 1
      %s274 = smul.addr %s273, 8
      %s275 = scalar_lea.vmem %s6, %s274
      %v276 = vld [vmem:[%s260] sm:$0xff]
      %v277 = vld [vmem:[%s260 + $0x8] sm:$0xff]
      %v278 = vld [vmem:[%s260 + $0x10] sm:$0xff]
      %v279 = vld [vmem:[%s260 + $0x18] sm:$0xff]
      %v280 = vld [vmem:[%s260 + $0x20] sm:$0xff]
      %v281 = vld [vmem:[%s260 + $0x28] sm:$0xff]
      %v282 = vld [vmem:[%s260 + $0x30] sm:$0xff]
      %v283 = vld [vmem:[%s260 + $0x38] sm:$0xff]
      %v284 = vld [vmem:[%s260 + $0x40] sm:$0xff]
      %v285 = vld [vmem:[%s260 + $0x48] sm:$0xff]
      %v286 = vld [vmem:[%s260 + $0x50] sm:$0xff]
      %v287 = vld [vmem:[%s260 + $0x58] sm:$0xff]
      %v288 = vld [vmem:[%s260 + $0x60] sm:$0xff]
      %v289 = vld [vmem:[%s260 + $0x68] sm:$0xff]
      %v290 = vld [vmem:[%s260 + $0x70] sm:$0xff]
      %v291 = vld [vmem:[%s260 + $0x78] sm:$0xff]
      %v292 = vld [vmem:[%s260 + $0x80] sm:$0xff]
      %v293 = vld [vmem:[%s260 + $0x88] sm:$0xff]
      %v294 = vld [vmem:[%s260 + $0x90] sm:$0xff]
      %v295 = vld [vmem:[%s260 + $0x98] sm:$0xff]
      %v296 = vld [vmem:[%s260 + $0xa0] sm:$0xff]
      %v297 = vld [vmem:[%s260 + $0xa8] sm:$0xff]
      %v298 = vld [vmem:[%s260 + $0xb0] sm:$0xff]
      %v299 = vld [vmem:[%s260 + $0xb8] sm:$0xff]
      %v300 = vld [vmem:[%s260 + $0xc0] sm:$0xff]
      %v301 = vld [vmem:[%s260 + $0xc8] sm:$0xff]
      %v302 = vld [vmem:[%s260 + $0xd0] sm:$0xff]
      %v303 = vld [vmem:[%s260 + $0xd8] sm:$0xff]
      %v304 = vld [vmem:[%s260 + $0xe0] sm:$0xff]
      %v305 = vld [vmem:[%s260 + $0xe8] sm:$0xff]
      %v306 = vld [vmem:[%s260 + $0xf0] sm:$0xff]
      %v307 = vld [vmem:[%s260 + $0xf8] sm:$0xff]
      %v308 = vld [vmem:[%s1] sm:$0x1]
      %v310 = vlaneseq
      %v311 = vshrl.u32 %v310, 7
      %v312 = vsub.s32 0, %v311
      %v313 = vrot.slane %v308, %v312
      %v315 = vmul.f32 %v276, %v313
      %v316 = vmul.f32 %v277, %v313
      %v317 = vmul.f32 %v278, %v313
      %v318 = vmul.f32 %v279, %v313
      %v319 = vmul.f32 %v280, %v313
      %v320 = vmul.f32 %v281, %v313
      %v321 = vmul.f32 %v282, %v313
      %v322 = vmul.f32 %v283, %v313
      %v323 = vmul.f32 %v284, %v313
      %v324 = vmul.f32 %v285, %v313
      %v325 = vmul.f32 %v286, %v313
      %v326 = vmul.f32 %v287, %v313
      %v327 = vmul.f32 %v288, %v313
      %v328 = vmul.f32 %v289, %v313
      %v329 = vmul.f32 %v290, %v313
      %v330 = vmul.f32 %v291, %v313
      %v331 = vmul.f32 %v292, %v313
      %v332 = vmul.f32 %v293, %v313
      %v333 = vmul.f32 %v294, %v313
      %v334 = vmul.f32 %v295, %v313
      %v335 = vmul.f32 %v296, %v313
      %v336 = vmul.f32 %v297, %v313
      %v337 = vmul.f32 %v298, %v313
      %v338 = vmul.f32 %v299, %v313
      %v339 = vmul.f32 %v300, %v313
      %v340 = vmul.f32 %v301, %v313
      %v341 = vmul.f32 %v302, %v313
      %v342 = vmul.f32 %v303, %v313
      %v343 = vmul.f32 %v304, %v313
      %v344 = vmul.f32 %v305, %v313
      %v345 = vmul.f32 %v306, %v313
      %v346 = vmul.f32 %v307, %v313
      %v347 = vld [vmem:[%s2] sm:$0x1]
      %v349 = vlaneseq
      %v350 = vshrl.u32 %v349, 7
      %v351 = vsub.s32 0, %v350
      %v352 = vrot.slane %v347, %v351
      %v354 = vadd.f32 %v315, %v352
      %v355 = vadd.f32 %v316, %v352
      %v356 = vadd.f32 %v317, %v352
      %v357 = vadd.f32 %v318, %v352
      %v358 = vadd.f32 %v319, %v352
      %v359 = vadd.f32 %v320, %v352
      %v360 = vadd.f32 %v321, %v352
      %v361 = vadd.f32 %v322, %v352
      %v362 = vadd.f32 %v323, %v352
      %v363 = vadd.f32 %v324, %v352
      %v364 = vadd.f32 %v325, %v352
      %v365 = vadd.f32 %v326, %v352
      %v366 = vadd.f32 %v327, %v352
      %v367 = vadd.f32 %v328, %v352
      %v368 = vadd.f32 %v329, %v352
      %v369 = vadd.f32 %v330, %v352
      %v370 = vadd.f32 %v331, %v352
      %v371 = vadd.f32 %v332, %v352
      %v372 = vadd.f32 %v333, %v352
      %v373 = vadd.f32 %v334, %v352
      %v374 = vadd.f32 %v335, %v352
      %v375 = vadd.f32 %v336, %v352
      %v376 = vadd.f32 %v337, %v352
      %v377 = vadd.f32 %v338, %v352
      %v378 = vadd.f32 %v339, %v352
      %v379 = vadd.f32 %v340, %v352
      %v380 = vadd.f32 %v341, %v352
      %v381 = vadd.f32 %v342, %v352
      %v382 = vadd.f32 %v343, %v352
      %v383 = vadd.f32 %v344, %v352
      %v384 = vadd.f32 %v345, %v352
      %v385 = vadd.f32 %v346, %v352
      %vm386 = vcmp.gt.f32.partialorder %v354, 0.0
      %vm387 = vcmp.gt.f32.partialorder %v355, 0.0
      %vm388 = vcmp.gt.f32.partialorder %v356, 0.0
      %vm389 = vcmp.gt.f32.partialorder %v357, 0.0
      %vm390 = vcmp.gt.f32.partialorder %v358, 0.0
      %vm391 = vcmp.gt.f32.partialorder %v359, 0.0
      %vm392 = vcmp.gt.f32.partialorder %v360, 0.0
      %vm393 = vcmp.gt.f32.partialorder %v361, 0.0
      %vm394 = vcmp.gt.f32.partialorder %v362, 0.0
      %vm395 = vcmp.gt.f32.partialorder %v363, 0.0
      %vm396 = vcmp.gt.f32.partialorder %v364, 0.0
      %vm397 = vcmp.gt.f32.partialorder %v365, 0.0
      %vm398 = vcmp.gt.f32.partialorder %v366, 0.0
      %vm399 = vcmp.gt.f32.partialorder %v367, 0.0
      %vm400 = vcmp.gt.f32.partialorder %v368, 0.0
      %vm401 = vcmp.gt.f32.partialorder %v369, 0.0
      %vm402 = vcmp.gt.f32.partialorder %v370, 0.0
      %vm403 = vcmp.gt.f32.partialorder %v371, 0.0
      %vm404 = vcmp.gt.f32.partialorder %v372, 0.0
      %vm405 = vcmp.gt.f32.partialorder %v373, 0.0
      %vm406 = vcmp.gt.f32.partialorder %v374, 0.0
      %vm407 = vcmp.gt.f32.partialorder %v375, 0.0
      %vm408 = vcmp.gt.f32.partialorder %v376, 0.0
      %vm409 = vcmp.gt.f32.partialorder %v377, 0.0
      %vm410 = vcmp.gt.f32.partialorder %v378, 0.0
      %vm411 = vcmp.gt.f32.partialorder %v379, 0.0
      %vm412 = vcmp.gt.f32.partialorder %v380, 0.0
      %vm413 = vcmp.gt.f32.partialorder %v381, 0.0
      %vm414 = vcmp.gt.f32.partialorder %v382, 0.0
      %vm415 = vcmp.gt.f32.partialorder %v383, 0.0
      %vm416 = vcmp.gt.f32.partialorder %v384, 0.0
      %vm417 = vcmp.gt.f32.partialorder %v385, 0.0
      %v418 = vmul.f32 %v354, 0.1
      %v419 = vmul.f32 %v355, 0.1
      %v420 = vmul.f32 %v356, 0.1
      %v421 = vmul.f32 %v357, 0.1
      %v422 = vmul.f32 %v358, 0.1
      %v423 = vmul.f32 %v359, 0.1
      %v424 = vmul.f32 %v360, 0.1
      %v425 = vmul.f32 %v361, 0.1
      %v426 = vmul.f32 %v362, 0.1
      %v427 = vmul.f32 %v363, 0.1
      %v428 = vmul.f32 %v364, 0.1
      %v429 = vmul.f32 %v365, 0.1
      %v430 = vmul.f32 %v366, 0.1
      %v431 = vmul.f32 %v367, 0.1
      %v432 = vmul.f32 %v368, 0.1
      %v433 = vmul.f32 %v369, 0.1
      %v434 = vmul.f32 %v370, 0.1
      %v435 = vmul.f32 %v371, 0.1
      %v436 = vmul.f32 %v372, 0.1
      %v437 = vmul.f32 %v373, 0.1
      %v438 = vmul.f32 %v374, 0.1
      %v439 = vmul.f32 %v375, 0.1
      %v440 = vmul.f32 %v376, 0.1
      %v441 = vmul.f32 %v377, 0.1
      %v442 = vmul.f32 %v378, 0.1
      %v443 = vmul.f32 %v379, 0.1
      %v444 = vmul.f32 %v380, 0.1
      %v445 = vmul.f32 %v381, 0.1
      %v446 = vmul.f32 %v382, 0.1
      %v447 = vmul.f32 %v383, 0.1
      %v448 = vmul.f32 %v384, 0.1
      %v449 = vmul.f32 %v385, 0.1
      %v450 = vsel %vm386, %v354, %v418
      %v451 = vsel %vm387, %v355, %v419
      %v452 = vsel %vm388, %v356, %v420
      %v453 = vsel %vm389, %v357, %v421
      %v454 = vsel %vm390, %v358, %v422
      %v455 = vsel %vm391, %v359, %v423
      %v456 = vsel %vm392, %v360, %v424
      %v457 = vsel %vm393, %v361, %v425
      %v458 = vsel %vm394, %v362, %v426
      %v459 = vsel %vm395, %v363, %v427
      %v460 = vsel %vm396, %v364, %v428
      %v461 = vsel %vm397, %v365, %v429
      %v462 = vsel %vm398, %v366, %v430
      %v463 = vsel %vm399, %v367, %v431
      %v464 = vsel %vm400, %v368, %v432
      %v465 = vsel %vm401, %v369, %v433
      %v466 = vsel %vm402, %v370, %v434
      %v467 = vsel %vm403, %v371, %v435
      %v468 = vsel %vm404, %v372, %v436
      %v469 = vsel %vm405, %v373, %v437
      %v470 = vsel %vm406, %v374, %v438
      %v471 = vsel %vm407, %v375, %v439
      %v472 = vsel %vm408, %v376, %v440
      %v473 = vsel %vm409, %v377, %v441
      %v474 = vsel %vm410, %v378, %v442
      %v475 = vsel %vm411, %v379, %v443
      %v476 = vsel %vm412, %v380, %v444
      %v477 = vsel %vm413, %v381, %v445
      %v478 = vsel %vm414, %v382, %v446
      %v479 = vsel %vm415, %v383, %v447
      %v480 = vsel %vm416, %v384, %v448
      %v481 = vsel %vm417, %v385, %v449
      %v482 = vld [vmem:[%s3] sm:$0xff]
      %v483 = vld [vmem:[%s3 + $0x8] sm:$0xff]
      %v484 = vld [vmem:[%s3 + $0x10] sm:$0xff]
      %v485 = vld [vmem:[%s3 + $0x18] sm:$0xff]
      %v486 = vld [vmem:[%s3 + $0x20] sm:$0xff]
      %v487 = vld [vmem:[%s3 + $0x28] sm:$0xff]
      %v488 = vld [vmem:[%s3 + $0x30] sm:$0xff]
      %v489 = vld [vmem:[%s3 + $0x38] sm:$0xff]
      %v490 = vld [vmem:[%s3 + $0x40] sm:$0xff]
      %v491 = vld [vmem:[%s3 + $0x48] sm:$0xff]
      %v492 = vld [vmem:[%s3 + $0x50] sm:$0xff]
      %v493 = vld [vmem:[%s3 + $0x58] sm:$0xff]
      %v494 = vld [vmem:[%s3 + $0x60] sm:$0xff]
      %v495 = vld [vmem:[%s3 + $0x68] sm:$0xff]
      %v496 = vld [vmem:[%s3 + $0x70] sm:$0xff]
      %v497 = vld [vmem:[%s3 + $0x78] sm:$0xff]
      %498 = vmatprep.subr.mxu0 0.0
      %499 = vmatpush1.msra.mxu0 %v497
      %500 = vmatprep.subr.mxu0 0.0
      %501 = vmatpush1.msra.mxu0 %v496
      %502 = vmatprep.subr.mxu0 0.0
      %503 = vmatpush1.msra.mxu0 %v495
      %504 = vmatprep.subr.mxu0 0.0
      %505 = vmatpush1.msra.mxu0 %v494
      %506 = vmatprep.subr.mxu0 0.0
      %507 = vmatpush1.msra.mxu0 %v493
      %508 = vmatprep.subr.mxu0 0.0
      %509 = vmatpush1.msra.mxu0 %v492
      %510 = vmatprep.subr.mxu0 0.0
      %511 = vmatpush1.msra.mxu0 %v491
      %512 = vmatprep.subr.mxu0 0.0
      %513 = vmatpush1.msra.mxu0 %v490
      %514 = vmatprep.subr.mxu0 0.0
      %515 = vmatpush1.msra.mxu0 %v489
      %516 = vmatprep.subr.mxu0 0.0
      %517 = vmatpush1.msra.mxu0 %v488
      %518 = vmatprep.subr.mxu0 0.0
      %519 = vmatpush1.msra.mxu0 %v487
      %520 = vmatprep.subr.mxu0 0.0
      %521 = vmatpush1.msra.mxu0 %v486
      %522 = vmatprep.subr.mxu0 0.0
      %523 = vmatpush1.msra.mxu0 %v485
      %524 = vmatprep.subr.mxu0 0.0
      %525 = vmatpush1.msra.mxu0 %v484
      %526 = vmatprep.subr.mxu0 0.0
      %527 = vmatpush1.msra.mxu0 %v483
      %528 = vmatprep.subr.mxu0 0.0
      %529 = vmatpush1.msra.mxu0 %v482
      %530 = vmatprep.subr.mxu0 0.0
      %531 = vmatpush2.msra.mxu0 0.0
      %532 = vmatprep.subr.mxu0 0.0
      %533 = vmatpush2.msra.mxu0 0.0
      %534 = vmatprep.subr.mxu0 0.0
      %535 = vmatpush2.msra.mxu0 0.0
      %536 = vmatprep.subr.mxu0 0.0
      %537 = vmatpush2.msra.mxu0 0.0
      %538 = vmatprep.subr.mxu0 0.0
      %539 = vmatpush2.msra.mxu0 0.0
      %540 = vmatprep.subr.mxu0 0.0
      %541 = vmatpush2.msra.mxu0 0.0
      %542 = vmatprep.subr.mxu0 0.0
      %543 = vmatpush2.msra.mxu0 0.0
      %544 = vmatprep.subr.mxu0 0.0
      %545 = vmatpush2.msra.mxu0 0.0
      %546 = vmatprep.subr.mxu0 0.0
      %547 = vmatpush2.msra.mxu0 0.0
      %548 = vmatprep.subr.mxu0 0.0
      %549 = vmatpush2.msra.mxu0 0.0
      %550 = vmatprep.subr.mxu0 0.0
      %551 = vmatpush2.msra.mxu0 0.0
      %552 = vmatprep.subr.mxu0 0.0
      %553 = vmatpush2.msra.mxu0 0.0
      %554 = vmatprep.subr.mxu0 0.0
      %555 = vmatpush2.msra.mxu0 0.0
      %556 = vmatprep.subr.mxu0 0.0
      %557 = vmatpush2.msra.mxu0 0.0
      %558 = vmatprep.subr.mxu0 0.0
      %559 = vmatpush2.msra.mxu0 0.0
      %560 = vmatprep.subr.mxu0 0.0
      %561 = vmatpush2.msra.mxu0 0.0
      %562 = vmatprep.mubr.f32.mxu0 0.0
      %563 = vmatmul.mubr.f32.gmra.mxu0 %v450
      %v564 = vpop.f32.mrf.mxu0
      %v565 = vadd.f32 0.0, %v564
      %v566 = vpop.f32.mrf.mxu0
      %567 = vmatprep.mubr.f32.mxu0 0.0
      %568 = vmatmul.mubr.f32.gmra.mxu0 %v451
      %v569 = vpop.f32.mrf.mxu0
      %v570 = vadd.f32 0.0, %v569
      %v571 = vpop.f32.mrf.mxu0
      %572 = vmatprep.mubr.f32.mxu0 0.0
      %573 = vmatmul.mubr.f32.gmra.mxu0 %v452
      %v574 = vpop.f32.mrf.mxu0
      %v575 = vadd.f32 0.0, %v574
      %v576 = vpop.f32.mrf.mxu0
      %577 = vmatprep.mubr.f32.mxu0 0.0
      %578 = vmatmul.mubr.f32.gmra.mxu0 %v453
      %v579 = vpop.f32.mrf.mxu0
      %v580 = vadd.f32 0.0, %v579
      %v581 = vpop.f32.mrf.mxu0
      %582 = vmatprep.mubr.f32.mxu0 0.0
      %583 = vmatmul.mubr.f32.gmra.mxu0 %v454
      %v584 = vpop.f32.mrf.mxu0
      %v585 = vadd.f32 0.0, %v584
      %v586 = vpop.f32.mrf.mxu0
      %587 = vmatprep.mubr.f32.mxu0 0.0
      %588 = vmatmul.mubr.f32.gmra.mxu0 %v455
      %v589 = vpop.f32.mrf.mxu0
      %v590 = vadd.f32 0.0, %v589
      %v591 = vpop.f32.mrf.mxu0
      %592 = vmatprep.mubr.f32.mxu0 0.0
      %593 = vmatmul.mubr.f32.gmra.mxu0 %v456
      %v594 = vpop.f32.mrf.mxu0
      %v595 = vadd.f32 0.0, %v594
      %v596 = vpop.f32.mrf.mxu0
      %597 = vmatprep.mubr.f32.mxu0 0.0
      %598 = vmatmul.mubr.f32.gmra.mxu0 %v457
      %v599 = vpop.f32.mrf.mxu0
      %v600 = vadd.f32 0.0, %v599
      %v601 = vpop.f32.mrf.mxu0
      %602 = vmatprep.mubr.f32.mxu0 0.0
      %603 = vmatmul.mubr.f32.gmra.mxu0 %v458
      %v604 = vpop.f32.mrf.mxu0
      %v605 = vadd.f32 0.0, %v604
      %v606 = vpop.f32.mrf.mxu0
      %607 = vmatprep.mubr.f32.mxu0 0.0
      %608 = vmatmul.mubr.f32.gmra.mxu0 %v459
      %v609 = vpop.f32.mrf.mxu0
      %v610 = vadd.f32 0.0, %v609
      %v611 = vpop.f32.mrf.mxu0
      %612 = vmatprep.mubr.f32.mxu0 0.0
      %613 = vmatmul.mubr.f32.gmra.mxu0 %v460
      %v614 = vpop.f32.mrf.mxu0
      %v615 = vadd.f32 0.0, %v614
      %v616 = vpop.f32.mrf.mxu0
      %617 = vmatprep.mubr.f32.mxu0 0.0
      %618 = vmatmul.mubr.f32.gmra.mxu0 %v461
      %v619 = vpop.f32.mrf.mxu0
      %v620 = vadd.f32 0.0, %v619
      %v621 = vpop.f32.mrf.mxu0
      %622 = vmatprep.mubr.f32.mxu0 0.0
      %623 = vmatmul.mubr.f32.gmra.mxu0 %v462
      %v624 = vpop.f32.mrf.mxu0
      %v625 = vadd.f32 0.0, %v624
      %v626 = vpop.f32.mrf.mxu0
      %627 = vmatprep.mubr.f32.mxu0 0.0
      %628 = vmatmul.mubr.f32.gmra.mxu0 %v463
      %v629 = vpop.f32.mrf.mxu0
      %v630 = vadd.f32 0.0, %v629
      %v631 = vpop.f32.mrf.mxu0
      %632 = vmatprep.mubr.f32.mxu0 0.0
      %633 = vmatmul.mubr.f32.gmra.mxu0 %v464
      %v634 = vpop.f32.mrf.mxu0
      %v635 = vadd.f32 0.0, %v634
      %v636 = vpop.f32.mrf.mxu0
      %637 = vmatprep.mubr.f32.mxu0 0.0
      %638 = vmatmul.mubr.f32.gmra.mxu0 %v465
      %v639 = vpop.f32.mrf.mxu0
      %v640 = vadd.f32 0.0, %v639
      %v641 = vpop.f32.mrf.mxu0
      %642 = vmatprep.mubr.f32.mxu0 0.0
      %643 = vmatmul.mubr.f32.gmra.mxu0 %v466
      %v644 = vpop.f32.mrf.mxu0
      %v645 = vadd.f32 0.0, %v644
      %v646 = vpop.f32.mrf.mxu0
      %647 = vmatprep.mubr.f32.mxu0 0.0
      %648 = vmatmul.mubr.f32.gmra.mxu0 %v467
      %v649 = vpop.f32.mrf.mxu0
      %v650 = vadd.f32 0.0, %v649
      %v651 = vpop.f32.mrf.mxu0
      %652 = vmatprep.mubr.f32.mxu0 0.0
      %653 = vmatmul.mubr.f32.gmra.mxu0 %v468
      %v654 = vpop.f32.mrf.mxu0
      %v655 = vadd.f32 0.0, %v654
      %v656 = vpop.f32.mrf.mxu0
      %657 = vmatprep.mubr.f32.mxu0 0.0
      %658 = vmatmul.mubr.f32.gmra.mxu0 %v469
      %v659 = vpop.f32.mrf.mxu0
      %v660 = vadd.f32 0.0, %v659
      %v661 = vpop.f32.mrf.mxu0
      %662 = vmatprep.mubr.f32.mxu0 0.0
      %663 = vmatmul.mubr.f32.gmra.mxu0 %v470
      %v664 = vpop.f32.mrf.mxu0
      %v665 = vadd.f32 0.0, %v664
      %v666 = vpop.f32.mrf.mxu0
      %667 = vmatprep.mubr.f32.mxu0 0.0
      %668 = vmatmul.mubr.f32.gmra.mxu0 %v471
      %v669 = vpop.f32.mrf.mxu0
      %v670 = vadd.f32 0.0, %v669
      %v671 = vpop.f32.mrf.mxu0
      %672 = vmatprep.mubr.f32.mxu0 0.0
      %673 = vmatmul.mubr.f32.gmra.mxu0 %v472
      %v674 = vpop.f32.mrf.mxu0
      %v675 = vadd.f32 0.0, %v674
      %v676 = vpop.f32.mrf.mxu0
      %677 = vmatprep.mubr.f32.mxu0 0.0
      %678 = vmatmul.mubr.f32.gmra.mxu0 %v473
      %v679 = vpop.f32.mrf.mxu0
      %v680 = vadd.f32 0.0, %v679
      %v681 = vpop.f32.mrf.mxu0
      %682 = vmatprep.mubr.f32.mxu0 0.0
      %683 = vmatmul.mubr.f32.gmra.mxu0 %v474
      %v684 = vpop.f32.mrf.mxu0
      %v685 = vadd.f32 0.0, %v684
      %v686 = vpop.f32.mrf.mxu0
      %687 = vmatprep.mubr.f32.mxu0 0.0
      %688 = vmatmul.mubr.f32.gmra.mxu0 %v475
      %v689 = vpop.f32.mrf.mxu0
      %v690 = vadd.f32 0.0, %v689
      %v691 = vpop.f32.mrf.mxu0
      %692 = vmatprep.mubr.f32.mxu0 0.0
      %693 = vmatmul.mubr.f32.gmra.mxu0 %v476
      %v694 = vpop.f32.mrf.mxu0
      %v695 = vadd.f32 0.0, %v694
      %v696 = vpop.f32.mrf.mxu0
      %697 = vmatprep.mubr.f32.mxu0 0.0
      %698 = vmatmul.mubr.f32.gmra.mxu0 %v477
      %v699 = vpop.f32.mrf.mxu0
      %v700 = vadd.f32 0.0, %v699
      %v701 = vpop.f32.mrf.mxu0
      %702 = vmatprep.mubr.f32.mxu0 0.0
      %703 = vmatmul.mubr.f32.gmra.mxu0 %v478
      %v704 = vpop.f32.mrf.mxu0
      %v705 = vadd.f32 0.0, %v704
      %v706 = vpop.f32.mrf.mxu0
      %707 = vmatprep.mubr.f32.mxu0 0.0
      %708 = vmatmul.mubr.f32.gmra.mxu0 %v479
      %v709 = vpop.f32.mrf.mxu0
      %v710 = vadd.f32 0.0, %v709
      %v711 = vpop.f32.mrf.mxu0
      %712 = vmatprep.mubr.f32.mxu0 0.0
      %713 = vmatmul.mubr.f32.gmra.mxu0 %v480
      %v714 = vpop.f32.mrf.mxu0
      %v715 = vadd.f32 0.0, %v714
      %v716 = vpop.f32.mrf.mxu0
      %717 = vmatprep.mubr.f32.mxu0 0.0
      %718 = vmatmul.mubr.f32.gmra.mxu0 %v481
      %v719 = vpop.f32.mrf.mxu0
      %v720 = vadd.f32 0.0, %v719
      %v721 = vpop.f32.mrf.mxu0
      %722 = vdwg.mxu0
      %723 = vst [vmem:[%s266] sm:$0xff] %v565
      %724 = vst [vmem:[%s266 + $0x8] sm:$0xff] %v570
      %725 = vst [vmem:[%s266 + $0x10] sm:$0xff] %v575
      %726 = vst [vmem:[%s266 + $0x18] sm:$0xff] %v580
      %727 = vst [vmem:[%s266 + $0x20] sm:$0xff] %v585
      %728 = vst [vmem:[%s266 + $0x28] sm:$0xff] %v590
      %729 = vst [vmem:[%s266 + $0x30] sm:$0xff] %v595
      %730 = vst [vmem:[%s266 + $0x38] sm:$0xff] %v600
      %731 = vst [vmem:[%s266 + $0x40] sm:$0xff] %v605
      %732 = vst [vmem:[%s266 + $0x48] sm:$0xff] %v610
      %733 = vst [vmem:[%s266 + $0x50] sm:$0xff] %v615
      %734 = vst [vmem:[%s266 + $0x58] sm:$0xff] %v620
      %735 = vst [vmem:[%s266 + $0x60] sm:$0xff] %v625
      %736 = vst [vmem:[%s266 + $0x68] sm:$0xff] %v630
      %737 = vst [vmem:[%s266 + $0x70] sm:$0xff] %v635
      %738 = vst [vmem:[%s266 + $0x78] sm:$0xff] %v640
      %739 = vst [vmem:[%s266 + $0x80] sm:$0xff] %v645
      %740 = vst [vmem:[%s266 + $0x88] sm:$0xff] %v650
      %741 = vst [vmem:[%s266 + $0x90] sm:$0xff] %v655
      %742 = vst [vmem:[%s266 + $0x98] sm:$0xff] %v660
      %743 = vst [vmem:[%s266 + $0xa0] sm:$0xff] %v665
      %744 = vst [vmem:[%s266 + $0xa8] sm:$0xff] %v670
      %745 = vst [vmem:[%s266 + $0xb0] sm:$0xff] %v675
      %746 = vst [vmem:[%s266 + $0xb8] sm:$0xff] %v680
      %747 = vst [vmem:[%s266 + $0xc0] sm:$0xff] %v685
      %748 = vst [vmem:[%s266 + $0xc8] sm:$0xff] %v690
      %749 = vst [vmem:[%s266 + $0xd0] sm:$0xff] %v695
      %750 = vst [vmem:[%s266 + $0xd8] sm:$0xff] %v700
      %751 = vst [vmem:[%s266 + $0xe0] sm:$0xff] %v705
      %752 = vst [vmem:[%s266 + $0xe8] sm:$0xff] %v710
      %753 = vst [vmem:[%s266 + $0xf0] sm:$0xff] %v715
      %754 = vst [vmem:[%s266 + $0xf8] sm:$0xff] %v720
      %v755 = vadd.f32 %v565, %v570
      %v756 = vadd.f32 %v755, %v575
      %v757 = vadd.f32 %v756, %v580
      %v758 = vadd.f32 %v757, %v585
      %v759 = vadd.f32 %v758, %v590
      %v760 = vadd.f32 %v759, %v595
      %v761 = vadd.f32 %v760, %v600
      %v762 = vadd.f32 %v761, %v605
      %v763 = vadd.f32 %v762, %v610
      %v764 = vadd.f32 %v763, %v615
      %v765 = vadd.f32 %v764, %v620
      %v766 = vadd.f32 %v765, %v625
      %v767 = vadd.f32 %v766, %v630
      %v768 = vadd.f32 %v767, %v635
      %v769 = vadd.f32 %v768, %v640
      %v770 = vadd.f32 %v769, %v645
      %v771 = vadd.f32 %v770, %v650
      %v772 = vadd.f32 %v771, %v655
      %v773 = vadd.f32 %v772, %v660
      %v774 = vadd.f32 %v773, %v665
      %v775 = vadd.f32 %v774, %v670
      %v776 = vadd.f32 %v775, %v675
      %v777 = vadd.f32 %v776, %v680
      %v778 = vadd.f32 %v777, %v685
      %v779 = vadd.f32 %v778, %v690
      %v780 = vadd.f32 %v779, %v695
      %v781 = vadd.f32 %v780, %v700
      %v782 = vadd.f32 %v781, %v705
      %v783 = vadd.f32 %v782, %v710
      %v784 = vadd.f32 %v783, %v715
      %v785 = vadd.f32 %v784, %v720
      %v786 = vrot.slane %v785, 4
      %v787 = vadd.f32 %v785, %v786
      %v788 = vrot.slane %v787, 2
      %v789 = vadd.f32 %v787, %v788
      %v790 = vrot.slane %v789, 1
      %v791 = vadd.f32 %v789, %v790
      %792 = vst [vmem:[%s271] sm:$0xff] %v791
      %v793 = vmul.f32 %v565, %v565
      %v794 = vmul.f32 %v570, %v570
      %v795 = vmul.f32 %v575, %v575
      %v796 = vmul.f32 %v580, %v580
      %v797 = vmul.f32 %v585, %v585
      %v798 = vmul.f32 %v590, %v590
      %v799 = vmul.f32 %v595, %v595
      %v800 = vmul.f32 %v600, %v600
      %v801 = vmul.f32 %v605, %v605
      %v802 = vmul.f32 %v610, %v610
      %v803 = vmul.f32 %v615, %v615
      %v804 = vmul.f32 %v620, %v620
      %v805 = vmul.f32 %v625, %v625
      %v806 = vmul.f32 %v630, %v630
      %v807 = vmul.f32 %v635, %v635
      %v808 = vmul.f32 %v640, %v640
      %v809 = vmul.f32 %v645, %v645
      %v810 = vmul.f32 %v650, %v650
      %v811 = vmul.f32 %v655, %v655
      %v812 = vmul.f32 %v660, %v660
      %v813 = vmul.f32 %v665, %v665
      %v814 = vmul.f32 %v670, %v670
      %v815 = vmul.f32 %v675, %v675
      %v816 = vmul.f32 %v680, %v680
      %v817 = vmul.f32 %v685, %v685
      %v818 = vmul.f32 %v690, %v690
      %v819 = vmul.f32 %v695, %v695
      %v820 = vmul.f32 %v700, %v700
      %v821 = vmul.f32 %v705, %v705
      %v822 = vmul.f32 %v710, %v710
      %v823 = vmul.f32 %v715, %v715
      %v824 = vmul.f32 %v720, %v720
      %v825 = vadd.f32 %v793, %v794
      %v826 = vadd.f32 %v825, %v795
      %v827 = vadd.f32 %v826, %v796
      %v828 = vadd.f32 %v827, %v797
      %v829 = vadd.f32 %v828, %v798
      %v830 = vadd.f32 %v829, %v799
      %v831 = vadd.f32 %v830, %v800
      %v832 = vadd.f32 %v831, %v801
      %v833 = vadd.f32 %v832, %v802
      %v834 = vadd.f32 %v833, %v803
      %v835 = vadd.f32 %v834, %v804
      %v836 = vadd.f32 %v835, %v805
      %v837 = vadd.f32 %v836, %v806
      %v838 = vadd.f32 %v837, %v807
      %v839 = vadd.f32 %v838, %v808
      %v840 = vadd.f32 %v839, %v809
      %v841 = vadd.f32 %v840, %v810
      %v842 = vadd.f32 %v841, %v811
      %v843 = vadd.f32 %v842, %v812
      %v844 = vadd.f32 %v843, %v813
      %v845 = vadd.f32 %v844, %v814
      %v846 = vadd.f32 %v845, %v815
      %v847 = vadd.f32 %v846, %v816
      %v848 = vadd.f32 %v847, %v817
      %v849 = vadd.f32 %v848, %v818
      %v850 = vadd.f32 %v849, %v819
      %v851 = vadd.f32 %v850, %v820
      %v852 = vadd.f32 %v851, %v821
      %v853 = vadd.f32 %v852, %v822
      %v854 = vadd.f32 %v853, %v823
      %v855 = vadd.f32 %v854, %v824
      %v856 = vrot.slane %v855, 4
      %v857 = vadd.f32 %v855, %v856
      %v858 = vrot.slane %v857, 2
      %v859 = vadd.f32 %v857, %v858
      %v860 = vrot.slane %v859, 1
      %v861 = vadd.f32 %v859, %v860
      %862 = vst [vmem:[%s275] sm:$0xff] %v861
      %s863 = smul.u32 32, %s18
      %p864 = scmp.lt.s32.totalorder %s863, 63
      %s865 = scalar_select %p864, %s863, 63
      %s866 = smul.addr %s865, 8
      %s867 = scalar_lea.vmem %s4, %s866
      %p868 = scmp.lt.s32.totalorder %s18, 1
      %s869 = scalar_select %p868, %s18, 1
      %s870 = smul.addr %s869, 8
      %s871 = scalar_lea.vmem %s5, %s870
      %p872 = scmp.lt.s32.totalorder %s18, 1
      %s873 = scalar_select %p872, %s18, 1
      %s874 = smul.addr %s873, 8
      %s875 = scalar_lea.vmem %s6, %s874
      // Predicated region
      $region37: #{bottleneck_forward.8} parent=35 // pred_check
        %p876 = pneg %p125
      $region38: #{bottleneck_forward.8} parent=35 // pred_check_branch
        %878 = sbr.rel (%p876) target = $region40
      $region39: #{bottleneck_forward.8} parent=35 // pred_region
        %s879 = smul.u32 32, %s18
      $region40: #{bottleneck_forward.8} parent=35 // pred_fallthru
        _
      // Predicated region
      $region41: #{bottleneck_forward.8} parent=35 // pred_check
        %p880 = pneg %p151
      $region42: #{bottleneck_forward.8} parent=35 // pred_check_branch
        %882 = sbr.rel (%p880) target = $region44
      $region43: #{bottleneck_forward.8} parent=35 // pred_region
        _
      $region44: #{bottleneck_forward.8} parent=35 // pred_fallthru
        _
      // Predicated region
      $region45: #{bottleneck_forward.8} parent=35 // pred_check
        %p883 = pneg %p177
      $region46: #{bottleneck_forward.8} parent=35 // pred_check_branch
        %885 = sbr.rel (%p883) target = $region48
      $region47: #{bottleneck_forward.8} parent=35 // pred_region
        _
      $region48: #{bottleneck_forward.8} parent=35 // pred_fallthru
        _
    $region36: #{bottleneck_forward.8} parent=5 // pred_fallthru
      _
    %p886 = scmp.le.s32.totalorder 2, %s13
    // Predicated region
    $region49: #{bottleneck_forward.8} parent=5 // pred_check
      %p887 = pneg %p886
    $region50: #{bottleneck_forward.8} parent=5 // pred_check_branch
      %889 = sbr.rel (%p887) target = $region52
    $region51: #{bottleneck_forward.8} parent=5 // pred_region
      %s890 = ssub.s32 %s13, 2
      // Predicated region
      $region53: #{bottleneck_forward.8} parent=51 // pred_check
        %p891 = pneg %p131
      $region54: #{bottleneck_forward.8} parent=51 // pred_check_branch
        %893 = sbr.rel (%p891) target = $region56
      $region55: #{bottleneck_forward.8} parent=51 // pred_region
        %s894 = smul.u32 32, %s19
        %p895 = scmp.lt.s32.totalorder %s894, 63
        %s896 = scalar_select %p895, %s894, 63
        %s897 = smul.addr %s896, 8
        %s898 = scalar_lea.vmem %s4, %s897
      $region56: #{bottleneck_forward.8} parent=51 // pred_fallthru
        _
      // Predicated region
      $region57: #{bottleneck_forward.8} parent=51 // pred_check
        %p899 = pneg %p157
      $region58: #{bottleneck_forward.8} parent=51 // pred_check_branch
        %901 = sbr.rel (%p899) target = $region60
      $region59: #{bottleneck_forward.8} parent=51 // pred_region
        %p902 = scmp.lt.s32.totalorder %s19, 1
        %s903 = scalar_select %p902, %s19, 1
        %s904 = smul.addr %s903, 8
        %s905 = scalar_lea.vmem %s5, %s904
      $region60: #{bottleneck_forward.8} parent=51 // pred_fallthru
        _
      // Predicated region
      $region61: #{bottleneck_forward.8} parent=51 // pred_check
        %p906 = pneg %p183
      $region62: #{bottleneck_forward.8} parent=51 // pred_check_branch
        %908 = sbr.rel (%p906) target = $region64
      $region63: #{bottleneck_forward.8} parent=51 // pred_region
        %p909 = scmp.lt.s32.totalorder %s19, 1
        %s910 = scalar_select %p909, %s19, 1
        %s911 = smul.addr %s910, 8
        %s912 = scalar_lea.vmem %s6, %s911
      $region64: #{bottleneck_forward.8} parent=51 // pred_fallthru
        _
    $region52: #{bottleneck_forward.8} parent=5 // pred_fallthru
      _
  $region6: #{bottleneck_forward.8} parent=0 // loop_footer
    %s17 = sadd.s32 1, %s13
  $region7: #{bottleneck_forward.8} parent=0 // loop_footer_branch
    %12 = sbr.rel target = $region3
  $region8: #{bottleneck_forward.8} parent=0 // loop_exit
    _

// kernel: bottleneck_forward.9
$region0: #{bottleneck_forward.9}
  #allocation0 [shape = 'u32[]', space=smem, size = 0x4, offset = 0x4, fixed_abs, tag = 'smem constant byte address 0x4 - core index']
  #allocation1 [shape = 'u32[144,128]{1,0:T(1,128)}', space=vmem, size = 0x12000, scoped, tag = 'internal scratch']
  %s0 = inlined_call_operand.vmem [shape: f32[512,128], index: 0, kind: input, shape index: {}]
  %s1 = inlined_call_operand.vmem [shape: f32[1,128], index: 1, kind: input, shape index: {}]
  %s2 = inlined_call_operand.vmem [shape: f32[1,128], index: 2, kind: input, shape index: {}]
  %s3 = inlined_call_operand.vmem [shape: f32[512,128], index: 3, kind: input, shape index: {}]
  %s4 = inlined_call_operand.hbm [shape: f32[512,128], index: 4, kind: output, shape index: {}]
  %s5 = sld [smem:[#allocation0]]
  $region49: #{bottleneck_forward.9} parent=0
    _
  %s7 = ssub.s32 1, %s5
  %s8 = scalar_select 0, %s7, %s5
  $region1: #{bottleneck_forward.9} parent=0
    #allocation2 [shape = 'u8[262144]{0}', space=vmem, size = 0x40000, scoped, tag = 'output window, operand 0']
    #allocation3 [shape = 's32[2]{0}', space=sflag, size = 0x8, scoped, tag = 'scoped memory for bottleneck_forward.9']
    %9 = vsyncpa [#allocation3], 0
    %s10 = scalar_lea.sflag [#allocation3], 1
    %11 = vsyncpa %s10, 0
    loop: start=0, step=1, limit=4
    $region2: #{bottleneck_forward.9} parent=1 // loop_pre_header
      _
    $region3: #{bottleneck_forward.9} parent=1 // loop_header
      %s13 = sphi 0, %s17
      %p14 = scmp.ge.s32.totalorder %s13, 4
      %s23 = sphi 0, %s25
      %s26 = sphi 0, %s23
      %s27 = sphi 0, %s26
      %s43 = sphi 0, %s27
      %s47 = sphi 0, %s47
      %s49 = sphi 0, %s47
      %s50 = sphi 0, %s49
      %s64 = sphi 0, %s50
      %s68 = sphi 0, %s68
      %s70 = sphi 0, %s68
      %s71 = sphi 0, %s70
      %s85 = sphi 0, %s71
      %s91 = sphi 0, %s93
      %s94 = sphi 0, %s91
      %s95 = sphi 0, %s94
      %s111 = sphi 0, %s95
      %s117 = sphi 0, %s119
      %s120 = sphi 0, %s117
      %s121 = sphi 0, %s120
      %s137 = sphi 0, %s121
    $region4: #{bottleneck_forward.9} parent=1 // loop_header_branch
      %16 = sbr.rel (%p14) target = $region8
    $region5: #{bottleneck_forward.9} parent=1 // loop_body
      %s18 = ssub.s32 %s13, 1
      %s19 = ssub.s32 %s13, 2
      %s20 = sadd.s32 %s13, 1
      %s21 = ssub.s32 %s13, %s20
      %p22 = scmp.eq.s32.totalorder %s21, 0
      %s24 = sadd.s32 %s23, 1
      %s25 = scalar_select %p22, %s23, %s24
      %p28 = pneg %p22
      %p29 = scmp.eq.s32.totalorder %s13, 1
      %p30 = por %p28, %p29
      %p31 = scmp.ne.s32.totalorder %s23, %s26
      %p32 = scmp.eq.s32.totalorder %s13, 0
      %p33 = por %p31, %p32
      %p34 = scmp.ne.s32.totalorder %s23, %s26
      %p35 = scmp.eq.s32.totalorder %s18, 1
      %p36 = por %p34, %p35
      %p37 = scmp.ne.s32.totalorder %s26, %s27
      %p38 = scmp.eq.s32.totalorder %s18, 0
      %p39 = por %p37, %p38
      %p40 = scmp.ne.s32.totalorder %s26, %s27
      %p41 = scmp.eq.s32.totalorder %s19, 1
      %p42 = por %p40, %p41
      %p44 = scmp.ne.s32.totalorder %s27, %s43
      %p45 = scmp.eq.s32.totalorder %s19, 0
      %p46 = por %p44, %p45
      %s48 = sadd.s32 %s47, 1
      %p51 = scmp.eq.s32.totalorder %s13, 1
      %p52 = scmp.ne.s32.totalorder %s47, %s49
      %p53 = scmp.eq.s32.totalorder %s13, 0
      %p54 = por %p52, %p53
      %p55 = scmp.ne.s32.totalorder %s47, %s49
      %p56 = scmp.eq.s32.totalorder %s18, 1
      %p57 = por %p55, %p56
      %p58 = scmp.ne.s32.totalorder %s49, %s50
      %p59 = scmp.eq.s32.totalorder %s18, 0
      %p60 = por %p58, %p59
      %p61 = scmp.ne.s32.totalorder %s49, %s50
      %p62 = scmp.eq.s32.totalorder %s19, 1
      %p63 = por %p61, %p62
      %p65 = scmp.ne.s32.totalorder %s50, %s64
      %p66 = scmp.eq.s32.totalorder %s19, 0
      %p67 = por %p65, %p66
      %s69 = sadd.s32 %s68, 1
      %p72 = scmp.eq.s32.totalorder %s13, 1
      %p73 = scmp.ne.s32.totalorder %s68, %s70
      %p74 = scmp.eq.s32.totalorder %s13, 0
      %p75 = por %p73, %p74
      %p76 = scmp.ne.s32.totalorder %s68, %s70
      %p77 = scmp.eq.s32.totalorder %s18, 1
      %p78 = por %p76, %p77
      %p79 = scmp.ne.s32.totalorder %s70, %s71
      %p80 = scmp.eq.s32.totalorder %s18, 0
      %p81 = por %p79, %p80
      %p82 = scmp.ne.s32.totalorder %s70, %s71
      %p83 = scmp.eq.s32.totalorder %s19, 1
      %p84 = por %p82, %p83
      %p86 = scmp.ne.s32.totalorder %s71, %s85
      %p87 = scmp.eq.s32.totalorder %s19, 0
      %p88 = por %p86, %p87
      %s89 = ssub.s32 %s13, %s20
      %p90 = scmp.eq.s32.totalorder %s89, 0
      %s92 = sadd.s32 %s91, 1
      %s93 = scalar_select %p90, %s91, %s92
      %p96 = pneg %p90
      %p97 = scmp.eq.s32.totalorder %s13, 1
      %p98 = por %p96, %p97
      %p99 = scmp.ne.s32.totalorder %s91, %s94
      %p100 = scmp.eq.s32.totalorder %s13, 0
      %p101 = por %p99, %p100
      %p102 = scmp.ne.s32.totalorder %s91, %s94
      %p103 = scmp.eq.s32.totalorder %s18, 1
      %p104 = por %p102, %p103
      %p105 = scmp.ne.s32.totalorder %s94, %s95
      %p106 = scmp.eq.s32.totalorder %s18, 0
      %p107 = por %p105, %p106
      %p108 = scmp.ne.s32.totalorder %s94, %s95
      %p109 = scmp.eq.s32.totalorder %s19, 1
      %p110 = por %p108, %p109
      %p112 = scmp.ne.s32.totalorder %s95, %s111
      %p113 = scmp.eq.s32.totalorder %s19, 0
      %p114 = por %p112, %p113
      %s115 = ssub.s32 %s13, %s20
      %p116 = scmp.eq.s32.totalorder %s115, 0
      %s118 = sadd.s32 %s117, 1
      %s119 = scalar_select %p116, %s117, %s118
      %p122 = pneg %p116
      %p123 = scmp.eq.s32.totalorder %s13, 1
      %p124 = por %p122, %p123
      %p125 = scmp.ne.s32.totalorder %s117, %s120
      %p126 = scmp.eq.s32.totalorder %s13, 0
      %p127 = por %p125, %p126
      %p128 = scmp.ne.s32.totalorder %s117, %s120
      %p129 = scmp.eq.s32.totalorder %s18, 1
      %p130 = por %p128, %p129
      %p131 = scmp.ne.s32.totalorder %s120, %s121
      %p132 = scmp.eq.s32.totalorder %s18, 0
      %p133 = por %p131, %p132
      %p134 = scmp.ne.s32.totalorder %s120, %s121
      %p135 = scmp.eq.s32.totalorder %s19, 1
      %p136 = por %p134, %p135
      %p138 = scmp.ne.s32.totalorder %s121, %s137
      %p139 = scmp.eq.s32.totalorder %s19, 0
      %p140 = por %p138, %p139
      %p141 = scmp.le.s32.totalorder 1, %s13
      %p142 = scmp.lt.s32.totalorder %s13, 3
      %p143 = pnand %p141, %p142
      %p144 = pneg %p143
      // Predicated region
      $region9: #{bottleneck_forward.9} parent=5 // pred_check
        _
      $region10: #{bottleneck_forward.9} parent=5 // pred_check_branch
        %146 = sbr.rel (%p143) target = $region12
      $region11: #{bottleneck_forward.9} parent=5 // pred_region
        %s147 = ssub.s32 %s13, 1
        // Predicated region
        $region13: #{bottleneck_forward.9} parent=11 // pred_check
          %p148 = pneg %p60
        $region14: #{bottleneck_forward.9} parent=11 // pred_check_branch
          %150 = sbr.rel (%p148) target = $region16
        $region15: #{bottleneck_forward.9} parent=11 // pred_region
          _
        $region16: #{bottleneck_forward.9} parent=11 // pred_fallthru
          _
        // Predicated region
        $region17: #{bottleneck_forward.9} parent=11 // pred_check
          %p151 = pneg %p81
        $region18: #{bottleneck_forward.9} parent=11 // pred_check_branch
          %153 = sbr.rel (%p151) target = $region20
        $region19: #{bottleneck_forward.9} parent=11 // pred_region
          _
        $region20: #{bottleneck_forward.9} parent=11 // pred_fallthru
          _
      $region12: #{bottleneck_forward.9} parent=5 // pred_fallthru
        _
      %p154 = scmp.lt.s32.totalorder %s13, 2
      // Predicated region
      $region21: #{bottleneck_forward.9} parent=5 // pred_check
        %p155 = pneg %p154
      $region22: #{bottleneck_forward.9} parent=5 // pred_check_branch
        %157 = sbr.rel (%p155) target = $region24
      $region23: #{bottleneck_forward.9} parent=5 // pred_region
        // Predicated region
        $region25: #{bottleneck_forward.9} parent=23 // pred_check
          %p158 = pneg %p33
        $region26: #{bottleneck_forward.9} parent=23 // pred_check_branch
          %160 = sbr.rel (%p158) target = $region28
        $region27: #{bottleneck_forward.9} parent=23 // pred_region
          %s161 = smul.u32 32, %s13
          %p162 = scmp.lt.s32.totalorder %s161, 63
          %s163 = scalar_select %p162, %s161, 63
          %s164 = smul.addr %s163, 8
          %s165 = scalar_lea.vmem %s0, %s164
          %s166 = smul.u32 32, %s13
        $region28: #{bottleneck_forward.9} parent=23 // pred_fallthru
          _
        // Predicated region
        $region29: #{bottleneck_forward.9} parent=23 // pred_check
          %p167 = pneg %p101
        $region30: #{bottleneck_forward.9} parent=23 // pred_check_branch
          %169 = sbr.rel (%p167) target = $region32
        $region31: #{bottleneck_forward.9} parent=23 // pred_region
          %s170 = smul.u32 32, %s13
          %p171 = scmp.lt.s32.totalorder %s170, 63
          %s172 = scalar_select %p171, %s170, 63
          %s173 = smul.addr %s172, 8
          %s174 = scalar_lea.vmem %s3, %s173
          %s175 = smul.u32 32, %s13
        $region32: #{bottleneck_forward.9} parent=23 // pred_fallthru
          _
      $region24: #{bottleneck_forward.9} parent=5 // pred_fallthru
        _
      %p176 = scmp.le.s32.totalorder 1, %s13
      %p177 = scmp.lt.s32.totalorder %s13, 3
      %p178 = pnand %p176, %p177
      %p179 = pneg %p178
      // Predicated region
      $region33: #{bottleneck_forward.9} parent=5 // pred_check
        _
      $region34: #{bottleneck_forward.9} parent=5 // pred_check_branch
        %181 = sbr.rel (%p178) target = $region36
      $region35: #{bottleneck_forward.9} parent=5 // pred_region
        %s182 = ssub.s32 %s13, 1
        %s183 = smul.u32 32, %s18
        %p184 = scmp.lt.s32.totalorder %s183, 63
        %s185 = scalar_select %p184, %s183, 63
        %s186 = smul.addr %s185, 8
        %s187 = scalar_lea.vmem %s0, %s186
        %p188 = pneg %p39
        %p189 = pneg %p36
        %p190 = pneg %p60
        %p191 = pneg %p57
        %p192 = pneg %p81
        %p193 = pneg %p78
        %s194 = smul.u32 32, %s18
        %p195 = scmp.lt.s32.totalorder %s194, 63
        %s196 = scalar_select %p195, %s194, 63
        %s197 = smul.addr %s196, 8
        %s198 = scalar_lea.vmem %s3, %s197
        %p199 = pneg %p107
        %p200 = pneg %p104
        %p201 = pneg %p133
        %p202 = pneg %p130
        %s203 = sand.u32 %s120, 1
        %s204 = scalar_lea.sflag [#allocation3], %s203
        %s205 = sand.u32 %s120, 1
        %s206 = smul.addr %s205, 256
        %s207 = scalar_lea.vmem [#allocation2], %s206
        %s208 = smul.u32 32, %s18
        %p209 = scmp.lt.s32.totalorder %s208, 63
        %s210 = scalar_select %p209, %s208, 63
        %s211 = smul.addr %s210, 8
        %s212 = scalar_lea.vmem %s0, %s211
        %s213 = smul.u32 32, %s18
        %s214 = smul.u32 32, %s18
        %p215 = scmp.lt.s32.totalorder %s214, 63
        %s216 = scalar_select %p215, %s214, 63
        %s217 = smul.addr %s216, 8
        %s218 = scalar_lea.vmem %s3, %s217
        %s219 = smul.u32 32, %s18
        %s220 = smul.u32 32, %s18
        %v221 = vld [vmem:[%s212] sm:$0xff]
        %v222 = vld [vmem:[%s212 + $0x8] sm:$0xff]
        %v223 = vld [vmem:[%s212 + $0x10] sm:$0xff]
        %v224 = vld [vmem:[%s212 + $0x18] sm:$0xff]
        %v225 = vld [vmem:[%s212 + $0x20] sm:$0xff]
        %v226 = vld [vmem:[%s212 + $0x28] sm:$0xff]
        %v227 = vld [vmem:[%s212 + $0x30] sm:$0xff]
        %v228 = vld [vmem:[%s212 + $0x38] sm:$0xff]
        %v229 = vld [vmem:[%s212 + $0x40] sm:$0xff]
        %v230 = vld [vmem:[%s212 + $0x48] sm:$0xff]
        %v231 = vld [vmem:[%s212 + $0x50] sm:$0xff]
        %v232 = vld [vmem:[%s212 + $0x58] sm:$0xff]
        %v233 = vld [vmem:[%s212 + $0x60] sm:$0xff]
        %v234 = vld [vmem:[%s212 + $0x68] sm:$0xff]
        %v235 = vld [vmem:[%s212 + $0x70] sm:$0xff]
        %v236 = vld [vmem:[%s212 + $0x78] sm:$0xff]
        %v237 = vld [vmem:[%s212 + $0x80] sm:$0xff]
        %v238 = vld [vmem:[%s212 + $0x88] sm:$0xff]
        %v239 = vld [vmem:[%s212 + $0x90] sm:$0xff]
        %v240 = vld [vmem:[%s212 + $0x98] sm:$0xff]
        %v241 = vld [vmem:[%s212 + $0xa0] sm:$0xff]
        %v242 = vld [vmem:[%s212 + $0xa8] sm:$0xff]
        %v243 = vld [vmem:[%s212 + $0xb0] sm:$0xff]
        %v244 = vld [vmem:[%s212 + $0xb8] sm:$0xff]
        %v245 = vld [vmem:[%s212 + $0xc0] sm:$0xff]
        %v246 = vld [vmem:[%s212 + $0xc8] sm:$0xff]
        %v247 = vld [vmem:[%s212 + $0xd0] sm:$0xff]
        %v248 = vld [vmem:[%s212 + $0xd8] sm:$0xff]
        %v249 = vld [vmem:[%s212 + $0xe0] sm:$0xff]
        %v250 = vld [vmem:[%s212 + $0xe8] sm:$0xff]
        %v251 = vld [vmem:[%s212 + $0xf0] sm:$0xff]
        %v252 = vld [vmem:[%s212 + $0xf8] sm:$0xff]
        %v253 = vld [vmem:[%s1] sm:$0x1]
        %v255 = vlaneseq
        %v256 = vshrl.u32 %v255, 7
        %v257 = vsub.s32 0, %v256
        %v258 = vrot.slane %v253, %v257
        %v260 = vmul.f32 %v221, %v258
        %v261 = vmul.f32 %v222, %v258
        %v262 = vmul.f32 %v223, %v258
        %v263 = vmul.f32 %v224, %v258
        %v264 = vmul.f32 %v225, %v258
        %v265 = vmul.f32 %v226, %v258
        %v266 = vmul.f32 %v227, %v258
        %v267 = vmul.f32 %v228, %v258
        %v268 = vmul.f32 %v229, %v258
        %v269 = vmul.f32 %v230, %v258
        %v270 = vmul.f32 %v231, %v258
        %v271 = vmul.f32 %v232, %v258
        %v272 = vmul.f32 %v233, %v258
        %v273 = vmul.f32 %v234, %v258
        %v274 = vmul.f32 %v235, %v258
        %v275 = vmul.f32 %v236, %v258
        %v276 = vmul.f32 %v237, %v258
        %v277 = vmul.f32 %v238, %v258
        %v278 = vmul.f32 %v239, %v258
        %v279 = vmul.f32 %v240, %v258
        %v280 = vmul.f32 %v241, %v258
        %v281 = vmul.f32 %v242, %v258
        %v282 = vmul.f32 %v243, %v258
        %v283 = vmul.f32 %v244, %v258
        %v284 = vmul.f32 %v245, %v258
        %v285 = vmul.f32 %v246, %v258
        %v286 = vmul.f32 %v247, %v258
        %v287 = vmul.f32 %v248, %v258
        %v288 = vmul.f32 %v249, %v258
        %v289 = vmul.f32 %v250, %v258
        %v290 = vmul.f32 %v251, %v258
        %v291 = vmul.f32 %v252, %v258
        %v292 = vld [vmem:[%s2] sm:$0x1]
        %v294 = vlaneseq
        %v295 = vshrl.u32 %v294, 7
        %v296 = vsub.s32 0, %v295
        %v297 = vrot.slane %v292, %v296
        %v299 = vadd.f32 %v260, %v297
        %v300 = vadd.f32 %v261, %v297
        %v301 = vadd.f32 %v262, %v297
        %v302 = vadd.f32 %v263, %v297
        %v303 = vadd.f32 %v264, %v297
        %v304 = vadd.f32 %v265, %v297
        %v305 = vadd.f32 %v266, %v297
        %v306 = vadd.f32 %v267, %v297
        %v307 = vadd.f32 %v268, %v297
        %v308 = vadd.f32 %v269, %v297
        %v309 = vadd.f32 %v270, %v297
        %v310 = vadd.f32 %v271, %v297
        %v311 = vadd.f32 %v272, %v297
        %v312 = vadd.f32 %v273, %v297
        %v313 = vadd.f32 %v274, %v297
        %v314 = vadd.f32 %v275, %v297
        %v315 = vadd.f32 %v276, %v297
        %v316 = vadd.f32 %v277, %v297
        %v317 = vadd.f32 %v278, %v297
        %v318 = vadd.f32 %v279, %v297
        %v319 = vadd.f32 %v280, %v297
        %v320 = vadd.f32 %v281, %v297
        %v321 = vadd.f32 %v282, %v297
        %v322 = vadd.f32 %v283, %v297
        %v323 = vadd.f32 %v284, %v297
        %v324 = vadd.f32 %v285, %v297
        %v325 = vadd.f32 %v286, %v297
        %v326 = vadd.f32 %v287, %v297
        %v327 = vadd.f32 %v288, %v297
        %v328 = vadd.f32 %v289, %v297
        %v329 = vadd.f32 %v290, %v297
        %v330 = vadd.f32 %v291, %v297
        %v331 = vld [vmem:[%s218] sm:$0xff]
        %v332 = vld [vmem:[%s218 + $0x8] sm:$0xff]
        %v333 = vld [vmem:[%s218 + $0x10] sm:$0xff]
        %v334 = vld [vmem:[%s218 + $0x18] sm:$0xff]
        %v335 = vld [vmem:[%s218 + $0x20] sm:$0xff]
        %v336 = vld [vmem:[%s218 + $0x28] sm:$0xff]
        %v337 = vld [vmem:[%s218 + $0x30] sm:$0xff]
        %v338 = vld [vmem:[%s218 + $0x38] sm:$0xff]
        %v339 = vld [vmem:[%s218 + $0x40] sm:$0xff]
        %v340 = vld [vmem:[%s218 + $0x48] sm:$0xff]
        %v341 = vld [vmem:[%s218 + $0x50] sm:$0xff]
        %v342 = vld [vmem:[%s218 + $0x58] sm:$0xff]
        %v343 = vld [vmem:[%s218 + $0x60] sm:$0xff]
        %v344 = vld [vmem:[%s218 + $0x68] sm:$0xff]
        %v345 = vld [vmem:[%s218 + $0x70] sm:$0xff]
        %v346 = vld [vmem:[%s218 + $0x78] sm:$0xff]
        %v347 = vld [vmem:[%s218 + $0x80] sm:$0xff]
        %v348 = vld [vmem:[%s218 + $0x88] sm:$0xff]
        %v349 = vld [vmem:[%s218 + $0x90] sm:$0xff]
        %v350 = vld [vmem:[%s218 + $0x98] sm:$0xff]
        %v351 = vld [vmem:[%s218 + $0xa0] sm:$0xff]
        %v352 = vld [vmem:[%s218 + $0xa8] sm:$0xff]
        %v353 = vld [vmem:[%s218 + $0xb0] sm:$0xff]
        %v354 = vld [vmem:[%s218 + $0xb8] sm:$0xff]
        %v355 = vld [vmem:[%s218 + $0xc0] sm:$0xff]
        %v356 = vld [vmem:[%s218 + $0xc8] sm:$0xff]
        %v357 = vld [vmem:[%s218 + $0xd0] sm:$0xff]
        %v358 = vld [vmem:[%s218 + $0xd8] sm:$0xff]
        %v359 = vld [vmem:[%s218 + $0xe0] sm:$0xff]
        %v360 = vld [vmem:[%s218 + $0xe8] sm:$0xff]
        %v361 = vld [vmem:[%s218 + $0xf0] sm:$0xff]
        %v362 = vld [vmem:[%s218 + $0xf8] sm:$0xff]
        %v363 = vadd.f32 %v299, %v331
        %v364 = vadd.f32 %v300, %v332
        %v365 = vadd.f32 %v301, %v333
        %v366 = vadd.f32 %v302, %v334
        %v367 = vadd.f32 %v303, %v335
        %v368 = vadd.f32 %v304, %v336
        %v369 = vadd.f32 %v305, %v337
        %v370 = vadd.f32 %v306, %v338
        %v371 = vadd.f32 %v307, %v339
        %v372 = vadd.f32 %v308, %v340
        %v373 = vadd.f32 %v309, %v341
        %v374 = vadd.f32 %v310, %v342
        %v375 = vadd.f32 %v311, %v343
        %v376 = vadd.f32 %v312, %v344
        %v377 = vadd.f32 %v313, %v345
        %v378 = vadd.f32 %v314, %v346
        %v379 = vadd.f32 %v315, %v347
        %v380 = vadd.f32 %v316, %v348
        %v381 = vadd.f32 %v317, %v349
        %v382 = vadd.f32 %v318, %v350
        %v383 = vadd.f32 %v319, %v351
        %v384 = vadd.f32 %v320, %v352
        %v385 = vadd.f32 %v321, %v353
        %v386 = vadd.f32 %v322, %v354
        %v387 = vadd.f32 %v323, %v355
        %v388 = vadd.f32 %v324, %v356
        %v389 = vadd.f32 %v325, %v357
        %v390 = vadd.f32 %v326, %v358
        %v391 = vadd.f32 %v327, %v359
        %v392 = vadd.f32 %v328, %v360
        %v393 = vadd.f32 %v329, %v361
        %v394 = vadd.f32 %v330, %v362
        %vm395 = vcmp.gt.f32.partialorder %v363, 0.0
        %vm396 = vcmp.gt.f32.partialorder %v364, 0.0
        %vm397 = vcmp.gt.f32.partialorder %v365, 0.0
        %vm398 = vcmp.gt.f32.partialorder %v366, 0.0
        %vm399 = vcmp.gt.f32.partialorder %v367, 0.0
        %vm400 = vcmp.gt.f32.partialorder %v368, 0.0
        %vm401 = vcmp.gt.f32.partialorder %v369, 0.0
        %vm402 = vcmp.gt.f32.partialorder %v370, 0.0
        %vm403 = vcmp.gt.f32.partialorder %v371, 0.0
        %vm404 = vcmp.gt.f32.partialorder %v372, 0.0
        %vm405 = vcmp.gt.f32.partialorder %v373, 0.0
        %vm406 = vcmp.gt.f32.partialorder %v374, 0.0
        %vm407 = vcmp.gt.f32.partialorder %v375, 0.0
        %vm408 = vcmp.gt.f32.partialorder %v376, 0.0
        %vm409 = vcmp.gt.f32.partialorder %v377, 0.0
        %vm410 = vcmp.gt.f32.partialorder %v378, 0.0
        %vm411 = vcmp.gt.f32.partialorder %v379, 0.0
        %vm412 = vcmp.gt.f32.partialorder %v380, 0.0
        %vm413 = vcmp.gt.f32.partialorder %v381, 0.0
        %vm414 = vcmp.gt.f32.partialorder %v382, 0.0
        %vm415 = vcmp.gt.f32.partialorder %v383, 0.0
        %vm416 = vcmp.gt.f32.partialorder %v384, 0.0
        %vm417 = vcmp.gt.f32.partialorder %v385, 0.0
        %vm418 = vcmp.gt.f32.partialorder %v386, 0.0
        %vm419 = vcmp.gt.f32.partialorder %v387, 0.0
        %vm420 = vcmp.gt.f32.partialorder %v388, 0.0
        %vm421 = vcmp.gt.f32.partialorder %v389, 0.0
        %vm422 = vcmp.gt.f32.partialorder %v390, 0.0
        %vm423 = vcmp.gt.f32.partialorder %v391, 0.0
        %vm424 = vcmp.gt.f32.partialorder %v392, 0.0
        %vm425 = vcmp.gt.f32.partialorder %v393, 0.0
        %vm426 = vcmp.gt.f32.partialorder %v394, 0.0
        %v427 = vmul.f32 %v363, 0.1
        %v428 = vmul.f32 %v364, 0.1
        %v429 = vmul.f32 %v365, 0.1
        %v430 = vmul.f32 %v366, 0.1
        %v431 = vmul.f32 %v367, 0.1
        %v432 = vmul.f32 %v368, 0.1
        %v433 = vmul.f32 %v369, 0.1
        %v434 = vmul.f32 %v370, 0.1
        %v435 = vmul.f32 %v371, 0.1
        %v436 = vmul.f32 %v372, 0.1
        %v437 = vmul.f32 %v373, 0.1
        %v438 = vmul.f32 %v374, 0.1
        %v439 = vmul.f32 %v375, 0.1
        %v440 = vmul.f32 %v376, 0.1
        %v441 = vmul.f32 %v377, 0.1
        %v442 = vmul.f32 %v378, 0.1
        %v443 = vmul.f32 %v379, 0.1
        %v444 = vmul.f32 %v380, 0.1
        %v445 = vmul.f32 %v381, 0.1
        %v446 = vmul.f32 %v382, 0.1
        %v447 = vmul.f32 %v383, 0.1
        %v448 = vmul.f32 %v384, 0.1
        %v449 = vmul.f32 %v385, 0.1
        %v450 = vmul.f32 %v386, 0.1
        %v451 = vmul.f32 %v387, 0.1
        %v452 = vmul.f32 %v388, 0.1
        %v453 = vmul.f32 %v389, 0.1
        %v454 = vmul.f32 %v390, 0.1
        %v455 = vmul.f32 %v391, 0.1
        %v456 = vmul.f32 %v392, 0.1
        %v457 = vmul.f32 %v393, 0.1
        %v458 = vmul.f32 %v394, 0.1
        %v459 = vsel %vm395, %v363, %v427
        %v460 = vsel %vm396, %v364, %v428
        %v461 = vsel %vm397, %v365, %v429
        %v462 = vsel %vm398, %v366, %v430
        %v463 = vsel %vm399, %v367, %v431
        %v464 = vsel %vm400, %v368, %v432
        %v465 = vsel %vm401, %v369, %v433
        %v466 = vsel %vm402, %v370, %v434
        %v467 = vsel %vm403, %v371, %v435
        %v468 = vsel %vm404, %v372, %v436
        %v469 = vsel %vm405, %v373, %v437
        %v470 = vsel %vm406, %v374, %v438
        %v471 = vsel %vm407, %v375, %v439
        %v472 = vsel %vm408, %v376, %v440
        %v473 = vsel %vm409, %v377, %v441
        %v474 = vsel %vm410, %v378, %v442
        %v475 = vsel %vm411, %v379, %v443
        %v476 = vsel %vm412, %v380, %v444
        %v477 = vsel %vm413, %v381, %v445
        %v478 = vsel %vm414, %v382, %v446
        %v479 = vsel %vm415, %v383, %v447
        %v480 = vsel %vm416, %v384, %v448
        %v481 = vsel %vm417, %v385, %v449
        %v482 = vsel %vm418, %v386, %v450
        %v483 = vsel %vm419, %v387, %v451
        %v484 = vsel %vm420, %v388, %v452
        %v485 = vsel %vm421, %v389, %v453
        %v486 = vsel %vm422, %v390, %v454
        %v487 = vsel %vm423, %v391, %v455
        %v488 = vsel %vm424, %v392, %v456
        %v489 = vsel %vm425, %v393, %v457
        %v490 = vsel %vm426, %v394, %v458
        %491 = vst [vmem:[%s207] sm:$0xff] %v459
        %492 = vst [vmem:[%s207 + $0x8] sm:$0xff] %v460
        %493 = vst [vmem:[%s207 + $0x10] sm:$0xff] %v461
        %494 = vst [vmem:[%s207 + $0x18] sm:$0xff] %v462
        %495 = vst [vmem:[%s207 + $0x20] sm:$0xff] %v463
        %496 = vst [vmem:[%s207 + $0x28] sm:$0xff] %v464
        %497 = vst [vmem:[%s207 + $0x30] sm:$0xff] %v465
        %498 = vst [vmem:[%s207 + $0x38] sm:$0xff] %v466
        %499 = vst [vmem:[%s207 + $0x40] sm:$0xff] %v467
        %500 = vst [vmem:[%s207 + $0x48] sm:$0xff] %v468
        %501 = vst [vmem:[%s207 + $0x50] sm:$0xff] %v469
        %502 = vst [vmem:[%s207 + $0x58] sm:$0xff] %v470
        %503 = vst [vmem:[%s207 + $0x60] sm:$0xff] %v471
        %504 = vst [vmem:[%s207 + $0x68] sm:$0xff] %v472
        %505 = vst [vmem:[%s207 + $0x70] sm:$0xff] %v473
        %506 = vst [vmem:[%s207 + $0x78] sm:$0xff] %v474
        %507 = vst [vmem:[%s207 + $0x80] sm:$0xff] %v475
        %508 = vst [vmem:[%s207 + $0x88] sm:$0xff] %v476
        %509 = vst [vmem:[%s207 + $0x90] sm:$0xff] %v477
        %510 = vst [vmem:[%s207 + $0x98] sm:$0xff] %v478
        %511 = vst [vmem:[%s207 + $0xa0] sm:$0xff] %v479
        %512 = vst [vmem:[%s207 + $0xa8] sm:$0xff] %v480
        %513 = vst [vmem:[%s207 + $0xb0] sm:$0xff] %v481
        %514 = vst [vmem:[%s207 + $0xb8] sm:$0xff] %v482
        %515 = vst [vmem:[%s207 + $0xc0] sm:$0xff] %v483
        %516 = vst [vmem:[%s207 + $0xc8] sm:$0xff] %v484
        %517 = vst [vmem:[%s207 + $0xd0] sm:$0xff] %v485
        %518 = vst [vmem:[%s207 + $0xd8] sm:$0xff] %v486
        %519 = vst [vmem:[%s207 + $0xe0] sm:$0xff] %v487
        %520 = vst [vmem:[%s207 + $0xe8] sm:$0xff] %v488
        %521 = vst [vmem:[%s207 + $0xf0] sm:$0xff] %v489
        %522 = vst [vmem:[%s207 + $0xf8] sm:$0xff] %v490
        %s523 = sand.u32 %s120, 1
        %s524 = scalar_lea.sflag [#allocation3], %s523
        %s525 = sand.u32 %s120, 1
        %s526 = smul.addr %s525, 256
        %s527 = scalar_lea.vmem [#allocation2], %s526
        // Predicated region
        $region37: #{bottleneck_forward.9} parent=35 // pred_check
          %p528 = pneg %p130
        $region38: #{bottleneck_forward.9} parent=35 // pred_check_branch
          %530 = sbr.rel (%p528) target = $region40
        $region39: #{bottleneck_forward.9} parent=35 // pred_region
          %s531 = smul.u32 32, %s18
          %s533 = ssub.s32 4096, 4096
          %534 = vsyncadd %s524, %s533
          %s535 = smul.addr %s531, 128
          %s536 = scalar_lea.hbm %s4, %s535
          %s537 = sshll.u32 %s527, 4
          %s538 = int_to_ptr.vmem [resolvable:$true] %s537
          %543 = dma.vmem_to_hbm [thread:$0]  %s538, 4096, %s536, %s524, 128, 128, 8
        $region40: #{bottleneck_forward.9} parent=35 // pred_fallthru
          _
      $region36: #{bottleneck_forward.9} parent=5 // pred_fallthru
        _
      %p544 = scmp.le.s32.totalorder 2, %s13
      // Predicated region
      $region41: #{bottleneck_forward.9} parent=5 // pred_check
        %p545 = pneg %p544
      $region42: #{bottleneck_forward.9} parent=5 // pred_check_branch
        %547 = sbr.rel (%p545) target = $region44
      $region43: #{bottleneck_forward.9} parent=5 // pred_region
        %s548 = ssub.s32 %s13, 2
        // Predicated region
        $region45: #{bottleneck_forward.9} parent=43 // pred_check
          %p549 = pneg %p136
        $region46: #{bottleneck_forward.9} parent=43 // pred_check_branch
          %551 = sbr.rel (%p549) target = $region48
        $region47: #{bottleneck_forward.9} parent=43 // pred_region
          %s552 = sand.u32 %s121, 1
          %s553 = scalar_lea.sflag [#allocation3], %s552
          %s554 = sand.u32 %s121, 1
          %s555 = smul.addr %s554, 256
          %s556 = scalar_lea.vmem [#allocation2], %s555
          %557 = dma.done %s553, 4096
        $region48: #{bottleneck_forward.9} parent=43 // pred_fallthru
          _
      $region44: #{bottleneck_forward.9} parent=5 // pred_fallthru
        _
    $region6: #{bottleneck_forward.9} parent=1 // loop_footer
      %s17 = sadd.s32 1, %s13
    $region7: #{bottleneck_forward.9} parent=1 // loop_footer_branch
      %12 = sbr.rel target = $region3
    $region8: #{bottleneck_forward.9} parent=1 // loop_exit
      _
    %558 = vsyncpa [#allocation3], 1
    %s559 = scalar_lea.sflag [#allocation3], 1
    %560 = vsyncpa %s559, 1

// kernel: bottleneck_forward.7
$region0: #{bottleneck_forward.7}
  #allocation0 [shape = 'u32[]', space=smem, size = 0x4, offset = 0x4, fixed_abs, tag = 'smem constant byte address 0x4 - core index']
  #allocation1 [shape = 'u32[144,128]{1,0:T(1,128)}', space=vmem, size = 0x12000, scoped, tag = 'internal scratch']
  %s0 = inlined_call_operand.vmem [shape: f32[2,18,18,128], index: 0, kind: input, shape index: {}]
  %s1 = inlined_call_operand.vmem [shape: f32[9,128,128], index: 1, kind: input, shape index: {}]
  %s2 = inlined_call_operand.vmem [shape: f32[2,256,128], index: 2, kind: output, shape index: {0}]
  %s3 = inlined_call_operand.vmem [shape: f32[2,8,128], index: 3, kind: output, shape index: {1}]
  %s4 = inlined_call_operand.vmem [shape: f32[2,8,128], index: 4, kind: output, shape index: {2}]
  %5 = xla_tuple %s2, %s3, %s4
  %s6 = sld [smem:[#allocation0]]
  $region57: #{bottleneck_forward.7} parent=0
    _
  %s8 = ssub.s32 1, %s6
  %s9 = scalar_select 0, %s8, %s6
  loop: start=0, step=1, limit=4
  $region2: #{bottleneck_forward.7} parent=0 // loop_pre_header
    _
  $region3: #{bottleneck_forward.7} parent=0 // loop_header
    %s11 = sphi 0, %s15
    %p12 = scmp.ge.s32.totalorder %s11, 4
    %s21 = sphi 0, %s23
    %s24 = sphi 0, %s21
    %s25 = sphi 0, %s24
    %s41 = sphi 0, %s25
    %s45 = sphi 0, %s45
    %s47 = sphi 0, %s45
    %s48 = sphi 0, %s47
    %s62 = sphi 0, %s48
    %s68 = sphi 0, %s70
    %s71 = sphi 0, %s68
    %s72 = sphi 0, %s71
    %s88 = sphi 0, %s72
    %s94 = sphi 0, %s96
    %s97 = sphi 0, %s94
    %s98 = sphi 0, %s97
    %s114 = sphi 0, %s98
    %s120 = sphi 0, %s122
    %s123 = sphi 0, %s120
    %s124 = sphi 0, %s123
    %s140 = sphi 0, %s124
  $region4: #{bottleneck_forward.7} parent=0 // loop_header_branch
    %14 = sbr.rel (%p12) target = $region8
  $region5: #{bottleneck_forward.7} parent=0 // loop_body
    %s16 = ssub.s32 %s11, 1
    %s17 = ssub.s32 %s11, 2
    %s18 = sadd.s32 %s11, 1
    %s19 = ssub.s32 %s11, %s18
    %p20 = scmp.eq.s32.totalorder %s19, 0
    %s22 = sadd.s32 %s21, 1
    %s23 = scalar_select %p20, %s21, %s22
    %p26 = pneg %p20
    %p27 = scmp.eq.s32.totalorder %s11, 1
    %p28 = por %p26, %p27
    %p29 = scmp.ne.s32.totalorder %s21, %s24
    %p30 = scmp.eq.s32.totalorder %s11, 0
    %p31 = por %p29, %p30
    %p32 = scmp.ne.s32.totalorder %s21, %s24
    %p33 = scmp.eq.s32.totalorder %s16, 1
    %p34 = por %p32, %p33
    %p35 = scmp.ne.s32.totalorder %s24, %s25
    %p36 = scmp.eq.s32.totalorder %s16, 0
    %p37 = por %p35, %p36
    %p38 = scmp.ne.s32.totalorder %s24, %s25
    %p39 = scmp.eq.s32.totalorder %s17, 1
    %p40 = por %p38, %p39
    %p42 = scmp.ne.s32.totalorder %s25, %s41
    %p43 = scmp.eq.s32.totalorder %s17, 0
    %p44 = por %p42, %p43
    %s46 = sadd.s32 %s45, 1
    %p49 = scmp.eq.s32.totalorder %s11, 1
    %p50 = scmp.ne.s32.totalorder %s45, %s47
    %p51 = scmp.eq.s32.totalorder %s11, 0
    %p52 = por %p50, %p51
    %p53 = scmp.ne.s32.totalorder %s45, %s47
    %p54 = scmp.eq.s32.totalorder %s16, 1
    %p55 = por %p53, %p54
    %p56 = scmp.ne.s32.totalorder %s47, %s48
    %p57 = scmp.eq.s32.totalorder %s16, 0
    %p58 = por %p56, %p57
    %p59 = scmp.ne.s32.totalorder %s47, %s48
    %p60 = scmp.eq.s32.totalorder %s17, 1
    %p61 = por %p59, %p60
    %p63 = scmp.ne.s32.totalorder %s48, %s62
    %p64 = scmp.eq.s32.totalorder %s17, 0
    %p65 = por %p63, %p64
    %s66 = ssub.s32 %s11, %s18
    %p67 = scmp.eq.s32.totalorder %s66, 0
    %s69 = sadd.s32 %s68, 1
    %s70 = scalar_select %p67, %s68, %s69
    %p73 = pneg %p67
    %p74 = scmp.eq.s32.totalorder %s11, 1
    %p75 = por %p73, %p74
    %p76 = scmp.ne.s32.totalorder %s68, %s71
    %p77 = scmp.eq.s32.totalorder %s11, 0
    %p78 = por %p76, %p77
    %p79 = scmp.ne.s32.totalorder %s68, %s71
    %p80 = scmp.eq.s32.totalorder %s16, 1
    %p81 = por %p79, %p80
    %p82 = scmp.ne.s32.totalorder %s71, %s72
    %p83 = scmp.eq.s32.totalorder %s16, 0
    %p84 = por %p82, %p83
    %p85 = scmp.ne.s32.totalorder %s71, %s72
    %p86 = scmp.eq.s32.totalorder %s17, 1
    %p87 = por %p85, %p86
    %p89 = scmp.ne.s32.totalorder %s72, %s88
    %p90 = scmp.eq.s32.totalorder %s17, 0
    %p91 = por %p89, %p90
    %s92 = ssub.s32 %s11, %s18
    %p93 = scmp.eq.s32.totalorder %s92, 0
    %s95 = sadd.s32 %s94, 1
    %s96 = scalar_select %p93, %s94, %s95
    %p99 = pneg %p93
    %p100 = scmp.eq.s32.totalorder %s11, 1
    %p101 = por %p99, %p100
    %p102 = scmp.ne.s32.totalorder %s94, %s97
    %p103 = scmp.eq.s32.totalorder %s11, 0
    %p104 = por %p102, %p103
    %p105 = scmp.ne.s32.totalorder %s94, %s97
    %p106 = scmp.eq.s32.totalorder %s16, 1
    %p107 = por %p105, %p106
    %p108 = scmp.ne.s32.totalorder %s97, %s98
    %p109 = scmp.eq.s32.totalorder %s16, 0
    %p110 = por %p108, %p109
    %p111 = scmp.ne.s32.totalorder %s97, %s98
    %p112 = scmp.eq.s32.totalorder %s17, 1
    %p113 = por %p111, %p112
    %p115 = scmp.ne.s32.totalorder %s98, %s114
    %p116 = scmp.eq.s32.totalorder %s17, 0
    %p117 = por %p115, %p116
    %s118 = ssub.s32 %s11, %s18
    %p119 = scmp.eq.s32.totalorder %s118, 0
    %s121 = sadd.s32 %s120, 1
    %s122 = scalar_select %p119, %s120, %s121
    %p125 = pneg %p119
    %p126 = scmp.eq.s32.totalorder %s11, 1
    %p127 = por %p125, %p126
    %p128 = scmp.ne.s32.totalorder %s120, %s123
    %p129 = scmp.eq.s32.totalorder %s11, 0
    %p130 = por %p128, %p129
    %p131 = scmp.ne.s32.totalorder %s120, %s123
    %p132 = scmp.eq.s32.totalorder %s16, 1
    %p133 = por %p131, %p132
    %p134 = scmp.ne.s32.totalorder %s123, %s124
    %p135 = scmp.eq.s32.totalorder %s16, 0
    %p136 = por %p134, %p135
    %p137 = scmp.ne.s32.totalorder %s123, %s124
    %p138 = scmp.eq.s32.totalorder %s17, 1
    %p139 = por %p137, %p138
    %p141 = scmp.ne.s32.totalorder %s124, %s140
    %p142 = scmp.eq.s32.totalorder %s17, 0
    %p143 = por %p141, %p142
    %p144 = scmp.le.s32.totalorder 1, %s11
    %p145 = scmp.lt.s32.totalorder %s11, 3
    %p146 = pnand %p144, %p145
    %p147 = pneg %p146
    // Predicated region
    $region9: #{bottleneck_forward.7} parent=5 // pred_check
      _
    $region10: #{bottleneck_forward.7} parent=5 // pred_check_branch
      %149 = sbr.rel (%p146) target = $region12
    $region11: #{bottleneck_forward.7} parent=5 // pred_region
      %s150 = ssub.s32 %s11, 1
      // Predicated region
      $region13: #{bottleneck_forward.7} parent=11 // pred_check
        %p151 = pneg %p58
      $region14: #{bottleneck_forward.7} parent=11 // pred_check_branch
        %153 = sbr.rel (%p151) target = $region16
      $region15: #{bottleneck_forward.7} parent=11 // pred_region
        _
      $region16: #{bottleneck_forward.7} parent=11 // pred_fallthru
        _
    $region12: #{bottleneck_forward.7} parent=5 // pred_fallthru
      _
    %p154 = scmp.lt.s32.totalorder %s11, 2
    // Predicated region
    $region17: #{bottleneck_forward.7} parent=5 // pred_check
      %p155 = pneg %p154
    $region18: #{bottleneck_forward.7} parent=5 // pred_check_branch
      %157 = sbr.rel (%p155) target = $region20
    $region19: #{bottleneck_forward.7} parent=5 // pred_region
      // Predicated region
      $region21: #{bottleneck_forward.7} parent=19 // pred_check
        %p158 = pneg %p31
      $region22: #{bottleneck_forward.7} parent=19 // pred_check_branch
        %160 = sbr.rel (%p158) target = $region24
      $region23: #{bottleneck_forward.7} parent=19 // pred_region
        %p161 = scmp.lt.s32.totalorder %s11, 1
        %s162 = scalar_select %p161, %s11, 1
        %s163 = smul.addr %s162, 54
        %s164 = smul.addr %s163, 8
        %s165 = scalar_lea.vmem %s0, %s164
      $region24: #{bottleneck_forward.7} parent=19 // pred_fallthru
        _
    $region20: #{bottleneck_forward.7} parent=5 // pred_fallthru
      _
    %p166 = scmp.le.s32.totalorder 1, %s11
    %p167 = scmp.lt.s32.totalorder %s11, 3
    %p168 = pnand %p166, %p167
    %p169 = pneg %p168
    // Predicated region
    $region25: #{bottleneck_forward.7} parent=5 // pred_check
      _
    $region26: #{bottleneck_forward.7} parent=5 // pred_check_branch
      %171 = sbr.rel (%p168) target = $region28
    $region27: #{bottleneck_forward.7} parent=5 // pred_region
      %s172 = ssub.s32 %s11, 1
      %p173 = scmp.lt.s32.totalorder %s16, 1
      %s174 = scalar_select %p173, %s16, 1
      %s175 = smul.addr %s174, 54
      %s176 = smul.addr %s175, 8
      %s177 = scalar_lea.vmem %s0, %s176
      %p178 = pneg %p37
      %p179 = pneg %p34
      %p180 = pneg %p58
      %p181 = pneg %p55
      %p182 = pneg %p84
      %p183 = pneg %p81
      %p184 = scmp.lt.s32.totalorder %s16, 1
      %s185 = scalar_select %p184, %s16, 1
      %s186 = smul.addr %s185, 32
      %s187 = smul.addr %s186, 8
      %s188 = scalar_lea.vmem %s2, %s187
      %p189 = pneg %p110
      %p190 = pneg %p107
      %p191 = scmp.lt.s32.totalorder %s16, 1
      %s192 = scalar_select %p191, %s16, 1
      %s193 = smul.addr %s192, 8
      %s194 = scalar_lea.vmem %s3, %s193
      %p195 = pneg %p136
      %p196 = pneg %p133
      %p197 = scmp.lt.s32.totalorder %s16, 1
      %s198 = scalar_select %p197, %s16, 1
      %s199 = smul.addr %s198, 8
      %s200 = scalar_lea.vmem %s4, %s199
      %p201 = scmp.lt.s32.totalorder %s16, 1
      %s202 = scalar_select %p201, %s16, 1
      %s203 = smul.addr %s202, 54
      %s204 = smul.addr %s203, 8
      %s205 = scalar_lea.vmem %s0, %s204
      %p206 = scmp.lt.s32.totalorder %s16, 1
      %s207 = scalar_select %p206, %s16, 1
      %s208 = smul.addr %s207, 32
      %s209 = smul.addr %s208, 8
      %s210 = scalar_lea.vmem %s2, %s209
      %p211 = scmp.lt.s32.totalorder %s16, 1
      %s212 = scalar_select %p211, %s16, 1
      %s213 = smul.addr %s212, 8
      %s214 = scalar_lea.vmem %s3, %s213
      %p215 = scmp.lt.s32.totalorder %s16, 1
      %s216 = scalar_select %p215, %s16, 1
      %s217 = smul.addr %s216, 8
      %s218 = scalar_lea.vmem %s4, %s217
      %v219 = vld [vmem:[%s205] sm:$0xff]
      %v220 = vld [vmem:[%s205 + $0x8] sm:$0xff]
      %v221 = vld [vmem:[%s205 + $0x18] sm:$0xff]
      %v222 = vld [vmem:[%s205 + $0x20] sm:$0xff]
      %v223 = vld [vmem:[%s205 + $0x30] sm:$0xff]
      %v224 = vld [vmem:[%s205 + $0x38] sm:$0xff]
      %v225 = vld [vmem:[%s205 + $0x48] sm:$0xff]
      %v226 = vld [vmem:[%s205 + $0x50] sm:$0xff]
      %v227 = vld [vmem:[%s205 + $0x60] sm:$0xff]
      %v228 = vld [vmem:[%s205 + $0x68] sm:$0xff]
      %v229 = vld [vmem:[%s205 + $0x78] sm:$0xff]
      %v230 = vld [vmem:[%s205 + $0x80] sm:$0xff]
      %v231 = vld [vmem:[%s205 + $0x90] sm:$0xff]
      %v232 = vld [vmem:[%s205 + $0x98] sm:$0xff]
      %v233 = vld [vmem:[%s205 + $0xa8] sm:$0xff]
      %v234 = vld [vmem:[%s205 + $0xb0] sm:$0xff]
      %v235 = vld [vmem:[%s205 + $0xc0] sm:$0xff]
      %v236 = vld [vmem:[%s205 + $0xc8] sm:$0xff]
      %v237 = vld [vmem:[%s205 + $0xd8] sm:$0xff]
      %v238 = vld [vmem:[%s205 + $0xe0] sm:$0xff]
      %v239 = vld [vmem:[%s205 + $0xf0] sm:$0xff]
      %v240 = vld [vmem:[%s205 + $0xf8] sm:$0xff]
      %v241 = vld [vmem:[%s205 + $0x108] sm:$0xff]
      %v242 = vld [vmem:[%s205 + $0x110] sm:$0xff]
      %v243 = vld [vmem:[%s205 + $0x120] sm:$0xff]
      %v244 = vld [vmem:[%s205 + $0x128] sm:$0xff]
      %v245 = vld [vmem:[%s205 + $0x138] sm:$0xff]
      %v246 = vld [vmem:[%s205 + $0x140] sm:$0xff]
      %v247 = vld [vmem:[%s205 + $0x150] sm:$0xff]
      %v248 = vld [vmem:[%s205 + $0x158] sm:$0xff]
      %v249 = vld [vmem:[%s205 + $0x168] sm:$0xff]
      %v250 = vld [vmem:[%s205 + $0x170] sm:$0xff]
      %v251 = vld [vmem:[%s1] sm:$0xff]
      %v252 = vld [vmem:[%s1 + $0x8] sm:$0xff]
      %v253 = vld [vmem:[%s1 + $0x10] sm:$0xff]
      %v254 = vld [vmem:[%s1 + $0x18] sm:$0xff]
      %v255 = vld [vmem:[%s1 + $0x20] sm:$0xff]
      %v256 = vld [vmem:[%s1 + $0x28] sm:$0xff]
      %v257 = vld [vmem:[%s1 + $0x30] sm:$0xff]
      %v258 = vld [vmem:[%s1 + $0x38] sm:$0xff]
      %v259 = vld [vmem:[%s1 + $0x40] sm:$0xff]
      %v260 = vld [vmem:[%s1 + $0x48] sm:$0xff]
      %v261 = vld [vmem:[%s1 + $0x50] sm:$0xff]
      %v262 = vld [vmem:[%s1 + $0x58] sm:$0xff]
      %v263 = vld [vmem:[%s1 + $0x60] sm:$0xff]
      %v264 = vld [vmem:[%s1 + $0x68] sm:$0xff]
      %v265 = vld [vmem:[%s1 + $0x70] sm:$0xff]
      %v266 = vld [vmem:[%s1 + $0x78] sm:$0xff]
      %v267 = vld [vmem:[%s205 + $0x1] sm:$0xff]
      %v268 = vld [vmem:[%s205 + $0x9] sm:$0xff]
      %v269 = vld [vmem:[%s205 + $0x19] sm:$0xff]
      %v270 = vld [vmem:[%s205 + $0x21] sm:$0xff]
      %v271 = vld [vmem:[%s205 + $0x31] sm:$0xff]
      %v272 = vld [vmem:[%s205 + $0x39] sm:$0xff]
      %v273 = vld [vmem:[%s205 + $0x49] sm:$0xff]
      %v274 = vld [vmem:[%s205 + $0x51] sm:$0xff]
      %v275 = vld [vmem:[%s205 + $0x61] sm:$0xff]
      %v276 = vld [vmem:[%s205 + $0x69] sm:$0xff]
      %v277 = vld [vmem:[%s205 + $0x79] sm:$0xff]
      %v278 = vld [vmem:[%s205 + $0x81] sm:$0xff]
      %v279 = vld [vmem:[%s205 + $0x91] sm:$0xff]
      %v280 = vld [vmem:[%s205 + $0x99] sm:$0xff]
      %v281 = vld [vmem:[%s205 + $0xa9] sm:$0xff]
      %v282 = vld [vmem:[%s205 + $0xb1] sm:$0xff]
      %v283 = vld [vmem:[%s205 + $0xc1] sm:$0xff]
      %v284 = vld [vmem:[%s205 + $0xc9] sm:$0xff]
      %v285 = vld [vmem:[%s205 + $0xd9] sm:$0xff]
      %v286 = vld [vmem:[%s205 + $0xe1] sm:$0xff]
      %v287 = vld [vmem:[%s205 + $0xf1] sm:$0xff]
      %v288 = vld [vmem:[%s205 + $0xf9] sm:$0xff]
      %v289 = vld [vmem:[%s205 + $0x109] sm:$0xff]
      %v290 = vld [vmem:[%s205 + $0x111] sm:$0xff]
      %v291 = vld [vmem:[%s205 + $0x121] sm:$0xff]
      %v292 = vld [vmem:[%s205 + $0x129] sm:$0xff]
      %v293 = vld [vmem:[%s205 + $0x139] sm:$0xff]
      %v294 = vld [vmem:[%s205 + $0x141] sm:$0xff]
      %v295 = vld [vmem:[%s205 + $0x151] sm:$0xff]
      %v296 = vld [vmem:[%s205 + $0x159] sm:$0xff]
      %v297 = vld [vmem:[%s205 + $0x169] sm:$0xff]
      %v298 = vld [vmem:[%s205 + $0x171] sm:$0xff]
      %s299 = scalar_lea.vmem %s1, 128
      %v300 = vld [vmem:[%s299] sm:$0xff]
      %v301 = vld [vmem:[%s299 + $0x8] sm:$0xff]
      %v302 = vld [vmem:[%s299 + $0x10] sm:$0xff]
      %v303 = vld [vmem:[%s299 + $0x18] sm:$0xff]
      %v304 = vld [vmem:[%s299 + $0x20] sm:$0xff]
      %v305 = vld [vmem:[%s299 + $0x28] sm:$0xff]
      %v306 = vld [vmem:[%s299 + $0x30] sm:$0xff]
      %v307 = vld [vmem:[%s299 + $0x38] sm:$0xff]
      %v308 = vld [vmem:[%s299 + $0x40] sm:$0xff]
      %v309 = vld [vmem:[%s299 + $0x48] sm:$0xff]
      %v310 = vld [vmem:[%s299 + $0x50] sm:$0xff]
      %v311 = vld [vmem:[%s299 + $0x58] sm:$0xff]
      %v312 = vld [vmem:[%s299 + $0x60] sm:$0xff]
      %v313 = vld [vmem:[%s299 + $0x68] sm:$0xff]
      %v314 = vld [vmem:[%s299 + $0x70] sm:$0xff]
      %v315 = vld [vmem:[%s299 + $0x78] sm:$0xff]
      %316 = vmatprep.subr.mxu0 0.0
      %317 = vmatpush1.msra.mxu0 %v315
      %318 = vmatprep.subr.mxu0 0.0
      %319 = vmatpush1.msra.mxu0 %v314
      %320 = vmatprep.subr.mxu0 0.0
      %321 = vmatpush1.msra.mxu0 %v313
      %322 = vmatprep.subr.mxu0 0.0
      %323 = vmatpush1.msra.mxu0 %v312
      %324 = vmatprep.subr.mxu0 0.0
      %325 = vmatpush1.msra.mxu0 %v311
      %326 = vmatprep.subr.mxu0 0.0
      %327 = vmatpush1.msra.mxu0 %v310
      %328 = vmatprep.subr.mxu0 0.0
      %329 = vmatpush1.msra.mxu0 %v309
      %330 = vmatprep.subr.mxu0 0.0
      %331 = vmatpush1.msra.mxu0 %v308
      %332 = vmatprep.subr.mxu0 0.0
      %333 = vmatpush1.msra.mxu0 %v307
      %334 = vmatprep.subr.mxu0 0.0
      %335 = vmatpush1.msra.mxu0 %v306
      %336 = vmatprep.subr.mxu0 0.0
      %337 = vmatpush1.msra.mxu0 %v305
      %338 = vmatprep.subr.mxu0 0.0
      %339 = vmatpush1.msra.mxu0 %v304
      %340 = vmatprep.subr.mxu0 0.0
      %341 = vmatpush1.msra.mxu0 %v303
      %342 = vmatprep.subr.mxu0 0.0
      %343 = vmatpush1.msra.mxu0 %v302
      %344 = vmatprep.subr.mxu0 0.0
      %345 = vmatpush1.msra.mxu0 %v301
      %346 = vmatprep.subr.mxu0 0.0
      %347 = vmatpush1.msra.mxu0 %v300
      %348 = vmatprep.subr.mxu0 0.0
      %349 = vmatpush2.msra.mxu0 0.0
      %350 = vmatprep.subr.mxu0 0.0
      %351 = vmatpush2.msra.mxu0 0.0
      %352 = vmatprep.subr.mxu0 0.0
      %353 = vmatpush2.msra.mxu0 0.0
      %354 = vmatprep.subr.mxu0 0.0
      %355 = vmatpush2.msra.mxu0 0.0
      %356 = vmatprep.subr.mxu0 0.0
      %357 = vmatpush2.msra.mxu0 0.0
      %358 = vmatprep.subr.mxu0 0.0
      %359 = vmatpush2.msra.mxu0 0.0
      %360 = vmatprep.subr.mxu0 0.0
      %361 = vmatpush2.msra.mxu0 0.0
      %362 = vmatprep.subr.mxu0 0.0
      %363 = vmatpush2.msra.mxu0 0.0
      %364 = vmatprep.subr.mxu0 0.0
      %365 = vmatpush2.msra.mxu0 0.0
      %366 = vmatprep.subr.mxu0 0.0
      %367 = vmatpush2.msra.mxu0 0.0
      %368 = vmatprep.subr.mxu0 0.0
      %369 = vmatpush2.msra.mxu0 0.0
      %370 = vmatprep.subr.mxu0 0.0
      %371 = vmatpush2.msra.mxu0 0.0
      %372 = vmatprep.subr.mxu0 0.0
      %373 = vmatpush2.msra.mxu0 0.0
      %374 = vmatprep.subr.mxu0 0.0
      %375 = vmatpush2.msra.mxu0 0.0
      %376 = vmatprep.subr.mxu0 0.0
      %377 = vmatpush2.msra.mxu0 0.0
      %378 = vmatprep.subr.mxu0 0.0
      %379 = vmatpush2.msra.mxu0 0.0
      %380 = vmatprep.mubr.f32.mxu0 0.0
      %381 = vmatmul.mubr.f32.gmra.mxu0 %v267
      %v382 = vpop.f32.mrf.mxu0
      %v383 = vadd.f32 0.0, %v382
      %v384 = vpop.f32.mrf.mxu0
      %385 = vmatprep.mubr.f32.mxu0 0.0
      %386 = vmatmul.mubr.f32.gmra.mxu0 %v268
      %v387 = vpop.f32.mrf.mxu0
      %v388 = vadd.f32 0.0, %v387
      %v389 = vpop.f32.mrf.mxu0
      %390 = vmatprep.mubr.f32.mxu0 0.0
      %391 = vmatmul.mubr.f32.gmra.mxu0 %v269
      %v392 = vpop.f32.mrf.mxu0
      %v393 = vadd.f32 0.0, %v392
      %v394 = vpop.f32.mrf.mxu0
      %395 = vmatprep.mubr.f32.mxu0 0.0
      %396 = vmatmul.mubr.f32.gmra.mxu0 %v270
      %v397 = vpop.f32.mrf.mxu0
      %v398 = vadd.f32 0.0, %v397
      %v399 = vpop.f32.mrf.mxu0
      %400 = vmatprep.mubr.f32.mxu0 0.0
      %401 = vmatmul.mubr.f32.gmra.mxu0 %v271
      %v402 = vpop.f32.mrf.mxu0
      %v403 = vadd.f32 0.0, %v402
      %v404 = vpop.f32.mrf.mxu0
      %405 = vmatprep.mubr.f32.mxu0 0.0
      %406 = vmatmul.mubr.f32.gmra.mxu0 %v272
      %v407 = vpop.f32.mrf.mxu0
      %v408 = vadd.f32 0.0, %v407
      %v409 = vpop.f32.mrf.mxu0
      %410 = vmatprep.mubr.f32.mxu0 0.0
      %411 = vmatmul.mubr.f32.gmra.mxu0 %v273
      %v412 = vpop.f32.mrf.mxu0
      %v413 = vadd.f32 0.0, %v412
      %v414 = vpop.f32.mrf.mxu0
      %415 = vmatprep.mubr.f32.mxu0 0.0
      %416 = vmatmul.mubr.f32.gmra.mxu0 %v274
      %v417 = vpop.f32.mrf.mxu0
      %v418 = vadd.f32 0.0, %v417
      %v419 = vpop.f32.mrf.mxu0
      %420 = vmatprep.mubr.f32.mxu0 0.0
      %421 = vmatmul.mubr.f32.gmra.mxu0 %v275
      %v422 = vpop.f32.mrf.mxu0
      %v423 = vadd.f32 0.0, %v422
      %v424 = vpop.f32.mrf.mxu0
      %425 = vmatprep.mubr.f32.mxu0 0.0
      %426 = vmatmul.mubr.f32.gmra.mxu0 %v276
      %v427 = vpop.f32.mrf.mxu0
      %v428 = vadd.f32 0.0, %v427
      %v429 = vpop.f32.mrf.mxu0
      %430 = vmatprep.mubr.f32.mxu0 0.0
      %431 = vmatmul.mubr.f32.gmra.mxu0 %v277
      %v432 = vpop.f32.mrf.mxu0
      %v433 = vadd.f32 0.0, %v432
      %v434 = vpop.f32.mrf.mxu0
      %435 = vmatprep.mubr.f32.mxu0 0.0
      %436 = vmatmul.mubr.f32.gmra.mxu0 %v278
      %v437 = vpop.f32.mrf.mxu0
      %v438 = vadd.f32 0.0, %v437
      %v439 = vpop.f32.mrf.mxu0
      %440 = vmatprep.mubr.f32.mxu0 0.0
      %441 = vmatmul.mubr.f32.gmra.mxu0 %v279
      %v442 = vpop.f32.mrf.mxu0
      %v443 = vadd.f32 0.0, %v442
      %v444 = vpop.f32.mrf.mxu0
      %445 = vmatprep.mubr.f32.mxu0 0.0
      %446 = vmatmul.mubr.f32.gmra.mxu0 %v280
      %v447 = vpop.f32.mrf.mxu0
      %v448 = vadd.f32 0.0, %v447
      %v449 = vpop.f32.mrf.mxu0
      %450 = vmatprep.mubr.f32.mxu0 0.0
      %451 = vmatmul.mubr.f32.gmra.mxu0 %v281
      %v452 = vpop.f32.mrf.mxu0
      %v453 = vadd.f32 0.0, %v452
      %v454 = vpop.f32.mrf.mxu0
      %455 = vmatprep.mubr.f32.mxu0 0.0
      %456 = vmatmul.mubr.f32.gmra.mxu0 %v282
      %v457 = vpop.f32.mrf.mxu0
      %v458 = vadd.f32 0.0, %v457
      %v459 = vpop.f32.mrf.mxu0
      %460 = vmatprep.mubr.f32.mxu0 0.0
      %461 = vmatmul.mubr.f32.gmra.mxu0 %v283
      %v462 = vpop.f32.mrf.mxu0
      %v463 = vadd.f32 0.0, %v462
      %v464 = vpop.f32.mrf.mxu0
      %465 = vmatprep.mubr.f32.mxu0 0.0
      %466 = vmatmul.mubr.f32.gmra.mxu0 %v284
      %v467 = vpop.f32.mrf.mxu0
      %v468 = vadd.f32 0.0, %v467
      %v469 = vpop.f32.mrf.mxu0
      %470 = vmatprep.mubr.f32.mxu0 0.0
      %471 = vmatmul.mubr.f32.gmra.mxu0 %v285
      %v472 = vpop.f32.mrf.mxu0
      %v473 = vadd.f32 0.0, %v472
      %v474 = vpop.f32.mrf.mxu0
      %475 = vmatprep.mubr.f32.mxu0 0.0
      %476 = vmatmul.mubr.f32.gmra.mxu0 %v286
      %v477 = vpop.f32.mrf.mxu0
      %v478 = vadd.f32 0.0, %v477
      %v479 = vpop.f32.mrf.mxu0
      %480 = vmatprep.mubr.f32.mxu0 0.0
      %481 = vmatmul.mubr.f32.gmra.mxu0 %v287
      %v482 = vpop.f32.mrf.mxu0
      %v483 = vadd.f32 0.0, %v482
      %v484 = vpop.f32.mrf.mxu0
      %485 = vmatprep.mubr.f32.mxu0 0.0
      %486 = vmatmul.mubr.f32.gmra.mxu0 %v288
      %v487 = vpop.f32.mrf.mxu0
      %v488 = vadd.f32 0.0, %v487
      %v489 = vpop.f32.mrf.mxu0
      %490 = vmatprep.mubr.f32.mxu0 0.0
      %491 = vmatmul.mubr.f32.gmra.mxu0 %v289
      %v492 = vpop.f32.mrf.mxu0
      %v493 = vadd.f32 0.0, %v492
      %v494 = vpop.f32.mrf.mxu0
      %495 = vmatprep.mubr.f32.mxu0 0.0
      %496 = vmatmul.mubr.f32.gmra.mxu0 %v290
      %v497 = vpop.f32.mrf.mxu0
      %v498 = vadd.f32 0.0, %v497
      %v499 = vpop.f32.mrf.mxu0
      %500 = vmatprep.mubr.f32.mxu0 0.0
      %501 = vmatmul.mubr.f32.gmra.mxu0 %v291
      %v502 = vpop.f32.mrf.mxu0
      %v503 = vadd.f32 0.0, %v502
      %v504 = vpop.f32.mrf.mxu0
      %505 = vmatprep.mubr.f32.mxu0 0.0
      %506 = vmatmul.mubr.f32.gmra.mxu0 %v292
      %v507 = vpop.f32.mrf.mxu0
      %v508 = vadd.f32 0.0, %v507
      %v509 = vpop.f32.mrf.mxu0
      %510 = vmatprep.mubr.f32.mxu0 0.0
      %511 = vmatmul.mubr.f32.gmra.mxu0 %v293
      %v512 = vpop.f32.mrf.mxu0
      %v513 = vadd.f32 0.0, %v512
      %v514 = vpop.f32.mrf.mxu0
      %515 = vmatprep.mubr.f32.mxu0 0.0
      %516 = vmatmul.mubr.f32.gmra.mxu0 %v294
      %v517 = vpop.f32.mrf.mxu0
      %v518 = vadd.f32 0.0, %v517
      %v519 = vpop.f32.mrf.mxu0
      %520 = vmatprep.mubr.f32.mxu0 0.0
      %521 = vmatmul.mubr.f32.gmra.mxu0 %v295
      %v522 = vpop.f32.mrf.mxu0
      %v523 = vadd.f32 0.0, %v522
      %v524 = vpop.f32.mrf.mxu0
      %525 = vmatprep.mubr.f32.mxu0 0.0
      %526 = vmatmul.mubr.f32.gmra.mxu0 %v296
      %v527 = vpop.f32.mrf.mxu0
      %v528 = vadd.f32 0.0, %v527
      %v529 = vpop.f32.mrf.mxu0
      %530 = vmatprep.mubr.f32.mxu0 0.0
      %531 = vmatmul.mubr.f32.gmra.mxu0 %v297
      %v532 = vpop.f32.mrf.mxu0
      %v533 = vadd.f32 0.0, %v532
      %v534 = vpop.f32.mrf.mxu0
      %535 = vmatprep.mubr.f32.mxu0 0.0
      %536 = vmatmul.mubr.f32.gmra.mxu0 %v298
      %v537 = vpop.f32.mrf.mxu0
      %v538 = vadd.f32 0.0, %v537
      %v539 = vpop.f32.mrf.mxu0
      %540 = vdwg.mxu0
      %541 = vmatprep.subr.mxu0 0.0
      %542 = vmatpush1.msra.mxu0 %v266
      %543 = vmatprep.subr.mxu0 0.0
      %544 = vmatpush1.msra.mxu0 %v265
      %545 = vmatprep.subr.mxu0 0.0
      %546 = vmatpush1.msra.mxu0 %v264
      %547 = vmatprep.subr.mxu0 0.0
      %548 = vmatpush1.msra.mxu0 %v263
      %549 = vmatprep.subr.mxu0 0.0
      %550 = vmatpush1.msra.mxu0 %v262
      %551 = vmatprep.subr.mxu0 0.0
      %552 = vmatpush1.msra.mxu0 %v261
      %553 = vmatprep.subr.mxu0 0.0
      %554 = vmatpush1.msra.mxu0 %v260
      %555 = vmatprep.subr.mxu0 0.0
      %556 = vmatpush1.msra.mxu0 %v259
      %557 = vmatprep.subr.mxu0 0.0
      %558 = vmatpush1.msra.mxu0 %v258
      %559 = vmatprep.subr.mxu0 0.0
      %560 = vmatpush1.msra.mxu0 %v257
      %561 = vmatprep.subr.mxu0 0.0
      %562 = vmatpush1.msra.mxu0 %v256
      %563 = vmatprep.subr.mxu0 0.0
      %564 = vmatpush1.msra.mxu0 %v255
      %565 = vmatprep.subr.mxu0 0.0
      %566 = vmatpush1.msra.mxu0 %v254
      %567 = vmatprep.subr.mxu0 0.0
      %568 = vmatpush1.msra.mxu0 %v253
      %569 = vmatprep.subr.mxu0 0.0
      %570 = vmatpush1.msra.mxu0 %v252
      %571 = vmatprep.subr.mxu0 0.0
      %572 = vmatpush1.msra.mxu0 %v251
      %573 = vmatprep.subr.mxu0 0.0
      %574 = vmatpush2.msra.mxu0 0.0
      %575 = vmatprep.subr.mxu0 0.0
      %576 = vmatpush2.msra.mxu0 0.0
      %577 = vmatprep.subr.mxu0 0.0
      %578 = vmatpush2.msra.mxu0 0.0
      %579 = vmatprep.subr.mxu0 0.0
      %580 = vmatpush2.msra.mxu0 0.0
      %581 = vmatprep.subr.mxu0 0.0
      %582 = vmatpush2.msra.mxu0 0.0
      %583 = vmatprep.subr.mxu0 0.0
      %584 = vmatpush2.msra.mxu0 0.0
      %585 = vmatprep.subr.mxu0 0.0
      %586 = vmatpush2.msra.mxu0 0.0
      %587 = vmatprep.subr.mxu0 0.0
      %588 = vmatpush2.msra.mxu0 0.0
      %589 = vmatprep.subr.mxu0 0.0
      %590 = vmatpush2.msra.mxu0 0.0
      %591 = vmatprep.subr.mxu0 0.0
      %592 = vmatpush2.msra.mxu0 0.0
      %593 = vmatprep.subr.mxu0 0.0
      %594 = vmatpush2.msra.mxu0 0.0
      %595 = vmatprep.subr.mxu0 0.0
      %596 = vmatpush2.msra.mxu0 0.0
      %597 = vmatprep.subr.mxu0 0.0
      %598 = vmatpush2.msra.mxu0 0.0
      %599 = vmatprep.subr.mxu0 0.0
      %600 = vmatpush2.msra.mxu0 0.0
      %601 = vmatprep.subr.mxu0 0.0
      %602 = vmatpush2.msra.mxu0 0.0
      %603 = vmatprep.subr.mxu0 0.0
      %604 = vmatpush2.msra.mxu0 0.0
      %605 = vmatprep.mubr.f32.mxu0 0.0
      %606 = vmatmul.mubr.f32.gmra.mxu0 %v219
      %v607 = vpop.f32.mrf.mxu0
      %v608 = vadd.f32 %v383, %v607
      %v609 = vpop.f32.mrf.mxu0
      %610 = vmatprep.mubr.f32.mxu0 0.0
      %611 = vmatmul.mubr.f32.gmra.mxu0 %v220
      %v612 = vpop.f32.mrf.mxu0
      %v613 = vadd.f32 %v388, %v612
      %v614 = vpop.f32.mrf.mxu0
      %615 = vmatprep.mubr.f32.mxu0 0.0
      %616 = vmatmul.mubr.f32.gmra.mxu0 %v221
      %v617 = vpop.f32.mrf.mxu0
      %v618 = vadd.f32 %v393, %v617
      %v619 = vpop.f32.mrf.mxu0
      %620 = vmatprep.mubr.f32.mxu0 0.0
      %621 = vmatmul.mubr.f32.gmra.mxu0 %v222
      %v622 = vpop.f32.mrf.mxu0
      %v623 = vadd.f32 %v398, %v622
      %v624 = vpop.f32.mrf.mxu0
      %625 = vmatprep.mubr.f32.mxu0 0.0
      %626 = vmatmul.mubr.f32.gmra.mxu0 %v223
      %v627 = vpop.f32.mrf.mxu0
      %v628 = vadd.f32 %v403, %v627
      %v629 = vpop.f32.mrf.mxu0
      %630 = vmatprep.mubr.f32.mxu0 0.0
      %631 = vmatmul.mubr.f32.gmra.mxu0 %v224
      %v632 = vpop.f32.mrf.mxu0
      %v633 = vadd.f32 %v408, %v632
      %v634 = vpop.f32.mrf.mxu0
      %635 = vmatprep.mubr.f32.mxu0 0.0
      %636 = vmatmul.mubr.f32.gmra.mxu0 %v225
      %v637 = vpop.f32.mrf.mxu0
      %v638 = vadd.f32 %v413, %v637
      %v639 = vpop.f32.mrf.mxu0
      %640 = vmatprep.mubr.f32.mxu0 0.0
      %641 = vmatmul.mubr.f32.gmra.mxu0 %v226
      %v642 = vpop.f32.mrf.mxu0
      %v643 = vadd.f32 %v418, %v642
      %v644 = vpop.f32.mrf.mxu0
      %645 = vmatprep.mubr.f32.mxu0 0.0
      %646 = vmatmul.mubr.f32.gmra.mxu0 %v227
      %v647 = vpop.f32.mrf.mxu0
      %v648 = vadd.f32 %v423, %v647
      %v649 = vpop.f32.mrf.mxu0
      %650 = vmatprep.mubr.f32.mxu0 0.0
      %651 = vmatmul.mubr.f32.gmra.mxu0 %v228
      %v652 = vpop.f32.mrf.mxu0
      %v653 = vadd.f32 %v428, %v652
      %v654 = vpop.f32.mrf.mxu0
      %655 = vmatprep.mubr.f32.mxu0 0.0
      %656 = vmatmul.mubr.f32.gmra.mxu0 %v229
      %v657 = vpop.f32.mrf.mxu0
      %v658 = vadd.f32 %v433, %v657
      %v659 = vpop.f32.mrf.mxu0
      %660 = vmatprep.mubr.f32.mxu0 0.0
      %661 = vmatmul.mubr.f32.gmra.mxu0 %v230
      %v662 = vpop.f32.mrf.mxu0
      %v663 = vadd.f32 %v438, %v662
      %v664 = vpop.f32.mrf.mxu0
      %665 = vmatprep.mubr.f32.mxu0 0.0
      %666 = vmatmul.mubr.f32.gmra.mxu0 %v231
      %v667 = vpop.f32.mrf.mxu0
      %v668 = vadd.f32 %v443, %v667
      %v669 = vpop.f32.mrf.mxu0
      %670 = vmatprep.mubr.f32.mxu0 0.0
      %671 = vmatmul.mubr.f32.gmra.mxu0 %v232
      %v672 = vpop.f32.mrf.mxu0
      %v673 = vadd.f32 %v448, %v672
      %v674 = vpop.f32.mrf.mxu0
      %675 = vmatprep.mubr.f32.mxu0 0.0
      %676 = vmatmul.mubr.f32.gmra.mxu0 %v233
      %v677 = vpop.f32.mrf.mxu0
      %v678 = vadd.f32 %v453, %v677
      %v679 = vpop.f32.mrf.mxu0
      %680 = vmatprep.mubr.f32.mxu0 0.0
      %681 = vmatmul.mubr.f32.gmra.mxu0 %v234
      %v682 = vpop.f32.mrf.mxu0
      %v683 = vadd.f32 %v458, %v682
      %v684 = vpop.f32.mrf.mxu0
      %685 = vmatprep.mubr.f32.mxu0 0.0
      %686 = vmatmul.mubr.f32.gmra.mxu0 %v235
      %v687 = vpop.f32.mrf.mxu0
      %v688 = vadd.f32 %v463, %v687
      %v689 = vpop.f32.mrf.mxu0
      %690 = vmatprep.mubr.f32.mxu0 0.0
      %691 = vmatmul.mubr.f32.gmra.mxu0 %v236
      %v692 = vpop.f32.mrf.mxu0
      %v693 = vadd.f32 %v468, %v692
      %v694 = vpop.f32.mrf.mxu0
      %695 = vmatprep.mubr.f32.mxu0 0.0
      %696 = vmatmul.mubr.f32.gmra.mxu0 %v237
      %v697 = vpop.f32.mrf.mxu0
      %v698 = vadd.f32 %v473, %v697
      %v699 = vpop.f32.mrf.mxu0
      %700 = vmatprep.mubr.f32.mxu0 0.0
      %701 = vmatmul.mubr.f32.gmra.mxu0 %v238
      %v702 = vpop.f32.mrf.mxu0
      %v703 = vadd.f32 %v478, %v702
      %v704 = vpop.f32.mrf.mxu0
      %705 = vmatprep.mubr.f32.mxu0 0.0
      %706 = vmatmul.mubr.f32.gmra.mxu0 %v239
      %v707 = vpop.f32.mrf.mxu0
      %v708 = vadd.f32 %v483, %v707
      %v709 = vpop.f32.mrf.mxu0
      %710 = vmatprep.mubr.f32.mxu0 0.0
      %711 = vmatmul.mubr.f32.gmra.mxu0 %v240
      %v712 = vpop.f32.mrf.mxu0
      %v713 = vadd.f32 %v488, %v712
      %v714 = vpop.f32.mrf.mxu0
      %715 = vmatprep.mubr.f32.mxu0 0.0
      %716 = vmatmul.mubr.f32.gmra.mxu0 %v241
      %v717 = vpop.f32.mrf.mxu0
      %v718 = vadd.f32 %v493, %v717
      %v719 = vpop.f32.mrf.mxu0
      %720 = vmatprep.mubr.f32.mxu0 0.0
      %721 = vmatmul.mubr.f32.gmra.mxu0 %v242
      %v722 = vpop.f32.mrf.mxu0
      %v723 = vadd.f32 %v498, %v722
      %v724 = vpop.f32.mrf.mxu0
      %725 = vmatprep.mubr.f32.mxu0 0.0
      %726 = vmatmul.mubr.f32.gmra.mxu0 %v243
      %v727 = vpop.f32.mrf.mxu0
      %v728 = vadd.f32 %v503, %v727
      %v729 = vpop.f32.mrf.mxu0
      %730 = vmatprep.mubr.f32.mxu0 0.0
      %731 = vmatmul.mubr.f32.gmra.mxu0 %v244
      %v732 = vpop.f32.mrf.mxu0
      %v733 = vadd.f32 %v508, %v732
      %v734 = vpop.f32.mrf.mxu0
      %735 = vmatprep.mubr.f32.mxu0 0.0
      %736 = vmatmul.mubr.f32.gmra.mxu0 %v245
      %v737 = vpop.f32.mrf.mxu0
      %v738 = vadd.f32 %v513, %v737
      %v739 = vpop.f32.mrf.mxu0
      %740 = vmatprep.mubr.f32.mxu0 0.0
      %741 = vmatmul.mubr.f32.gmra.mxu0 %v246
      %v742 = vpop.f32.mrf.mxu0
      %v743 = vadd.f32 %v518, %v742
      %v744 = vpop.f32.mrf.mxu0
      %745 = vmatprep.mubr.f32.mxu0 0.0
      %746 = vmatmul.mubr.f32.gmra.mxu0 %v247
      %v747 = vpop.f32.mrf.mxu0
      %v748 = vadd.f32 %v523, %v747
      %v749 = vpop.f32.mrf.mxu0
      %750 = vmatprep.mubr.f32.mxu0 0.0
      %751 = vmatmul.mubr.f32.gmra.mxu0 %v248
      %v752 = vpop.f32.mrf.mxu0
      %v753 = vadd.f32 %v528, %v752
      %v754 = vpop.f32.mrf.mxu0
      %755 = vmatprep.mubr.f32.mxu0 0.0
      %756 = vmatmul.mubr.f32.gmra.mxu0 %v249
      %v757 = vpop.f32.mrf.mxu0
      %v758 = vadd.f32 %v533, %v757
      %v759 = vpop.f32.mrf.mxu0
      %760 = vmatprep.mubr.f32.mxu0 0.0
      %761 = vmatmul.mubr.f32.gmra.mxu0 %v250
      %v762 = vpop.f32.mrf.mxu0
      %v763 = vadd.f32 %v538, %v762
      %v764 = vpop.f32.mrf.mxu0
      %765 = vdwg.mxu0
      %v766 = vld [vmem:[%s205 + $0x2] sm:$0xff]
      %v767 = vld [vmem:[%s205 + $0xa] sm:$0xff]
      %v768 = vld [vmem:[%s205 + $0x1a] sm:$0xff]
      %v769 = vld [vmem:[%s205 + $0x22] sm:$0xff]
      %v770 = vld [vmem:[%s205 + $0x32] sm:$0xff]
      %v771 = vld [vmem:[%s205 + $0x3a] sm:$0xff]
      %v772 = vld [vmem:[%s205 + $0x4a] sm:$0xff]
      %v773 = vld [vmem:[%s205 + $0x52] sm:$0xff]
      %v774 = vld [vmem:[%s205 + $0x62] sm:$0xff]
      %v775 = vld [vmem:[%s205 + $0x6a] sm:$0xff]
      %v776 = vld [vmem:[%s205 + $0x7a] sm:$0xff]
      %v777 = vld [vmem:[%s205 + $0x82] sm:$0xff]
      %v778 = vld [vmem:[%s205 + $0x92] sm:$0xff]
      %v779 = vld [vmem:[%s205 + $0x9a] sm:$0xff]
      %v780 = vld [vmem:[%s205 + $0xaa] sm:$0xff]
      %v781 = vld [vmem:[%s205 + $0xb2] sm:$0xff]
      %v782 = vld [vmem:[%s205 + $0xc2] sm:$0xff]
      %v783 = vld [vmem:[%s205 + $0xca] sm:$0xff]
      %v784 = vld [vmem:[%s205 + $0xda] sm:$0xff]
      %v785 = vld [vmem:[%s205 + $0xe2] sm:$0xff]
      %v786 = vld [vmem:[%s205 + $0xf2] sm:$0xff]
      %v787 = vld [vmem:[%s205 + $0xfa] sm:$0xff]
      %v788 = vld [vmem:[%s205 + $0x10a] sm:$0xff]
      %v789 = vld [vmem:[%s205 + $0x112] sm:$0xff]
      %v790 = vld [vmem:[%s205 + $0x122] sm:$0xff]
      %v791 = vld [vmem:[%s205 + $0x12a] sm:$0xff]
      %v792 = vld [vmem:[%s205 + $0x13a] sm:$0xff]
      %v793 = vld [vmem:[%s205 + $0x142] sm:$0xff]
      %v794 = vld [vmem:[%s205 + $0x152] sm:$0xff]
      %v795 = vld [vmem:[%s205 + $0x15a] sm:$0xff]
      %v796 = vld [vmem:[%s205 + $0x16a] sm:$0xff]
      %v797 = vld [vmem:[%s205 + $0x172] sm:$0xff]
      %s798 = scalar_lea.vmem %s1, 256
      %v799 = vld [vmem:[%s798] sm:$0xff]
      %v800 = vld [vmem:[%s798 + $0x8] sm:$0xff]
      %v801 = vld [vmem:[%s798 + $0x10] sm:$0xff]
      %v802 = vld [vmem:[%s798 + $0x18] sm:$0xff]
      %v803 = vld [vmem:[%s798 + $0x20] sm:$0xff]
      %v804 = vld [vmem:[%s798 + $0x28] sm:$0xff]
      %v805 = vld [vmem:[%s798 + $0x30] sm:$0xff]
      %v806 = vld [vmem:[%s798 + $0x38] sm:$0xff]
      %v807 = vld [vmem:[%s798 + $0x40] sm:$0xff]
      %v808 = vld [vmem:[%s798 + $0x48] sm:$0xff]
      %v809 = vld [vmem:[%s798 + $0x50] sm:$0xff]
      %v810 = vld [vmem:[%s798 + $0x58] sm:$0xff]
      %v811 = vld [vmem:[%s798 + $0x60] sm:$0xff]
      %v812 = vld [vmem:[%s798 + $0x68] sm:$0xff]
      %v813 = vld [vmem:[%s798 + $0x70] sm:$0xff]
      %v814 = vld [vmem:[%s798 + $0x78] sm:$0xff]
      %815 = vmatprep.subr.mxu0 0.0
      %816 = vmatpush1.msra.mxu0 %v814
      %817 = vmatprep.subr.mxu0 0.0
      %818 = vmatpush1.msra.mxu0 %v813
      %819 = vmatprep.subr.mxu0 0.0
      %820 = vmatpush1.msra.mxu0 %v812
      %821 = vmatprep.subr.mxu0 0.0
      %822 = vmatpush1.msra.mxu0 %v811
      %823 = vmatprep.subr.mxu0 0.0
      %824 = vmatpush1.msra.mxu0 %v810
      %825 = vmatprep.subr.mxu0 0.0
      %826 = vmatpush1.msra.mxu0 %v809
      %827 = vmatprep.subr.mxu0 0.0
      %828 = vmatpush1.msra.mxu0 %v808
      %829 = vmatprep.subr.mxu0 0.0
      %830 = vmatpush1.msra.mxu0 %v807
      %831 = vmatprep.subr.mxu0 0.0
      %832 = vmatpush1.msra.mxu0 %v806
      %833 = vmatprep.subr.mxu0 0.0
      %834 = vmatpush1.msra.mxu0 %v805
      %835 = vmatprep.subr.mxu0 0.0
      %836 = vmatpush1.msra.mxu0 %v804
      %837 = vmatprep.subr.mxu0 0.0
      %838 = vmatpush1.msra.mxu0 %v803
      %839 = vmatprep.subr.mxu0 0.0
      %840 = vmatpush1.msra.mxu0 %v802
      %841 = vmatprep.subr.mxu0 0.0
      %842 = vmatpush1.msra.mxu0 %v801
      %843 = vmatprep.subr.mxu0 0.0
      %844 = vmatpush1.msra.mxu0 %v800
      %845 = vmatprep.subr.mxu0 0.0
      %846 = vmatpush1.msra.mxu0 %v799
      %847 = vmatprep.subr.mxu0 0.0
      %848 = vmatpush2.msra.mxu0 0.0
      %849 = vmatprep.subr.mxu0 0.0
      %850 = vmatpush2.msra.mxu0 0.0
      %851 = vmatprep.subr.mxu0 0.0
      %852 = vmatpush2.msra.mxu0 0.0
      %853 = vmatprep.subr.mxu0 0.0
      %854 = vmatpush2.msra.mxu0 0.0
      %855 = vmatprep.subr.mxu0 0.0
      %856 = vmatpush2.msra.mxu0 0.0
      %857 = vmatprep.subr.mxu0 0.0
      %858 = vmatpush2.msra.mxu0 0.0
      %859 = vmatprep.subr.mxu0 0.0
      %860 = vmatpush2.msra.mxu0 0.0
      %861 = vmatprep.subr.mxu0 0.0
      %862 = vmatpush2.msra.mxu0 0.0
      %863 = vmatprep.subr.mxu0 0.0
      %864 = vmatpush2.msra.mxu0 0.0
      %865 = vmatprep.subr.mxu0 0.0
      %866 = vmatpush2.msra.mxu0 0.0
      %867 = vmatprep.subr.mxu0 0.0
      %868 = vmatpush2.msra.mxu0 0.0
      %869 = vmatprep.subr.mxu0 0.0
      %870 = vmatpush2.msra.mxu0 0.0
      %871 = vmatprep.subr.mxu0 0.0
      %872 = vmatpush2.msra.mxu0 0.0
      %873 = vmatprep.subr.mxu0 0.0
      %874 = vmatpush2.msra.mxu0 0.0
      %875 = vmatprep.subr.mxu0 0.0
      %876 = vmatpush2.msra.mxu0 0.0
      %877 = vmatprep.subr.mxu0 0.0
      %878 = vmatpush2.msra.mxu0 0.0
      %879 = vmatprep.mubr.f32.mxu0 0.0
      %880 = vmatmul.mubr.f32.gmra.mxu0 %v766
      %v881 = vpop.f32.mrf.mxu0
      %v882 = vadd.f32 0.0, %v881
      %v883 = vpop.f32.mrf.mxu0
      %884 = vmatprep.mubr.f32.mxu0 0.0
      %885 = vmatmul.mubr.f32.gmra.mxu0 %v767
      %v886 = vpop.f32.mrf.mxu0
      %v887 = vadd.f32 0.0, %v886
      %v888 = vpop.f32.mrf.mxu0
      %889 = vmatprep.mubr.f32.mxu0 0.0
      %890 = vmatmul.mubr.f32.gmra.mxu0 %v768
      %v891 = vpop.f32.mrf.mxu0
      %v892 = vadd.f32 0.0, %v891
      %v893 = vpop.f32.mrf.mxu0
      %894 = vmatprep.mubr.f32.mxu0 0.0
      %895 = vmatmul.mubr.f32.gmra.mxu0 %v769
      %v896 = vpop.f32.mrf.mxu0
      %v897 = vadd.f32 0.0, %v896
      %v898 = vpop.f32.mrf.mxu0
      %899 = vmatprep.mubr.f32.mxu0 0.0
      %900 = vmatmul.mubr.f32.gmra.mxu0 %v770
      %v901 = vpop.f32.mrf.mxu0
      %v902 = vadd.f32 0.0, %v901
      %v903 = vpop.f32.mrf.mxu0
      %904 = vmatprep.mubr.f32.mxu0 0.0
      %905 = vmatmul.mubr.f32.gmra.mxu0 %v771
      %v906 = vpop.f32.mrf.mxu0
      %v907 = vadd.f32 0.0, %v906
      %v908 = vpop.f32.mrf.mxu0
      %909 = vmatprep.mubr.f32.mxu0 0.0
      %910 = vmatmul.mubr.f32.gmra.mxu0 %v772
      %v911 = vpop.f32.mrf.mxu0
      %v912 = vadd.f32 0.0, %v911
      %v913 = vpop.f32.mrf.mxu0
      %914 = vmatprep.mubr.f32.mxu0 0.0
      %915 = vmatmul.mubr.f32.gmra.mxu0 %v773
      %v916 = vpop.f32.mrf.mxu0
      %v917 = vadd.f32 0.0, %v916
      %v918 = vpop.f32.mrf.mxu0
      %919 = vmatprep.mubr.f32.mxu0 0.0
      %920 = vmatmul.mubr.f32.gmra.mxu0 %v774
      %v921 = vpop.f32.mrf.mxu0
      %v922 = vadd.f32 0.0, %v921
      %v923 = vpop.f32.mrf.mxu0
      %924 = vmatprep.mubr.f32.mxu0 0.0
      %925 = vmatmul.mubr.f32.gmra.mxu0 %v775
      %v926 = vpop.f32.mrf.mxu0
      %v927 = vadd.f32 0.0, %v926
      %v928 = vpop.f32.mrf.mxu0
      %929 = vmatprep.mubr.f32.mxu0 0.0
      %930 = vmatmul.mubr.f32.gmra.mxu0 %v776
      %v931 = vpop.f32.mrf.mxu0
      %v932 = vadd.f32 0.0, %v931
      %v933 = vpop.f32.mrf.mxu0
      %934 = vmatprep.mubr.f32.mxu0 0.0
      %935 = vmatmul.mubr.f32.gmra.mxu0 %v777
      %v936 = vpop.f32.mrf.mxu0
      %v937 = vadd.f32 0.0, %v936
      %v938 = vpop.f32.mrf.mxu0
      %939 = vmatprep.mubr.f32.mxu0 0.0
      %940 = vmatmul.mubr.f32.gmra.mxu0 %v778
      %v941 = vpop.f32.mrf.mxu0
      %v942 = vadd.f32 0.0, %v941
      %v943 = vpop.f32.mrf.mxu0
      %944 = vmatprep.mubr.f32.mxu0 0.0
      %945 = vmatmul.mubr.f32.gmra.mxu0 %v779
      %v946 = vpop.f32.mrf.mxu0
      %v947 = vadd.f32 0.0, %v946
      %v948 = vpop.f32.mrf.mxu0
      %949 = vmatprep.mubr.f32.mxu0 0.0
      %950 = vmatmul.mubr.f32.gmra.mxu0 %v780
      %v951 = vpop.f32.mrf.mxu0
      %v952 = vadd.f32 0.0, %v951
      %v953 = vpop.f32.mrf.mxu0
      %954 = vmatprep.mubr.f32.mxu0 0.0
      %955 = vmatmul.mubr.f32.gmra.mxu0 %v781
      %v956 = vpop.f32.mrf.mxu0
      %v957 = vadd.f32 0.0, %v956
      %v958 = vpop.f32.mrf.mxu0
      %959 = vmatprep.mubr.f32.mxu0 0.0
      %960 = vmatmul.mubr.f32.gmra.mxu0 %v782
      %v961 = vpop.f32.mrf.mxu0
      %v962 = vadd.f32 0.0, %v961
      %v963 = vpop.f32.mrf.mxu0
      %964 = vmatprep.mubr.f32.mxu0 0.0
      %965 = vmatmul.mubr.f32.gmra.mxu0 %v783
      %v966 = vpop.f32.mrf.mxu0
      %v967 = vadd.f32 0.0, %v966
      %v968 = vpop.f32.mrf.mxu0
      %969 = vmatprep.mubr.f32.mxu0 0.0
      %970 = vmatmul.mubr.f32.gmra.mxu0 %v784
      %v971 = vpop.f32.mrf.mxu0
      %v972 = vadd.f32 0.0, %v971
      %v973 = vpop.f32.mrf.mxu0
      %974 = vmatprep.mubr.f32.mxu0 0.0
      %975 = vmatmul.mubr.f32.gmra.mxu0 %v785
      %v976 = vpop.f32.mrf.mxu0
      %v977 = vadd.f32 0.0, %v976
      %v978 = vpop.f32.mrf.mxu0
      %979 = vmatprep.mubr.f32.mxu0 0.0
      %980 = vmatmul.mubr.f32.gmra.mxu0 %v786
      %v981 = vpop.f32.mrf.mxu0
      %v982 = vadd.f32 0.0, %v981
      %v983 = vpop.f32.mrf.mxu0
      %984 = vmatprep.mubr.f32.mxu0 0.0
      %985 = vmatmul.mubr.f32.gmra.mxu0 %v787
      %v986 = vpop.f32.mrf.mxu0
      %v987 = vadd.f32 0.0, %v986
      %v988 = vpop.f32.mrf.mxu0
      %989 = vmatprep.mubr.f32.mxu0 0.0
      %990 = vmatmul.mubr.f32.gmra.mxu0 %v788
      %v991 = vpop.f32.mrf.mxu0
      %v992 = vadd.f32 0.0, %v991
      %v993 = vpop.f32.mrf.mxu0
      %994 = vmatprep.mubr.f32.mxu0 0.0
      %995 = vmatmul.mubr.f32.gmra.mxu0 %v789
      %v996 = vpop.f32.mrf.mxu0
      %v997 = vadd.f32 0.0, %v996
      %v998 = vpop.f32.mrf.mxu0
      %999 = vmatprep.mubr.f32.mxu0 0.0
      %1000 = vmatmul.mubr.f32.gmra.mxu0 %v790
      %v1001 = vpop.f32.mrf.mxu0
      %v1002 = vadd.f32 0.0, %v1001
      %v1003 = vpop.f32.mrf.mxu0
      %1004 = vmatprep.mubr.f32.mxu0 0.0
      %1005 = vmatmul.mubr.f32.gmra.mxu0 %v791
      %v1006 = vpop.f32.mrf.mxu0
      %v1007 = vadd.f32 0.0, %v1006
      %v1008 = vpop.f32.mrf.mxu0
      %1009 = vmatprep.mubr.f32.mxu0 0.0
      %1010 = vmatmul.mubr.f32.gmra.mxu0 %v792
      %v1011 = vpop.f32.mrf.mxu0
      %v1012 = vadd.f32 0.0, %v1011
      %v1013 = vpop.f32.mrf.mxu0
      %1014 = vmatprep.mubr.f32.mxu0 0.0
      %1015 = vmatmul.mubr.f32.gmra.mxu0 %v793
      %v1016 = vpop.f32.mrf.mxu0
      %v1017 = vadd.f32 0.0, %v1016
      %v1018 = vpop.f32.mrf.mxu0
      %1019 = vmatprep.mubr.f32.mxu0 0.0
      %1020 = vmatmul.mubr.f32.gmra.mxu0 %v794
      %v1021 = vpop.f32.mrf.mxu0
      %v1022 = vadd.f32 0.0, %v1021
      %v1023 = vpop.f32.mrf.mxu0
      %1024 = vmatprep.mubr.f32.mxu0 0.0
      %1025 = vmatmul.mubr.f32.gmra.mxu0 %v795
      %v1026 = vpop.f32.mrf.mxu0
      %v1027 = vadd.f32 0.0, %v1026
      %v1028 = vpop.f32.mrf.mxu0
      %1029 = vmatprep.mubr.f32.mxu0 0.0
      %1030 = vmatmul.mubr.f32.gmra.mxu0 %v796
      %v1031 = vpop.f32.mrf.mxu0
      %v1032 = vadd.f32 0.0, %v1031
      %v1033 = vpop.f32.mrf.mxu0
      %1034 = vmatprep.mubr.f32.mxu0 0.0
      %1035 = vmatmul.mubr.f32.gmra.mxu0 %v797
      %v1036 = vpop.f32.mrf.mxu0
      %v1037 = vadd.f32 0.0, %v1036
      %v1038 = vpop.f32.mrf.mxu0
      %1039 = vdwg.mxu0
      %v1040 = vadd.f32 %v608, %v882
      %v1041 = vadd.f32 %v613, %v887
      %v1042 = vadd.f32 %v618, %v892
      %v1043 = vadd.f32 %v623, %v897
      %v1044 = vadd.f32 %v628, %v902
      %v1045 = vadd.f32 %v633, %v907
      %v1046 = vadd.f32 %v638, %v912
      %v1047 = vadd.f32 %v643, %v917
      %v1048 = vadd.f32 %v648, %v922
      %v1049 = vadd.f32 %v653, %v927
      %v1050 = vadd.f32 %v658, %v932
      %v1051 = vadd.f32 %v663, %v937
      %v1052 = vadd.f32 %v668, %v942
      %v1053 = vadd.f32 %v673, %v947
      %v1054 = vadd.f32 %v678, %v952
      %v1055 = vadd.f32 %v683, %v957
      %v1056 = vadd.f32 %v688, %v962
      %v1057 = vadd.f32 %v693, %v967
      %v1058 = vadd.f32 %v698, %v972
      %v1059 = vadd.f32 %v703, %v977
      %v1060 = vadd.f32 %v708, %v982
      %v1061 = vadd.f32 %v713, %v987
      %v1062 = vadd.f32 %v718, %v992
      %v1063 = vadd.f32 %v723, %v997
      %v1064 = vadd.f32 %v728, %v1002
      %v1065 = vadd.f32 %v733, %v1007
      %v1066 = vadd.f32 %v738, %v1012
      %v1067 = vadd.f32 %v743, %v1017
      %v1068 = vadd.f32 %v748, %v1022
      %v1069 = vadd.f32 %v753, %v1027
      %v1070 = vadd.f32 %v758, %v1032
      %v1071 = vadd.f32 %v763, %v1037
      %s1072 = scalar_lea.vmem %s205, 24
      %v1073 = vld [vmem:[%s1072] sm:$0xff]
      %v1074 = vld [vmem:[%s1072 + $0x8] sm:$0xff]
      %v1075 = vld [vmem:[%s1072 + $0x18] sm:$0xff]
      %v1076 = vld [vmem:[%s1072 + $0x20] sm:$0xff]
      %v1077 = vld [vmem:[%s1072 + $0x30] sm:$0xff]
      %v1078 = vld [vmem:[%s1072 + $0x38] sm:$0xff]
      %v1079 = vld [vmem:[%s1072 + $0x48] sm:$0xff]
      %v1080 = vld [vmem:[%s1072 + $0x50] sm:$0xff]
      %v1081 = vld [vmem:[%s1072 + $0x60] sm:$0xff]
      %v1082 = vld [vmem:[%s1072 + $0x68] sm:$0xff]
      %v1083 = vld [vmem:[%s1072 + $0x78] sm:$0xff]
      %v1084 = vld [vmem:[%s1072 + $0x80] sm:$0xff]
      %v1085 = vld [vmem:[%s1072 + $0x90] sm:$0xff]
      %v1086 = vld [vmem:[%s1072 + $0x98] sm:$0xff]
      %v1087 = vld [vmem:[%s1072 + $0xa8] sm:$0xff]
      %v1088 = vld [vmem:[%s1072 + $0xb0] sm:$0xff]
      %v1089 = vld [vmem:[%s1072 + $0xc0] sm:$0xff]
      %v1090 = vld [vmem:[%s1072 + $0xc8] sm:$0xff]
      %v1091 = vld [vmem:[%s1072 + $0xd8] sm:$0xff]
      %v1092 = vld [vmem:[%s1072 + $0xe0] sm:$0xff]
      %v1093 = vld [vmem:[%s1072 + $0xf0] sm:$0xff]
      %v1094 = vld [vmem:[%s1072 + $0xf8] sm:$0xff]
      %v1095 = vld [vmem:[%s1072 + $0x108] sm:$0xff]
      %v1096 = vld [vmem:[%s1072 + $0x110] sm:$0xff]
      %v1097 = vld [vmem:[%s1072 + $0x120] sm:$0xff]
      %v1098 = vld [vmem:[%s1072 + $0x128] sm:$0xff]
      %v1099 = vld [vmem:[%s1072 + $0x138] sm:$0xff]
      %v1100 = vld [vmem:[%s1072 + $0x140] sm:$0xff]
      %v1101 = vld [vmem:[%s1072 + $0x150] sm:$0xff]
      %v1102 = vld [vmem:[%s1072 + $0x158] sm:$0xff]
      %v1103 = vld [vmem:[%s1072 + $0x168] sm:$0xff]
      %v1104 = vld [vmem:[%s1072 + $0x170] sm:$0xff]
      %s1105 = scalar_lea.vmem %s1, 384
      %v1106 = vld [vmem:[%s1105] sm:$0xff]
      %v1107 = vld [vmem:[%s1105 + $0x8] sm:$0xff]
      %v1108 = vld [vmem:[%s1105 + $0x10] sm:$0xff]
      %v1109 = vld [vmem:[%s1105 + $0x18] sm:$0xff]
      %v1110 = vld [vmem:[%s1105 + $0x20] sm:$0xff]
      %v1111 = vld [vmem:[%s1105 + $0x28] sm:$0xff]
      %v1112 = vld [vmem:[%s1105 + $0x30] sm:$0xff]
      %v1113 = vld [vmem:[%s1105 + $0x38] sm:$0xff]
      %v1114 = vld [vmem:[%s1105 + $0x40] sm:$0xff]
      %v1115 = vld [vmem:[%s1105 + $0x48] sm:$0xff]
      %v1116 = vld [vmem:[%s1105 + $0x50] sm:$0xff]
      %v1117 = vld [vmem:[%s1105 + $0x58] sm:$0xff]
      %v1118 = vld [vmem:[%s1105 + $0x60] sm:$0xff]
      %v1119 = vld [vmem:[%s1105 + $0x68] sm:$0xff]
      %v1120 = vld [vmem:[%s1105 + $0x70] sm:$0xff]
      %v1121 = vld [vmem:[%s1105 + $0x78] sm:$0xff]
      %1122 = vmatprep.subr.mxu0 0.0
      %1123 = vmatpush1.msra.mxu0 %v1121
      %1124 = vmatprep.subr.mxu0 0.0
      %1125 = vmatpush1.msra.mxu0 %v1120
      %1126 = vmatprep.subr.mxu0 0.0
      %1127 = vmatpush1.msra.mxu0 %v1119
      %1128 = vmatprep.subr.mxu0 0.0
      %1129 = vmatpush1.msra.mxu0 %v1118
      %1130 = vmatprep.subr.mxu0 0.0
      %1131 = vmatpush1.msra.mxu0 %v1117
      %1132 = vmatprep.subr.mxu0 0.0
      %1133 = vmatpush1.msra.mxu0 %v1116
      %1134 = vmatprep.subr.mxu0 0.0
      %1135 = vmatpush1.msra.mxu0 %v1115
      %1136 = vmatprep.subr.mxu0 0.0
      %1137 = vmatpush1.msra.mxu0 %v1114
      %1138 = vmatprep.subr.mxu0 0.0
      %1139 = vmatpush1.msra.mxu0 %v1113
      %1140 = vmatprep.subr.mxu0 0.0
      %1141 = vmatpush1.msra.mxu0 %v1112
      %1142 = vmatprep.subr.mxu0 0.0
      %1143 = vmatpush1.msra.mxu0 %v1111
      %1144 = vmatprep.subr.mxu0 0.0
      %1145 = vmatpush1.msra.mxu0 %v1110
      %1146 = vmatprep.subr.mxu0 0.0
      %1147 = vmatpush1.msra.mxu0 %v1109
      %1148 = vmatprep.subr.mxu0 0.0
      %1149 = vmatpush1.msra.mxu0 %v1108
      %1150 = vmatprep.subr.mxu0 0.0
      %1151 = vmatpush1.msra.mxu0 %v1107
      %1152 = vmatprep.subr.mxu0 0.0
      %1153 = vmatpush1.msra.mxu0 %v1106
      %1154 = vmatprep.subr.mxu0 0.0
      %1155 = vmatpush2.msra.mxu0 0.0
      %1156 = vmatprep.subr.mxu0 0.0
      %1157 = vmatpush2.msra.mxu0 0.0
      %1158 = vmatprep.subr.mxu0 0.0
      %1159 = vmatpush2.msra.mxu0 0.0
      %1160 = vmatprep.subr.mxu0 0.0
      %1161 = vmatpush2.msra.mxu0 0.0
      %1162 = vmatprep.subr.mxu0 0.0
      %1163 = vmatpush2.msra.mxu0 0.0
      %1164 = vmatprep.subr.mxu0 0.0
      %1165 = vmatpush2.msra.mxu0 0.0
      %1166 = vmatprep.subr.mxu0 0.0
      %1167 = vmatpush2.msra.mxu0 0.0
      %1168 = vmatprep.subr.mxu0 0.0
      %1169 = vmatpush2.msra.mxu0 0.0
      %1170 = vmatprep.subr.mxu0 0.0
      %1171 = vmatpush2.msra.mxu0 0.0
      %1172 = vmatprep.subr.mxu0 0.0
      %1173 = vmatpush2.msra.mxu0 0.0
      %1174 = vmatprep.subr.mxu0 0.0
      %1175 = vmatpush2.msra.mxu0 0.0
      %1176 = vmatprep.subr.mxu0 0.0
      %1177 = vmatpush2.msra.mxu0 0.0
      %1178 = vmatprep.subr.mxu0 0.0
      %1179 = vmatpush2.msra.mxu0 0.0
      %1180 = vmatprep.subr.mxu0 0.0
      %1181 = vmatpush2.msra.mxu0 0.0
      %1182 = vmatprep.subr.mxu0 0.0
      %1183 = vmatpush2.msra.mxu0 0.0
      %1184 = vmatprep.subr.mxu0 0.0
      %1185 = vmatpush2.msra.mxu0 0.0
      %1186 = vmatprep.mubr.f32.mxu0 0.0
      %1187 = vmatmul.mubr.f32.gmra.mxu0 %v1073
      %v1188 = vpop.f32.mrf.mxu0
      %v1189 = vadd.f32 0.0, %v1188
      %v1190 = vpop.f32.mrf.mxu0
      %1191 = vmatprep.mubr.f32.mxu0 0.0
      %1192 = vmatmul.mubr.f32.gmra.mxu0 %v1074
      %v1193 = vpop.f32.mrf.mxu0
      %v1194 = vadd.f32 0.0, %v1193
      %v1195 = vpop.f32.mrf.mxu0
      %1196 = vmatprep.mubr.f32.mxu0 0.0
      %1197 = vmatmul.mubr.f32.gmra.mxu0 %v1075
      %v1198 = vpop.f32.mrf.mxu0
      %v1199 = vadd.f32 0.0, %v1198
      %v1200 = vpop.f32.mrf.mxu0
      %1201 = vmatprep.mubr.f32.mxu0 0.0
      %1202 = vmatmul.mubr.f32.gmra.mxu0 %v1076
      %v1203 = vpop.f32.mrf.mxu0
      %v1204 = vadd.f32 0.0, %v1203
      %v1205 = vpop.f32.mrf.mxu0
      %1206 = vmatprep.mubr.f32.mxu0 0.0
      %1207 = vmatmul.mubr.f32.gmra.mxu0 %v1077
      %v1208 = vpop.f32.mrf.mxu0
      %v1209 = vadd.f32 0.0, %v1208
      %v1210 = vpop.f32.mrf.mxu0
      %1211 = vmatprep.mubr.f32.mxu0 0.0
      %1212 = vmatmul.mubr.f32.gmra.mxu0 %v1078
      %v1213 = vpop.f32.mrf.mxu0
      %v1214 = vadd.f32 0.0, %v1213
      %v1215 = vpop.f32.mrf.mxu0
      %1216 = vmatprep.mubr.f32.mxu0 0.0
      %1217 = vmatmul.mubr.f32.gmra.mxu0 %v1079
      %v1218 = vpop.f32.mrf.mxu0
      %v1219 = vadd.f32 0.0, %v1218
      %v1220 = vpop.f32.mrf.mxu0
      %1221 = vmatprep.mubr.f32.mxu0 0.0
      %1222 = vmatmul.mubr.f32.gmra.mxu0 %v1080
      %v1223 = vpop.f32.mrf.mxu0
      %v1224 = vadd.f32 0.0, %v1223
      %v1225 = vpop.f32.mrf.mxu0
      %1226 = vmatprep.mubr.f32.mxu0 0.0
      %1227 = vmatmul.mubr.f32.gmra.mxu0 %v1081
      %v1228 = vpop.f32.mrf.mxu0
      %v1229 = vadd.f32 0.0, %v1228
      %v1230 = vpop.f32.mrf.mxu0
      %1231 = vmatprep.mubr.f32.mxu0 0.0
      %1232 = vmatmul.mubr.f32.gmra.mxu0 %v1082
      %v1233 = vpop.f32.mrf.mxu0
      %v1234 = vadd.f32 0.0, %v1233
      %v1235 = vpop.f32.mrf.mxu0
      %1236 = vmatprep.mubr.f32.mxu0 0.0
      %1237 = vmatmul.mubr.f32.gmra.mxu0 %v1083
      %v1238 = vpop.f32.mrf.mxu0
      %v1239 = vadd.f32 0.0, %v1238
      %v1240 = vpop.f32.mrf.mxu0
      %1241 = vmatprep.mubr.f32.mxu0 0.0
      %1242 = vmatmul.mubr.f32.gmra.mxu0 %v1084
      %v1243 = vpop.f32.mrf.mxu0
      %v1244 = vadd.f32 0.0, %v1243
      %v1245 = vpop.f32.mrf.mxu0
      %1246 = vmatprep.mubr.f32.mxu0 0.0
      %1247 = vmatmul.mubr.f32.gmra.mxu0 %v1085
      %v1248 = vpop.f32.mrf.mxu0
      %v1249 = vadd.f32 0.0, %v1248
      %v1250 = vpop.f32.mrf.mxu0
      %1251 = vmatprep.mubr.f32.mxu0 0.0
      %1252 = vmatmul.mubr.f32.gmra.mxu0 %v1086
      %v1253 = vpop.f32.mrf.mxu0
      %v1254 = vadd.f32 0.0, %v1253
      %v1255 = vpop.f32.mrf.mxu0
      %1256 = vmatprep.mubr.f32.mxu0 0.0
      %1257 = vmatmul.mubr.f32.gmra.mxu0 %v1087
      %v1258 = vpop.f32.mrf.mxu0
      %v1259 = vadd.f32 0.0, %v1258
      %v1260 = vpop.f32.mrf.mxu0
      %1261 = vmatprep.mubr.f32.mxu0 0.0
      %1262 = vmatmul.mubr.f32.gmra.mxu0 %v1088
      %v1263 = vpop.f32.mrf.mxu0
      %v1264 = vadd.f32 0.0, %v1263
      %v1265 = vpop.f32.mrf.mxu0
      %1266 = vmatprep.mubr.f32.mxu0 0.0
      %1267 = vmatmul.mubr.f32.gmra.mxu0 %v1089
      %v1268 = vpop.f32.mrf.mxu0
      %v1269 = vadd.f32 0.0, %v1268
      %v1270 = vpop.f32.mrf.mxu0
      %1271 = vmatprep.mubr.f32.mxu0 0.0
      %1272 = vmatmul.mubr.f32.gmra.mxu0 %v1090
      %v1273 = vpop.f32.mrf.mxu0
      %v1274 = vadd.f32 0.0, %v1273
      %v1275 = vpop.f32.mrf.mxu0
      %1276 = vmatprep.mubr.f32.mxu0 0.0
      %1277 = vmatmul.mubr.f32.gmra.mxu0 %v1091
      %v1278 = vpop.f32.mrf.mxu0
      %v1279 = vadd.f32 0.0, %v1278
      %v1280 = vpop.f32.mrf.mxu0
      %1281 = vmatprep.mubr.f32.mxu0 0.0
      %1282 = vmatmul.mubr.f32.gmra.mxu0 %v1092
      %v1283 = vpop.f32.mrf.mxu0
      %v1284 = vadd.f32 0.0, %v1283
      %v1285 = vpop.f32.mrf.mxu0
      %1286 = vmatprep.mubr.f32.mxu0 0.0
      %1287 = vmatmul.mubr.f32.gmra.mxu0 %v1093
      %v1288 = vpop.f32.mrf.mxu0
      %v1289 = vadd.f32 0.0, %v1288
      %v1290 = vpop.f32.mrf.mxu0
      %1291 = vmatprep.mubr.f32.mxu0 0.0
      %1292 = vmatmul.mubr.f32.gmra.mxu0 %v1094
      %v1293 = vpop.f32.mrf.mxu0
      %v1294 = vadd.f32 0.0, %v1293
      %v1295 = vpop.f32.mrf.mxu0
      %1296 = vmatprep.mubr.f32.mxu0 0.0
      %1297 = vmatmul.mubr.f32.gmra.mxu0 %v1095
      %v1298 = vpop.f32.mrf.mxu0
      %v1299 = vadd.f32 0.0, %v1298
      %v1300 = vpop.f32.mrf.mxu0
      %1301 = vmatprep.mubr.f32.mxu0 0.0
      %1302 = vmatmul.mubr.f32.gmra.mxu0 %v1096
      %v1303 = vpop.f32.mrf.mxu0
      %v1304 = vadd.f32 0.0, %v1303
      %v1305 = vpop.f32.mrf.mxu0
      %1306 = vmatprep.mubr.f32.mxu0 0.0
      %1307 = vmatmul.mubr.f32.gmra.mxu0 %v1097
      %v1308 = vpop.f32.mrf.mxu0
      %v1309 = vadd.f32 0.0, %v1308
      %v1310 = vpop.f32.mrf.mxu0
      %1311 = vmatprep.mubr.f32.mxu0 0.0
      %1312 = vmatmul.mubr.f32.gmra.mxu0 %v1098
      %v1313 = vpop.f32.mrf.mxu0
      %v1314 = vadd.f32 0.0, %v1313
      %v1315 = vpop.f32.mrf.mxu0
      %1316 = vmatprep.mubr.f32.mxu0 0.0
      %1317 = vmatmul.mubr.f32.gmra.mxu0 %v1099
      %v1318 = vpop.f32.mrf.mxu0
      %v1319 = vadd.f32 0.0, %v1318
      %v1320 = vpop.f32.mrf.mxu0
      %1321 = vmatprep.mubr.f32.mxu0 0.0
      %1322 = vmatmul.mubr.f32.gmra.mxu0 %v1100
      %v1323 = vpop.f32.mrf.mxu0
      %v1324 = vadd.f32 0.0, %v1323
      %v1325 = vpop.f32.mrf.mxu0
      %1326 = vmatprep.mubr.f32.mxu0 0.0
      %1327 = vmatmul.mubr.f32.gmra.mxu0 %v1101
      %v1328 = vpop.f32.mrf.mxu0
      %v1329 = vadd.f32 0.0, %v1328
      %v1330 = vpop.f32.mrf.mxu0
      %1331 = vmatprep.mubr.f32.mxu0 0.0
      %1332 = vmatmul.mubr.f32.gmra.mxu0 %v1102
      %v1333 = vpop.f32.mrf.mxu0
      %v1334 = vadd.f32 0.0, %v1333
      %v1335 = vpop.f32.mrf.mxu0
      %1336 = vmatprep.mubr.f32.mxu0 0.0
      %1337 = vmatmul.mubr.f32.gmra.mxu0 %v1103
      %v1338 = vpop.f32.mrf.mxu0
      %v1339 = vadd.f32 0.0, %v1338
      %v1340 = vpop.f32.mrf.mxu0
      %1341 = vmatprep.mubr.f32.mxu0 0.0
      %1342 = vmatmul.mubr.f32.gmra.mxu0 %v1104
      %v1343 = vpop.f32.mrf.mxu0
      %v1344 = vadd.f32 0.0, %v1343
      %v1345 = vpop.f32.mrf.mxu0
      %1346 = vdwg.mxu0
      %v1347 = vadd.f32 %v1040, %v1189
      %v1348 = vadd.f32 %v1041, %v1194
      %v1349 = vadd.f32 %v1042, %v1199
      %v1350 = vadd.f32 %v1043, %v1204
      %v1351 = vadd.f32 %v1044, %v1209
      %v1352 = vadd.f32 %v1045, %v1214
      %v1353 = vadd.f32 %v1046, %v1219
      %v1354 = vadd.f32 %v1047, %v1224
      %v1355 = vadd.f32 %v1048, %v1229
      %v1356 = vadd.f32 %v1049, %v1234
      %v1357 = vadd.f32 %v1050, %v1239
      %v1358 = vadd.f32 %v1051, %v1244
      %v1359 = vadd.f32 %v1052, %v1249
      %v1360 = vadd.f32 %v1053, %v1254
      %v1361 = vadd.f32 %v1054, %v1259
      %v1362 = vadd.f32 %v1055, %v1264
      %v1363 = vadd.f32 %v1056, %v1269
      %v1364 = vadd.f32 %v1057, %v1274
      %v1365 = vadd.f32 %v1058, %v1279
      %v1366 = vadd.f32 %v1059, %v1284
      %v1367 = vadd.f32 %v1060, %v1289
      %v1368 = vadd.f32 %v1061, %v1294
      %v1369 = vadd.f32 %v1062, %v1299
      %v1370 = vadd.f32 %v1063, %v1304
      %v1371 = vadd.f32 %v1064, %v1309
      %v1372 = vadd.f32 %v1065, %v1314
      %v1373 = vadd.f32 %v1066, %v1319
      %v1374 = vadd.f32 %v1067, %v1324
      %v1375 = vadd.f32 %v1068, %v1329
      %v1376 = vadd.f32 %v1069, %v1334
      %v1377 = vadd.f32 %v1070, %v1339
      %v1378 = vadd.f32 %v1071, %v1344
      %v1379 = vld [vmem:[%s1072 + $0x1] sm:$0xff]
      %v1380 = vld [vmem:[%s1072 + $0x9] sm:$0xff]
      %v1381 = vld [vmem:[%s1072 + $0x19] sm:$0xff]
      %v1382 = vld [vmem:[%s1072 + $0x21] sm:$0xff]
      %v1383 = vld [vmem:[%s1072 + $0x31] sm:$0xff]
      %v1384 = vld [vmem:[%s1072 + $0x39] sm:$0xff]
      %v1385 = vld [vmem:[%s1072 + $0x49] sm:$0xff]
      %v1386 = vld [vmem:[%s1072 + $0x51] sm:$0xff]
      %v1387 = vld [vmem:[%s1072 + $0x61] sm:$0xff]
      %v1388 = vld [vmem:[%s1072 + $0x69] sm:$0xff]
      %v1389 = vld [vmem:[%s1072 + $0x79] sm:$0xff]
      %v1390 = vld [vmem:[%s1072 + $0x81] sm:$0xff]
      %v1391 = vld [vmem:[%s1072 + $0x91] sm:$0xff]
      %v1392 = vld [vmem:[%s1072 + $0x99] sm:$0xff]
      %v1393 = vld [vmem:[%s1072 + $0xa9] sm:$0xff]
      %v1394 = vld [vmem:[%s1072 + $0xb1] sm:$0xff]
      %v1395 = vld [vmem:[%s1072 + $0xc1] sm:$0xff]
      %v1396 = vld [vmem:[%s1072 + $0xc9] sm:$0xff]
      %v1397 = vld [vmem:[%s1072 + $0xd9] sm:$0xff]
      %v1398 = vld [vmem:[%s1072 + $0xe1] sm:$0xff]
      %v1399 = vld [vmem:[%s1072 + $0xf1] sm:$0xff]
      %v1400 = vld [vmem:[%s1072 + $0xf9] sm:$0xff]
      %v1401 = vld [vmem:[%s1072 + $0x109] sm:$0xff]
      %v1402 = vld [vmem:[%s1072 + $0x111] sm:$0xff]
      %v1403 = vld [vmem:[%s1072 + $0x121] sm:$0xff]
      %v1404 = vld [vmem:[%s1072 + $0x129] sm:$0xff]
      %v1405 = vld [vmem:[%s1072 + $0x139] sm:$0xff]
      %v1406 = vld [vmem:[%s1072 + $0x141] sm:$0xff]
      %v1407 = vld [vmem:[%s1072 + $0x151] sm:$0xff]
      %v1408 = vld [vmem:[%s1072 + $0x159] sm:$0xff]
      %v1409 = vld [vmem:[%s1072 + $0x169] sm:$0xff]
      %v1410 = vld [vmem:[%s1072 + $0x171] sm:$0xff]
      %s1411 = scalar_lea.vmem %s1, 512
      %v1412 = vld [vmem:[%s1411] sm:$0xff]
      %v1413 = vld [vmem:[%s1411 + $0x8] sm:$0xff]
      %v1414 = vld [vmem:[%s1411 + $0x10] sm:$0xff]
      %v1415 = vld [vmem:[%s1411 + $0x18] sm:$0xff]
      %v1416 = vld [vmem:[%s1411 + $0x20] sm:$0xff]
      %v1417 = vld [vmem:[%s1411 + $0x28] sm:$0xff]
      %v1418 = vld [vmem:[%s1411 + $0x30] sm:$0xff]
      %v1419 = vld [vmem:[%s1411 + $0x38] sm:$0xff]
      %v1420 = vld [vmem:[%s1411 + $0x40] sm:$0xff]
      %v1421 = vld [vmem:[%s1411 + $0x48] sm:$0xff]
      %v1422 = vld [vmem:[%s1411 + $0x50] sm:$0xff]
      %v1423 = vld [vmem:[%s1411 + $0x58] sm:$0xff]
      %v1424 = vld [vmem:[%s1411 + $0x60] sm:$0xff]
      %v1425 = vld [vmem:[%s1411 + $0x68] sm:$0xff]
      %v1426 = vld [vmem:[%s1411 + $0x70] sm:$0xff]
      %v1427 = vld [vmem:[%s1411 + $0x78] sm:$0xff]
      %1428 = vmatprep.subr.mxu0 0.0
      %1429 = vmatpush1.msra.mxu0 %v1427
      %1430 = vmatprep.subr.mxu0 0.0
      %1431 = vmatpush1.msra.mxu0 %v1426
      %1432 = vmatprep.subr.mxu0 0.0
      %1433 = vmatpush1.msra.mxu0 %v1425
      %1434 = vmatprep.subr.mxu0 0.0
      %1435 = vmatpush1.msra.mxu0 %v1424
      %1436 = vmatprep.subr.mxu0 0.0
      %1437 = vmatpush1.msra.mxu0 %v1423
      %1438 = vmatprep.subr.mxu0 0.0
      %1439 = vmatpush1.msra.mxu0 %v1422
      %1440 = vmatprep.subr.mxu0 0.0
      %1441 = vmatpush1.msra.mxu0 %v1421
      %1442 = vmatprep.subr.mxu0 0.0
      %1443 = vmatpush1.msra.mxu0 %v1420
      %1444 = vmatprep.subr.mxu0 0.0
      %1445 = vmatpush1.msra.mxu0 %v1419
      %1446 = vmatprep.subr.mxu0 0.0
      %1447 = vmatpush1.msra.mxu0 %v1418
      %1448 = vmatprep.subr.mxu0 0.0
      %1449 = vmatpush1.msra.mxu0 %v1417
      %1450 = vmatprep.subr.mxu0 0.0
      %1451 = vmatpush1.msra.mxu0 %v1416
      %1452 = vmatprep.subr.mxu0 0.0
      %1453 = vmatpush1.msra.mxu0 %v1415
      %1454 = vmatprep.subr.mxu0 0.0
      %1455 = vmatpush1.msra.mxu0 %v1414
      %1456 = vmatprep.subr.mxu0 0.0
      %1457 = vmatpush1.msra.mxu0 %v1413
      %1458 = vmatprep.subr.mxu0 0.0
      %1459 = vmatpush1.msra.mxu0 %v1412
      %1460 = vmatprep.subr.mxu0 0.0
      %1461 = vmatpush2.msra.mxu0 0.0
      %1462 = vmatprep.subr.mxu0 0.0
      %1463 = vmatpush2.msra.mxu0 0.0
      %1464 = vmatprep.subr.mxu0 0.0
      %1465 = vmatpush2.msra.mxu0 0.0
      %1466 = vmatprep.subr.mxu0 0.0
      %1467 = vmatpush2.msra.mxu0 0.0
      %1468 = vmatprep.subr.mxu0 0.0
      %1469 = vmatpush2.msra.mxu0 0.0
      %1470 = vmatprep.subr.mxu0 0.0
      %1471 = vmatpush2.msra.mxu0 0.0
      %1472 = vmatprep.subr.mxu0 0.0
      %1473 = vmatpush2.msra.mxu0 0.0
      %1474 = vmatprep.subr.mxu0 0.0
      %1475 = vmatpush2.msra.mxu0 0.0
      %1476 = vmatprep.subr.mxu0 0.0
      %1477 = vmatpush2.msra.mxu0 0.0
      %1478 = vmatprep.subr.mxu0 0.0
      %1479 = vmatpush2.msra.mxu0 0.0
      %1480 = vmatprep.subr.mxu0 0.0
      %1481 = vmatpush2.msra.mxu0 0.0
      %1482 = vmatprep.subr.mxu0 0.0
      %1483 = vmatpush2.msra.mxu0 0.0
      %1484 = vmatprep.subr.mxu0 0.0
      %1485 = vmatpush2.msra.mxu0 0.0
      %1486 = vmatprep.subr.mxu0 0.0
      %1487 = vmatpush2.msra.mxu0 0.0
      %1488 = vmatprep.subr.mxu0 0.0
      %1489 = vmatpush2.msra.mxu0 0.0
      %1490 = vmatprep.subr.mxu0 0.0
      %1491 = vmatpush2.msra.mxu0 0.0
      %1492 = vmatprep.mubr.f32.mxu0 0.0
      %1493 = vmatmul.mubr.f32.gmra.mxu0 %v1379
      %v1494 = vpop.f32.mrf.mxu0
      %v1495 = vadd.f32 0.0, %v1494
      %v1496 = vpop.f32.mrf.mxu0
      %1497 = vmatprep.mubr.f32.mxu0 0.0
      %1498 = vmatmul.mubr.f32.gmra.mxu0 %v1380
      %v1499 = vpop.f32.mrf.mxu0
      %v1500 = vadd.f32 0.0, %v1499
      %v1501 = vpop.f32.mrf.mxu0
      %1502 = vmatprep.mubr.f32.mxu0 0.0
      %1503 = vmatmul.mubr.f32.gmra.mxu0 %v1381
      %v1504 = vpop.f32.mrf.mxu0
      %v1505 = vadd.f32 0.0, %v1504
      %v1506 = vpop.f32.mrf.mxu0
      %1507 = vmatprep.mubr.f32.mxu0 0.0
      %1508 = vmatmul.mubr.f32.gmra.mxu0 %v1382
      %v1509 = vpop.f32.mrf.mxu0
      %v1510 = vadd.f32 0.0, %v1509
      %v1511 = vpop.f32.mrf.mxu0
      %1512 = vmatprep.mubr.f32.mxu0 0.0
      %1513 = vmatmul.mubr.f32.gmra.mxu0 %v1383
      %v1514 = vpop.f32.mrf.mxu0
      %v1515 = vadd.f32 0.0, %v1514
      %v1516 = vpop.f32.mrf.mxu0
      %1517 = vmatprep.mubr.f32.mxu0 0.0
      %1518 = vmatmul.mubr.f32.gmra.mxu0 %v1384
      %v1519 = vpop.f32.mrf.mxu0
      %v1520 = vadd.f32 0.0, %v1519
      %v1521 = vpop.f32.mrf.mxu0
      %1522 = vmatprep.mubr.f32.mxu0 0.0
      %1523 = vmatmul.mubr.f32.gmra.mxu0 %v1385
      %v1524 = vpop.f32.mrf.mxu0
      %v1525 = vadd.f32 0.0, %v1524
      %v1526 = vpop.f32.mrf.mxu0
      %1527 = vmatprep.mubr.f32.mxu0 0.0
      %1528 = vmatmul.mubr.f32.gmra.mxu0 %v1386
      %v1529 = vpop.f32.mrf.mxu0
      %v1530 = vadd.f32 0.0, %v1529
      %v1531 = vpop.f32.mrf.mxu0
      %1532 = vmatprep.mubr.f32.mxu0 0.0
      %1533 = vmatmul.mubr.f32.gmra.mxu0 %v1387
      %v1534 = vpop.f32.mrf.mxu0
      %v1535 = vadd.f32 0.0, %v1534
      %v1536 = vpop.f32.mrf.mxu0
      %1537 = vmatprep.mubr.f32.mxu0 0.0
      %1538 = vmatmul.mubr.f32.gmra.mxu0 %v1388
      %v1539 = vpop.f32.mrf.mxu0
      %v1540 = vadd.f32 0.0, %v1539
      %v1541 = vpop.f32.mrf.mxu0
      %1542 = vmatprep.mubr.f32.mxu0 0.0
      %1543 = vmatmul.mubr.f32.gmra.mxu0 %v1389
      %v1544 = vpop.f32.mrf.mxu0
      %v1545 = vadd.f32 0.0, %v1544
      %v1546 = vpop.f32.mrf.mxu0
      %1547 = vmatprep.mubr.f32.mxu0 0.0
      %1548 = vmatmul.mubr.f32.gmra.mxu0 %v1390
      %v1549 = vpop.f32.mrf.mxu0
      %v1550 = vadd.f32 0.0, %v1549
      %v1551 = vpop.f32.mrf.mxu0
      %1552 = vmatprep.mubr.f32.mxu0 0.0
      %1553 = vmatmul.mubr.f32.gmra.mxu0 %v1391
      %v1554 = vpop.f32.mrf.mxu0
      %v1555 = vadd.f32 0.0, %v1554
      %v1556 = vpop.f32.mrf.mxu0
      %1557 = vmatprep.mubr.f32.mxu0 0.0
      %1558 = vmatmul.mubr.f32.gmra.mxu0 %v1392
      %v1559 = vpop.f32.mrf.mxu0
      %v1560 = vadd.f32 0.0, %v1559
      %v1561 = vpop.f32.mrf.mxu0
      %1562 = vmatprep.mubr.f32.mxu0 0.0
      %1563 = vmatmul.mubr.f32.gmra.mxu0 %v1393
      %v1564 = vpop.f32.mrf.mxu0
      %v1565 = vadd.f32 0.0, %v1564
      %v1566 = vpop.f32.mrf.mxu0
      %1567 = vmatprep.mubr.f32.mxu0 0.0
      %1568 = vmatmul.mubr.f32.gmra.mxu0 %v1394
      %v1569 = vpop.f32.mrf.mxu0
      %v1570 = vadd.f32 0.0, %v1569
      %v1571 = vpop.f32.mrf.mxu0
      %1572 = vmatprep.mubr.f32.mxu0 0.0
      %1573 = vmatmul.mubr.f32.gmra.mxu0 %v1395
      %v1574 = vpop.f32.mrf.mxu0
      %v1575 = vadd.f32 0.0, %v1574
      %v1576 = vpop.f32.mrf.mxu0
      %1577 = vmatprep.mubr.f32.mxu0 0.0
      %1578 = vmatmul.mubr.f32.gmra.mxu0 %v1396
      %v1579 = vpop.f32.mrf.mxu0
      %v1580 = vadd.f32 0.0, %v1579
      %v1581 = vpop.f32.mrf.mxu0
      %1582 = vmatprep.mubr.f32.mxu0 0.0
      %1583 = vmatmul.mubr.f32.gmra.mxu0 %v1397
      %v1584 = vpop.f32.mrf.mxu0
      %v1585 = vadd.f32 0.0, %v1584
      %v1586 = vpop.f32.mrf.mxu0
      %1587 = vmatprep.mubr.f32.mxu0 0.0
      %1588 = vmatmul.mubr.f32.gmra.mxu0 %v1398
      %v1589 = vpop.f32.mrf.mxu0
      %v1590 = vadd.f32 0.0, %v1589
      %v1591 = vpop.f32.mrf.mxu0
      %1592 = vmatprep.mubr.f32.mxu0 0.0
      %1593 = vmatmul.mubr.f32.gmra.mxu0 %v1399
      %v1594 = vpop.f32.mrf.mxu0
      %v1595 = vadd.f32 0.0, %v1594
      %v1596 = vpop.f32.mrf.mxu0
      %1597 = vmatprep.mubr.f32.mxu0 0.0
      %1598 = vmatmul.mubr.f32.gmra.mxu0 %v1400
      %v1599 = vpop.f32.mrf.mxu0
      %v1600 = vadd.f32 0.0, %v1599
      %v1601 = vpop.f32.mrf.mxu0
      %1602 = vmatprep.mubr.f32.mxu0 0.0
      %1603 = vmatmul.mubr.f32.gmra.mxu0 %v1401
      %v1604 = vpop.f32.mrf.mxu0
      %v1605 = vadd.f32 0.0, %v1604
      %v1606 = vpop.f32.mrf.mxu0
      %1607 = vmatprep.mubr.f32.mxu0 0.0
      %1608 = vmatmul.mubr.f32.gmra.mxu0 %v1402
      %v1609 = vpop.f32.mrf.mxu0
      %v1610 = vadd.f32 0.0, %v1609
      %v1611 = vpop.f32.mrf.mxu0
      %1612 = vmatprep.mubr.f32.mxu0 0.0
      %1613 = vmatmul.mubr.f32.gmra.mxu0 %v1403
      %v1614 = vpop.f32.mrf.mxu0
      %v1615 = vadd.f32 0.0, %v1614
      %v1616 = vpop.f32.mrf.mxu0
      %1617 = vmatprep.mubr.f32.mxu0 0.0
      %1618 = vmatmul.mubr.f32.gmra.mxu0 %v1404
      %v1619 = vpop.f32.mrf.mxu0
      %v1620 = vadd.f32 0.0, %v1619
      %v1621 = vpop.f32.mrf.mxu0
      %1622 = vmatprep.mubr.f32.mxu0 0.0
      %1623 = vmatmul.mubr.f32.gmra.mxu0 %v1405
      %v1624 = vpop.f32.mrf.mxu0
      %v1625 = vadd.f32 0.0, %v1624
      %v1626 = vpop.f32.mrf.mxu0
      %1627 = vmatprep.mubr.f32.mxu0 0.0
      %1628 = vmatmul.mubr.f32.gmra.mxu0 %v1406
      %v1629 = vpop.f32.mrf.mxu0
      %v1630 = vadd.f32 0.0, %v1629
      %v1631 = vpop.f32.mrf.mxu0
      %1632 = vmatprep.mubr.f32.mxu0 0.0
      %1633 = vmatmul.mubr.f32.gmra.mxu0 %v1407
      %v1634 = vpop.f32.mrf.mxu0
      %v1635 = vadd.f32 0.0, %v1634
      %v1636 = vpop.f32.mrf.mxu0
      %1637 = vmatprep.mubr.f32.mxu0 0.0
      %1638 = vmatmul.mubr.f32.gmra.mxu0 %v1408
      %v1639 = vpop.f32.mrf.mxu0
      %v1640 = vadd.f32 0.0, %v1639
      %v1641 = vpop.f32.mrf.mxu0
      %1642 = vmatprep.mubr.f32.mxu0 0.0
      %1643 = vmatmul.mubr.f32.gmra.mxu0 %v1409
      %v1644 = vpop.f32.mrf.mxu0
      %v1645 = vadd.f32 0.0, %v1644
      %v1646 = vpop.f32.mrf.mxu0
      %1647 = vmatprep.mubr.f32.mxu0 0.0
      %1648 = vmatmul.mubr.f32.gmra.mxu0 %v1410
      %v1649 = vpop.f32.mrf.mxu0
      %v1650 = vadd.f32 0.0, %v1649
      %v1651 = vpop.f32.mrf.mxu0
      %1652 = vdwg.mxu0
      %v1653 = vadd.f32 %v1347, %v1495
      %v1654 = vadd.f32 %v1348, %v1500
      %v1655 = vadd.f32 %v1349, %v1505
      %v1656 = vadd.f32 %v1350, %v1510
      %v1657 = vadd.f32 %v1351, %v1515
      %v1658 = vadd.f32 %v1352, %v1520
      %v1659 = vadd.f32 %v1353, %v1525
      %v1660 = vadd.f32 %v1354, %v1530
      %v1661 = vadd.f32 %v1355, %v1535
      %v1662 = vadd.f32 %v1356, %v1540
      %v1663 = vadd.f32 %v1357, %v1545
      %v1664 = vadd.f32 %v1358, %v1550
      %v1665 = vadd.f32 %v1359, %v1555
      %v1666 = vadd.f32 %v1360, %v1560
      %v1667 = vadd.f32 %v1361, %v1565
      %v1668 = vadd.f32 %v1362, %v1570
      %v1669 = vadd.f32 %v1363, %v1575
      %v1670 = vadd.f32 %v1364, %v1580
      %v1671 = vadd.f32 %v1365, %v1585
      %v1672 = vadd.f32 %v1366, %v1590
      %v1673 = vadd.f32 %v1367, %v1595
      %v1674 = vadd.f32 %v1368, %v1600
      %v1675 = vadd.f32 %v1369, %v1605
      %v1676 = vadd.f32 %v1370, %v1610
      %v1677 = vadd.f32 %v1371, %v1615
      %v1678 = vadd.f32 %v1372, %v1620
      %v1679 = vadd.f32 %v1373, %v1625
      %v1680 = vadd.f32 %v1374, %v1630
      %v1681 = vadd.f32 %v1375, %v1635
      %v1682 = vadd.f32 %v1376, %v1640
      %v1683 = vadd.f32 %v1377, %v1645
      %v1684 = vadd.f32 %v1378, %v1650
      %v1685 = vld [vmem:[%s1072 + $0x2] sm:$0xff]
      %v1686 = vld [vmem:[%s1072 + $0xa] sm:$0xff]
      %v1687 = vld [vmem:[%s1072 + $0x1a] sm:$0xff]
      %v1688 = vld [vmem:[%s1072 + $0x22] sm:$0xff]
      %v1689 = vld [vmem:[%s1072 + $0x32] sm:$0xff]
      %v1690 = vld [vmem:[%s1072 + $0x3a] sm:$0xff]
      %v1691 = vld [vmem:[%s1072 + $0x4a] sm:$0xff]
      %v1692 = vld [vmem:[%s1072 + $0x52] sm:$0xff]
      %v1693 = vld [vmem:[%s1072 + $0x62] sm:$0xff]
      %v1694 = vld [vmem:[%s1072 + $0x6a] sm:$0xff]
      %v1695 = vld [vmem:[%s1072 + $0x7a] sm:$0xff]
      %v1696 = vld [vmem:[%s1072 + $0x82] sm:$0xff]
      %v1697 = vld [vmem:[%s1072 + $0x92] sm:$0xff]
      %v1698 = vld [vmem:[%s1072 + $0x9a] sm:$0xff]
      %v1699 = vld [vmem:[%s1072 + $0xaa] sm:$0xff]
      %v1700 = vld [vmem:[%s1072 + $0xb2] sm:$0xff]
      %v1701 = vld [vmem:[%s1072 + $0xc2] sm:$0xff]
      %v1702 = vld [vmem:[%s1072 + $0xca] sm:$0xff]
      %v1703 = vld [vmem:[%s1072 + $0xda] sm:$0xff]
      %v1704 = vld [vmem:[%s1072 + $0xe2] sm:$0xff]
      %v1705 = vld [vmem:[%s1072 + $0xf2] sm:$0xff]
      %v1706 = vld [vmem:[%s1072 + $0xfa] sm:$0xff]
      %v1707 = vld [vmem:[%s1072 + $0x10a] sm:$0xff]
      %v1708 = vld [vmem:[%s1072 + $0x112] sm:$0xff]
      %v1709 = vld [vmem:[%s1072 + $0x122] sm:$0xff]
      %v1710 = vld [vmem:[%s1072 + $0x12a] sm:$0xff]
      %v1711 = vld [vmem:[%s1072 + $0x13a] sm:$0xff]
      %v1712 = vld [vmem:[%s1072 + $0x142] sm:$0xff]
      %v1713 = vld [vmem:[%s1072 + $0x152] sm:$0xff]
      %v1714 = vld [vmem:[%s1072 + $0x15a] sm:$0xff]
      %v1715 = vld [vmem:[%s1072 + $0x16a] sm:$0xff]
      %v1716 = vld [vmem:[%s1072 + $0x172] sm:$0xff]
      %s1717 = scalar_lea.vmem %s1, 640
      %v1718 = vld [vmem:[%s1717] sm:$0xff]
      %v1719 = vld [vmem:[%s1717 + $0x8] sm:$0xff]
      %v1720 = vld [vmem:[%s1717 + $0x10] sm:$0xff]
      %v1721 = vld [vmem:[%s1717 + $0x18] sm:$0xff]
      %v1722 = vld [vmem:[%s1717 + $0x20] sm:$0xff]
      %v1723 = vld [vmem:[%s1717 + $0x28] sm:$0xff]
      %v1724 = vld [vmem:[%s1717 + $0x30] sm:$0xff]
      %v1725 = vld [vmem:[%s1717 + $0x38] sm:$0xff]
      %v1726 = vld [vmem:[%s1717 + $0x40] sm:$0xff]
      %v1727 = vld [vmem:[%s1717 + $0x48] sm:$0xff]
      %v1728 = vld [vmem:[%s1717 + $0x50] sm:$0xff]
      %v1729 = vld [vmem:[%s1717 + $0x58] sm:$0xff]
      %v1730 = vld [vmem:[%s1717 + $0x60] sm:$0xff]
      %v1731 = vld [vmem:[%s1717 + $0x68] sm:$0xff]
      %v1732 = vld [vmem:[%s1717 + $0x70] sm:$0xff]
      %v1733 = vld [vmem:[%s1717 + $0x78] sm:$0xff]
      %1734 = vmatprep.subr.mxu0 0.0
      %1735 = vmatpush1.msra.mxu0 %v1733
      %1736 = vmatprep.subr.mxu0 0.0
      %1737 = vmatpush1.msra.mxu0 %v1732
      %1738 = vmatprep.subr.mxu0 0.0
      %1739 = vmatpush1.msra.mxu0 %v1731
      %1740 = vmatprep.subr.mxu0 0.0
      %1741 = vmatpush1.msra.mxu0 %v1730
      %1742 = vmatprep.subr.mxu0 0.0
      %1743 = vmatpush1.msra.mxu0 %v1729
      %1744 = vmatprep.subr.mxu0 0.0
      %1745 = vmatpush1.msra.mxu0 %v1728
      %1746 = vmatprep.subr.mxu0 0.0
      %1747 = vmatpush1.msra.mxu0 %v1727
      %1748 = vmatprep.subr.mxu0 0.0
      %1749 = vmatpush1.msra.mxu0 %v1726
      %1750 = vmatprep.subr.mxu0 0.0
      %1751 = vmatpush1.msra.mxu0 %v1725
      %1752 = vmatprep.subr.mxu0 0.0
      %1753 = vmatpush1.msra.mxu0 %v1724
      %1754 = vmatprep.subr.mxu0 0.0
      %1755 = vmatpush1.msra.mxu0 %v1723
      %1756 = vmatprep.subr.mxu0 0.0
      %1757 = vmatpush1.msra.mxu0 %v1722
      %1758 = vmatprep.subr.mxu0 0.0
      %1759 = vmatpush1.msra.mxu0 %v1721
      %1760 = vmatprep.subr.mxu0 0.0
      %1761 = vmatpush1.msra.mxu0 %v1720
      %1762 = vmatprep.subr.mxu0 0.0
      %1763 = vmatpush1.msra.mxu0 %v1719
      %1764 = vmatprep.subr.mxu0 0.0
      %1765 = vmatpush1.msra.mxu0 %v1718
      %1766 = vmatprep.subr.mxu0 0.0
      %1767 = vmatpush2.msra.mxu0 0.0
      %1768 = vmatprep.subr.mxu0 0.0
      %1769 = vmatpush2.msra.mxu0 0.0
      %1770 = vmatprep.subr.mxu0 0.0
      %1771 = vmatpush2.msra.mxu0 0.0
      %1772 = vmatprep.subr.mxu0 0.0
      %1773 = vmatpush2.msra.mxu0 0.0
      %1774 = vmatprep.subr.mxu0 0.0
      %1775 = vmatpush2.msra.mxu0 0.0
      %1776 = vmatprep.subr.mxu0 0.0
      %1777 = vmatpush2.msra.mxu0 0.0
      %1778 = vmatprep.subr.mxu0 0.0
      %1779 = vmatpush2.msra.mxu0 0.0
      %1780 = vmatprep.subr.mxu0 0.0
      %1781 = vmatpush2.msra.mxu0 0.0
      %1782 = vmatprep.subr.mxu0 0.0
      %1783 = vmatpush2.msra.mxu0 0.0
      %1784 = vmatprep.subr.mxu0 0.0
      %1785 = vmatpush2.msra.mxu0 0.0
      %1786 = vmatprep.subr.mxu0 0.0
      %1787 = vmatpush2.msra.mxu0 0.0
      %1788 = vmatprep.subr.mxu0 0.0
      %1789 = vmatpush2.msra.mxu0 0.0
      %1790 = vmatprep.subr.mxu0 0.0
      %1791 = vmatpush2.msra.mxu0 0.0
      %1792 = vmatprep.subr.mxu0 0.0
      %1793 = vmatpush2.msra.mxu0 0.0
      %1794 = vmatprep.subr.mxu0 0.0
      %1795 = vmatpush2.msra.mxu0 0.0
      %1796 = vmatprep.subr.mxu0 0.0
      %1797 = vmatpush2.msra.mxu0 0.0
      %1798 = vmatprep.mubr.f32.mxu0 0.0
      %1799 = vmatmul.mubr.f32.gmra.mxu0 %v1685
      %v1800 = vpop.f32.mrf.mxu0
      %v1801 = vadd.f32 0.0, %v1800
      %v1802 = vpop.f32.mrf.mxu0
      %1803 = vmatprep.mubr.f32.mxu0 0.0
      %1804 = vmatmul.mubr.f32.gmra.mxu0 %v1686
      %v1805 = vpop.f32.mrf.mxu0
      %v1806 = vadd.f32 0.0, %v1805
      %v1807 = vpop.f32.mrf.mxu0
      %1808 = vmatprep.mubr.f32.mxu0 0.0
      %1809 = vmatmul.mubr.f32.gmra.mxu0 %v1687
      %v1810 = vpop.f32.mrf.mxu0
      %v1811 = vadd.f32 0.0, %v1810
      %v1812 = vpop.f32.mrf.mxu0
      %1813 = vmatprep.mubr.f32.mxu0 0.0
      %1814 = vmatmul.mubr.f32.gmra.mxu0 %v1688
      %v1815 = vpop.f32.mrf.mxu0
      %v1816 = vadd.f32 0.0, %v1815
      %v1817 = vpop.f32.mrf.mxu0
      %1818 = vmatprep.mubr.f32.mxu0 0.0
      %1819 = vmatmul.mubr.f32.gmra.mxu0 %v1689
      %v1820 = vpop.f32.mrf.mxu0
      %v1821 = vadd.f32 0.0, %v1820
      %v1822 = vpop.f32.mrf.mxu0
      %1823 = vmatprep.mubr.f32.mxu0 0.0
      %1824 = vmatmul.mubr.f32.gmra.mxu0 %v1690
      %v1825 = vpop.f32.mrf.mxu0
      %v1826 = vadd.f32 0.0, %v1825
      %v1827 = vpop.f32.mrf.mxu0
      %1828 = vmatprep.mubr.f32.mxu0 0.0
      %1829 = vmatmul.mubr.f32.gmra.mxu0 %v1691
      %v1830 = vpop.f32.mrf.mxu0
      %v1831 = vadd.f32 0.0, %v1830
      %v1832 = vpop.f32.mrf.mxu0
      %1833 = vmatprep.mubr.f32.mxu0 0.0
      %1834 = vmatmul.mubr.f32.gmra.mxu0 %v1692
      %v1835 = vpop.f32.mrf.mxu0
      %v1836 = vadd.f32 0.0, %v1835
      %v1837 = vpop.f32.mrf.mxu0
      %1838 = vmatprep.mubr.f32.mxu0 0.0
      %1839 = vmatmul.mubr.f32.gmra.mxu0 %v1693
      %v1840 = vpop.f32.mrf.mxu0
      %v1841 = vadd.f32 0.0, %v1840
      %v1842 = vpop.f32.mrf.mxu0
      %1843 = vmatprep.mubr.f32.mxu0 0.0
      %1844 = vmatmul.mubr.f32.gmra.mxu0 %v1694
      %v1845 = vpop.f32.mrf.mxu0
      %v1846 = vadd.f32 0.0, %v1845
      %v1847 = vpop.f32.mrf.mxu0
      %1848 = vmatprep.mubr.f32.mxu0 0.0
      %1849 = vmatmul.mubr.f32.gmra.mxu0 %v1695
      %v1850 = vpop.f32.mrf.mxu0
      %v1851 = vadd.f32 0.0, %v1850
      %v1852 = vpop.f32.mrf.mxu0
      %1853 = vmatprep.mubr.f32.mxu0 0.0
      %1854 = vmatmul.mubr.f32.gmra.mxu0 %v1696
      %v1855 = vpop.f32.mrf.mxu0
      %v1856 = vadd.f32 0.0, %v1855
      %v1857 = vpop.f32.mrf.mxu0
      %1858 = vmatprep.mubr.f32.mxu0 0.0
      %1859 = vmatmul.mubr.f32.gmra.mxu0 %v1697
      %v1860 = vpop.f32.mrf.mxu0
      %v1861 = vadd.f32 0.0, %v1860
      %v1862 = vpop.f32.mrf.mxu0
      %1863 = vmatprep.mubr.f32.mxu0 0.0
      %1864 = vmatmul.mubr.f32.gmra.mxu0 %v1698
      %v1865 = vpop.f32.mrf.mxu0
      %v1866 = vadd.f32 0.0, %v1865
      %v1867 = vpop.f32.mrf.mxu0
      %1868 = vmatprep.mubr.f32.mxu0 0.0
      %1869 = vmatmul.mubr.f32.gmra.mxu0 %v1699
      %v1870 = vpop.f32.mrf.mxu0
      %v1871 = vadd.f32 0.0, %v1870
      %v1872 = vpop.f32.mrf.mxu0
      %1873 = vmatprep.mubr.f32.mxu0 0.0
      %1874 = vmatmul.mubr.f32.gmra.mxu0 %v1700
      %v1875 = vpop.f32.mrf.mxu0
      %v1876 = vadd.f32 0.0, %v1875
      %v1877 = vpop.f32.mrf.mxu0
      %1878 = vmatprep.mubr.f32.mxu0 0.0
      %1879 = vmatmul.mubr.f32.gmra.mxu0 %v1701
      %v1880 = vpop.f32.mrf.mxu0
      %v1881 = vadd.f32 0.0, %v1880
      %v1882 = vpop.f32.mrf.mxu0
      %1883 = vmatprep.mubr.f32.mxu0 0.0
      %1884 = vmatmul.mubr.f32.gmra.mxu0 %v1702
      %v1885 = vpop.f32.mrf.mxu0
      %v1886 = vadd.f32 0.0, %v1885
      %v1887 = vpop.f32.mrf.mxu0
      %1888 = vmatprep.mubr.f32.mxu0 0.0
      %1889 = vmatmul.mubr.f32.gmra.mxu0 %v1703
      %v1890 = vpop.f32.mrf.mxu0
      %v1891 = vadd.f32 0.0, %v1890
      %v1892 = vpop.f32.mrf.mxu0
      %1893 = vmatprep.mubr.f32.mxu0 0.0
      %1894 = vmatmul.mubr.f32.gmra.mxu0 %v1704
      %v1895 = vpop.f32.mrf.mxu0
      %v1896 = vadd.f32 0.0, %v1895
      %v1897 = vpop.f32.mrf.mxu0
      %1898 = vmatprep.mubr.f32.mxu0 0.0
      %1899 = vmatmul.mubr.f32.gmra.mxu0 %v1705
      %v1900 = vpop.f32.mrf.mxu0
      %v1901 = vadd.f32 0.0, %v1900
      %v1902 = vpop.f32.mrf.mxu0
      %1903 = vmatprep.mubr.f32.mxu0 0.0
      %1904 = vmatmul.mubr.f32.gmra.mxu0 %v1706
      %v1905 = vpop.f32.mrf.mxu0
      %v1906 = vadd.f32 0.0, %v1905
      %v1907 = vpop.f32.mrf.mxu0
      %1908 = vmatprep.mubr.f32.mxu0 0.0
      %1909 = vmatmul.mubr.f32.gmra.mxu0 %v1707
      %v1910 = vpop.f32.mrf.mxu0
      %v1911 = vadd.f32 0.0, %v1910
      %v1912 = vpop.f32.mrf.mxu0
      %1913 = vmatprep.mubr.f32.mxu0 0.0
      %1914 = vmatmul.mubr.f32.gmra.mxu0 %v1708
      %v1915 = vpop.f32.mrf.mxu0
      %v1916 = vadd.f32 0.0, %v1915
      %v1917 = vpop.f32.mrf.mxu0
      %1918 = vmatprep.mubr.f32.mxu0 0.0
      %1919 = vmatmul.mubr.f32.gmra.mxu0 %v1709
      %v1920 = vpop.f32.mrf.mxu0
      %v1921 = vadd.f32 0.0, %v1920
      %v1922 = vpop.f32.mrf.mxu0
      %1923 = vmatprep.mubr.f32.mxu0 0.0
      %1924 = vmatmul.mubr.f32.gmra.mxu0 %v1710
      %v1925 = vpop.f32.mrf.mxu0
      %v1926 = vadd.f32 0.0, %v1925
      %v1927 = vpop.f32.mrf.mxu0
      %1928 = vmatprep.mubr.f32.mxu0 0.0
      %1929 = vmatmul.mubr.f32.gmra.mxu0 %v1711
      %v1930 = vpop.f32.mrf.mxu0
      %v1931 = vadd.f32 0.0, %v1930
      %v1932 = vpop.f32.mrf.mxu0
      %1933 = vmatprep.mubr.f32.mxu0 0.0
      %1934 = vmatmul.mubr.f32.gmra.mxu0 %v1712
      %v1935 = vpop.f32.mrf.mxu0
      %v1936 = vadd.f32 0.0, %v1935
      %v1937 = vpop.f32.mrf.mxu0
      %1938 = vmatprep.mubr.f32.mxu0 0.0
      %1939 = vmatmul.mubr.f32.gmra.mxu0 %v1713
      %v1940 = vpop.f32.mrf.mxu0
      %v1941 = vadd.f32 0.0, %v1940
      %v1942 = vpop.f32.mrf.mxu0
      %1943 = vmatprep.mubr.f32.mxu0 0.0
      %1944 = vmatmul.mubr.f32.gmra.mxu0 %v1714
      %v1945 = vpop.f32.mrf.mxu0
      %v1946 = vadd.f32 0.0, %v1945
      %v1947 = vpop.f32.mrf.mxu0
      %1948 = vmatprep.mubr.f32.mxu0 0.0
      %1949 = vmatmul.mubr.f32.gmra.mxu0 %v1715
      %v1950 = vpop.f32.mrf.mxu0
      %v1951 = vadd.f32 0.0, %v1950
      %v1952 = vpop.f32.mrf.mxu0
      %1953 = vmatprep.mubr.f32.mxu0 0.0
      %1954 = vmatmul.mubr.f32.gmra.mxu0 %v1716
      %v1955 = vpop.f32.mrf.mxu0
      %v1956 = vadd.f32 0.0, %v1955
      %v1957 = vpop.f32.mrf.mxu0
      %1958 = vdwg.mxu0
      %v1959 = vadd.f32 %v1653, %v1801
      %v1960 = vadd.f32 %v1654, %v1806
      %v1961 = vadd.f32 %v1655, %v1811
      %v1962 = vadd.f32 %v1656, %v1816
      %v1963 = vadd.f32 %v1657, %v1821
      %v1964 = vadd.f32 %v1658, %v1826
      %v1965 = vadd.f32 %v1659, %v1831
      %v1966 = vadd.f32 %v1660, %v1836
      %v1967 = vadd.f32 %v1661, %v1841
      %v1968 = vadd.f32 %v1662, %v1846
      %v1969 = vadd.f32 %v1663, %v1851
      %v1970 = vadd.f32 %v1664, %v1856
      %v1971 = vadd.f32 %v1665, %v1861
      %v1972 = vadd.f32 %v1666, %v1866
      %v1973 = vadd.f32 %v1667, %v1871
      %v1974 = vadd.f32 %v1668, %v1876
      %v1975 = vadd.f32 %v1669, %v1881
      %v1976 = vadd.f32 %v1670, %v1886
      %v1977 = vadd.f32 %v1671, %v1891
      %v1978 = vadd.f32 %v1672, %v1896
      %v1979 = vadd.f32 %v1673, %v1901
      %v1980 = vadd.f32 %v1674, %v1906
      %v1981 = vadd.f32 %v1675, %v1911
      %v1982 = vadd.f32 %v1676, %v1916
      %v1983 = vadd.f32 %v1677, %v1921
      %v1984 = vadd.f32 %v1678, %v1926
      %v1985 = vadd.f32 %v1679, %v1931
      %v1986 = vadd.f32 %v1680, %v1936
      %v1987 = vadd.f32 %v1681, %v1941
      %v1988 = vadd.f32 %v1682, %v1946
      %v1989 = vadd.f32 %v1683, %v1951
      %v1990 = vadd.f32 %v1684, %v1956
      %s1991 = scalar_lea.vmem %s205, 48
      %v1992 = vld [vmem:[%s1991] sm:$0xff]
      %v1993 = vld [vmem:[%s1991 + $0x8] sm:$0xff]
      %v1994 = vld [vmem:[%s1991 + $0x18] sm:$0xff]
      %v1995 = vld [vmem:[%s1991 + $0x20] sm:$0xff]
      %v1996 = vld [vmem:[%s1991 + $0x30] sm:$0xff]
      %v1997 = vld [vmem:[%s1991 + $0x38] sm:$0xff]
      %v1998 = vld [vmem:[%s1991 + $0x48] sm:$0xff]
      %v1999 = vld [vmem:[%s1991 + $0x50] sm:$0xff]
      %v2000 = vld [vmem:[%s1991 + $0x60] sm:$0xff]
      %v2001 = vld [vmem:[%s1991 + $0x68] sm:$0xff]
      %v2002 = vld [vmem:[%s1991 + $0x78] sm:$0xff]
      %v2003 = vld [vmem:[%s1991 + $0x80] sm:$0xff]
      %v2004 = vld [vmem:[%s1991 + $0x90] sm:$0xff]
      %v2005 = vld [vmem:[%s1991 + $0x98] sm:$0xff]
      %v2006 = vld [vmem:[%s1991 + $0xa8] sm:$0xff]
      %v2007 = vld [vmem:[%s1991 + $0xb0] sm:$0xff]
      %v2008 = vld [vmem:[%s1991 + $0xc0] sm:$0xff]
      %v2009 = vld [vmem:[%s1991 + $0xc8] sm:$0xff]
      %v2010 = vld [vmem:[%s1991 + $0xd8] sm:$0xff]
      %v2011 = vld [vmem:[%s1991 + $0xe0] sm:$0xff]
      %v2012 = vld [vmem:[%s1991 + $0xf0] sm:$0xff]
      %v2013 = vld [vmem:[%s1991 + $0xf8] sm:$0xff]
      %v2014 = vld [vmem:[%s1991 + $0x108] sm:$0xff]
      %v2015 = vld [vmem:[%s1991 + $0x110] sm:$0xff]
      %v2016 = vld [vmem:[%s1991 + $0x120] sm:$0xff]
      %v2017 = vld [vmem:[%s1991 + $0x128] sm:$0xff]
      %v2018 = vld [vmem:[%s1991 + $0x138] sm:$0xff]
      %v2019 = vld [vmem:[%s1991 + $0x140] sm:$0xff]
      %v2020 = vld [vmem:[%s1991 + $0x150] sm:$0xff]
      %v2021 = vld [vmem:[%s1991 + $0x158] sm:$0xff]
      %v2022 = vld [vmem:[%s1991 + $0x168] sm:$0xff]
      %v2023 = vld [vmem:[%s1991 + $0x170] sm:$0xff]
      %s2024 = scalar_lea.vmem %s1, 768
      %v2025 = vld [vmem:[%s2024] sm:$0xff]
      %v2026 = vld [vmem:[%s2024 + $0x8] sm:$0xff]
      %v2027 = vld [vmem:[%s2024 + $0x10] sm:$0xff]
      %v2028 = vld [vmem:[%s2024 + $0x18] sm:$0xff]
      %v2029 = vld [vmem:[%s2024 + $0x20] sm:$0xff]
      %v2030 = vld [vmem:[%s2024 + $0x28] sm:$0xff]
      %v2031 = vld [vmem:[%s2024 + $0x30] sm:$0xff]
      %v2032 = vld [vmem:[%s2024 + $0x38] sm:$0xff]
      %v2033 = vld [vmem:[%s2024 + $0x40] sm:$0xff]
      %v2034 = vld [vmem:[%s2024 + $0x48] sm:$0xff]
      %v2035 = vld [vmem:[%s2024 + $0x50] sm:$0xff]
      %v2036 = vld [vmem:[%s2024 + $0x58] sm:$0xff]
      %v2037 = vld [vmem:[%s2024 + $0x60] sm:$0xff]
      %v2038 = vld [vmem:[%s2024 + $0x68] sm:$0xff]
      %v2039 = vld [vmem:[%s2024 + $0x70] sm:$0xff]
      %v2040 = vld [vmem:[%s2024 + $0x78] sm:$0xff]
      %2041 = vmatprep.subr.mxu0 0.0
      %2042 = vmatpush1.msra.mxu0 %v2040
      %2043 = vmatprep.subr.mxu0 0.0
      %2044 = vmatpush1.msra.mxu0 %v2039
      %2045 = vmatprep.subr.mxu0 0.0
      %2046 = vmatpush1.msra.mxu0 %v2038
      %2047 = vmatprep.subr.mxu0 0.0
      %2048 = vmatpush1.msra.mxu0 %v2037
      %2049 = vmatprep.subr.mxu0 0.0
      %2050 = vmatpush1.msra.mxu0 %v2036
      %2051 = vmatprep.subr.mxu0 0.0
      %2052 = vmatpush1.msra.mxu0 %v2035
      %2053 = vmatprep.subr.mxu0 0.0
      %2054 = vmatpush1.msra.mxu0 %v2034
      %2055 = vmatprep.subr.mxu0 0.0
      %2056 = vmatpush1.msra.mxu0 %v2033
      %2057 = vmatprep.subr.mxu0 0.0
      %2058 = vmatpush1.msra.mxu0 %v2032
      %2059 = vmatprep.subr.mxu0 0.0
      %2060 = vmatpush1.msra.mxu0 %v2031
      %2061 = vmatprep.subr.mxu0 0.0
      %2062 = vmatpush1.msra.mxu0 %v2030
      %2063 = vmatprep.subr.mxu0 0.0
      %2064 = vmatpush1.msra.mxu0 %v2029
      %2065 = vmatprep.subr.mxu0 0.0
      %2066 = vmatpush1.msra.mxu0 %v2028
      %2067 = vmatprep.subr.mxu0 0.0
      %2068 = vmatpush1.msra.mxu0 %v2027
      %2069 = vmatprep.subr.mxu0 0.0
      %2070 = vmatpush1.msra.mxu0 %v2026
      %2071 = vmatprep.subr.mxu0 0.0
      %2072 = vmatpush1.msra.mxu0 %v2025
      %2073 = vmatprep.subr.mxu0 0.0
      %2074 = vmatpush2.msra.mxu0 0.0
      %2075 = vmatprep.subr.mxu0 0.0
      %2076 = vmatpush2.msra.mxu0 0.0
      %2077 = vmatprep.subr.mxu0 0.0
      %2078 = vmatpush2.msra.mxu0 0.0
      %2079 = vmatprep.subr.mxu0 0.0
      %2080 = vmatpush2.msra.mxu0 0.0
      %2081 = vmatprep.subr.mxu0 0.0
      %2082 = vmatpush2.msra.mxu0 0.0
      %2083 = vmatprep.subr.mxu0 0.0
      %2084 = vmatpush2.msra.mxu0 0.0
      %2085 = vmatprep.subr.mxu0 0.0
      %2086 = vmatpush2.msra.mxu0 0.0
      %2087 = vmatprep.subr.mxu0 0.0
      %2088 = vmatpush2.msra.mxu0 0.0
      %2089 = vmatprep.subr.mxu0 0.0
      %2090 = vmatpush2.msra.mxu0 0.0
      %2091 = vmatprep.subr.mxu0 0.0
      %2092 = vmatpush2.msra.mxu0 0.0
      %2093 = vmatprep.subr.mxu0 0.0
      %2094 = vmatpush2.msra.mxu0 0.0
      %2095 = vmatprep.subr.mxu0 0.0
      %2096 = vmatpush2.msra.mxu0 0.0
      %2097 = vmatprep.subr.mxu0 0.0
      %2098 = vmatpush2.msra.mxu0 0.0
      %2099 = vmatprep.subr.mxu0 0.0
      %2100 = vmatpush2.msra.mxu0 0.0
      %2101 = vmatprep.subr.mxu0 0.0
      %2102 = vmatpush2.msra.mxu0 0.0
      %2103 = vmatprep.subr.mxu0 0.0
      %2104 = vmatpush2.msra.mxu0 0.0
      %2105 = vmatprep.mubr.f32.mxu0 0.0
      %2106 = vmatmul.mubr.f32.gmra.mxu0 %v1992
      %v2107 = vpop.f32.mrf.mxu0
      %v2108 = vadd.f32 0.0, %v2107
      %v2109 = vpop.f32.mrf.mxu0
      %2110 = vmatprep.mubr.f32.mxu0 0.0
      %2111 = vmatmul.mubr.f32.gmra.mxu0 %v1993
      %v2112 = vpop.f32.mrf.mxu0
      %v2113 = vadd.f32 0.0, %v2112
      %v2114 = vpop.f32.mrf.mxu0
      %2115 = vmatprep.mubr.f32.mxu0 0.0
      %2116 = vmatmul.mubr.f32.gmra.mxu0 %v1994
      %v2117 = vpop.f32.mrf.mxu0
      %v2118 = vadd.f32 0.0, %v2117
      %v2119 = vpop.f32.mrf.mxu0
      %2120 = vmatprep.mubr.f32.mxu0 0.0
      %2121 = vmatmul.mubr.f32.gmra.mxu0 %v1995
      %v2122 = vpop.f32.mrf.mxu0
      %v2123 = vadd.f32 0.0, %v2122
      %v2124 = vpop.f32.mrf.mxu0
      %2125 = vmatprep.mubr.f32.mxu0 0.0
      %2126 = vmatmul.mubr.f32.gmra.mxu0 %v1996
      %v2127 = vpop.f32.mrf.mxu0
      %v2128 = vadd.f32 0.0, %v2127
      %v2129 = vpop.f32.mrf.mxu0
      %2130 = vmatprep.mubr.f32.mxu0 0.0
      %2131 = vmatmul.mubr.f32.gmra.mxu0 %v1997
      %v2132 = vpop.f32.mrf.mxu0
      %v2133 = vadd.f32 0.0, %v2132
      %v2134 = vpop.f32.mrf.mxu0
      %2135 = vmatprep.mubr.f32.mxu0 0.0
      %2136 = vmatmul.mubr.f32.gmra.mxu0 %v1998
      %v2137 = vpop.f32.mrf.mxu0
      %v2138 = vadd.f32 0.0, %v2137
      %v2139 = vpop.f32.mrf.mxu0
      %2140 = vmatprep.mubr.f32.mxu0 0.0
      %2141 = vmatmul.mubr.f32.gmra.mxu0 %v1999
      %v2142 = vpop.f32.mrf.mxu0
      %v2143 = vadd.f32 0.0, %v2142
      %v2144 = vpop.f32.mrf.mxu0
      %2145 = vmatprep.mubr.f32.mxu0 0.0
      %2146 = vmatmul.mubr.f32.gmra.mxu0 %v2000
      %v2147 = vpop.f32.mrf.mxu0
      %v2148 = vadd.f32 0.0, %v2147
      %v2149 = vpop.f32.mrf.mxu0
      %2150 = vmatprep.mubr.f32.mxu0 0.0
      %2151 = vmatmul.mubr.f32.gmra.mxu0 %v2001
      %v2152 = vpop.f32.mrf.mxu0
      %v2153 = vadd.f32 0.0, %v2152
      %v2154 = vpop.f32.mrf.mxu0
      %2155 = vmatprep.mubr.f32.mxu0 0.0
      %2156 = vmatmul.mubr.f32.gmra.mxu0 %v2002
      %v2157 = vpop.f32.mrf.mxu0
      %v2158 = vadd.f32 0.0, %v2157
      %v2159 = vpop.f32.mrf.mxu0
      %2160 = vmatprep.mubr.f32.mxu0 0.0
      %2161 = vmatmul.mubr.f32.gmra.mxu0 %v2003
      %v2162 = vpop.f32.mrf.mxu0
      %v2163 = vadd.f32 0.0, %v2162
      %v2164 = vpop.f32.mrf.mxu0
      %2165 = vmatprep.mubr.f32.mxu0 0.0
      %2166 = vmatmul.mubr.f32.gmra.mxu0 %v2004
      %v2167 = vpop.f32.mrf.mxu0
      %v2168 = vadd.f32 0.0, %v2167
      %v2169 = vpop.f32.mrf.mxu0
      %2170 = vmatprep.mubr.f32.mxu0 0.0
      %2171 = vmatmul.mubr.f32.gmra.mxu0 %v2005
      %v2172 = vpop.f32.mrf.mxu0
      %v2173 = vadd.f32 0.0, %v2172
      %v2174 = vpop.f32.mrf.mxu0
      %2175 = vmatprep.mubr.f32.mxu0 0.0
      %2176 = vmatmul.mubr.f32.gmra.mxu0 %v2006
      %v2177 = vpop.f32.mrf.mxu0
      %v2178 = vadd.f32 0.0, %v2177
      %v2179 = vpop.f32.mrf.mxu0
      %2180 = vmatprep.mubr.f32.mxu0 0.0
      %2181 = vmatmul.mubr.f32.gmra.mxu0 %v2007
      %v2182 = vpop.f32.mrf.mxu0
      %v2183 = vadd.f32 0.0, %v2182
      %v2184 = vpop.f32.mrf.mxu0
      %2185 = vmatprep.mubr.f32.mxu0 0.0
      %2186 = vmatmul.mubr.f32.gmra.mxu0 %v2008
      %v2187 = vpop.f32.mrf.mxu0
      %v2188 = vadd.f32 0.0, %v2187
      %v2189 = vpop.f32.mrf.mxu0
      %2190 = vmatprep.mubr.f32.mxu0 0.0
      %2191 = vmatmul.mubr.f32.gmra.mxu0 %v2009
      %v2192 = vpop.f32.mrf.mxu0
      %v2193 = vadd.f32 0.0, %v2192
      %v2194 = vpop.f32.mrf.mxu0
      %2195 = vmatprep.mubr.f32.mxu0 0.0
      %2196 = vmatmul.mubr.f32.gmra.mxu0 %v2010
      %v2197 = vpop.f32.mrf.mxu0
      %v2198 = vadd.f32 0.0, %v2197
      %v2199 = vpop.f32.mrf.mxu0
      %2200 = vmatprep.mubr.f32.mxu0 0.0
      %2201 = vmatmul.mubr.f32.gmra.mxu0 %v2011
      %v2202 = vpop.f32.mrf.mxu0
      %v2203 = vadd.f32 0.0, %v2202
      %v2204 = vpop.f32.mrf.mxu0
      %2205 = vmatprep.mubr.f32.mxu0 0.0
      %2206 = vmatmul.mubr.f32.gmra.mxu0 %v2012
      %v2207 = vpop.f32.mrf.mxu0
      %v2208 = vadd.f32 0.0, %v2207
      %v2209 = vpop.f32.mrf.mxu0
      %2210 = vmatprep.mubr.f32.mxu0 0.0
      %2211 = vmatmul.mubr.f32.gmra.mxu0 %v2013
      %v2212 = vpop.f32.mrf.mxu0
      %v2213 = vadd.f32 0.0, %v2212
      %v2214 = vpop.f32.mrf.mxu0
      %2215 = vmatprep.mubr.f32.mxu0 0.0
      %2216 = vmatmul.mubr.f32.gmra.mxu0 %v2014
      %v2217 = vpop.f32.mrf.mxu0
      %v2218 = vadd.f32 0.0, %v2217
      %v2219 = vpop.f32.mrf.mxu0
      %2220 = vmatprep.mubr.f32.mxu0 0.0
      %2221 = vmatmul.mubr.f32.gmra.mxu0 %v2015
      %v2222 = vpop.f32.mrf.mxu0
      %v2223 = vadd.f32 0.0, %v2222
      %v2224 = vpop.f32.mrf.mxu0
      %2225 = vmatprep.mubr.f32.mxu0 0.0
      %2226 = vmatmul.mubr.f32.gmra.mxu0 %v2016
      %v2227 = vpop.f32.mrf.mxu0
      %v2228 = vadd.f32 0.0, %v2227
      %v2229 = vpop.f32.mrf.mxu0
      %2230 = vmatprep.mubr.f32.mxu0 0.0
      %2231 = vmatmul.mubr.f32.gmra.mxu0 %v2017
      %v2232 = vpop.f32.mrf.mxu0
      %v2233 = vadd.f32 0.0, %v2232
      %v2234 = vpop.f32.mrf.mxu0
      %2235 = vmatprep.mubr.f32.mxu0 0.0
      %2236 = vmatmul.mubr.f32.gmra.mxu0 %v2018
      %v2237 = vpop.f32.mrf.mxu0
      %v2238 = vadd.f32 0.0, %v2237
      %v2239 = vpop.f32.mrf.mxu0
      %2240 = vmatprep.mubr.f32.mxu0 0.0
      %2241 = vmatmul.mubr.f32.gmra.mxu0 %v2019
      %v2242 = vpop.f32.mrf.mxu0
      %v2243 = vadd.f32 0.0, %v2242
      %v2244 = vpop.f32.mrf.mxu0
      %2245 = vmatprep.mubr.f32.mxu0 0.0
      %2246 = vmatmul.mubr.f32.gmra.mxu0 %v2020
      %v2247 = vpop.f32.mrf.mxu0
      %v2248 = vadd.f32 0.0, %v2247
      %v2249 = vpop.f32.mrf.mxu0
      %2250 = vmatprep.mubr.f32.mxu0 0.0
      %2251 = vmatmul.mubr.f32.gmra.mxu0 %v2021
      %v2252 = vpop.f32.mrf.mxu0
      %v2253 = vadd.f32 0.0, %v2252
      %v2254 = vpop.f32.mrf.mxu0
      %2255 = vmatprep.mubr.f32.mxu0 0.0
      %2256 = vmatmul.mubr.f32.gmra.mxu0 %v2022
      %v2257 = vpop.f32.mrf.mxu0
      %v2258 = vadd.f32 0.0, %v2257
      %v2259 = vpop.f32.mrf.mxu0
      %2260 = vmatprep.mubr.f32.mxu0 0.0
      %2261 = vmatmul.mubr.f32.gmra.mxu0 %v2023
      %v2262 = vpop.f32.mrf.mxu0
      %v2263 = vadd.f32 0.0, %v2262
      %v2264 = vpop.f32.mrf.mxu0
      %2265 = vdwg.mxu0
      %v2266 = vadd.f32 %v1959, %v2108
      %v2267 = vadd.f32 %v1960, %v2113
      %v2268 = vadd.f32 %v1961, %v2118
      %v2269 = vadd.f32 %v1962, %v2123
      %v2270 = vadd.f32 %v1963, %v2128
      %v2271 = vadd.f32 %v1964, %v2133
      %v2272 = vadd.f32 %v1965, %v2138
      %v2273 = vadd.f32 %v1966, %v2143
      %v2274 = vadd.f32 %v1967, %v2148
      %v2275 = vadd.f32 %v1968, %v2153
      %v2276 = vadd.f32 %v1969, %v2158
      %v2277 = vadd.f32 %v1970, %v2163
      %v2278 = vadd.f32 %v1971, %v2168
      %v2279 = vadd.f32 %v1972, %v2173
      %v2280 = vadd.f32 %v1973, %v2178
      %v2281 = vadd.f32 %v1974, %v2183
      %v2282 = vadd.f32 %v1975, %v2188
      %v2283 = vadd.f32 %v1976, %v2193
      %v2284 = vadd.f32 %v1977, %v2198
      %v2285 = vadd.f32 %v1978, %v2203
      %v2286 = vadd.f32 %v1979, %v2208
      %v2287 = vadd.f32 %v1980, %v2213
      %v2288 = vadd.f32 %v1981, %v2218
      %v2289 = vadd.f32 %v1982, %v2223
      %v2290 = vadd.f32 %v1983, %v2228
      %v2291 = vadd.f32 %v1984, %v2233
      %v2292 = vadd.f32 %v1985, %v2238
      %v2293 = vadd.f32 %v1986, %v2243
      %v2294 = vadd.f32 %v1987, %v2248
      %v2295 = vadd.f32 %v1988, %v2253
      %v2296 = vadd.f32 %v1989, %v2258
      %v2297 = vadd.f32 %v1990, %v2263
      %v2298 = vld [vmem:[%s1991 + $0x1] sm:$0xff]
      %v2299 = vld [vmem:[%s1991 + $0x9] sm:$0xff]
      %v2300 = vld [vmem:[%s1991 + $0x19] sm:$0xff]
      %v2301 = vld [vmem:[%s1991 + $0x21] sm:$0xff]
      %v2302 = vld [vmem:[%s1991 + $0x31] sm:$0xff]
      %v2303 = vld [vmem:[%s1991 + $0x39] sm:$0xff]
      %v2304 = vld [vmem:[%s1991 + $0x49] sm:$0xff]
      %v2305 = vld [vmem:[%s1991 + $0x51] sm:$0xff]
      %v2306 = vld [vmem:[%s1991 + $0x61] sm:$0xff]
      %v2307 = vld [vmem:[%s1991 + $0x69] sm:$0xff]
      %v2308 = vld [vmem:[%s1991 + $0x79] sm:$0xff]
      %v2309 = vld [vmem:[%s1991 + $0x81] sm:$0xff]
      %v2310 = vld [vmem:[%s1991 + $0x91] sm:$0xff]
      %v2311 = vld [vmem:[%s1991 + $0x99] sm:$0xff]
      %v2312 = vld [vmem:[%s1991 + $0xa9] sm:$0xff]
      %v2313 = vld [vmem:[%s1991 + $0xb1] sm:$0xff]
      %v2314 = vld [vmem:[%s1991 + $0xc1] sm:$0xff]
      %v2315 = vld [vmem:[%s1991 + $0xc9] sm:$0xff]
      %v2316 = vld [vmem:[%s1991 + $0xd9] sm:$0xff]
      %v2317 = vld [vmem:[%s1991 + $0xe1] sm:$0xff]
      %v2318 = vld [vmem:[%s1991 + $0xf1] sm:$0xff]
      %v2319 = vld [vmem:[%s1991 + $0xf9] sm:$0xff]
      %v2320 = vld [vmem:[%s1991 + $0x109] sm:$0xff]
      %v2321 = vld [vmem:[%s1991 + $0x111] sm:$0xff]
      %v2322 = vld [vmem:[%s1991 + $0x121] sm:$0xff]
      %v2323 = vld [vmem:[%s1991 + $0x129] sm:$0xff]
      %v2324 = vld [vmem:[%s1991 + $0x139] sm:$0xff]
      %v2325 = vld [vmem:[%s1991 + $0x141] sm:$0xff]
      %v2326 = vld [vmem:[%s1991 + $0x151] sm:$0xff]
      %v2327 = vld [vmem:[%s1991 + $0x159] sm:$0xff]
      %v2328 = vld [vmem:[%s1991 + $0x169] sm:$0xff]
      %v2329 = vld [vmem:[%s1991 + $0x171] sm:$0xff]
      %s2330 = scalar_lea.vmem %s1, 896
      %v2331 = vld [vmem:[%s2330] sm:$0xff]
      %v2332 = vld [vmem:[%s2330 + $0x8] sm:$0xff]
      %v2333 = vld [vmem:[%s2330 + $0x10] sm:$0xff]
      %v2334 = vld [vmem:[%s2330 + $0x18] sm:$0xff]
      %v2335 = vld [vmem:[%s2330 + $0x20] sm:$0xff]
      %v2336 = vld [vmem:[%s2330 + $0x28] sm:$0xff]
      %v2337 = vld [vmem:[%s2330 + $0x30] sm:$0xff]
      %v2338 = vld [vmem:[%s2330 + $0x38] sm:$0xff]
      %v2339 = vld [vmem:[%s2330 + $0x40] sm:$0xff]
      %v2340 = vld [vmem:[%s2330 + $0x48] sm:$0xff]
      %v2341 = vld [vmem:[%s2330 + $0x50] sm:$0xff]
      %v2342 = vld [vmem:[%s2330 + $0x58] sm:$0xff]
      %v2343 = vld [vmem:[%s2330 + $0x60] sm:$0xff]
      %v2344 = vld [vmem:[%s2330 + $0x68] sm:$0xff]
      %v2345 = vld [vmem:[%s2330 + $0x70] sm:$0xff]
      %v2346 = vld [vmem:[%s2330 + $0x78] sm:$0xff]
      %2347 = vmatprep.subr.mxu0 0.0
      %2348 = vmatpush1.msra.mxu0 %v2346
      %2349 = vmatprep.subr.mxu0 0.0
      %2350 = vmatpush1.msra.mxu0 %v2345
      %2351 = vmatprep.subr.mxu0 0.0
      %2352 = vmatpush1.msra.mxu0 %v2344
      %2353 = vmatprep.subr.mxu0 0.0
      %2354 = vmatpush1.msra.mxu0 %v2343
      %2355 = vmatprep.subr.mxu0 0.0
      %2356 = vmatpush1.msra.mxu0 %v2342
      %2357 = vmatprep.subr.mxu0 0.0
      %2358 = vmatpush1.msra.mxu0 %v2341
      %2359 = vmatprep.subr.mxu0 0.0
      %2360 = vmatpush1.msra.mxu0 %v2340
      %2361 = vmatprep.subr.mxu0 0.0
      %2362 = vmatpush1.msra.mxu0 %v2339
      %2363 = vmatprep.subr.mxu0 0.0
      %2364 = vmatpush1.msra.mxu0 %v2338
      %2365 = vmatprep.subr.mxu0 0.0
      %2366 = vmatpush1.msra.mxu0 %v2337
      %2367 = vmatprep.subr.mxu0 0.0
      %2368 = vmatpush1.msra.mxu0 %v2336
      %2369 = vmatprep.subr.mxu0 0.0
      %2370 = vmatpush1.msra.mxu0 %v2335
      %2371 = vmatprep.subr.mxu0 0.0
      %2372 = vmatpush1.msra.mxu0 %v2334
      %2373 = vmatprep.subr.mxu0 0.0
      %2374 = vmatpush1.msra.mxu0 %v2333
      %2375 = vmatprep.subr.mxu0 0.0
      %2376 = vmatpush1.msra.mxu0 %v2332
      %2377 = vmatprep.subr.mxu0 0.0
      %2378 = vmatpush1.msra.mxu0 %v2331
      %2379 = vmatprep.subr.mxu0 0.0
      %2380 = vmatpush2.msra.mxu0 0.0
      %2381 = vmatprep.subr.mxu0 0.0
      %2382 = vmatpush2.msra.mxu0 0.0
      %2383 = vmatprep.subr.mxu0 0.0
      %2384 = vmatpush2.msra.mxu0 0.0
      %2385 = vmatprep.subr.mxu0 0.0
      %2386 = vmatpush2.msra.mxu0 0.0
      %2387 = vmatprep.subr.mxu0 0.0
      %2388 = vmatpush2.msra.mxu0 0.0
      %2389 = vmatprep.subr.mxu0 0.0
      %2390 = vmatpush2.msra.mxu0 0.0
      %2391 = vmatprep.subr.mxu0 0.0
      %2392 = vmatpush2.msra.mxu0 0.0
      %2393 = vmatprep.subr.mxu0 0.0
      %2394 = vmatpush2.msra.mxu0 0.0
      %2395 = vmatprep.subr.mxu0 0.0
      %2396 = vmatpush2.msra.mxu0 0.0
      %2397 = vmatprep.subr.mxu0 0.0
      %2398 = vmatpush2.msra.mxu0 0.0
      %2399 = vmatprep.subr.mxu0 0.0
      %2400 = vmatpush2.msra.mxu0 0.0
      %2401 = vmatprep.subr.mxu0 0.0
      %2402 = vmatpush2.msra.mxu0 0.0
      %2403 = vmatprep.subr.mxu0 0.0
      %2404 = vmatpush2.msra.mxu0 0.0
      %2405 = vmatprep.subr.mxu0 0.0
      %2406 = vmatpush2.msra.mxu0 0.0
      %2407 = vmatprep.subr.mxu0 0.0
      %2408 = vmatpush2.msra.mxu0 0.0
      %2409 = vmatprep.subr.mxu0 0.0
      %2410 = vmatpush2.msra.mxu0 0.0
      %2411 = vmatprep.mubr.f32.mxu0 0.0
      %2412 = vmatmul.mubr.f32.gmra.mxu0 %v2298
      %v2413 = vpop.f32.mrf.mxu0
      %v2414 = vadd.f32 0.0, %v2413
      %v2415 = vpop.f32.mrf.mxu0
      %2416 = vmatprep.mubr.f32.mxu0 0.0
      %2417 = vmatmul.mubr.f32.gmra.mxu0 %v2299
      %v2418 = vpop.f32.mrf.mxu0
      %v2419 = vadd.f32 0.0, %v2418
      %v2420 = vpop.f32.mrf.mxu0
      %2421 = vmatprep.mubr.f32.mxu0 0.0
      %2422 = vmatmul.mubr.f32.gmra.mxu0 %v2300
      %v2423 = vpop.f32.mrf.mxu0
      %v2424 = vadd.f32 0.0, %v2423
      %v2425 = vpop.f32.mrf.mxu0
      %2426 = vmatprep.mubr.f32.mxu0 0.0
      %2427 = vmatmul.mubr.f32.gmra.mxu0 %v2301
      %v2428 = vpop.f32.mrf.mxu0
      %v2429 = vadd.f32 0.0, %v2428
      %v2430 = vpop.f32.mrf.mxu0
      %2431 = vmatprep.mubr.f32.mxu0 0.0
      %2432 = vmatmul.mubr.f32.gmra.mxu0 %v2302
      %v2433 = vpop.f32.mrf.mxu0
      %v2434 = vadd.f32 0.0, %v2433
      %v2435 = vpop.f32.mrf.mxu0
      %2436 = vmatprep.mubr.f32.mxu0 0.0
      %2437 = vmatmul.mubr.f32.gmra.mxu0 %v2303
      %v2438 = vpop.f32.mrf.mxu0
      %v2439 = vadd.f32 0.0, %v2438
      %v2440 = vpop.f32.mrf.mxu0
      %2441 = vmatprep.mubr.f32.mxu0 0.0
      %2442 = vmatmul.mubr.f32.gmra.mxu0 %v2304
      %v2443 = vpop.f32.mrf.mxu0
      %v2444 = vadd.f32 0.0, %v2443
      %v2445 = vpop.f32.mrf.mxu0
      %2446 = vmatprep.mubr.f32.mxu0 0.0
      %2447 = vmatmul.mubr.f32.gmra.mxu0 %v2305
      %v2448 = vpop.f32.mrf.mxu0
      %v2449 = vadd.f32 0.0, %v2448
      %v2450 = vpop.f32.mrf.mxu0
      %2451 = vmatprep.mubr.f32.mxu0 0.0
      %2452 = vmatmul.mubr.f32.gmra.mxu0 %v2306
      %v2453 = vpop.f32.mrf.mxu0
      %v2454 = vadd.f32 0.0, %v2453
      %v2455 = vpop.f32.mrf.mxu0
      %2456 = vmatprep.mubr.f32.mxu0 0.0
      %2457 = vmatmul.mubr.f32.gmra.mxu0 %v2307
      %v2458 = vpop.f32.mrf.mxu0
      %v2459 = vadd.f32 0.0, %v2458
      %v2460 = vpop.f32.mrf.mxu0
      %2461 = vmatprep.mubr.f32.mxu0 0.0
      %2462 = vmatmul.mubr.f32.gmra.mxu0 %v2308
      %v2463 = vpop.f32.mrf.mxu0
      %v2464 = vadd.f32 0.0, %v2463
      %v2465 = vpop.f32.mrf.mxu0
      %2466 = vmatprep.mubr.f32.mxu0 0.0
      %2467 = vmatmul.mubr.f32.gmra.mxu0 %v2309
      %v2468 = vpop.f32.mrf.mxu0
      %v2469 = vadd.f32 0.0, %v2468
      %v2470 = vpop.f32.mrf.mxu0
      %2471 = vmatprep.mubr.f32.mxu0 0.0
      %2472 = vmatmul.mubr.f32.gmra.mxu0 %v2310
      %v2473 = vpop.f32.mrf.mxu0
      %v2474 = vadd.f32 0.0, %v2473
      %v2475 = vpop.f32.mrf.mxu0
      %2476 = vmatprep.mubr.f32.mxu0 0.0
      %2477 = vmatmul.mubr.f32.gmra.mxu0 %v2311
      %v2478 = vpop.f32.mrf.mxu0
      %v2479 = vadd.f32 0.0, %v2478
      %v2480 = vpop.f32.mrf.mxu0
      %2481 = vmatprep.mubr.f32.mxu0 0.0
      %2482 = vmatmul.mubr.f32.gmra.mxu0 %v2312
      %v2483 = vpop.f32.mrf.mxu0
      %v2484 = vadd.f32 0.0, %v2483
      %v2485 = vpop.f32.mrf.mxu0
      %2486 = vmatprep.mubr.f32.mxu0 0.0
      %2487 = vmatmul.mubr.f32.gmra.mxu0 %v2313
      %v2488 = vpop.f32.mrf.mxu0
      %v2489 = vadd.f32 0.0, %v2488
      %v2490 = vpop.f32.mrf.mxu0
      %2491 = vmatprep.mubr.f32.mxu0 0.0
      %2492 = vmatmul.mubr.f32.gmra.mxu0 %v2314
      %v2493 = vpop.f32.mrf.mxu0
      %v2494 = vadd.f32 0.0, %v2493
      %v2495 = vpop.f32.mrf.mxu0
      %2496 = vmatprep.mubr.f32.mxu0 0.0
      %2497 = vmatmul.mubr.f32.gmra.mxu0 %v2315
      %v2498 = vpop.f32.mrf.mxu0
      %v2499 = vadd.f32 0.0, %v2498
      %v2500 = vpop.f32.mrf.mxu0
      %2501 = vmatprep.mubr.f32.mxu0 0.0
      %2502 = vmatmul.mubr.f32.gmra.mxu0 %v2316
      %v2503 = vpop.f32.mrf.mxu0
      %v2504 = vadd.f32 0.0, %v2503
      %v2505 = vpop.f32.mrf.mxu0
      %2506 = vmatprep.mubr.f32.mxu0 0.0
      %2507 = vmatmul.mubr.f32.gmra.mxu0 %v2317
      %v2508 = vpop.f32.mrf.mxu0
      %v2509 = vadd.f32 0.0, %v2508
      %v2510 = vpop.f32.mrf.mxu0
      %2511 = vmatprep.mubr.f32.mxu0 0.0
      %2512 = vmatmul.mubr.f32.gmra.mxu0 %v2318
      %v2513 = vpop.f32.mrf.mxu0
      %v2514 = vadd.f32 0.0, %v2513
      %v2515 = vpop.f32.mrf.mxu0
      %2516 = vmatprep.mubr.f32.mxu0 0.0
      %2517 = vmatmul.mubr.f32.gmra.mxu0 %v2319
      %v2518 = vpop.f32.mrf.mxu0
      %v2519 = vadd.f32 0.0, %v2518
      %v2520 = vpop.f32.mrf.mxu0
      %2521 = vmatprep.mubr.f32.mxu0 0.0
      %2522 = vmatmul.mubr.f32.gmra.mxu0 %v2320
      %v2523 = vpop.f32.mrf.mxu0
      %v2524 = vadd.f32 0.0, %v2523
      %v2525 = vpop.f32.mrf.mxu0
      %2526 = vmatprep.mubr.f32.mxu0 0.0
      %2527 = vmatmul.mubr.f32.gmra.mxu0 %v2321
      %v2528 = vpop.f32.mrf.mxu0
      %v2529 = vadd.f32 0.0, %v2528
      %v2530 = vpop.f32.mrf.mxu0
      %2531 = vmatprep.mubr.f32.mxu0 0.0
      %2532 = vmatmul.mubr.f32.gmra.mxu0 %v2322
      %v2533 = vpop.f32.mrf.mxu0
      %v2534 = vadd.f32 0.0, %v2533
      %v2535 = vpop.f32.mrf.mxu0
      %2536 = vmatprep.mubr.f32.mxu0 0.0
      %2537 = vmatmul.mubr.f32.gmra.mxu0 %v2323
      %v2538 = vpop.f32.mrf.mxu0
      %v2539 = vadd.f32 0.0, %v2538
      %v2540 = vpop.f32.mrf.mxu0
      %2541 = vmatprep.mubr.f32.mxu0 0.0
      %2542 = vmatmul.mubr.f32.gmra.mxu0 %v2324
      %v2543 = vpop.f32.mrf.mxu0
      %v2544 = vadd.f32 0.0, %v2543
      %v2545 = vpop.f32.mrf.mxu0
      %2546 = vmatprep.mubr.f32.mxu0 0.0
      %2547 = vmatmul.mubr.f32.gmra.mxu0 %v2325
      %v2548 = vpop.f32.mrf.mxu0
      %v2549 = vadd.f32 0.0, %v2548
      %v2550 = vpop.f32.mrf.mxu0
      %2551 = vmatprep.mubr.f32.mxu0 0.0
      %2552 = vmatmul.mubr.f32.gmra.mxu0 %v2326
      %v2553 = vpop.f32.mrf.mxu0
      %v2554 = vadd.f32 0.0, %v2553
      %v2555 = vpop.f32.mrf.mxu0
      %2556 = vmatprep.mubr.f32.mxu0 0.0
      %2557 = vmatmul.mubr.f32.gmra.mxu0 %v2327
      %v2558 = vpop.f32.mrf.mxu0
      %v2559 = vadd.f32 0.0, %v2558
      %v2560 = vpop.f32.mrf.mxu0
      %2561 = vmatprep.mubr.f32.mxu0 0.0
      %2562 = vmatmul.mubr.f32.gmra.mxu0 %v2328
      %v2563 = vpop.f32.mrf.mxu0
      %v2564 = vadd.f32 0.0, %v2563
      %v2565 = vpop.f32.mrf.mxu0
      %2566 = vmatprep.mubr.f32.mxu0 0.0
      %2567 = vmatmul.mubr.f32.gmra.mxu0 %v2329
      %v2568 = vpop.f32.mrf.mxu0
      %v2569 = vadd.f32 0.0, %v2568
      %v2570 = vpop.f32.mrf.mxu0
      %2571 = vdwg.mxu0
      %v2572 = vadd.f32 %v2266, %v2414
      %v2573 = vadd.f32 %v2267, %v2419
      %v2574 = vadd.f32 %v2268, %v2424
      %v2575 = vadd.f32 %v2269, %v2429
      %v2576 = vadd.f32 %v2270, %v2434
      %v2577 = vadd.f32 %v2271, %v2439
      %v2578 = vadd.f32 %v2272, %v2444
      %v2579 = vadd.f32 %v2273, %v2449
      %v2580 = vadd.f32 %v2274, %v2454
      %v2581 = vadd.f32 %v2275, %v2459
      %v2582 = vadd.f32 %v2276, %v2464
      %v2583 = vadd.f32 %v2277, %v2469
      %v2584 = vadd.f32 %v2278, %v2474
      %v2585 = vadd.f32 %v2279, %v2479
      %v2586 = vadd.f32 %v2280, %v2484
      %v2587 = vadd.f32 %v2281, %v2489
      %v2588 = vadd.f32 %v2282, %v2494
      %v2589 = vadd.f32 %v2283, %v2499
      %v2590 = vadd.f32 %v2284, %v2504
      %v2591 = vadd.f32 %v2285, %v2509
      %v2592 = vadd.f32 %v2286, %v2514
      %v2593 = vadd.f32 %v2287, %v2519
      %v2594 = vadd.f32 %v2288, %v2524
      %v2595 = vadd.f32 %v2289, %v2529
      %v2596 = vadd.f32 %v2290, %v2534
      %v2597 = vadd.f32 %v2291, %v2539
      %v2598 = vadd.f32 %v2292, %v2544
      %v2599 = vadd.f32 %v2293, %v2549
      %v2600 = vadd.f32 %v2294, %v2554
      %v2601 = vadd.f32 %v2295, %v2559
      %v2602 = vadd.f32 %v2296, %v2564
      %v2603 = vadd.f32 %v2297, %v2569
      %v2604 = vld [vmem:[%s1991 + $0x2] sm:$0xff]
      %v2605 = vld [vmem:[%s1991 + $0xa] sm:$0xff]
      %v2606 = vld [vmem:[%s1991 + $0x1a] sm:$0xff]
      %v2607 = vld [vmem:[%s1991 + $0x22] sm:$0xff]
      %v2608 = vld [vmem:[%s1991 + $0x32] sm:$0xff]
      %v2609 = vld [vmem:[%s1991 + $0x3a] sm:$0xff]
      %v2610 = vld [vmem:[%s1991 + $0x4a] sm:$0xff]
      %v2611 = vld [vmem:[%s1991 + $0x52] sm:$0xff]
      %v2612 = vld [vmem:[%s1991 + $0x62] sm:$0xff]
      %v2613 = vld [vmem:[%s1991 + $0x6a] sm:$0xff]
      %v2614 = vld [vmem:[%s1991 + $0x7a] sm:$0xff]
      %v2615 = vld [vmem:[%s1991 + $0x82] sm:$0xff]
      %v2616 = vld [vmem:[%s1991 + $0x92] sm:$0xff]
      %v2617 = vld [vmem:[%s1991 + $0x9a] sm:$0xff]
      %v2618 = vld [vmem:[%s1991 + $0xaa] sm:$0xff]
      %v2619 = vld [vmem:[%s1991 + $0xb2] sm:$0xff]
      %v2620 = vld [vmem:[%s1991 + $0xc2] sm:$0xff]
      %v2621 = vld [vmem:[%s1991 + $0xca] sm:$0xff]
      %v2622 = vld [vmem:[%s1991 + $0xda] sm:$0xff]
      %v2623 = vld [vmem:[%s1991 + $0xe2] sm:$0xff]
      %v2624 = vld [vmem:[%s1991 + $0xf2] sm:$0xff]
      %v2625 = vld [vmem:[%s1991 + $0xfa] sm:$0xff]
      %v2626 = vld [vmem:[%s1991 + $0x10a] sm:$0xff]
      %v2627 = vld [vmem:[%s1991 + $0x112] sm:$0xff]
      %v2628 = vld [vmem:[%s1991 + $0x122] sm:$0xff]
      %v2629 = vld [vmem:[%s1991 + $0x12a] sm:$0xff]
      %v2630 = vld [vmem:[%s1991 + $0x13a] sm:$0xff]
      %v2631 = vld [vmem:[%s1991 + $0x142] sm:$0xff]
      %v2632 = vld [vmem:[%s1991 + $0x152] sm:$0xff]
      %v2633 = vld [vmem:[%s1991 + $0x15a] sm:$0xff]
      %v2634 = vld [vmem:[%s1991 + $0x16a] sm:$0xff]
      %v2635 = vld [vmem:[%s1991 + $0x172] sm:$0xff]
      %s2636 = scalar_lea.vmem %s1, 1024
      %v2637 = vld [vmem:[%s2636] sm:$0xff]
      %v2638 = vld [vmem:[%s2636 + $0x8] sm:$0xff]
      %v2639 = vld [vmem:[%s2636 + $0x10] sm:$0xff]
      %v2640 = vld [vmem:[%s2636 + $0x18] sm:$0xff]
      %v2641 = vld [vmem:[%s2636 + $0x20] sm:$0xff]
      %v2642 = vld [vmem:[%s2636 + $0x28] sm:$0xff]
      %v2643 = vld [vmem:[%s2636 + $0x30] sm:$0xff]
      %v2644 = vld [vmem:[%s2636 + $0x38] sm:$0xff]
      %v2645 = vld [vmem:[%s2636 + $0x40] sm:$0xff]
      %v2646 = vld [vmem:[%s2636 + $0x48] sm:$0xff]
      %v2647 = vld [vmem:[%s2636 + $0x50] sm:$0xff]
      %v2648 = vld [vmem:[%s2636 + $0x58] sm:$0xff]
      %v2649 = vld [vmem:[%s2636 + $0x60] sm:$0xff]
      %v2650 = vld [vmem:[%s2636 + $0x68] sm:$0xff]
      %v2651 = vld [vmem:[%s2636 + $0x70] sm:$0xff]
      %v2652 = vld [vmem:[%s2636 + $0x78] sm:$0xff]
      %2653 = vmatprep.subr.mxu0 0.0
      %2654 = vmatpush1.msra.mxu0 %v2652
      %2655 = vmatprep.subr.mxu0 0.0
      %2656 = vmatpush1.msra.mxu0 %v2651
      %2657 = vmatprep.subr.mxu0 0.0
      %2658 = vmatpush1.msra.mxu0 %v2650
      %2659 = vmatprep.subr.mxu0 0.0
      %2660 = vmatpush1.msra.mxu0 %v2649
      %2661 = vmatprep.subr.mxu0 0.0
      %2662 = vmatpush1.msra.mxu0 %v2648
      %2663 = vmatprep.subr.mxu0 0.0
      %2664 = vmatpush1.msra.mxu0 %v2647
      %2665 = vmatprep.subr.mxu0 0.0
      %2666 = vmatpush1.msra.mxu0 %v2646
      %2667 = vmatprep.subr.mxu0 0.0
      %2668 = vmatpush1.msra.mxu0 %v2645
      %2669 = vmatprep.subr.mxu0 0.0
      %2670 = vmatpush1.msra.mxu0 %v2644
      %2671 = vmatprep.subr.mxu0 0.0
      %2672 = vmatpush1.msra.mxu0 %v2643
      %2673 = vmatprep.subr.mxu0 0.0
      %2674 = vmatpush1.msra.mxu0 %v2642
      %2675 = vmatprep.subr.mxu0 0.0
      %2676 = vmatpush1.msra.mxu0 %v2641
      %2677 = vmatprep.subr.mxu0 0.0
      %2678 = vmatpush1.msra.mxu0 %v2640
      %2679 = vmatprep.subr.mxu0 0.0
      %2680 = vmatpush1.msra.mxu0 %v2639
      %2681 = vmatprep.subr.mxu0 0.0
      %2682 = vmatpush1.msra.mxu0 %v2638
      %2683 = vmatprep.subr.mxu0 0.0
      %2684 = vmatpush1.msra.mxu0 %v2637
      %2685 = vmatprep.subr.mxu0 0.0
      %2686 = vmatpush2.msra.mxu0 0.0
      %2687 = vmatprep.subr.mxu0 0.0
      %2688 = vmatpush2.msra.mxu0 0.0
      %2689 = vmatprep.subr.mxu0 0.0
      %2690 = vmatpush2.msra.mxu0 0.0
      %2691 = vmatprep.subr.mxu0 0.0
      %2692 = vmatpush2.msra.mxu0 0.0
      %2693 = vmatprep.subr.mxu0 0.0
      %2694 = vmatpush2.msra.mxu0 0.0
      %2695 = vmatprep.subr.mxu0 0.0
      %2696 = vmatpush2.msra.mxu0 0.0
      %2697 = vmatprep.subr.mxu0 0.0
      %2698 = vmatpush2.msra.mxu0 0.0
      %2699 = vmatprep.subr.mxu0 0.0
      %2700 = vmatpush2.msra.mxu0 0.0
      %2701 = vmatprep.subr.mxu0 0.0
      %2702 = vmatpush2.msra.mxu0 0.0
      %2703 = vmatprep.subr.mxu0 0.0
      %2704 = vmatpush2.msra.mxu0 0.0
      %2705 = vmatprep.subr.mxu0 0.0
      %2706 = vmatpush2.msra.mxu0 0.0
      %2707 = vmatprep.subr.mxu0 0.0
      %2708 = vmatpush2.msra.mxu0 0.0
      %2709 = vmatprep.subr.mxu0 0.0
      %2710 = vmatpush2.msra.mxu0 0.0
      %2711 = vmatprep.subr.mxu0 0.0
      %2712 = vmatpush2.msra.mxu0 0.0
      %2713 = vmatprep.subr.mxu0 0.0
      %2714 = vmatpush2.msra.mxu0 0.0
      %2715 = vmatprep.subr.mxu0 0.0
      %2716 = vmatpush2.msra.mxu0 0.0
      %2717 = vmatprep.mubr.f32.mxu0 0.0
      %2718 = vmatmul.mubr.f32.gmra.mxu0 %v2604
      %v2719 = vpop.f32.mrf.mxu0
      %v2720 = vadd.f32 0.0, %v2719
      %v2721 = vpop.f32.mrf.mxu0
      %2722 = vmatprep.mubr.f32.mxu0 0.0
      %2723 = vmatmul.mubr.f32.gmra.mxu0 %v2605
      %v2724 = vpop.f32.mrf.mxu0
      %v2725 = vadd.f32 0.0, %v2724
      %v2726 = vpop.f32.mrf.mxu0
      %2727 = vmatprep.mubr.f32.mxu0 0.0
      %2728 = vmatmul.mubr.f32.gmra.mxu0 %v2606
      %v2729 = vpop.f32.mrf.mxu0
      %v2730 = vadd.f32 0.0, %v2729
      %v2731 = vpop.f32.mrf.mxu0
      %2732 = vmatprep.mubr.f32.mxu0 0.0
      %2733 = vmatmul.mubr.f32.gmra.mxu0 %v2607
      %v2734 = vpop.f32.mrf.mxu0
      %v2735 = vadd.f32 0.0, %v2734
      %v2736 = vpop.f32.mrf.mxu0
      %2737 = vmatprep.mubr.f32.mxu0 0.0
      %2738 = vmatmul.mubr.f32.gmra.mxu0 %v2608
      %v2739 = vpop.f32.mrf.mxu0
      %v2740 = vadd.f32 0.0, %v2739
      %v2741 = vpop.f32.mrf.mxu0
      %2742 = vmatprep.mubr.f32.mxu0 0.0
      %2743 = vmatmul.mubr.f32.gmra.mxu0 %v2609
      %v2744 = vpop.f32.mrf.mxu0
      %v2745 = vadd.f32 0.0, %v2744
      %v2746 = vpop.f32.mrf.mxu0
      %2747 = vmatprep.mubr.f32.mxu0 0.0
      %2748 = vmatmul.mubr.f32.gmra.mxu0 %v2610
      %v2749 = vpop.f32.mrf.mxu0
      %v2750 = vadd.f32 0.0, %v2749
      %v2751 = vpop.f32.mrf.mxu0
      %2752 = vmatprep.mubr.f32.mxu0 0.0
      %2753 = vmatmul.mubr.f32.gmra.mxu0 %v2611
      %v2754 = vpop.f32.mrf.mxu0
      %v2755 = vadd.f32 0.0, %v2754
      %v2756 = vpop.f32.mrf.mxu0
      %2757 = vmatprep.mubr.f32.mxu0 0.0
      %2758 = vmatmul.mubr.f32.gmra.mxu0 %v2612
      %v2759 = vpop.f32.mrf.mxu0
      %v2760 = vadd.f32 0.0, %v2759
      %v2761 = vpop.f32.mrf.mxu0
      %2762 = vmatprep.mubr.f32.mxu0 0.0
      %2763 = vmatmul.mubr.f32.gmra.mxu0 %v2613
      %v2764 = vpop.f32.mrf.mxu0
      %v2765 = vadd.f32 0.0, %v2764
      %v2766 = vpop.f32.mrf.mxu0
      %2767 = vmatprep.mubr.f32.mxu0 0.0
      %2768 = vmatmul.mubr.f32.gmra.mxu0 %v2614
      %v2769 = vpop.f32.mrf.mxu0
      %v2770 = vadd.f32 0.0, %v2769
      %v2771 = vpop.f32.mrf.mxu0
      %2772 = vmatprep.mubr.f32.mxu0 0.0
      %2773 = vmatmul.mubr.f32.gmra.mxu0 %v2615
      %v2774 = vpop.f32.mrf.mxu0
      %v2775 = vadd.f32 0.0, %v2774
      %v2776 = vpop.f32.mrf.mxu0
      %2777 = vmatprep.mubr.f32.mxu0 0.0
      %2778 = vmatmul.mubr.f32.gmra.mxu0 %v2616
      %v2779 = vpop.f32.mrf.mxu0
      %v2780 = vadd.f32 0.0, %v2779
      %v2781 = vpop.f32.mrf.mxu0
      %2782 = vmatprep.mubr.f32.mxu0 0.0
      %2783 = vmatmul.mubr.f32.gmra.mxu0 %v2617
      %v2784 = vpop.f32.mrf.mxu0
      %v2785 = vadd.f32 0.0, %v2784
      %v2786 = vpop.f32.mrf.mxu0
      %2787 = vmatprep.mubr.f32.mxu0 0.0
      %2788 = vmatmul.mubr.f32.gmra.mxu0 %v2618
      %v2789 = vpop.f32.mrf.mxu0
      %v2790 = vadd.f32 0.0, %v2789
      %v2791 = vpop.f32.mrf.mxu0
      %2792 = vmatprep.mubr.f32.mxu0 0.0
      %2793 = vmatmul.mubr.f32.gmra.mxu0 %v2619
      %v2794 = vpop.f32.mrf.mxu0
      %v2795 = vadd.f32 0.0, %v2794
      %v2796 = vpop.f32.mrf.mxu0
      %2797 = vmatprep.mubr.f32.mxu0 0.0
      %2798 = vmatmul.mubr.f32.gmra.mxu0 %v2620
      %v2799 = vpop.f32.mrf.mxu0
      %v2800 = vadd.f32 0.0, %v2799
      %v2801 = vpop.f32.mrf.mxu0
      %2802 = vmatprep.mubr.f32.mxu0 0.0
      %2803 = vmatmul.mubr.f32.gmra.mxu0 %v2621
      %v2804 = vpop.f32.mrf.mxu0
      %v2805 = vadd.f32 0.0, %v2804
      %v2806 = vpop.f32.mrf.mxu0
      %2807 = vmatprep.mubr.f32.mxu0 0.0
      %2808 = vmatmul.mubr.f32.gmra.mxu0 %v2622
      %v2809 = vpop.f32.mrf.mxu0
      %v2810 = vadd.f32 0.0, %v2809
      %v2811 = vpop.f32.mrf.mxu0
      %2812 = vmatprep.mubr.f32.mxu0 0.0
      %2813 = vmatmul.mubr.f32.gmra.mxu0 %v2623
      %v2814 = vpop.f32.mrf.mxu0
      %v2815 = vadd.f32 0.0, %v2814
      %v2816 = vpop.f32.mrf.mxu0
      %2817 = vmatprep.mubr.f32.mxu0 0.0
      %2818 = vmatmul.mubr.f32.gmra.mxu0 %v2624
      %v2819 = vpop.f32.mrf.mxu0
      %v2820 = vadd.f32 0.0, %v2819
      %v2821 = vpop.f32.mrf.mxu0
      %2822 = vmatprep.mubr.f32.mxu0 0.0
      %2823 = vmatmul.mubr.f32.gmra.mxu0 %v2625
      %v2824 = vpop.f32.mrf.mxu0
      %v2825 = vadd.f32 0.0, %v2824
      %v2826 = vpop.f32.mrf.mxu0
      %2827 = vmatprep.mubr.f32.mxu0 0.0
      %2828 = vmatmul.mubr.f32.gmra.mxu0 %v2626
      %v2829 = vpop.f32.mrf.mxu0
      %v2830 = vadd.f32 0.0, %v2829
      %v2831 = vpop.f32.mrf.mxu0
      %2832 = vmatprep.mubr.f32.mxu0 0.0
      %2833 = vmatmul.mubr.f32.gmra.mxu0 %v2627
      %v2834 = vpop.f32.mrf.mxu0
      %v2835 = vadd.f32 0.0, %v2834
      %v2836 = vpop.f32.mrf.mxu0
      %2837 = vmatprep.mubr.f32.mxu0 0.0
      %2838 = vmatmul.mubr.f32.gmra.mxu0 %v2628
      %v2839 = vpop.f32.mrf.mxu0
      %v2840 = vadd.f32 0.0, %v2839
      %v2841 = vpop.f32.mrf.mxu0
      %2842 = vmatprep.mubr.f32.mxu0 0.0
      %2843 = vmatmul.mubr.f32.gmra.mxu0 %v2629
      %v2844 = vpop.f32.mrf.mxu0
      %v2845 = vadd.f32 0.0, %v2844
      %v2846 = vpop.f32.mrf.mxu0
      %2847 = vmatprep.mubr.f32.mxu0 0.0
      %2848 = vmatmul.mubr.f32.gmra.mxu0 %v2630
      %v2849 = vpop.f32.mrf.mxu0
      %v2850 = vadd.f32 0.0, %v2849
      %v2851 = vpop.f32.mrf.mxu0
      %2852 = vmatprep.mubr.f32.mxu0 0.0
      %2853 = vmatmul.mubr.f32.gmra.mxu0 %v2631
      %v2854 = vpop.f32.mrf.mxu0
      %v2855 = vadd.f32 0.0, %v2854
      %v2856 = vpop.f32.mrf.mxu0
      %2857 = vmatprep.mubr.f32.mxu0 0.0
      %2858 = vmatmul.mubr.f32.gmra.mxu0 %v2632
      %v2859 = vpop.f32.mrf.mxu0
      %v2860 = vadd.f32 0.0, %v2859
      %v2861 = vpop.f32.mrf.mxu0
      %2862 = vmatprep.mubr.f32.mxu0 0.0
      %2863 = vmatmul.mubr.f32.gmra.mxu0 %v2633
      %v2864 = vpop.f32.mrf.mxu0
      %v2865 = vadd.f32 0.0, %v2864
      %v2866 = vpop.f32.mrf.mxu0
      %2867 = vmatprep.mubr.f32.mxu0 0.0
      %2868 = vmatmul.mubr.f32.gmra.mxu0 %v2634
      %v2869 = vpop.f32.mrf.mxu0
      %v2870 = vadd.f32 0.0, %v2869
      %v2871 = vpop.f32.mrf.mxu0
      %2872 = vmatprep.mubr.f32.mxu0 0.0
      %2873 = vmatmul.mubr.f32.gmra.mxu0 %v2635
      %v2874 = vpop.f32.mrf.mxu0
      %v2875 = vadd.f32 0.0, %v2874
      %v2876 = vpop.f32.mrf.mxu0
      %2877 = vdwg.mxu0
      %v2878 = vadd.f32 %v2572, %v2720
      %v2879 = vadd.f32 %v2573, %v2725
      %v2880 = vadd.f32 %v2574, %v2730
      %v2881 = vadd.f32 %v2575, %v2735
      %v2882 = vadd.f32 %v2576, %v2740
      %v2883 = vadd.f32 %v2577, %v2745
      %v2884 = vadd.f32 %v2578, %v2750
      %v2885 = vadd.f32 %v2579, %v2755
      %v2886 = vadd.f32 %v2580, %v2760
      %v2887 = vadd.f32 %v2581, %v2765
      %v2888 = vadd.f32 %v2582, %v2770
      %v2889 = vadd.f32 %v2583, %v2775
      %v2890 = vadd.f32 %v2584, %v2780
      %v2891 = vadd.f32 %v2585, %v2785
      %v2892 = vadd.f32 %v2586, %v2790
      %v2893 = vadd.f32 %v2587, %v2795
      %v2894 = vadd.f32 %v2588, %v2800
      %v2895 = vadd.f32 %v2589, %v2805
      %v2896 = vadd.f32 %v2590, %v2810
      %v2897 = vadd.f32 %v2591, %v2815
      %v2898 = vadd.f32 %v2592, %v2820
      %v2899 = vadd.f32 %v2593, %v2825
      %v2900 = vadd.f32 %v2594, %v2830
      %v2901 = vadd.f32 %v2595, %v2835
      %v2902 = vadd.f32 %v2596, %v2840
      %v2903 = vadd.f32 %v2597, %v2845
      %v2904 = vadd.f32 %v2598, %v2850
      %v2905 = vadd.f32 %v2599, %v2855
      %v2906 = vadd.f32 %v2600, %v2860
      %v2907 = vadd.f32 %v2601, %v2865
      %v2908 = vadd.f32 %v2602, %v2870
      %v2909 = vadd.f32 %v2603, %v2875
      %2910 = vst [vmem:[%s210] sm:$0xff] %v2878
      %2911 = vst [vmem:[%s210 + $0x8] sm:$0xff] %v2879
      %2912 = vst [vmem:[%s210 + $0x10] sm:$0xff] %v2880
      %2913 = vst [vmem:[%s210 + $0x18] sm:$0xff] %v2881
      %2914 = vst [vmem:[%s210 + $0x20] sm:$0xff] %v2882
      %2915 = vst [vmem:[%s210 + $0x28] sm:$0xff] %v2883
      %2916 = vst [vmem:[%s210 + $0x30] sm:$0xff] %v2884
      %2917 = vst [vmem:[%s210 + $0x38] sm:$0xff] %v2885
      %2918 = vst [vmem:[%s210 + $0x40] sm:$0xff] %v2886
      %2919 = vst [vmem:[%s210 + $0x48] sm:$0xff] %v2887
      %2920 = vst [vmem:[%s210 + $0x50] sm:$0xff] %v2888
      %2921 = vst [vmem:[%s210 + $0x58] sm:$0xff] %v2889
      %2922 = vst [vmem:[%s210 + $0x60] sm:$0xff] %v2890
      %2923 = vst [vmem:[%s210 + $0x68] sm:$0xff] %v2891
      %2924 = vst [vmem:[%s210 + $0x70] sm:$0xff] %v2892
      %2925 = vst [vmem:[%s210 + $0x78] sm:$0xff] %v2893
      %2926 = vst [vmem:[%s210 + $0x80] sm:$0xff] %v2894
      %2927 = vst [vmem:[%s210 + $0x88] sm:$0xff] %v2895
      %2928 = vst [vmem:[%s210 + $0x90] sm:$0xff] %v2896
      %2929 = vst [vmem:[%s210 + $0x98] sm:$0xff] %v2897
      %2930 = vst [vmem:[%s210 + $0xa0] sm:$0xff] %v2898
      %2931 = vst [vmem:[%s210 + $0xa8] sm:$0xff] %v2899
      %2932 = vst [vmem:[%s210 + $0xb0] sm:$0xff] %v2900
      %2933 = vst [vmem:[%s210 + $0xb8] sm:$0xff] %v2901
      %2934 = vst [vmem:[%s210 + $0xc0] sm:$0xff] %v2902
      %2935 = vst [vmem:[%s210 + $0xc8] sm:$0xff] %v2903
      %2936 = vst [vmem:[%s210 + $0xd0] sm:$0xff] %v2904
      %2937 = vst [vmem:[%s210 + $0xd8] sm:$0xff] %v2905
      %2938 = vst [vmem:[%s210 + $0xe0] sm:$0xff] %v2906
      %2939 = vst [vmem:[%s210 + $0xe8] sm:$0xff] %v2907
      %2940 = vst [vmem:[%s210 + $0xf0] sm:$0xff] %v2908
      %2941 = vst [vmem:[%s210 + $0xf8] sm:$0xff] %v2909
      %v2942 = vadd.f32 %v2878, %v2879
      %v2943 = vadd.f32 %v2942, %v2880
      %v2944 = vadd.f32 %v2943, %v2881
      %v2945 = vadd.f32 %v2944, %v2882
      %v2946 = vadd.f32 %v2945, %v2883
      %v2947 = vadd.f32 %v2946, %v2884
      %v2948 = vadd.f32 %v2947, %v2885
      %v2949 = vadd.f32 %v2948, %v2886
      %v2950 = vadd.f32 %v2949, %v2887
      %v2951 = vadd.f32 %v2950, %v2888
      %v2952 = vadd.f32 %v2951, %v2889
      %v2953 = vadd.f32 %v2952, %v2890
      %v2954 = vadd.f32 %v2953, %v2891
      %v2955 = vadd.f32 %v2954, %v2892
      %v2956 = vadd.f32 %v2955, %v2893
      %v2957 = vadd.f32 %v2956, %v2894
      %v2958 = vadd.f32 %v2957, %v2895
      %v2959 = vadd.f32 %v2958, %v2896
      %v2960 = vadd.f32 %v2959, %v2897
      %v2961 = vadd.f32 %v2960, %v2898
      %v2962 = vadd.f32 %v2961, %v2899
      %v2963 = vadd.f32 %v2962, %v2900
      %v2964 = vadd.f32 %v2963, %v2901
      %v2965 = vadd.f32 %v2964, %v2902
      %v2966 = vadd.f32 %v2965, %v2903
      %v2967 = vadd.f32 %v2966, %v2904
      %v2968 = vadd.f32 %v2967, %v2905
      %v2969 = vadd.f32 %v2968, %v2906
      %v2970 = vadd.f32 %v2969, %v2907
      %v2971 = vadd.f32 %v2970, %v2908
      %v2972 = vadd.f32 %v2971, %v2909
      %v2973 = vrot.slane %v2972, 4
      %v2974 = vadd.f32 %v2972, %v2973
      %v2975 = vrot.slane %v2974, 2
      %v2976 = vadd.f32 %v2974, %v2975
      %v2977 = vrot.slane %v2976, 1
      %v2978 = vadd.f32 %v2976, %v2977
      %2979 = vst [vmem:[%s214] sm:$0xff] %v2978
      %v2980 = vmul.f32 %v2878, %v2878
      %v2981 = vmul.f32 %v2879, %v2879
      %v2982 = vmul.f32 %v2880, %v2880
      %v2983 = vmul.f32 %v2881, %v2881
      %v2984 = vmul.f32 %v2882, %v2882
      %v2985 = vmul.f32 %v2883, %v2883
      %v2986 = vmul.f32 %v2884, %v2884
      %v2987 = vmul.f32 %v2885, %v2885
      %v2988 = vmul.f32 %v2886, %v2886
      %v2989 = vmul.f32 %v2887, %v2887
      %v2990 = vmul.f32 %v2888, %v2888
      %v2991 = vmul.f32 %v2889, %v2889
      %v2992 = vmul.f32 %v2890, %v2890
      %v2993 = vmul.f32 %v2891, %v2891
      %v2994 = vmul.f32 %v2892, %v2892
      %v2995 = vmul.f32 %v2893, %v2893
      %v2996 = vmul.f32 %v2894, %v2894
      %v2997 = vmul.f32 %v2895, %v2895
      %v2998 = vmul.f32 %v2896, %v2896
      %v2999 = vmul.f32 %v2897, %v2897
      %v3000 = vmul.f32 %v2898, %v2898
      %v3001 = vmul.f32 %v2899, %v2899
      %v3002 = vmul.f32 %v2900, %v2900
      %v3003 = vmul.f32 %v2901, %v2901
      %v3004 = vmul.f32 %v2902, %v2902
      %v3005 = vmul.f32 %v2903, %v2903
      %v3006 = vmul.f32 %v2904, %v2904
      %v3007 = vmul.f32 %v2905, %v2905
      %v3008 = vmul.f32 %v2906, %v2906
      %v3009 = vmul.f32 %v2907, %v2907
      %v3010 = vmul.f32 %v2908, %v2908
      %v3011 = vmul.f32 %v2909, %v2909
      %v3012 = vadd.f32 %v2980, %v2981
      %v3013 = vadd.f32 %v3012, %v2982
      %v3014 = vadd.f32 %v3013, %v2983
      %v3015 = vadd.f32 %v3014, %v2984
      %v3016 = vadd.f32 %v3015, %v2985
      %v3017 = vadd.f32 %v3016, %v2986
      %v3018 = vadd.f32 %v3017, %v2987
      %v3019 = vadd.f32 %v3018, %v2988
      %v3020 = vadd.f32 %v3019, %v2989
      %v3021 = vadd.f32 %v3020, %v2990
      %v3022 = vadd.f32 %v3021, %v2991
      %v3023 = vadd.f32 %v3022, %v2992
      %v3024 = vadd.f32 %v3023, %v2993
      %v3025 = vadd.f32 %v3024, %v2994
      %v3026 = vadd.f32 %v3025, %v2995
      %v3027 = vadd.f32 %v3026, %v2996
      %v3028 = vadd.f32 %v3027, %v2997
      %v3029 = vadd.f32 %v3028, %v2998
      %v3030 = vadd.f32 %v3029, %v2999
      %v3031 = vadd.f32 %v3030, %v3000
      %v3032 = vadd.f32 %v3031, %v3001
      %v3033 = vadd.f32 %v3032, %v3002
      %v3034 = vadd.f32 %v3033, %v3003
      %v3035 = vadd.f32 %v3034, %v3004
      %v3036 = vadd.f32 %v3035, %v3005
      %v3037 = vadd.f32 %v3036, %v3006
      %v3038 = vadd.f32 %v3037, %v3007
      %v3039 = vadd.f32 %v3038, %v3008
      %v3040 = vadd.f32 %v3039, %v3009
      %v3041 = vadd.f32 %v3040, %v3010
      %v3042 = vadd.f32 %v3041, %v3011
      %v3043 = vrot.slane %v3042, 4
      %v3044 = vadd.f32 %v3042, %v3043
      %v3045 = vrot.slane %v3044, 2
      %v3046 = vadd.f32 %v3044, %v3045
      %v3047 = vrot.slane %v3046, 1
      %v3048 = vadd.f32 %v3046, %v3047
      %3049 = vst [vmem:[%s218] sm:$0xff] %v3048
      %p3050 = scmp.lt.s32.totalorder %s16, 1
      %s3051 = scalar_select %p3050, %s16, 1
      %s3052 = smul.addr %s3051, 32
      %s3053 = smul.addr %s3052, 8
      %s3054 = scalar_lea.vmem %s2, %s3053
      %p3055 = scmp.lt.s32.totalorder %s16, 1
      %s3056 = scalar_select %p3055, %s16, 1
      %s3057 = smul.addr %s3056, 8
      %s3058 = scalar_lea.vmem %s3, %s3057
      %p3059 = scmp.lt.s32.totalorder %s16, 1
      %s3060 = scalar_select %p3059, %s16, 1
      %s3061 = smul.addr %s3060, 8
      %s3062 = scalar_lea.vmem %s4, %s3061
      // Predicated region
      $region29: #{bottleneck_forward.7} parent=27 // pred_check
        %p3063 = pneg %p81
      $region30: #{bottleneck_forward.7} parent=27 // pred_check_branch
        %3065 = sbr.rel (%p3063) target = $region32
      $region31: #{bottleneck_forward.7} parent=27 // pred_region
        _
      $region32: #{bottleneck_forward.7} parent=27 // pred_fallthru
        _
      // Predicated region
      $region33: #{bottleneck_forward.7} parent=27 // pred_check
        %p3066 = pneg %p107
      $region34: #{bottleneck_forward.7} parent=27 // pred_check_branch
        %3068 = sbr.rel (%p3066) target = $region36
      $region35: #{bottleneck_forward.7} parent=27 // pred_region
        _
      $region36: #{bottleneck_forward.7} parent=27 // pred_fallthru
        _
      // Predicated region
      $region37: #{bottleneck_forward.7} parent=27 // pred_check
        %p3069 = pneg %p133
      $region38: #{bottleneck_forward.7} parent=27 // pred_check_branch
        %3071 = sbr.rel (%p3069) target = $region40
      $region39: #{bottleneck_forward.7} parent=27 // pred_region
        _
      $region40: #{bottleneck_forward.7} parent=27 // pred_fallthru
        _
    $region28: #{bottleneck_forward.7} parent=5 // pred_fallthru
      _
    %p3072 = scmp.le.s32.totalorder 2, %s11
    // Predicated region
    $region41: #{bottleneck_forward.7} parent=5 // pred_check
      %p3073 = pneg %p3072
    $region42: #{bottleneck_forward.7} parent=5 // pred_check_branch
      %3075 = sbr.rel (%p3073) target = $region44
    $region43: #{bottleneck_forward.7} parent=5 // pred_region
      %s3076 = ssub.s32 %s11, 2
      // Predicated region
      $region45: #{bottleneck_forward.7} parent=43 // pred_check
        %p3077 = pneg %p87
      $region46: #{bottleneck_forward.7} parent=43 // pred_check_branch
        %3079 = sbr.rel (%p3077) target = $region48
      $region47: #{bottleneck_forward.7} parent=43 // pred_region
        %p3080 = scmp.lt.s32.totalorder %s17, 1
        %s3081 = scalar_select %p3080, %s17, 1
        %s3082 = smul.addr %s3081, 32
        %s3083 = smul.addr %s3082, 8
        %s3084 = scalar_lea.vmem %s2, %s3083
      $region48: #{bottleneck_forward.7} parent=43 // pred_fallthru
        _
      // Predicated region
      $region49: #{bottleneck_forward.7} parent=43 // pred_check
        %p3085 = pneg %p113
      $region50: #{bottleneck_forward.7} parent=43 // pred_check_branch
        %3087 = sbr.rel (%p3085) target = $region52
      $region51: #{bottleneck_forward.7} parent=43 // pred_region
        %p3088 = scmp.lt.s32.totalorder %s17, 1
        %s3089 = scalar_select %p3088, %s17, 1
        %s3090 = smul.addr %s3089, 8
        %s3091 = scalar_lea.vmem %s3, %s3090
      $region52: #{bottleneck_forward.7} parent=43 // pred_fallthru
        _
      // Predicated region
      $region53: #{bottleneck_forward.7} parent=43 // pred_check
        %p3092 = pneg %p139
      $region54: #{bottleneck_forward.7} parent=43 // pred_check_branch
        %3094 = sbr.rel (%p3092) target = $region56
      $region55: #{bottleneck_forward.7} parent=43 // pred_region
        %p3095 = scmp.lt.s32.totalorder %s17, 1
        %s3096 = scalar_select %p3095, %s17, 1
        %s3097 = smul.addr %s3096, 8
        %s3098 = scalar_lea.vmem %s4, %s3097
      $region56: #{bottleneck_forward.7} parent=43 // pred_fallthru
        _
    $region44: #{bottleneck_forward.7} parent=5 // pred_fallthru
      _
  $region6: #{bottleneck_forward.7} parent=0 // loop_footer
    %s15 = sadd.s32 1, %s11
  $region7: #{bottleneck_forward.7} parent=0 // loop_footer_branch
    %10 = sbr.rel target = $region3
  $region8: #{bottleneck_forward.7} parent=0 // loop_exit
    _

</llo_original>
